<compile_context>
chip_gen: v6e
topology: v6e:2x2x1
jax: 0.10.0
libtpu: 0.0.40
codegen_flags: <defaults>
</compile_context>

<pallas_src>
import functools
import math

import jax
import jax.numpy as jnp
from jax import lax
from jax.experimental import pallas as pl
from jax.experimental.pallas import tpu as pltpu


def _softmax(logits):
    m = jnp.max(logits, axis=-1, keepdims=True)
    e = jnp.exp(logits - m)
    return e / jnp.sum(e, axis=-1, keepdims=True)


def ptrnet_kernel(x_ref, gum_ref, embw_ref,
                  wih_ref, bih_ref, e_whh_ref, d_whh_ref,
                  wr_ref, br_ref,
                  g_wq_ref, g_bq_ref, g_v_ref,
                  p_wq_ref, p_bq_ref, p_v_ref,
                  dec0_ref,
                  probs_ref, idx_ref,
                  enc_s,
                  *, B, S, E, H, n_glimpses, use_tanh, C):
    f32 = jnp.float32
    neg_inf = f32(-jnp.inf)
    H4 = 4 * H

    def mm_bf16(a, b):
        # Bulk pre-compute matmuls: bf16 operands, f32 accumulate (MXU native).
        return jnp.dot(a.astype(jnp.bfloat16), b.astype(jnp.bfloat16),
                       preferred_element_type=f32)

    # ---- Embedding as a 2-term VPU outer product (K=2 MXU matmul avoided). ----
    x = x_ref[...]                                                   # (B*S, 2)
    embw = embw_ref[...]                                             # (2, E)
    emb = x[:, 0:1] * embw[0:1, :] + x[:, 1:2] * embw[1:2, :]        # (B*S, E)

    # ---- Hoist parameter loads / pre-broadcast biases out of the loops. ----
    e_whh = e_whh_ref[...]
    d_whh = d_whh_ref[...]
    g_wq = g_wq_ref[...]
    p_wq = p_wq_ref[...]
    g_bq_b = jnp.broadcast_to(g_bq_ref[...], (B, H))
    p_bq_b = jnp.broadcast_to(p_bq_ref[...], (B, H))
    g_v_b = jnp.broadcast_to(g_v_ref[...].reshape(1, 1, H), (B, S, H))
    p_v_b = jnp.broadcast_to(p_v_ref[...].reshape(1, 1, H), (B, S, H))

    # ---- Fused encoder+decoder input projections: ONE (B*S,E)@(E,8H) matmul. ----
    gates_all = mm_bf16(emb, wih_ref[...]) + bih_ref[...]            # (B*S, 8H)
    eg_bsh = gates_all[:, 0:H4].reshape(B, S, H4)                    # encoder x-gates
    dg_bsh = gates_all[:, H4:2 * H4].reshape(B, S, H4)               # decoder x-gates
    dg0 = jnp.broadcast_to(
        (jnp.dot(dec0_ref[...], wih_ref[...], preferred_element_type=f32)
         + bih_ref[...])[:, H4:2 * H4], (B, H4))                     # first decoder input

    def lstm_cell(xg, h, c, whh):
        # x-contribution (incl. b_ih + b_hh) precomputed; only recurrent matmul here.
        gates = xg + jnp.dot(h, whh, preferred_element_type=f32)     # (B,4H)
        act = jax.nn.sigmoid(gates)        # one EUP pass over the full 4H lanes
        i = act[:, 0:H]
        f = act[:, H:2 * H]
        o = act[:, 3 * H:4 * H]
        g = jnp.tanh(gates[:, 2 * H:3 * H])
        c_new = f * c + i * g
        return o * jnp.tanh(c_new), c_new

    # ---- Encoder LSTM, fully unrolled (static indices everywhere). ----
    h = jnp.zeros((B, H), f32)
    c = jnp.zeros((B, H), f32)
    for t in range(S):
        h, c = lstm_cell(eg_bsh[:, t, :], h, c, e_whh)
        enc_s[:, t, :] = h

    # ---- Fused glimpse+pointer W_ref projections: ONE (B*S,H)@(H,2H) matmul. ----
    refp_all = mm_bf16(enc_s[...].reshape(B * S, H), wr_ref[...]) + br_ref[...]
    refp_g = refp_all[:, 0:H].reshape(B, S, H)
    refp_p = refp_all[:, H:2 * H].reshape(B, S, H)

    def attn_logits(query, wq, bq_b, refp, v_b, do_tanh):
        qp = jnp.dot(query, wq, preferred_element_type=f32) + bq_b   # (B,H)
        u = jnp.tanh(qp[:, None, :] + refp)                          # (B,S,H)
        logits = jnp.sum(u * v_b, axis=-1)                           # (B,S)
        if do_tanh:
            logits = C * jnp.tanh(logits)
        return logits

    iota_s = lax.broadcasted_iota(jnp.int32, (B, S), 1)

    # ---- Decoder / pointer loop, fully unrolled; per-step results written
    #      straight to the time-major outputs (no staging scratch, no bulk
    #      transpose).  gum_ref is already time-major, read per step. ----
    mask = jnp.zeros((B, S), f32)
    xg_dec = dg0
    for step in range(S):
        h, c = lstm_cell(xg_dec, h, c, d_whh)
        query = h
        for _ in range(n_glimpses):
            lg = attn_logits(query, g_wq, g_bq_b, refp_g, g_v_b, False)
            lg = jnp.where(mask > 0.5, neg_inf, lg)
            p = _softmax(lg)
            query = jnp.sum(refp_g * p[:, :, None], axis=1)          # (B,H)
        lp = attn_logits(query, p_wq, p_bq_b, refp_p, p_v_b, use_tanh)
        lp = jnp.where(mask > 0.5, neg_inf, lp)
        prob = _softmax(lp)                                          # (B,S)

        # Gumbel-max categorical sampling (== torch.multinomial's distribution).
        scores = lp + gum_ref[step]                                  # (B,S)
        best = jnp.max(scores, axis=-1, keepdims=True)
        idx = jnp.min(jnp.where(scores >= best, iota_s, S),
                      axis=-1, keepdims=True).astype(jnp.int32)      # (B,1)

        onehot = (iota_s == idx).astype(f32)
        mask = jnp.maximum(mask, onehot)
        # Next decoder input already projected through W_ih_dec (+bias): gather
        # realized as a tiny one-hot contraction on the pre-projected gates.
        xg_dec = jnp.sum(onehot[:, :, None] * dg_bsh, axis=1)        # (B,4H)

        probs_ref[step] = prob
        idx_ref[step] = idx


def make_params(key, E, H):
    se = 1.0 / math.sqrt(E)
    sh = 1.0 / math.sqrt(H)

    def u(k, shape, s):
        return jax.random.uniform(k, shape, jnp.float32, -s, s)

    ks = jax.random.split(key, 20)
    return dict(
        emb_w=u(ks[0], (2, E), se),
        e_wih_t=u(ks[1], (E, 4 * H), sh),
        e_whh_t=u(ks[2], (H, 4 * H), sh),
        e_b=u(ks[3], (1, 4 * H), sh) + u(ks[4], (1, 4 * H), sh),   # b_ih + b_hh
        d_wih_t=u(ks[5], (E, 4 * H), sh),
        d_whh_t=u(ks[6], (H, 4 * H), sh),
        d_b=u(ks[7], (1, 4 * H), sh) + u(ks[8], (1, 4 * H), sh),
        g_wq_t=u(ks[9], (H, H), sh), g_bq=u(ks[10], (1, H), sh),
        g_wr_t=u(ks[11], (H, H), sh), g_br=u(ks[12], (1, H), sh),
        g_v=u(ks[13], (1, H), sh),
        p_wq_t=u(ks[14], (H, H), sh), p_bq=u(ks[15], (1, H), sh),
        p_wr_t=u(ks[16], (H, H), sh), p_br=u(ks[17], (1, H), sh),
        p_v=u(ks[18], (1, H), sh),
        dec0=u(ks[19], (1, E), se),
    )


def ptrnet_forward(inputs, params, sample_key, *, n_glimpses=1, use_tanh=True,
                   C=10.0, num_batch_blocks=1):
    B, two, S = inputs.shape
    assert two == 2
    E = params["emb_w"].shape[1]
    H = params["e_whh_t"].shape[0]

    # num_batch_blocks=1 by default: on single-TensorCore chips (v5e/v6e) the grid
    # is a serial loop and splitting only shrinks the per-step MXU M dimension.
    # On v7x pass num_batch_blocks=2 for megacore (requires Bblk % 8 == 0, since
    # the batch is the second-to-last axis of the time-major I/O blocks).
    nb = num_batch_blocks
    assert B % nb == 0
    Bblk = B // nb
    if nb > 1:
        assert Bblk % 8 == 0, "batch blocks must be 8-sublane aligned when nb > 1"

    # glue: (B, 2, S) -> batch-major (B*S, 2) rows for the embedding.
    x2 = jnp.transpose(inputs, (0, 2, 1)).reshape(B * S, 2).astype(jnp.float32)
    # Pre-draw all Gumbel noise once, already TIME-major (replaces torch.multinomial).
    gumbel = jax.random.gumbel(sample_key, (S, B, S), jnp.float32)

    # Fuse encoder/decoder LSTM input projections and glimpse/pointer W_ref into
    # single wide weights (one-time concat here, single wide matmuls in-kernel).
    wih_fused = jnp.concatenate([params["e_wih_t"], params["d_wih_t"]], axis=1)  # (E, 8H)
    bih_fused = jnp.concatenate([params["e_b"], params["d_b"]], axis=1)          # (1, 8H)
    wr_fused = jnp.concatenate([params["g_wr_t"], params["p_wr_t"]], axis=1)     # (H, 2H)
    br_fused = jnp.concatenate([params["g_br"], params["p_br"]], axis=1)         # (1, 2H)

    kernel = functools.partial(ptrnet_kernel, B=Bblk, S=S, E=E, H=H,
                               n_glimpses=n_glimpses, use_tanh=use_tanh, C=C)

    def full_spec(arr):
        nd = arr.ndim
        return pl.BlockSpec(arr.shape, lambda i, _nd=nd: (0,) * _nd)

    weights = (params["emb_w"], wih_fused, bih_fused,
               params["e_whh_t"], params["d_whh_t"],
               wr_fused, br_fused,
               params["g_wq_t"], params["g_bq"], params["g_v"],
               params["p_wq_t"], params["p_bq"], params["p_v"],
               params["dec0"])

    in_specs = ([pl.BlockSpec((Bblk * S, 2), lambda i: (i, 0)),
                 pl.BlockSpec((S, Bblk, S), lambda i: (0, i, 0))]
                + [full_spec(w) for w in weights])
    out_specs = (pl.BlockSpec((S, Bblk, S), lambda i: (0, i, 0)),
                 pl.BlockSpec((S, Bblk, 1), lambda i: (0, i, 0)))

    # NOTE: probs is S*B*S*4 bytes per block; at production sizes tile the batch
    # via the grid (smaller Bblk) rather than keeping it all resident — budget
    # for v7x's 64 MiB physical / 32 MiB scoped VMEM.
    probs_sbs, idx_sb1 = pl.pallas_call(
        kernel,
        grid=(nb,),
        out_shape=(jax.ShapeDtypeStruct((S, B, S), jnp.float32),
                   jax.ShapeDtypeStruct((S, B, 1), jnp.int32)),
        in_specs=in_specs,
        out_specs=out_specs,
        scratch_shapes=[pltpu.VMEM((Bblk, S, H), jnp.float32)],  # encoder hidden states
        compiler_params=pltpu.CompilerParams(dimension_semantics=("parallel",)),
    )(x2, gumbel, *weights)

    # PyTorch returns lists of length seq_len: probs[i] is (B,S), index[i] is (B,).
    # Outputs are already time-major — no post-transposes.
    return probs_sbs, idx_sb1[:, :, 0]


if __name__ == "__main__":
    B, S, E, H = 2, 8, 16, 32            # batch, seq_len, embedding_size, hidden_size
    key = jax.random.PRNGKey(0)
    k_in, k_par, k_samp = jax.random.split(key, 3)
    # ptrNet consumes (B, 2, seq_len) 2-D point sets (e.g. TSP coordinates).
    inputs = jax.random.uniform(k_in, (B, 2, S), jnp.float32)
    params = make_params(k_par, E, H)

    probs, prev_index = ptrnet_forward(inputs, params, k_samp,
                                       n_glimpses=1, use_tanh=True)
    jax.block_until_ready((probs, prev_index))

    assert probs.shape == (S, B, S) and prev_index.shape == (S, B)
    assert bool(jnp.all(jnp.isfinite(probs)))
    # each step's probs are a distribution over the sequence
    assert bool(jnp.allclose(jnp.sum(probs, axis=-1), 1.0, atol=1e-4))
    # sampled tour visits each city exactly once per batch element
    assert bool(jnp.all(jnp.sort(prev_index, axis=0) ==
                        jnp.arange(S, dtype=prev_index.dtype)[:, None]))
    print("KERNEL_OK")
</pallas_src>

<mosaic_0001>
module attributes {stable_mosaic.version = 11 : i64} {
  func.func @ptrnet_kernel(%arg0: i32, %arg1: memref<16x2xf32, #tpu.memory_space<vmem>>, %arg2: memref<8x2x8xf32, #tpu.memory_space<vmem>>, %arg3: memref<2x16xf32, #tpu.memory_space<vmem>>, %arg4: memref<16x256xf32, #tpu.memory_space<vmem>>, %arg5: memref<1x256xf32, #tpu.memory_space<vmem>>, %arg6: memref<32x128xf32, #tpu.memory_space<vmem>>, %arg7: memref<32x128xf32, #tpu.memory_space<vmem>>, %arg8: memref<32x64xf32, #tpu.memory_space<vmem>>, %arg9: memref<1x64xf32, #tpu.memory_space<vmem>>, %arg10: memref<32x32xf32, #tpu.memory_space<vmem>>, %arg11: memref<1x32xf32, #tpu.memory_space<vmem>>, %arg12: memref<1x32xf32, #tpu.memory_space<vmem>>, %arg13: memref<32x32xf32, #tpu.memory_space<vmem>>, %arg14: memref<1x32xf32, #tpu.memory_space<vmem>>, %arg15: memref<1x32xf32, #tpu.memory_space<vmem>>, %arg16: memref<1x16xf32, #tpu.memory_space<vmem>>, %arg17: memref<8x2x8xf32, #tpu.memory_space<vmem>>, %arg18: memref<8x2x1xi32, #tpu.memory_space<vmem>>, %arg19: memref<2x8x32xf32, #tpu.memory_space<vmem>>) attributes {dimension_semantics = [#tpu.dimension_semantics<parallel>], iteration_bounds = array<i64: 1>, scalar_prefetch = 0 : i64, scratch_operands = 1 : i64, tpu.core_type = #tpu.core_type<tc>, window_params = [{transform_indices = @transform_0, window_bounds = array<i64: 16, 2>}, {transform_indices = @transform_1, window_bounds = array<i64: 8, 2, 8>}, {pipeline_mode = #tpu.pipeline_mode<synchronous>, transform_indices = @transform_2, window_bounds = array<i64: 2, 16>}, {pipeline_mode = #tpu.pipeline_mode<synchronous>, transform_indices = @transform_3, window_bounds = array<i64: 16, 256>}, {pipeline_mode = #tpu.pipeline_mode<synchronous>, transform_indices = @transform_4, window_bounds = array<i64: 1, 256>}, {pipeline_mode = #tpu.pipeline_mode<synchronous>, transform_indices = @transform_5, window_bounds = array<i64: 32, 128>}, {pipeline_mode = #tpu.pipeline_mode<synchronous>, transform_indices = @transform_6, window_bounds = array<i64: 32, 128>}, {pipeline_mode = #tpu.pipeline_mode<synchronous>, transform_indices = @transform_7, window_bounds = array<i64: 32, 64>}, {pipeline_mode = #tpu.pipeline_mode<synchronous>, transform_indices = @transform_8, window_bounds = array<i64: 1, 64>}, {pipeline_mode = #tpu.pipeline_mode<synchronous>, transform_indices = @transform_9, window_bounds = array<i64: 32, 32>}, {pipeline_mode = #tpu.pipeline_mode<synchronous>, transform_indices = @transform_10, window_bounds = array<i64: 1, 32>}, {pipeline_mode = #tpu.pipeline_mode<synchronous>, transform_indices = @transform_11, window_bounds = array<i64: 1, 32>}, {pipeline_mode = #tpu.pipeline_mode<synchronous>, transform_indices = @transform_12, window_bounds = array<i64: 32, 32>}, {pipeline_mode = #tpu.pipeline_mode<synchronous>, transform_indices = @transform_13, window_bounds = array<i64: 1, 32>}, {pipeline_mode = #tpu.pipeline_mode<synchronous>, transform_indices = @transform_14, window_bounds = array<i64: 1, 32>}, {pipeline_mode = #tpu.pipeline_mode<synchronous>, transform_indices = @transform_15, window_bounds = array<i64: 1, 16>}, {transform_indices = @transform_16, window_bounds = array<i64: 8, 2, 8>}, {transform_indices = @transform_17, window_bounds = array<i64: 8, 2, 1>}]} {
    %c0 = arith.constant 0 : index
    %c0_0 = arith.constant 0 : index
    %0 = vector.load %arg1[%c0, %c0_0] : memref<16x2xf32, #tpu.memory_space<vmem>>, vector<16x2xf32>
    %c0_1 = arith.constant 0 : index
    %c0_2 = arith.constant 0 : index
    %1 = vector.load %arg3[%c0_1, %c0_2] : memref<2x16xf32, #tpu.memory_space<vmem>>, vector<2x16xf32>
    %2 = vector.extract_strided_slice %0 {offsets = [0, 0], sizes = [16, 1], strides = [1, 1]} : vector<16x2xf32> to vector<16x1xf32>
    %3 = vector.extract_strided_slice %1 {offsets = [0, 0], sizes = [1, 16], strides = [1, 1]} : vector<2x16xf32> to vector<1x16xf32>
    %4 = vector.broadcast %2 : vector<16x1xf32> to vector<16x16xf32>
    %5 = vector.broadcast %3 : vector<1x16xf32> to vector<16x16xf32>
    %6 = arith.mulf %4, %5 : vector<16x16xf32>
    %7 = vector.extract_strided_slice %0 {offsets = [0, 1], sizes = [16, 1], strides = [1, 1]} : vector<16x2xf32> to vector<16x1xf32>
    %8 = vector.extract_strided_slice %1 {offsets = [1, 0], sizes = [1, 16], strides = [1, 1]} : vector<2x16xf32> to vector<1x16xf32>
    %9 = vector.broadcast %7 : vector<16x1xf32> to vector<16x16xf32>
    %10 = vector.broadcast %8 : vector<1x16xf32> to vector<16x16xf32>
    %11 = arith.mulf %9, %10 : vector<16x16xf32>
    %12 = arith.addf %6, %11 : vector<16x16xf32>
    %c0_3 = arith.constant 0 : index
    %c0_4 = arith.constant 0 : index
    %13 = vector.load %arg6[%c0_3, %c0_4] : memref<32x128xf32, #tpu.memory_space<vmem>>, vector<32x128xf32>
    %c0_5 = arith.constant 0 : index
    %c0_6 = arith.constant 0 : index
    %14 = vector.load %arg7[%c0_5, %c0_6] : memref<32x128xf32, #tpu.memory_space<vmem>>, vector<32x128xf32>
    %c0_7 = arith.constant 0 : index
    %c0_8 = arith.constant 0 : index
    %15 = vector.load %arg10[%c0_7, %c0_8] : memref<32x32xf32, #tpu.memory_space<vmem>>, vector<32x32xf32>
    %c0_9 = arith.constant 0 : index
    %c0_10 = arith.constant 0 : index
    %16 = vector.load %arg13[%c0_9, %c0_10] : memref<32x32xf32, #tpu.memory_space<vmem>>, vector<32x32xf32>
    %c0_11 = arith.constant 0 : index
    %c0_12 = arith.constant 0 : index
    %17 = vector.load %arg11[%c0_11, %c0_12] : memref<1x32xf32, #tpu.memory_space<vmem>>, vector<1x32xf32>
    %18 = vector.shape_cast %17 : vector<1x32xf32> to vector<1x32xf32>
    %19 = vector.broadcast %18 : vector<1x32xf32> to vector<2x32xf32>
    %c0_13 = arith.constant 0 : index
    %c0_14 = arith.constant 0 : index
    %20 = vector.load %arg14[%c0_13, %c0_14] : memref<1x32xf32, #tpu.memory_space<vmem>>, vector<1x32xf32>
    %21 = vector.shape_cast %20 : vector<1x32xf32> to vector<1x32xf32>
    %22 = vector.broadcast %21 : vector<1x32xf32> to vector<2x32xf32>
    %c0_15 = arith.constant 0 : index
    %c0_16 = arith.constant 0 : index
    %23 = vector.load %arg12[%c0_15, %c0_16] : memref<1x32xf32, #tpu.memory_space<vmem>>, vector<1x32xf32>
    %24 = vector.shape_cast %23 : vector<1x32xf32> to vector<1x1x32xf32>
    %25 = vector.shape_cast %24 : vector<1x1x32xf32> to vector<1x1x32xf32>
    %26 = vector.broadcast %25 : vector<1x1x32xf32> to vector<2x8x32xf32>
    %c0_17 = arith.constant 0 : index
    %c0_18 = arith.constant 0 : index
    %27 = vector.load %arg15[%c0_17, %c0_18] : memref<1x32xf32, #tpu.memory_space<vmem>>, vector<1x32xf32>
    %28 = vector.shape_cast %27 : vector<1x32xf32> to vector<1x1x32xf32>
    %29 = vector.shape_cast %28 : vector<1x1x32xf32> to vector<1x1x32xf32>
    %30 = vector.broadcast %29 : vector<1x1x32xf32> to vector<2x8x32xf32>
    %c0_19 = arith.constant 0 : index
    %c0_20 = arith.constant 0 : index
    %31 = vector.load %arg4[%c0_19, %c0_20] : memref<16x256xf32, #tpu.memory_space<vmem>>, vector<16x256xf32>
    %32 = arith.truncf %12 : vector<16x16xf32> to vector<16x16xbf16>
    %33 = arith.truncf %31 : vector<16x256xf32> to vector<16x256xbf16>
    %cst = arith.constant dense<0.000000e+00> : vector<16x256xf32>
    %34 = tpu.matmul %32, %33, %cst {dimension_numbers = #tpu.dot_dimension_numbers<[1], [0], [0], [1], [0, 0, 1, 1], [], []>} : vector<16x16xbf16>, vector<16x256xbf16>, vector<16x256xf32> -> vector<16x256xf32>
    %c0_21 = arith.constant 0 : index
    %c0_22 = arith.constant 0 : index
    %35 = vector.load %arg5[%c0_21, %c0_22] : memref<1x256xf32, #tpu.memory_space<vmem>>, vector<1x256xf32>
    %36 = vector.broadcast %35 : vector<1x256xf32> to vector<16x256xf32>
    %37 = arith.addf %34, %36 : vector<16x256xf32>
    %38 = vector.extract_strided_slice %37 {offsets = [0, 0], sizes = [16, 128], strides = [1, 1]} : vector<16x256xf32> to vector<16x128xf32>
    %39 = vector.shape_cast %38 : vector<16x128xf32> to vector<2x8x128xf32>
    %40 = vector.extract_strided_slice %37 {offsets = [0, 128], sizes = [16, 128], strides = [1, 1]} : vector<16x256xf32> to vector<16x128xf32>
    %41 = vector.shape_cast %40 : vector<16x128xf32> to vector<2x8x128xf32>
    %c0_23 = arith.constant 0 : index
    %c0_24 = arith.constant 0 : index
    %42 = vector.load %arg16[%c0_23, %c0_24] : memref<1x16xf32, #tpu.memory_space<vmem>>, vector<1x16xf32>
    %c0_25 = arith.constant 0 : index
    %c0_26 = arith.constant 0 : index
    %43 = vector.load %arg4[%c0_25, %c0_26] : memref<16x256xf32, #tpu.memory_space<vmem>>, vector<16x256xf32>
    %cst_27 = arith.constant dense<0.000000e+00> : vector<1x256xf32>
    %44 = tpu.matmul %42, %43, %cst_27 {dimension_numbers = #tpu.dot_dimension_numbers<[1], [0], [0], [1], [0, 0, 1, 1], [], []>} : vector<1x16xf32>, vector<16x256xf32>, vector<1x256xf32> -> vector<1x256xf32>
    %c0_28 = arith.constant 0 : index
    %c0_29 = arith.constant 0 : index
    %45 = vector.load %arg5[%c0_28, %c0_29] : memref<1x256xf32, #tpu.memory_space<vmem>>, vector<1x256xf32>
    %46 = arith.addf %44, %45 : vector<1x256xf32>
    %47 = vector.extract_strided_slice %46 {offsets = [0, 128], sizes = [1, 128], strides = [1, 1]} : vector<1x256xf32> to vector<1x128xf32>
    %48 = vector.shape_cast %47 : vector<1x128xf32> to vector<1x128xf32>
    %49 = vector.broadcast %48 : vector<1x128xf32> to vector<2x128xf32>
    %cst_30 = arith.constant 0.000000e+00 : f32
    %50 = vector.broadcast %cst_30 : f32 to vector<2x32xf32>
    %cst_31 = arith.constant 0.000000e+00 : f32
    %51 = vector.broadcast %cst_31 : f32 to vector<2x32xf32>
    %52 = vector.extract_strided_slice %39 {offsets = [0, 0, 0], sizes = [2, 1, 128], strides = [1, 1, 1]} : vector<2x8x128xf32> to vector<2x1x128xf32>
    %53 = vector.shape_cast %52 : vector<2x1x128xf32> to vector<2x128xf32>
    %cst_32 = arith.constant dense<0.000000e+00> : vector<2x128xf32>
    %54 = tpu.matmul %50, %13, %cst_32 {dimension_numbers = #tpu.dot_dimension_numbers<[1], [0], [0], [1], [0, 0, 1, 1], [], []>} : vector<2x32xf32>, vector<32x128xf32>, vector<2x128xf32> -> vector<2x128xf32>
    %55 = arith.addf %53, %54 : vector<2x128xf32>
    %56 = arith.negf %55 : vector<2x128xf32>
    %57 = math.exp %56 : vector<2x128xf32>
    %cst_33 = arith.constant 1.000000e+00 : f32
    %58 = vector.broadcast %cst_33 : f32 to vector<2x128xf32>
    %59 = arith.addf %58, %57 : vector<2x128xf32>
    %60 = arith.divf %58, %59 : vector<2x128xf32>
    %61 = vector.extract_strided_slice %60 {offsets = [0, 0], sizes = [2, 32], strides = [1, 1]} : vector<2x128xf32> to vector<2x32xf32>
    %62 = vector.extract_strided_slice %60 {offsets = [0, 32], sizes = [2, 32], strides = [1, 1]} : vector<2x128xf32> to vector<2x32xf32>
    %63 = vector.extract_strided_slice %60 {offsets = [0, 96], sizes = [2, 32], strides = [1, 1]} : vector<2x128xf32> to vector<2x32xf32>
    %64 = vector.extract_strided_slice %55 {offsets = [0, 64], sizes = [2, 32], strides = [1, 1]} : vector<2x128xf32> to vector<2x32xf32>
    %65 = math.tanh %64 : vector<2x32xf32>
    %66 = arith.mulf %62, %51 : vector<2x32xf32>
    %67 = arith.mulf %61, %65 : vector<2x32xf32>
    %68 = arith.addf %66, %67 : vector<2x32xf32>
    %69 = math.tanh %68 : vector<2x32xf32>
    %70 = arith.mulf %63, %69 : vector<2x32xf32>
    %c0_34 = arith.constant 0 : index
    %c0_35 = arith.constant 0 : index
    %c0_36 = arith.constant 0 : index
    %71 = vector.load %arg19[%c0_34, %c0_35, %c0_36] : memref<2x8x32xf32, #tpu.memory_space<vmem>>, vector<2x1x32xf32>
    %72 = vector.shape_cast %71 : vector<2x1x32xf32> to vector<2x32xf32>
    %73 = vector.shape_cast %70 : vector<2x32xf32> to vector<2x1x32xf32>
    tpu.vector_store %arg19[%c0_34, %c0_35, %c0_36], %73 {strides = array<i32>} : memref<2x8x32xf32, #tpu.memory_space<vmem>>, vector<2x1x32xf32>,
    %74 = vector.extract_strided_slice %39 {offsets = [0, 1, 0], sizes = [2, 1, 128], strides = [1, 1, 1]} : vector<2x8x128xf32> to vector<2x1x128xf32>
    %75 = vector.shape_cast %74 : vector<2x1x128xf32> to vector<2x128xf32>
    %cst_37 = arith.constant dense<0.000000e+00> : vector<2x128xf32>
    %76 = tpu.matmul %70, %13, %cst_37 {dimension_numbers = #tpu.dot_dimension_numbers<[1], [0], [0], [1], [0, 0, 1, 1], [], []>} : vector<2x32xf32>, vector<32x128xf32>, vector<2x128xf32> -> vector<2x128xf32>
    %77 = arith.addf %75, %76 : vector<2x128xf32>
    %78 = arith.negf %77 : vector<2x128xf32>
    %79 = math.exp %78 : vector<2x128xf32>
    %cst_38 = arith.constant 1.000000e+00 : f32
    %80 = vector.broadcast %cst_38 : f32 to vector<2x128xf32>
    %81 = arith.addf %80, %79 : vector<2x128xf32>
    %82 = arith.divf %80, %81 : vector<2x128xf32>
    %83 = vector.extract_strided_slice %82 {offsets = [0, 0], sizes = [2, 32], strides = [1, 1]} : vector<2x128xf32> to vector<2x32xf32>
    %84 = vector.extract_strided_slice %82 {offsets = [0, 32], sizes = [2, 32], strides = [1, 1]} : vector<2x128xf32> to vector<2x32xf32>
    %85 = vector.extract_strided_slice %82 {offsets = [0, 96], sizes = [2, 32], strides = [1, 1]} : vector<2x128xf32> to vector<2x32xf32>
    %86 = vector.extract_strided_slice %77 {offsets = [0, 64], sizes = [2, 32], strides = [1, 1]} : vector<2x128xf32> to vector<2x32xf32>
    %87 = math.tanh %86 : vector<2x32xf32>
    %88 = arith.mulf %84, %68 : vector<2x32xf32>
    %89 = arith.mulf %83, %87 : vector<2x32xf32>
    %90 = arith.addf %88, %89 : vector<2x32xf32>
    %91 = math.tanh %90 : vector<2x32xf32>
    %92 = arith.mulf %85, %91 : vector<2x32xf32>
    %c0_39 = arith.constant 0 : index
    %c1 = arith.constant 1 : index
    %c0_40 = arith.constant 0 : index
    %93 = vector.load %arg19[%c0_39, %c1, %c0_40] : memref<2x8x32xf32, #tpu.memory_space<vmem>>, vector<2x1x32xf32>
    %94 = vector.shape_cast %93 : vector<2x1x32xf32> to vector<2x32xf32>
    %95 = vector.shape_cast %92 : vector<2x32xf32> to vector<2x1x32xf32>
    tpu.vector_store %arg19[%c0_39, %c1, %c0_40], %95 {strides = array<i32>} : memref<2x8x32xf32, #tpu.memory_space<vmem>>, vector<2x1x32xf32>,
    %96 = vector.extract_strided_slice %39 {offsets = [0, 2, 0], sizes = [2, 1, 128], strides = [1, 1, 1]} : vector<2x8x128xf32> to vector<2x1x128xf32>
    %97 = vector.shape_cast %96 : vector<2x1x128xf32> to vector<2x128xf32>
    %cst_41 = arith.constant dense<0.000000e+00> : vector<2x128xf32>
    %98 = tpu.matmul %92, %13, %cst_41 {dimension_numbers = #tpu.dot_dimension_numbers<[1], [0], [0], [1], [0, 0, 1, 1], [], []>} : vector<2x32xf32>, vector<32x128xf32>, vector<2x128xf32> -> vector<2x128xf32>
    %99 = arith.addf %97, %98 : vector<2x128xf32>
    %100 = arith.negf %99 : vector<2x128xf32>
    %101 = math.exp %100 : vector<2x128xf32>
    %cst_42 = arith.constant 1.000000e+00 : f32
    %102 = vector.broadcast %cst_42 : f32 to vector<2x128xf32>
    %103 = arith.addf %102, %101 : vector<2x128xf32>
    %104 = arith.divf %102, %103 : vector<2x128xf32>
    %105 = vector.extract_strided_slice %104 {offsets = [0, 0], sizes = [2, 32], strides = [1, 1]} : vector<2x128xf32> to vector<2x32xf32>
    %106 = vector.extract_strided_slice %104 {offsets = [0, 32], sizes = [2, 32], strides = [1, 1]} : vector<2x128xf32> to vector<2x32xf32>
    %107 = vector.extract_strided_slice %104 {offsets = [0, 96], sizes = [2, 32], strides = [1, 1]} : vector<2x128xf32> to vector<2x32xf32>
    %108 = vector.extract_strided_slice %99 {offsets = [0, 64], sizes = [2, 32], strides = [1, 1]} : vector<2x128xf32> to vector<2x32xf32>
    %109 = math.tanh %108 : vector<2x32xf32>
    %110 = arith.mulf %106, %90 : vector<2x32xf32>
    %111 = arith.mulf %105, %109 : vector<2x32xf32>
    %112 = arith.addf %110, %111 : vector<2x32xf32>
    %113 = math.tanh %112 : vector<2x32xf32>
    %114 = arith.mulf %107, %113 : vector<2x32xf32>
    %c0_43 = arith.constant 0 : index
    %c2 = arith.constant 2 : index
    %c0_44 = arith.constant 0 : index
    %115 = vector.load %arg19[%c0_43, %c2, %c0_44] : memref<2x8x32xf32, #tpu.memory_space<vmem>>, vector<2x1x32xf32>
    %116 = vector.shape_cast %115 : vector<2x1x32xf32> to vector<2x32xf32>
    %117 = vector.shape_cast %114 : vector<2x32xf32> to vector<2x1x32xf32>
    tpu.vector_store %arg19[%c0_43, %c2, %c0_44], %117 {strides = array<i32>} : memref<2x8x32xf32, #tpu.memory_space<vmem>>, vector<2x1x32xf32>,
    %118 = vector.extract_strided_slice %39 {offsets = [0, 3, 0], sizes = [2, 1, 128], strides = [1, 1, 1]} : vector<2x8x128xf32> to vector<2x1x128xf32>
    %119 = vector.shape_cast %118 : vector<2x1x128xf32> to vector<2x128xf32>
    %cst_45 = arith.constant dense<0.000000e+00> : vector<2x128xf32>
    %120 = tpu.matmul %114, %13, %cst_45 {dimension_numbers = #tpu.dot_dimension_numbers<[1], [0], [0], [1], [0, 0, 1, 1], [], []>} : vector<2x32xf32>, vector<32x128xf32>, vector<2x128xf32> -> vector<2x128xf32>
    %121 = arith.addf %119, %120 : vector<2x128xf32>
    %122 = arith.negf %121 : vector<2x128xf32>
    %123 = math.exp %122 : vector<2x128xf32>
    %cst_46 = arith.constant 1.000000e+00 : f32
    %124 = vector.broadcast %cst_46 : f32 to vector<2x128xf32>
    %125 = arith.addf %124, %123 : vector<2x128xf32>
    %126 = arith.divf %124, %125 : vector<2x128xf32>
    %127 = vector.extract_strided_slice %126 {offsets = [0, 0], sizes = [2, 32], strides = [1, 1]} : vector<2x128xf32> to vector<2x32xf32>
    %128 = vector.extract_strided_slice %126 {offsets = [0, 32], sizes = [2, 32], strides = [1, 1]} : vector<2x128xf32> to vector<2x32xf32>
    %129 = vector.extract_strided_slice %126 {offsets = [0, 96], sizes = [2, 32], strides = [1, 1]} : vector<2x128xf32> to vector<2x32xf32>
    %130 = vector.extract_strided_slice %121 {offsets = [0, 64], sizes = [2, 32], strides = [1, 1]} : vector<2x128xf32> to vector<2x32xf32>
    %131 = math.tanh %130 : vector<2x32xf32>
    %132 = arith.mulf %128, %112 : vector<2x32xf32>
    %133 = arith.mulf %127, %131 : vector<2x32xf32>
    %134 = arith.addf %132, %133 : vector<2x32xf32>
    %135 = math.tanh %134 : vector<2x32xf32>
    %136 = arith.mulf %129, %135 : vector<2x32xf32>
    %c0_47 = arith.constant 0 : index
    %c3 = arith.constant 3 : index
    %c0_48 = arith.constant 0 : index
    %137 = vector.load %arg19[%c0_47, %c3, %c0_48] : memref<2x8x32xf32, #tpu.memory_space<vmem>>, vector<2x1x32xf32>
    %138 = vector.shape_cast %137 : vector<2x1x32xf32> to vector<2x32xf32>
    %139 = vector.shape_cast %136 : vector<2x32xf32> to vector<2x1x32xf32>
    tpu.vector_store %arg19[%c0_47, %c3, %c0_48], %139 {strides = array<i32>} : memref<2x8x32xf32, #tpu.memory_space<vmem>>, vector<2x1x32xf32>,
    %140 = vector.extract_strided_slice %39 {offsets = [0, 4, 0], sizes = [2, 1, 128], strides = [1, 1, 1]} : vector<2x8x128xf32> to vector<2x1x128xf32>
    %141 = vector.shape_cast %140 : vector<2x1x128xf32> to vector<2x128xf32>
    %cst_49 = arith.constant dense<0.000000e+00> : vector<2x128xf32>
    %142 = tpu.matmul %136, %13, %cst_49 {dimension_numbers = #tpu.dot_dimension_numbers<[1], [0], [0], [1], [0, 0, 1, 1], [], []>} : vector<2x32xf32>, vector<32x128xf32>, vector<2x128xf32> -> vector<2x128xf32>
    %143 = arith.addf %141, %142 : vector<2x128xf32>
    %144 = arith.negf %143 : vector<2x128xf32>
    %145 = math.exp %144 : vector<2x128xf32>
    %cst_50 = arith.constant 1.000000e+00 : f32
    %146 = vector.broadcast %cst_50 : f32 to vector<2x128xf32>
    %147 = arith.addf %146, %145 : vector<2x128xf32>
    %148 = arith.divf %146, %147 : vector<2x128xf32>
    %149 = vector.extract_strided_slice %148 {offsets = [0, 0], sizes = [2, 32], strides = [1, 1]} : vector<2x128xf32> to vector<2x32xf32>
    %150 = vector.extract_strided_slice %148 {offsets = [0, 32], sizes = [2, 32], strides = [1, 1]} : vector<2x128xf32> to vector<2x32xf32>
    %151 = vector.extract_strided_slice %148 {offsets = [0, 96], sizes = [2, 32], strides = [1, 1]} : vector<2x128xf32> to vector<2x32xf32>
    %152 = vector.extract_strided_slice %143 {offsets = [0, 64], sizes = [2, 32], strides = [1, 1]} : vector<2x128xf32> to vector<2x32xf32>
    %153 = math.tanh %152 : vector<2x32xf32>
    %154 = arith.mulf %150, %134 : vector<2x32xf32>
    %155 = arith.mulf %149, %153 : vector<2x32xf32>
    %156 = arith.addf %154, %155 : vector<2x32xf32>
    %157 = math.tanh %156 : vector<2x32xf32>
    %158 = arith.mulf %151, %157 : vector<2x32xf32>
    %c0_51 = arith.constant 0 : index
    %c4 = arith.constant 4 : index
    %c0_52 = arith.constant 0 : index
    %159 = vector.load %arg19[%c0_51, %c4, %c0_52] : memref<2x8x32xf32, #tpu.memory_space<vmem>>, vector<2x1x32xf32>
    %160 = vector.shape_cast %159 : vector<2x1x32xf32> to vector<2x32xf32>
    %161 = vector.shape_cast %158 : vector<2x32xf32> to vector<2x1x32xf32>
    tpu.vector_store %arg19[%c0_51, %c4, %c0_52], %161 {strides = array<i32>} : memref<2x8x32xf32, #tpu.memory_space<vmem>>, vector<2x1x32xf32>,
    %162 = vector.extract_strided_slice %39 {offsets = [0, 5, 0], sizes = [2, 1, 128], strides = [1, 1, 1]} : vector<2x8x128xf32> to vector<2x1x128xf32>
    %163 = vector.shape_cast %162 : vector<2x1x128xf32> to vector<2x128xf32>
    %cst_53 = arith.constant dense<0.000000e+00> : vector<2x128xf32>
    %164 = tpu.matmul %158, %13, %cst_53 {dimension_numbers = #tpu.dot_dimension_numbers<[1], [0], [0], [1], [0, 0, 1, 1], [], []>} : vector<2x32xf32>, vector<32x128xf32>, vector<2x128xf32> -> vector<2x128xf32>
    %165 = arith.addf %163, %164 : vector<2x128xf32>
    %166 = arith.negf %165 : vector<2x128xf32>
    %167 = math.exp %166 : vector<2x128xf32>
    %cst_54 = arith.constant 1.000000e+00 : f32
    %168 = vector.broadcast %cst_54 : f32 to vector<2x128xf32>
    %169 = arith.addf %168, %167 : vector<2x128xf32>
    %170 = arith.divf %168, %169 : vector<2x128xf32>
    %171 = vector.extract_strided_slice %170 {offsets = [0, 0], sizes = [2, 32], strides = [1, 1]} : vector<2x128xf32> to vector<2x32xf32>
    %172 = vector.extract_strided_slice %170 {offsets = [0, 32], sizes = [2, 32], strides = [1, 1]} : vector<2x128xf32> to vector<2x32xf32>
    %173 = vector.extract_strided_slice %170 {offsets = [0, 96], sizes = [2, 32], strides = [1, 1]} : vector<2x128xf32> to vector<2x32xf32>
    %174 = vector.extract_strided_slice %165 {offsets = [0, 64], sizes = [2, 32], strides = [1, 1]} : vector<2x128xf32> to vector<2x32xf32>
    %175 = math.tanh %174 : vector<2x32xf32>
    %176 = arith.mulf %172, %156 : vector<2x32xf32>
    %177 = arith.mulf %171, %175 : vector<2x32xf32>
    %178 = arith.addf %176, %177 : vector<2x32xf32>
    %179 = math.tanh %178 : vector<2x32xf32>
    %180 = arith.mulf %173, %179 : vector<2x32xf32>
    %c0_55 = arith.constant 0 : index
    %c5 = arith.constant 5 : index
    %c0_56 = arith.constant 0 : index
    %181 = vector.load %arg19[%c0_55, %c5, %c0_56] : memref<2x8x32xf32, #tpu.memory_space<vmem>>, vector<2x1x32xf32>
    %182 = vector.shape_cast %181 : vector<2x1x32xf32> to vector<2x32xf32>
    %183 = vector.shape_cast %180 : vector<2x32xf32> to vector<2x1x32xf32>
    tpu.vector_store %arg19[%c0_55, %c5, %c0_56], %183 {strides = array<i32>} : memref<2x8x32xf32, #tpu.memory_space<vmem>>, vector<2x1x32xf32>,
    %184 = vector.extract_strided_slice %39 {offsets = [0, 6, 0], sizes = [2, 1, 128], strides = [1, 1, 1]} : vector<2x8x128xf32> to vector<2x1x128xf32>
    %185 = vector.shape_cast %184 : vector<2x1x128xf32> to vector<2x128xf32>
    %cst_57 = arith.constant dense<0.000000e+00> : vector<2x128xf32>
    %186 = tpu.matmul %180, %13, %cst_57 {dimension_numbers = #tpu.dot_dimension_numbers<[1], [0], [0], [1], [0, 0, 1, 1], [], []>} : vector<2x32xf32>, vector<32x128xf32>, vector<2x128xf32> -> vector<2x128xf32>
    %187 = arith.addf %185, %186 : vector<2x128xf32>
    %188 = arith.negf %187 : vector<2x128xf32>
    %189 = math.exp %188 : vector<2x128xf32>
    %cst_58 = arith.constant 1.000000e+00 : f32
    %190 = vector.broadcast %cst_58 : f32 to vector<2x128xf32>
    %191 = arith.addf %190, %189 : vector<2x128xf32>
    %192 = arith.divf %190, %191 : vector<2x128xf32>
    %193 = vector.extract_strided_slice %192 {offsets = [0, 0], sizes = [2, 32], strides = [1, 1]} : vector<2x128xf32> to vector<2x32xf32>
    %194 = vector.extract_strided_slice %192 {offsets = [0, 32], sizes = [2, 32], strides = [1, 1]} : vector<2x128xf32> to vector<2x32xf32>
    %195 = vector.extract_strided_slice %192 {offsets = [0, 96], sizes = [2, 32], strides = [1, 1]} : vector<2x128xf32> to vector<2x32xf32>
    %196 = vector.extract_strided_slice %187 {offsets = [0, 64], sizes = [2, 32], strides = [1, 1]} : vector<2x128xf32> to vector<2x32xf32>
    %197 = math.tanh %196 : vector<2x32xf32>
    %198 = arith.mulf %194, %178 : vector<2x32xf32>
    %199 = arith.mulf %193, %197 : vector<2x32xf32>
    %200 = arith.addf %198, %199 : vector<2x32xf32>
    %201 = math.tanh %200 : vector<2x32xf32>
    %202 = arith.mulf %195, %201 : vector<2x32xf32>
    %c0_59 = arith.constant 0 : index
    %c6 = arith.constant 6 : index
    %c0_60 = arith.constant 0 : index
    %203 = vector.load %arg19[%c0_59, %c6, %c0_60] : memref<2x8x32xf32, #tpu.memory_space<vmem>>, vector<2x1x32xf32>
    %204 = vector.shape_cast %203 : vector<2x1x32xf32> to vector<2x32xf32>
    %205 = vector.shape_cast %202 : vector<2x32xf32> to vector<2x1x32xf32>
    tpu.vector_store %arg19[%c0_59, %c6, %c0_60], %205 {strides = array<i32>} : memref<2x8x32xf32, #tpu.memory_space<vmem>>, vector<2x1x32xf32>,
    %206 = vector.extract_strided_slice %39 {offsets = [0, 7, 0], sizes = [2, 1, 128], strides = [1, 1, 1]} : vector<2x8x128xf32> to vector<2x1x128xf32>
    %207 = vector.shape_cast %206 : vector<2x1x128xf32> to vector<2x128xf32>
    %cst_61 = arith.constant dense<0.000000e+00> : vector<2x128xf32>
    %208 = tpu.matmul %202, %13, %cst_61 {dimension_numbers = #tpu.dot_dimension_numbers<[1], [0], [0], [1], [0, 0, 1, 1], [], []>} : vector<2x32xf32>, vector<32x128xf32>, vector<2x128xf32> -> vector<2x128xf32>
    %209 = arith.addf %207, %208 : vector<2x128xf32>
    %210 = arith.negf %209 : vector<2x128xf32>
    %211 = math.exp %210 : vector<2x128xf32>
    %cst_62 = arith.constant 1.000000e+00 : f32
    %212 = vector.broadcast %cst_62 : f32 to vector<2x128xf32>
    %213 = arith.addf %212, %211 : vector<2x128xf32>
    %214 = arith.divf %212, %213 : vector<2x128xf32>
    %215 = vector.extract_strided_slice %214 {offsets = [0, 0], sizes = [2, 32], strides = [1, 1]} : vector<2x128xf32> to vector<2x32xf32>
    %216 = vector.extract_strided_slice %214 {offsets = [0, 32], sizes = [2, 32], strides = [1, 1]} : vector<2x128xf32> to vector<2x32xf32>
    %217 = vector.extract_strided_slice %214 {offsets = [0, 96], sizes = [2, 32], strides = [1, 1]} : vector<2x128xf32> to vector<2x32xf32>
    %218 = vector.extract_strided_slice %209 {offsets = [0, 64], sizes = [2, 32], strides = [1, 1]} : vector<2x128xf32> to vector<2x32xf32>
    %219 = math.tanh %218 : vector<2x32xf32>
    %220 = arith.mulf %216, %200 : vector<2x32xf32>
    %221 = arith.mulf %215, %219 : vector<2x32xf32>
    %222 = arith.addf %220, %221 : vector<2x32xf32>
    %223 = math.tanh %222 : vector<2x32xf32>
    %224 = arith.mulf %217, %223 : vector<2x32xf32>
    %c0_63 = arith.constant 0 : index
    %c7 = arith.constant 7 : index
    %c0_64 = arith.constant 0 : index
    %225 = vector.load %arg19[%c0_63, %c7, %c0_64] : memref<2x8x32xf32, #tpu.memory_space<vmem>>, vector<2x1x32xf32>
    %226 = vector.shape_cast %225 : vector<2x1x32xf32> to vector<2x32xf32>
    %227 = vector.shape_cast %224 : vector<2x32xf32> to vector<2x1x32xf32>
    tpu.vector_store %arg19[%c0_63, %c7, %c0_64], %227 {strides = array<i32>} : memref<2x8x32xf32, #tpu.memory_space<vmem>>, vector<2x1x32xf32>,
    %c0_65 = arith.constant 0 : index
    %c0_66 = arith.constant 0 : index
    %c0_67 = arith.constant 0 : index
    %228 = vector.load %arg19[%c0_65, %c0_66, %c0_67] : memref<2x8x32xf32, #tpu.memory_space<vmem>>, vector<2x8x32xf32>
    %229 = vector.shape_cast %228 : vector<2x8x32xf32> to vector<16x32xf32>
    %c0_68 = arith.constant 0 : index
    %c0_69 = arith.constant 0 : index
    %230 = vector.load %arg8[%c0_68, %c0_69] : memref<32x64xf32, #tpu.memory_space<vmem>>, vector<32x64xf32>
    %231 = arith.truncf %229 : vector<16x32xf32> to vector<16x32xbf16>
    %232 = arith.truncf %230 : vector<32x64xf32> to vector<32x64xbf16>
    %cst_70 = arith.constant dense<0.000000e+00> : vector<16x64xf32>
    %233 = tpu.matmul %231, %232, %cst_70 {dimension_numbers = #tpu.dot_dimension_numbers<[1], [0], [0], [1], [0, 0, 1, 1], [], []>} : vector<16x32xbf16>, vector<32x64xbf16>, vector<16x64xf32> -> vector<16x64xf32>
    %c0_71 = arith.constant 0 : index
    %c0_72 = arith.constant 0 : index
    %234 = vector.load %arg9[%c0_71, %c0_72] : memref<1x64xf32, #tpu.memory_space<vmem>>, vector<1x64xf32>
    %235 = vector.broadcast %234 : vector<1x64xf32> to vector<16x64xf32>
    %236 = arith.addf %233, %235 : vector<16x64xf32>
    %237 = vector.extract_strided_slice %236 {offsets = [0, 0], sizes = [16, 32], strides = [1, 1]} : vector<16x64xf32> to vector<16x32xf32>
    %238 = vector.shape_cast %237 : vector<16x32xf32> to vector<2x8x32xf32>
    %239 = vector.extract_strided_slice %236 {offsets = [0, 32], sizes = [16, 32], strides = [1, 1]} : vector<16x64xf32> to vector<16x32xf32>
    %240 = vector.shape_cast %239 : vector<16x32xf32> to vector<2x8x32xf32>
    %241 = tpu.iota {dimensions = array<i32: 1>} : vector<2x8xi32>
    %cst_73 = arith.constant 0.000000e+00 : f32
    %242 = vector.broadcast %cst_73 : f32 to vector<2x8xf32>
    %cst_74 = arith.constant dense<0.000000e+00> : vector<2x128xf32>
    %243 = tpu.matmul %224, %14, %cst_74 {dimension_numbers = #tpu.dot_dimension_numbers<[1], [0], [0], [1], [0, 0, 1, 1], [], []>} : vector<2x32xf32>, vector<32x128xf32>, vector<2x128xf32> -> vector<2x128xf32>
    %244 = arith.addf %49, %243 : vector<2x128xf32>
    %245 = arith.negf %244 : vector<2x128xf32>
    %246 = math.exp %245 : vector<2x128xf32>
    %cst_75 = arith.constant 1.000000e+00 : f32
    %247 = vector.broadcast %cst_75 : f32 to vector<2x128xf32>
    %248 = arith.addf %247, %246 : vector<2x128xf32>
    %249 = arith.divf %247, %248 : vector<2x128xf32>
    %250 = vector.extract_strided_slice %249 {offsets = [0, 0], sizes = [2, 32], strides = [1, 1]} : vector<2x128xf32> to vector<2x32xf32>
    %251 = vector.extract_strided_slice %249 {offsets = [0, 32], sizes = [2, 32], strides = [1, 1]} : vector<2x128xf32> to vector<2x32xf32>
    %252 = vector.extract_strided_slice %249 {offsets = [0, 96], sizes = [2, 32], strides = [1, 1]} : vector<2x128xf32> to vector<2x32xf32>
    %253 = vector.extract_strided_slice %244 {offsets = [0, 64], sizes = [2, 32], strides = [1, 1]} : vector<2x128xf32> to vector<2x32xf32>
    %254 = math.tanh %253 : vector<2x32xf32>
    %255 = arith.mulf %251, %222 : vector<2x32xf32>
    %256 = arith.mulf %250, %254 : vector<2x32xf32>
    %257 = arith.addf %255, %256 : vector<2x32xf32>
    %258 = math.tanh %257 : vector<2x32xf32>
    %259 = arith.mulf %252, %258 : vector<2x32xf32>
    %cst_76 = arith.constant dense<0.000000e+00> : vector<2x32xf32>
    %260 = tpu.matmul %259, %15, %cst_76 {dimension_numbers = #tpu.dot_dimension_numbers<[1], [0], [0], [1], [0, 0, 1, 1], [], []>} : vector<2x32xf32>, vector<32x32xf32>, vector<2x32xf32> -> vector<2x32xf32>
    %261 = arith.addf %260, %19 : vector<2x32xf32>
    %262 = vector.shape_cast %261 : vector<2x32xf32> to vector<2x1x32xf32>
    %263 = vector.broadcast %262 : vector<2x1x32xf32> to vector<2x8x32xf32>
    %264 = arith.addf %263, %238 : vector<2x8x32xf32>
    %265 = math.tanh %264 : vector<2x8x32xf32>
    %266 = arith.mulf %265, %26 : vector<2x8x32xf32>
    %cst_77 = arith.constant dense<0.000000e+00> : vector<2x8xf32>
    %267 = vector.multi_reduction <add>, %266, %cst_77 [2] : vector<2x8x32xf32> to vector<2x8xf32>
    %cst_78 = arith.constant 5.000000e-01 : f32
    %268 = vector.broadcast %cst_78 : f32 to vector<2x8xf32>
    %269 = arith.cmpf ogt, %242, %268 : vector<2x8xf32>
    %cst_79 = arith.constant 0xFF800000 : f32
    %270 = vector.broadcast %cst_79 : f32 to vector<2x8xf32>
    %271 = arith.select %269, %270, %267 : vector<2x8xi1>, vector<2x8xf32>
    %cst_80 = arith.constant dense<0xFF800000> : vector<2xf32>
    %272 = vector.multi_reduction <maximumf>, %271, %cst_80 [1] : vector<2x8xf32> to vector<2xf32>
    %273 = vector.shape_cast %272 : vector<2xf32> to vector<2x1xf32>
    %274 = vector.broadcast %273 : vector<2x1xf32> to vector<2x8xf32>
    %275 = arith.subf %271, %274 : vector<2x8xf32>
    %276 = math.exp %275 : vector<2x8xf32>
    %cst_81 = arith.constant dense<0.000000e+00> : vector<2xf32>
    %277 = vector.multi_reduction <add>, %276, %cst_81 [1] : vector<2x8xf32> to vector<2xf32>
    %278 = vector.shape_cast %277 : vector<2xf32> to vector<2x1xf32>
    %279 = vector.broadcast %278 : vector<2x1xf32> to vector<2x8xf32>
    %280 = arith.divf %276, %279 : vector<2x8xf32>
    %281 = vector.shape_cast %280 : vector<2x8xf32> to vector<2x8x1xf32>
    %282 = vector.broadcast %281 : vector<2x8x1xf32> to vector<2x8x32xf32>
    %283 = arith.mulf %238, %282 : vector<2x8x32xf32>
    %cst_82 = arith.constant dense<0.000000e+00> : vector<2x32xf32>
    %284 = vector.multi_reduction <add>, %283, %cst_82 [1] : vector<2x8x32xf32> to vector<2x32xf32>
    %cst_83 = arith.constant dense<0.000000e+00> : vector<2x32xf32>
    %285 = tpu.matmul %284, %16, %cst_83 {dimension_numbers = #tpu.dot_dimension_numbers<[1], [0], [0], [1], [0, 0, 1, 1], [], []>} : vector<2x32xf32>, vector<32x32xf32>, vector<2x32xf32> -> vector<2x32xf32>
    %286 = arith.addf %285, %22 : vector<2x32xf32>
    %287 = vector.shape_cast %286 : vector<2x32xf32> to vector<2x1x32xf32>
    %288 = vector.broadcast %287 : vector<2x1x32xf32> to vector<2x8x32xf32>
    %289 = arith.addf %288, %240 : vector<2x8x32xf32>
    %290 = math.tanh %289 : vector<2x8x32xf32>
    %291 = arith.mulf %290, %30 : vector<2x8x32xf32>
    %cst_84 = arith.constant dense<0.000000e+00> : vector<2x8xf32>
    %292 = vector.multi_reduction <add>, %291, %cst_84 [2] : vector<2x8x32xf32> to vector<2x8xf32>
    %293 = math.tanh %292 : vector<2x8xf32>
    %cst_85 = arith.constant 1.000000e+01 : f32
    %294 = vector.broadcast %cst_85 : f32 to vector<2x8xf32>
    %295 = arith.mulf %294, %293 : vector<2x8xf32>
    %cst_86 = arith.constant 5.000000e-01 : f32
    %296 = vector.broadcast %cst_86 : f32 to vector<2x8xf32>
    %297 = arith.cmpf ogt, %242, %296 : vector<2x8xf32>
    %cst_87 = arith.constant 0xFF800000 : f32
    %298 = vector.broadcast %cst_87 : f32 to vector<2x8xf32>
    %299 = arith.select %297, %298, %295 : vector<2x8xi1>, vector<2x8xf32>
    %cst_88 = arith.constant dense<0xFF800000> : vector<2xf32>
    %300 = vector.multi_reduction <maximumf>, %299, %cst_88 [1] : vector<2x8xf32> to vector<2xf32>
    %301 = vector.shape_cast %300 : vector<2xf32> to vector<2x1xf32>
    %302 = vector.broadcast %301 : vector<2x1xf32> to vector<2x8xf32>
    %303 = arith.subf %299, %302 : vector<2x8xf32>
    %304 = math.exp %303 : vector<2x8xf32>
    %cst_89 = arith.constant dense<0.000000e+00> : vector<2xf32>
    %305 = vector.multi_reduction <add>, %304, %cst_89 [1] : vector<2x8xf32> to vector<2xf32>
    %306 = vector.shape_cast %305 : vector<2xf32> to vector<2x1xf32>
    %307 = vector.broadcast %306 : vector<2x1xf32> to vector<2x8xf32>
    %308 = arith.divf %304, %307 : vector<2x8xf32>
    %c0_90 = arith.constant 0 : index
    %c0_91 = arith.constant 0 : index
    %c0_92 = arith.constant 0 : index
    %309 = vector.load %arg2[%c0_90, %c0_91, %c0_92] : memref<8x2x8xf32, #tpu.memory_space<vmem>>, vector<1x2x8xf32>
    %310 = vector.shape_cast %309 : vector<1x2x8xf32> to vector<2x8xf32>
    %311 = arith.addf %299, %310 : vector<2x8xf32>
    %cst_93 = arith.constant dense<0xFF800000> : vector<2xf32>
    %312 = vector.multi_reduction <maximumf>, %311, %cst_93 [1] : vector<2x8xf32> to vector<2xf32>
    %313 = vector.shape_cast %312 : vector<2xf32> to vector<2x1xf32>
    %314 = vector.broadcast %313 : vector<2x1xf32> to vector<2x8xf32>
    %315 = arith.cmpf oge, %311, %314 : vector<2x8xf32>
    %c8_i32 = arith.constant 8 : i32
    %316 = vector.broadcast %c8_i32 : i32 to vector<2x8xi32>
    %317 = arith.select %315, %241, %316 : vector<2x8xi1>, vector<2x8xi32>
    %cst_94 = arith.constant dense<2147483647> : vector<2xi32>
    %318 = vector.multi_reduction <minsi>, %317, %cst_94 [1] : vector<2x8xi32> to vector<2xi32>
    %319 = vector.shape_cast %318 : vector<2xi32> to vector<2x1xi32>
    %320 = vector.broadcast %319 : vector<2x1xi32> to vector<2x8xi32>
    %321 = arith.cmpi eq, %241, %320 : vector<2x8xi32>
    %322 = arith.extui %321 : vector<2x8xi1> to vector<2x8xi32>
    %323 = arith.sitofp %322 : vector<2x8xi32> to vector<2x8xf32>
    %324 = arith.maximumf %242, %323 : vector<2x8xf32>
    %325 = vector.shape_cast %323 : vector<2x8xf32> to vector<2x8x1xf32>
    %326 = vector.broadcast %325 : vector<2x8x1xf32> to vector<2x8x128xf32>
    %327 = arith.mulf %326, %41 : vector<2x8x128xf32>
    %cst_95 = arith.constant dense<0.000000e+00> : vector<2x128xf32>
    %328 = vector.multi_reduction <add>, %327, %cst_95 [1] : vector<2x8x128xf32> to vector<2x128xf32>
    %c0_96 = arith.constant 0 : index
    %c0_97 = arith.constant 0 : index
    %c0_98 = arith.constant 0 : index
    %329 = vector.load %arg17[%c0_96, %c0_97, %c0_98] : memref<8x2x8xf32, #tpu.memory_space<vmem>>, vector<1x2x8xf32>
    %330 = vector.shape_cast %329 : vector<1x2x8xf32> to vector<2x8xf32>
    %331 = vector.shape_cast %308 : vector<2x8xf32> to vector<1x2x8xf32>
    tpu.vector_store %arg17[%c0_96, %c0_97, %c0_98], %331 {strides = array<i32>} : memref<8x2x8xf32, #tpu.memory_space<vmem>>, vector<1x2x8xf32>,
    %c0_99 = arith.constant 0 : index
    %c0_100 = arith.constant 0 : index
    %c0_101 = arith.constant 0 : index
    %332 = vector.load %arg18[%c0_99, %c0_100, %c0_101] : memref<8x2x1xi32, #tpu.memory_space<vmem>>, vector<1x2x1xi32>
    %333 = vector.shape_cast %332 : vector<1x2x1xi32> to vector<2x1xi32>
    %334 = vector.shape_cast %319 : vector<2x1xi32> to vector<1x2x1xi32>
    tpu.vector_store %arg18[%c0_99, %c0_100, %c0_101], %334 {strides = array<i32>} : memref<8x2x1xi32, #tpu.memory_space<vmem>>, vector<1x2x1xi32>,
    %cst_102 = arith.constant dense<0.000000e+00> : vector<2x128xf32>
    %335 = tpu.matmul %259, %14, %cst_102 {dimension_numbers = #tpu.dot_dimension_numbers<[1], [0], [0], [1], [0, 0, 1, 1], [], []>} : vector<2x32xf32>, vector<32x128xf32>, vector<2x128xf32> -> vector<2x128xf32>
    %336 = arith.addf %328, %335 : vector<2x128xf32>
    %337 = arith.negf %336 : vector<2x128xf32>
    %338 = math.exp %337 : vector<2x128xf32>
    %cst_103 = arith.constant 1.000000e+00 : f32
    %339 = vector.broadcast %cst_103 : f32 to vector<2x128xf32>
    %340 = arith.addf %339, %338 : vector<2x128xf32>
    %341 = arith.divf %339, %340 : vector<2x128xf32>
    %342 = vector.extract_strided_slice %341 {offsets = [0, 0], sizes = [2, 32], strides = [1, 1]} : vector<2x128xf32> to vector<2x32xf32>
    %343 = vector.extract_strided_slice %341 {offsets = [0, 32], sizes = [2, 32], strides = [1, 1]} : vector<2x128xf32> to vector<2x32xf32>
    %344 = vector.extract_strided_slice %341 {offsets = [0, 96], sizes = [2, 32], strides = [1, 1]} : vector<2x128xf32> to vector<2x32xf32>
    %345 = vector.extract_strided_slice %336 {offsets = [0, 64], sizes = [2, 32], strides = [1, 1]} : vector<2x128xf32> to vector<2x32xf32>
    %346 = math.tanh %345 : vector<2x32xf32>
    %347 = arith.mulf %343, %257 : vector<2x32xf32>
    %348 = arith.mulf %342, %346 : vector<2x32xf32>
    %349 = arith.addf %347, %348 : vector<2x32xf32>
    %350 = math.tanh %349 : vector<2x32xf32>
    %351 = arith.mulf %344, %350 : vector<2x32xf32>
    %cst_104 = arith.constant dense<0.000000e+00> : vector<2x32xf32>
    %352 = tpu.matmul %351, %15, %cst_104 {dimension_numbers = #tpu.dot_dimension_numbers<[1], [0], [0], [1], [0, 0, 1, 1], [], []>} : vector<2x32xf32>, vector<32x32xf32>, vector<2x32xf32> -> vector<2x32xf32>
    %353 = arith.addf %352, %19 : vector<2x32xf32>
    %354 = vector.shape_cast %353 : vector<2x32xf32> to vector<2x1x32xf32>
    %355 = vector.broadcast %354 : vector<2x1x32xf32> to vector<2x8x32xf32>
    %356 = arith.addf %355, %238 : vector<2x8x32xf32>
    %357 = math.tanh %356 : vector<2x8x32xf32>
    %358 = arith.mulf %357, %26 : vector<2x8x32xf32>
    %cst_105 = arith.constant dense<0.000000e+00> : vector<2x8xf32>
    %359 = vector.multi_reduction <add>, %358, %cst_105 [2] : vector<2x8x32xf32> to vector<2x8xf32>
    %cst_106 = arith.constant 5.000000e-01 : f32
    %360 = vector.broadcast %cst_106 : f32 to vector<2x8xf32>
    %361 = arith.cmpf ogt, %324, %360 : vector<2x8xf32>
    %cst_107 = arith.constant 0xFF800000 : f32
    %362 = vector.broadcast %cst_107 : f32 to vector<2x8xf32>
    %363 = arith.select %361, %362, %359 : vector<2x8xi1>, vector<2x8xf32>
    %cst_108 = arith.constant dense<0xFF800000> : vector<2xf32>
    %364 = vector.multi_reduction <maximumf>, %363, %cst_108 [1] : vector<2x8xf32> to vector<2xf32>
    %365 = vector.shape_cast %364 : vector<2xf32> to vector<2x1xf32>
    %366 = vector.broadcast %365 : vector<2x1xf32> to vector<2x8xf32>
    %367 = arith.subf %363, %366 : vector<2x8xf32>
    %368 = math.exp %367 : vector<2x8xf32>
    %cst_109 = arith.constant dense<0.000000e+00> : vector<2xf32>
    %369 = vector.multi_reduction <add>, %368, %cst_109 [1] : vector<2x8xf32> to vector<2xf32>
    %370 = vector.shape_cast %369 : vector<2xf32> to vector<2x1xf32>
    %371 = vector.broadcast %370 : vector<2x1xf32> to vector<2x8xf32>
    %372 = arith.divf %368, %371 : vector<2x8xf32>
    %373 = vector.shape_cast %372 : vector<2x8xf32> to vector<2x8x1xf32>
    %374 = vector.broadcast %373 : vector<2x8x1xf32> to vector<2x8x32xf32>
    %375 = arith.mulf %238, %374 : vector<2x8x32xf32>
    %cst_110 = arith.constant dense<0.000000e+00> : vector<2x32xf32>
    %376 = vector.multi_reduction <add>, %375, %cst_110 [1] : vector<2x8x32xf32> to vector<2x32xf32>
    %cst_111 = arith.constant dense<0.000000e+00> : vector<2x32xf32>
    %377 = tpu.matmul %376, %16, %cst_111 {dimension_numbers = #tpu.dot_dimension_numbers<[1], [0], [0], [1], [0, 0, 1, 1], [], []>} : vector<2x32xf32>, vector<32x32xf32>, vector<2x32xf32> -> vector<2x32xf32>
    %378 = arith.addf %377, %22 : vector<2x32xf32>
    %379 = vector.shape_cast %378 : vector<2x32xf32> to vector<2x1x32xf32>
    %380 = vector.broadcast %379 : vector<2x1x32xf32> to vector<2x8x32xf32>
    %381 = arith.addf %380, %240 : vector<2x8x32xf32>
    %382 = math.tanh %381 : vector<2x8x32xf32>
    %383 = arith.mulf %382, %30 : vector<2x8x32xf32>
    %cst_112 = arith.constant dense<0.000000e+00> : vector<2x8xf32>
    %384 = vector.multi_reduction <add>, %383, %cst_112 [2] : vector<2x8x32xf32> to vector<2x8xf32>
    %385 = math.tanh %384 : vector<2x8xf32>
    %cst_113 = arith.constant 1.000000e+01 : f32
    %386 = vector.broadcast %cst_113 : f32 to vector<2x8xf32>
    %387 = arith.mulf %386, %385 : vector<2x8xf32>
    %cst_114 = arith.constant 5.000000e-01 : f32
    %388 = vector.broadcast %cst_114 : f32 to vector<2x8xf32>
    %389 = arith.cmpf ogt, %324, %388 : vector<2x8xf32>
    %cst_115 = arith.constant 0xFF800000 : f32
    %390 = vector.broadcast %cst_115 : f32 to vector<2x8xf32>
    %391 = arith.select %389, %390, %387 : vector<2x8xi1>, vector<2x8xf32>
    %cst_116 = arith.constant dense<0xFF800000> : vector<2xf32>
    %392 = vector.multi_reduction <maximumf>, %391, %cst_116 [1] : vector<2x8xf32> to vector<2xf32>
    %393 = vector.shape_cast %392 : vector<2xf32> to vector<2x1xf32>
    %394 = vector.broadcast %393 : vector<2x1xf32> to vector<2x8xf32>
    %395 = arith.subf %391, %394 : vector<2x8xf32>
    %396 = math.exp %395 : vector<2x8xf32>
    %cst_117 = arith.constant dense<0.000000e+00> : vector<2xf32>
    %397 = vector.multi_reduction <add>, %396, %cst_117 [1] : vector<2x8xf32> to vector<2xf32>
    %398 = vector.shape_cast %397 : vector<2xf32> to vector<2x1xf32>
    %399 = vector.broadcast %398 : vector<2x1xf32> to vector<2x8xf32>
    %400 = arith.divf %396, %399 : vector<2x8xf32>
    %c1_118 = arith.constant 1 : index
    %c0_119 = arith.constant 0 : index
    %c0_120 = arith.constant 0 : index
    %401 = vector.load %arg2[%c1_118, %c0_119, %c0_120] : memref<8x2x8xf32, #tpu.memory_space<vmem>>, vector<1x2x8xf32>
    %402 = vector.shape_cast %401 : vector<1x2x8xf32> to vector<2x8xf32>
    %403 = arith.addf %391, %402 : vector<2x8xf32>
    %cst_121 = arith.constant dense<0xFF800000> : vector<2xf32>
    %404 = vector.multi_reduction <maximumf>, %403, %cst_121 [1] : vector<2x8xf32> to vector<2xf32>
    %405 = vector.shape_cast %404 : vector<2xf32> to vector<2x1xf32>
    %406 = vector.broadcast %405 : vector<2x1xf32> to vector<2x8xf32>
    %407 = arith.cmpf oge, %403, %406 : vector<2x8xf32>
    %c8_i32_122 = arith.constant 8 : i32
    %408 = vector.broadcast %c8_i32_122 : i32 to vector<2x8xi32>
    %409 = arith.select %407, %241, %408 : vector<2x8xi1>, vector<2x8xi32>
    %cst_123 = arith.constant dense<2147483647> : vector<2xi32>
    %410 = vector.multi_reduction <minsi>, %409, %cst_123 [1] : vector<2x8xi32> to vector<2xi32>
    %411 = vector.shape_cast %410 : vector<2xi32> to vector<2x1xi32>
    %412 = vector.broadcast %411 : vector<2x1xi32> to vector<2x8xi32>
    %413 = arith.cmpi eq, %241, %412 : vector<2x8xi32>
    %414 = arith.extui %413 : vector<2x8xi1> to vector<2x8xi32>
    %415 = arith.sitofp %414 : vector<2x8xi32> to vector<2x8xf32>
    %416 = arith.maximumf %324, %415 : vector<2x8xf32>
    %417 = vector.shape_cast %415 : vector<2x8xf32> to vector<2x8x1xf32>
    %418 = vector.broadcast %417 : vector<2x8x1xf32> to vector<2x8x128xf32>
    %419 = arith.mulf %418, %41 : vector<2x8x128xf32>
    %cst_124 = arith.constant dense<0.000000e+00> : vector<2x128xf32>
    %420 = vector.multi_reduction <add>, %419, %cst_124 [1] : vector<2x8x128xf32> to vector<2x128xf32>
    %c1_125 = arith.constant 1 : index
    %c0_126 = arith.constant 0 : index
    %c0_127 = arith.constant 0 : index
    %421 = vector.load %arg17[%c1_125, %c0_126, %c0_127] : memref<8x2x8xf32, #tpu.memory_space<vmem>>, vector<1x2x8xf32>
    %422 = vector.shape_cast %421 : vector<1x2x8xf32> to vector<2x8xf32>
    %423 = vector.shape_cast %400 : vector<2x8xf32> to vector<1x2x8xf32>
    tpu.vector_store %arg17[%c1_125, %c0_126, %c0_127], %423 {strides = array<i32>} : memref<8x2x8xf32, #tpu.memory_space<vmem>>, vector<1x2x8xf32>,
    %c1_128 = arith.constant 1 : index
    %c0_129 = arith.constant 0 : index
    %c0_130 = arith.constant 0 : index
    %424 = vector.load %arg18[%c1_128, %c0_129, %c0_130] : memref<8x2x1xi32, #tpu.memory_space<vmem>>, vector<1x2x1xi32>
    %425 = vector.shape_cast %424 : vector<1x2x1xi32> to vector<2x1xi32>
    %426 = vector.shape_cast %411 : vector<2x1xi32> to vector<1x2x1xi32>
    tpu.vector_store %arg18[%c1_128, %c0_129, %c0_130], %426 {strides = array<i32>} : memref<8x2x1xi32, #tpu.memory_space<vmem>>, vector<1x2x1xi32>,
    %cst_131 = arith.constant dense<0.000000e+00> : vector<2x128xf32>
    %427 = tpu.matmul %351, %14, %cst_131 {dimension_numbers = #tpu.dot_dimension_numbers<[1], [0], [0], [1], [0, 0, 1, 1], [], []>} : vector<2x32xf32>, vector<32x128xf32>, vector<2x128xf32> -> vector<2x128xf32>
    %428 = arith.addf %420, %427 : vector<2x128xf32>
    %429 = arith.negf %428 : vector<2x128xf32>
    %430 = math.exp %429 : vector<2x128xf32>
    %cst_132 = arith.constant 1.000000e+00 : f32
    %431 = vector.broadcast %cst_132 : f32 to vector<2x128xf32>
    %432 = arith.addf %431, %430 : vector<2x128xf32>
    %433 = arith.divf %431, %432 : vector<2x128xf32>
    %434 = vector.extract_strided_slice %433 {offsets = [0, 0], sizes = [2, 32], strides = [1, 1]} : vector<2x128xf32> to vector<2x32xf32>
    %435 = vector.extract_strided_slice %433 {offsets = [0, 32], sizes = [2, 32], strides = [1, 1]} : vector<2x128xf32> to vector<2x32xf32>
    %436 = vector.extract_strided_slice %433 {offsets = [0, 96], sizes = [2, 32], strides = [1, 1]} : vector<2x128xf32> to vector<2x32xf32>
    %437 = vector.extract_strided_slice %428 {offsets = [0, 64], sizes = [2, 32], strides = [1, 1]} : vector<2x128xf32> to vector<2x32xf32>
    %438 = math.tanh %437 : vector<2x32xf32>
    %439 = arith.mulf %435, %349 : vector<2x32xf32>
    %440 = arith.mulf %434, %438 : vector<2x32xf32>
    %441 = arith.addf %439, %440 : vector<2x32xf32>
    %442 = math.tanh %441 : vector<2x32xf32>
    %443 = arith.mulf %436, %442 : vector<2x32xf32>
    %cst_133 = arith.constant dense<0.000000e+00> : vector<2x32xf32>
    %444 = tpu.matmul %443, %15, %cst_133 {dimension_numbers = #tpu.dot_dimension_numbers<[1], [0], [0], [1], [0, 0, 1, 1], [], []>} : vector<2x32xf32>, vector<32x32xf32>, vector<2x32xf32> -> vector<2x32xf32>
    %445 = arith.addf %444, %19 : vector<2x32xf32>
    %446 = vector.shape_cast %445 : vector<2x32xf32> to vector<2x1x32xf32>
    %447 = vector.broadcast %446 : vector<2x1x32xf32> to vector<2x8x32xf32>
    %448 = arith.addf %447, %238 : vector<2x8x32xf32>
    %449 = math.tanh %448 : vector<2x8x32xf32>
    %450 = arith.mulf %449, %26 : vector<2x8x32xf32>
    %cst_134 = arith.constant dense<0.000000e+00> : vector<2x8xf32>
    %451 = vector.multi_reduction <add>, %450, %cst_134 [2] : vector<2x8x32xf32> to vector<2x8xf32>
    %cst_135 = arith.constant 5.000000e-01 : f32
    %452 = vector.broadcast %cst_135 : f32 to vector<2x8xf32>
    %453 = arith.cmpf ogt, %416, %452 : vector<2x8xf32>
    %cst_136 = arith.constant 0xFF800000 : f32
    %454 = vector.broadcast %cst_136 : f32 to vector<2x8xf32>
    %455 = arith.select %453, %454, %451 : vector<2x8xi1>, vector<2x8xf32>
    %cst_137 = arith.constant dense<0xFF800000> : vector<2xf32>
    %456 = vector.multi_reduction <maximumf>, %455, %cst_137 [1] : vector<2x8xf32> to vector<2xf32>
    %457 = vector.shape_cast %456 : vector<2xf32> to vector<2x1xf32>
    %458 = vector.broadcast %457 : vector<2x1xf32> to vector<2x8xf32>
    %459 = arith.subf %455, %458 : vector<2x8xf32>
    %460 = math.exp %459 : vector<2x8xf32>
    %cst_138 = arith.constant dense<0.000000e+00> : vector<2xf32>
    %461 = vector.multi_reduction <add>, %460, %cst_138 [1] : vector<2x8xf32> to vector<2xf32>
    %462 = vector.shape_cast %461 : vector<2xf32> to vector<2x1xf32>
    %463 = vector.broadcast %462 : vector<2x1xf32> to vector<2x8xf32>
    %464 = arith.divf %460, %463 : vector<2x8xf32>
    %465 = vector.shape_cast %464 : vector<2x8xf32> to vector<2x8x1xf32>
    %466 = vector.broadcast %465 : vector<2x8x1xf32> to vector<2x8x32xf32>
    %467 = arith.mulf %238, %466 : vector<2x8x32xf32>
    %cst_139 = arith.constant dense<0.000000e+00> : vector<2x32xf32>
    %468 = vector.multi_reduction <add>, %467, %cst_139 [1] : vector<2x8x32xf32> to vector<2x32xf32>
    %cst_140 = arith.constant dense<0.000000e+00> : vector<2x32xf32>
    %469 = tpu.matmul %468, %16, %cst_140 {dimension_numbers = #tpu.dot_dimension_numbers<[1], [0], [0], [1], [0, 0, 1, 1], [], []>} : vector<2x32xf32>, vector<32x32xf32>, vector<2x32xf32> -> vector<2x32xf32>
    %470 = arith.addf %469, %22 : vector<2x32xf32>
    %471 = vector.shape_cast %470 : vector<2x32xf32> to vector<2x1x32xf32>
    %472 = vector.broadcast %471 : vector<2x1x32xf32> to vector<2x8x32xf32>
    %473 = arith.addf %472, %240 : vector<2x8x32xf32>
    %474 = math.tanh %473 : vector<2x8x32xf32>
    %475 = arith.mulf %474, %30 : vector<2x8x32xf32>
    %cst_141 = arith.constant dense<0.000000e+00> : vector<2x8xf32>
    %476 = vector.multi_reduction <add>, %475, %cst_141 [2] : vector<2x8x32xf32> to vector<2x8xf32>
    %477 = math.tanh %476 : vector<2x8xf32>
    %cst_142 = arith.constant 1.000000e+01 : f32
    %478 = vector.broadcast %cst_142 : f32 to vector<2x8xf32>
    %479 = arith.mulf %478, %477 : vector<2x8xf32>
    %cst_143 = arith.constant 5.000000e-01 : f32
    %480 = vector.broadcast %cst_143 : f32 to vector<2x8xf32>
    %481 = arith.cmpf ogt, %416, %480 : vector<2x8xf32>
    %cst_144 = arith.constant 0xFF800000 : f32
    %482 = vector.broadcast %cst_144 : f32 to vector<2x8xf32>
    %483 = arith.select %481, %482, %479 : vector<2x8xi1>, vector<2x8xf32>
    %cst_145 = arith.constant dense<0xFF800000> : vector<2xf32>
    %484 = vector.multi_reduction <maximumf>, %483, %cst_145 [1] : vector<2x8xf32> to vector<2xf32>
    %485 = vector.shape_cast %484 : vector<2xf32> to vector<2x1xf32>
    %486 = vector.broadcast %485 : vector<2x1xf32> to vector<2x8xf32>
    %487 = arith.subf %483, %486 : vector<2x8xf32>
    %488 = math.exp %487 : vector<2x8xf32>
    %cst_146 = arith.constant dense<0.000000e+00> : vector<2xf32>
    %489 = vector.multi_reduction <add>, %488, %cst_146 [1] : vector<2x8xf32> to vector<2xf32>
    %490 = vector.shape_cast %489 : vector<2xf32> to vector<2x1xf32>
    %491 = vector.broadcast %490 : vector<2x1xf32> to vector<2x8xf32>
    %492 = arith.divf %488, %491 : vector<2x8xf32>
    %c2_147 = arith.constant 2 : index
    %c0_148 = arith.constant 0 : index
    %c0_149 = arith.constant 0 : index
    %493 = vector.load %arg2[%c2_147, %c0_148, %c0_149] : memref<8x2x8xf32, #tpu.memory_space<vmem>>, vector<1x2x8xf32>
    %494 = vector.shape_cast %493 : vector<1x2x8xf32> to vector<2x8xf32>
    %495 = arith.addf %483, %494 : vector<2x8xf32>
    %cst_150 = arith.constant dense<0xFF800000> : vector<2xf32>
    %496 = vector.multi_reduction <maximumf>, %495, %cst_150 [1] : vector<2x8xf32> to vector<2xf32>
    %497 = vector.shape_cast %496 : vector<2xf32> to vector<2x1xf32>
    %498 = vector.broadcast %497 : vector<2x1xf32> to vector<2x8xf32>
    %499 = arith.cmpf oge, %495, %498 : vector<2x8xf32>
    %c8_i32_151 = arith.constant 8 : i32
    %500 = vector.broadcast %c8_i32_151 : i32 to vector<2x8xi32>
    %501 = arith.select %499, %241, %500 : vector<2x8xi1>, vector<2x8xi32>
    %cst_152 = arith.constant dense<2147483647> : vector<2xi32>
    %502 = vector.multi_reduction <minsi>, %501, %cst_152 [1] : vector<2x8xi32> to vector<2xi32>
    %503 = vector.shape_cast %502 : vector<2xi32> to vector<2x1xi32>
    %504 = vector.broadcast %503 : vector<2x1xi32> to vector<2x8xi32>
    %505 = arith.cmpi eq, %241, %504 : vector<2x8xi32>
    %506 = arith.extui %505 : vector<2x8xi1> to vector<2x8xi32>
    %507 = arith.sitofp %506 : vector<2x8xi32> to vector<2x8xf32>
    %508 = arith.maximumf %416, %507 : vector<2x8xf32>
    %509 = vector.shape_cast %507 : vector<2x8xf32> to vector<2x8x1xf32>
    %510 = vector.broadcast %509 : vector<2x8x1xf32> to vector<2x8x128xf32>
    %511 = arith.mulf %510, %41 : vector<2x8x128xf32>
    %cst_153 = arith.constant dense<0.000000e+00> : vector<2x128xf32>
    %512 = vector.multi_reduction <add>, %511, %cst_153 [1] : vector<2x8x128xf32> to vector<2x128xf32>
    %c2_154 = arith.constant 2 : index
    %c0_155 = arith.constant 0 : index
    %c0_156 = arith.constant 0 : index
    %513 = vector.load %arg17[%c2_154, %c0_155, %c0_156] : memref<8x2x8xf32, #tpu.memory_space<vmem>>, vector<1x2x8xf32>
    %514 = vector.shape_cast %513 : vector<1x2x8xf32> to vector<2x8xf32>
    %515 = vector.shape_cast %492 : vector<2x8xf32> to vector<1x2x8xf32>
    tpu.vector_store %arg17[%c2_154, %c0_155, %c0_156], %515 {strides = array<i32>} : memref<8x2x8xf32, #tpu.memory_space<vmem>>, vector<1x2x8xf32>,
    %c2_157 = arith.constant 2 : index
    %c0_158 = arith.constant 0 : index
    %c0_159 = arith.constant 0 : index
    %516 = vector.load %arg18[%c2_157, %c0_158, %c0_159] : memref<8x2x1xi32, #tpu.memory_space<vmem>>, vector<1x2x1xi32>
    %517 = vector.shape_cast %516 : vector<1x2x1xi32> to vector<2x1xi32>
    %518 = vector.shape_cast %503 : vector<2x1xi32> to vector<1x2x1xi32>
    tpu.vector_store %arg18[%c2_157, %c0_158, %c0_159], %518 {strides = array<i32>} : memref<8x2x1xi32, #tpu.memory_space<vmem>>, vector<1x2x1xi32>,
    %cst_160 = arith.constant dense<0.000000e+00> : vector<2x128xf32>
    %519 = tpu.matmul %443, %14, %cst_160 {dimension_numbers = #tpu.dot_dimension_numbers<[1], [0], [0], [1], [0, 0, 1, 1], [], []>} : vector<2x32xf32>, vector<32x128xf32>, vector<2x128xf32> -> vector<2x128xf32>
    %520 = arith.addf %512, %519 : vector<2x128xf32>
    %521 = arith.negf %520 : vector<2x128xf32>
    %522 = math.exp %521 : vector<2x128xf32>
    %cst_161 = arith.constant 1.000000e+00 : f32
    %523 = vector.broadcast %cst_161 : f32 to vector<2x128xf32>
    %524 = arith.addf %523, %522 : vector<2x128xf32>
    %525 = arith.divf %523, %524 : vector<2x128xf32>
    %526 = vector.extract_strided_slice %525 {offsets = [0, 0], sizes = [2, 32], strides = [1, 1]} : vector<2x128xf32> to vector<2x32xf32>
    %527 = vector.extract_strided_slice %525 {offsets = [0, 32], sizes = [2, 32], strides = [1, 1]} : vector<2x128xf32> to vector<2x32xf32>
    %528 = vector.extract_strided_slice %525 {offsets = [0, 96], sizes = [2, 32], strides = [1, 1]} : vector<2x128xf32> to vector<2x32xf32>
    %529 = vector.extract_strided_slice %520 {offsets = [0, 64], sizes = [2, 32], strides = [1, 1]} : vector<2x128xf32> to vector<2x32xf32>
    %530 = math.tanh %529 : vector<2x32xf32>
    %531 = arith.mulf %527, %441 : vector<2x32xf32>
    %532 = arith.mulf %526, %530 : vector<2x32xf32>
    %533 = arith.addf %531, %532 : vector<2x32xf32>
    %534 = math.tanh %533 : vector<2x32xf32>
    %535 = arith.mulf %528, %534 : vector<2x32xf32>
    %cst_162 = arith.constant dense<0.000000e+00> : vector<2x32xf32>
    %536 = tpu.matmul %535, %15, %cst_162 {dimension_numbers = #tpu.dot_dimension_numbers<[1], [0], [0], [1], [0, 0, 1, 1], [], []>} : vector<2x32xf32>, vector<32x32xf32>, vector<2x32xf32> -> vector<2x32xf32>
    %537 = arith.addf %536, %19 : vector<2x32xf32>
    %538 = vector.shape_cast %537 : vector<2x32xf32> to vector<2x1x32xf32>
    %539 = vector.broadcast %538 : vector<2x1x32xf32> to vector<2x8x32xf32>
    %540 = arith.addf %539, %238 : vector<2x8x32xf32>
    %541 = math.tanh %540 : vector<2x8x32xf32>
    %542 = arith.mulf %541, %26 : vector<2x8x32xf32>
    %cst_163 = arith.constant dense<0.000000e+00> : vector<2x8xf32>
    %543 = vector.multi_reduction <add>, %542, %cst_163 [2] : vector<2x8x32xf32> to vector<2x8xf32>
    %cst_164 = arith.constant 5.000000e-01 : f32
    %544 = vector.broadcast %cst_164 : f32 to vector<2x8xf32>
    %545 = arith.cmpf ogt, %508, %544 : vector<2x8xf32>
    %cst_165 = arith.constant 0xFF800000 : f32
    %546 = vector.broadcast %cst_165 : f32 to vector<2x8xf32>
    %547 = arith.select %545, %546, %543 : vector<2x8xi1>, vector<2x8xf32>
    %cst_166 = arith.constant dense<0xFF800000> : vector<2xf32>
    %548 = vector.multi_reduction <maximumf>, %547, %cst_166 [1] : vector<2x8xf32> to vector<2xf32>
    %549 = vector.shape_cast %548 : vector<2xf32> to vector<2x1xf32>
    %550 = vector.broadcast %549 : vector<2x1xf32> to vector<2x8xf32>
    %551 = arith.subf %547, %550 : vector<2x8xf32>
    %552 = math.exp %551 : vector<2x8xf32>
    %cst_167 = arith.constant dense<0.000000e+00> : vector<2xf32>
    %553 = vector.multi_reduction <add>, %552, %cst_167 [1] : vector<2x8xf32> to vector<2xf32>
    %554 = vector.shape_cast %553 : vector<2xf32> to vector<2x1xf32>
    %555 = vector.broadcast %554 : vector<2x1xf32> to vector<2x8xf32>
    %556 = arith.divf %552, %555 : vector<2x8xf32>
    %557 = vector.shape_cast %556 : vector<2x8xf32> to vector<2x8x1xf32>
    %558 = vector.broadcast %557 : vector<2x8x1xf32> to vector<2x8x32xf32>
    %559 = arith.mulf %238, %558 : vector<2x8x32xf32>
    %cst_168 = arith.constant dense<0.000000e+00> : vector<2x32xf32>
    %560 = vector.multi_reduction <add>, %559, %cst_168 [1] : vector<2x8x32xf32> to vector<2x32xf32>
    %cst_169 = arith.constant dense<0.000000e+00> : vector<2x32xf32>
    %561 = tpu.matmul %560, %16, %cst_169 {dimension_numbers = #tpu.dot_dimension_numbers<[1], [0], [0], [1], [0, 0, 1, 1], [], []>} : vector<2x32xf32>, vector<32x32xf32>, vector<2x32xf32> -> vector<2x32xf32>
    %562 = arith.addf %561, %22 : vector<2x32xf32>
    %563 = vector.shape_cast %562 : vector<2x32xf32> to vector<2x1x32xf32>
    %564 = vector.broadcast %563 : vector<2x1x32xf32> to vector<2x8x32xf32>
    %565 = arith.addf %564, %240 : vector<2x8x32xf32>
    %566 = math.tanh %565 : vector<2x8x32xf32>
    %567 = arith.mulf %566, %30 : vector<2x8x32xf32>
    %cst_170 = arith.constant dense<0.000000e+00> : vector<2x8xf32>
    %568 = vector.multi_reduction <add>, %567, %cst_170 [2] : vector<2x8x32xf32> to vector<2x8xf32>
    %569 = math.tanh %568 : vector<2x8xf32>
    %cst_171 = arith.constant 1.000000e+01 : f32
    %570 = vector.broadcast %cst_171 : f32 to vector<2x8xf32>
    %571 = arith.mulf %570, %569 : vector<2x8xf32>
    %cst_172 = arith.constant 5.000000e-01 : f32
    %572 = vector.broadcast %cst_172 : f32 to vector<2x8xf32>
    %573 = arith.cmpf ogt, %508, %572 : vector<2x8xf32>
    %cst_173 = arith.constant 0xFF800000 : f32
    %574 = vector.broadcast %cst_173 : f32 to vector<2x8xf32>
    %575 = arith.select %573, %574, %571 : vector<2x8xi1>, vector<2x8xf32>
    %cst_174 = arith.constant dense<0xFF800000> : vector<2xf32>
    %576 = vector.multi_reduction <maximumf>, %575, %cst_174 [1] : vector<2x8xf32> to vector<2xf32>
    %577 = vector.shape_cast %576 : vector<2xf32> to vector<2x1xf32>
    %578 = vector.broadcast %577 : vector<2x1xf32> to vector<2x8xf32>
    %579 = arith.subf %575, %578 : vector<2x8xf32>
    %580 = math.exp %579 : vector<2x8xf32>
    %cst_175 = arith.constant dense<0.000000e+00> : vector<2xf32>
    %581 = vector.multi_reduction <add>, %580, %cst_175 [1] : vector<2x8xf32> to vector<2xf32>
    %582 = vector.shape_cast %581 : vector<2xf32> to vector<2x1xf32>
    %583 = vector.broadcast %582 : vector<2x1xf32> to vector<2x8xf32>
    %584 = arith.divf %580, %583 : vector<2x8xf32>
    %c3_176 = arith.constant 3 : index
    %c0_177 = arith.constant 0 : index
    %c0_178 = arith.constant 0 : index
    %585 = vector.load %arg2[%c3_176, %c0_177, %c0_178] : memref<8x2x8xf32, #tpu.memory_space<vmem>>, vector<1x2x8xf32>
    %586 = vector.shape_cast %585 : vector<1x2x8xf32> to vector<2x8xf32>
    %587 = arith.addf %575, %586 : vector<2x8xf32>
    %cst_179 = arith.constant dense<0xFF800000> : vector<2xf32>
    %588 = vector.multi_reduction <maximumf>, %587, %cst_179 [1] : vector<2x8xf32> to vector<2xf32>
    %589 = vector.shape_cast %588 : vector<2xf32> to vector<2x1xf32>
    %590 = vector.broadcast %589 : vector<2x1xf32> to vector<2x8xf32>
    %591 = arith.cmpf oge, %587, %590 : vector<2x8xf32>
    %c8_i32_180 = arith.constant 8 : i32
    %592 = vector.broadcast %c8_i32_180 : i32 to vector<2x8xi32>
    %593 = arith.select %591, %241, %592 : vector<2x8xi1>, vector<2x8xi32>
    %cst_181 = arith.constant dense<2147483647> : vector<2xi32>
    %594 = vector.multi_reduction <minsi>, %593, %cst_181 [1] : vector<2x8xi32> to vector<2xi32>
    %595 = vector.shape_cast %594 : vector<2xi32> to vector<2x1xi32>
    %596 = vector.broadcast %595 : vector<2x1xi32> to vector<2x8xi32>
    %597 = arith.cmpi eq, %241, %596 : vector<2x8xi32>
    %598 = arith.extui %597 : vector<2x8xi1> to vector<2x8xi32>
    %599 = arith.sitofp %598 : vector<2x8xi32> to vector<2x8xf32>
    %600 = arith.maximumf %508, %599 : vector<2x8xf32>
    %601 = vector.shape_cast %599 : vector<2x8xf32> to vector<2x8x1xf32>
    %602 = vector.broadcast %601 : vector<2x8x1xf32> to vector<2x8x128xf32>
    %603 = arith.mulf %602, %41 : vector<2x8x128xf32>
    %cst_182 = arith.constant dense<0.000000e+00> : vector<2x128xf32>
    %604 = vector.multi_reduction <add>, %603, %cst_182 [1] : vector<2x8x128xf32> to vector<2x128xf32>
    %c3_183 = arith.constant 3 : index
    %c0_184 = arith.constant 0 : index
    %c0_185 = arith.constant 0 : index
    %605 = vector.load %arg17[%c3_183, %c0_184, %c0_185] : memref<8x2x8xf32, #tpu.memory_space<vmem>>, vector<1x2x8xf32>
    %606 = vector.shape_cast %605 : vector<1x2x8xf32> to vector<2x8xf32>
    %607 = vector.shape_cast %584 : vector<2x8xf32> to vector<1x2x8xf32>
    tpu.vector_store %arg17[%c3_183, %c0_184, %c0_185], %607 {strides = array<i32>} : memref<8x2x8xf32, #tpu.memory_space<vmem>>, vector<1x2x8xf32>,
    %c3_186 = arith.constant 3 : index
    %c0_187 = arith.constant 0 : index
    %c0_188 = arith.constant 0 : index
    %608 = vector.load %arg18[%c3_186, %c0_187, %c0_188] : memref<8x2x1xi32, #tpu.memory_space<vmem>>, vector<1x2x1xi32>
    %609 = vector.shape_cast %608 : vector<1x2x1xi32> to vector<2x1xi32>
    %610 = vector.shape_cast %595 : vector<2x1xi32> to vector<1x2x1xi32>
    tpu.vector_store %arg18[%c3_186, %c0_187, %c0_188], %610 {strides = array<i32>} : memref<8x2x1xi32, #tpu.memory_space<vmem>>, vector<1x2x1xi32>,
    %cst_189 = arith.constant dense<0.000000e+00> : vector<2x128xf32>
    %611 = tpu.matmul %535, %14, %cst_189 {dimension_numbers = #tpu.dot_dimension_numbers<[1], [0], [0], [1], [0, 0, 1, 1], [], []>} : vector<2x32xf32>, vector<32x128xf32>, vector<2x128xf32> -> vector<2x128xf32>
    %612 = arith.addf %604, %611 : vector<2x128xf32>
    %613 = arith.negf %612 : vector<2x128xf32>
    %614 = math.exp %613 : vector<2x128xf32>
    %cst_190 = arith.constant 1.000000e+00 : f32
    %615 = vector.broadcast %cst_190 : f32 to vector<2x128xf32>
    %616 = arith.addf %615, %614 : vector<2x128xf32>
    %617 = arith.divf %615, %616 : vector<2x128xf32>
    %618 = vector.extract_strided_slice %617 {offsets = [0, 0], sizes = [2, 32], strides = [1, 1]} : vector<2x128xf32> to vector<2x32xf32>
    %619 = vector.extract_strided_slice %617 {offsets = [0, 32], sizes = [2, 32], strides = [1, 1]} : vector<2x128xf32> to vector<2x32xf32>
    %620 = vector.extract_strided_slice %617 {offsets = [0, 96], sizes = [2, 32], strides = [1, 1]} : vector<2x128xf32> to vector<2x32xf32>
    %621 = vector.extract_strided_slice %612 {offsets = [0, 64], sizes = [2, 32], strides = [1, 1]} : vector<2x128xf32> to vector<2x32xf32>
    %622 = math.tanh %621 : vector<2x32xf32>
    %623 = arith.mulf %619, %533 : vector<2x32xf32>
    %624 = arith.mulf %618, %622 : vector<2x32xf32>
    %625 = arith.addf %623, %624 : vector<2x32xf32>
    %626 = math.tanh %625 : vector<2x32xf32>
    %627 = arith.mulf %620, %626 : vector<2x32xf32>
    %cst_191 = arith.constant dense<0.000000e+00> : vector<2x32xf32>
    %628 = tpu.matmul %627, %15, %cst_191 {dimension_numbers = #tpu.dot_dimension_numbers<[1], [0], [0], [1], [0, 0, 1, 1], [], []>} : vector<2x32xf32>, vector<32x32xf32>, vector<2x32xf32> -> vector<2x32xf32>
    %629 = arith.addf %628, %19 : vector<2x32xf32>
    %630 = vector.shape_cast %629 : vector<2x32xf32> to vector<2x1x32xf32>
    %631 = vector.broadcast %630 : vector<2x1x32xf32> to vector<2x8x32xf32>
    %632 = arith.addf %631, %238 : vector<2x8x32xf32>
    %633 = math.tanh %632 : vector<2x8x32xf32>
    %634 = arith.mulf %633, %26 : vector<2x8x32xf32>
    %cst_192 = arith.constant dense<0.000000e+00> : vector<2x8xf32>
    %635 = vector.multi_reduction <add>, %634, %cst_192 [2] : vector<2x8x32xf32> to vector<2x8xf32>
    %cst_193 = arith.constant 5.000000e-01 : f32
    %636 = vector.broadcast %cst_193 : f32 to vector<2x8xf32>
    %637 = arith.cmpf ogt, %600, %636 : vector<2x8xf32>
    %cst_194 = arith.constant 0xFF800000 : f32
    %638 = vector.broadcast %cst_194 : f32 to vector<2x8xf32>
    %639 = arith.select %637, %638, %635 : vector<2x8xi1>, vector<2x8xf32>
    %cst_195 = arith.constant dense<0xFF800000> : vector<2xf32>
    %640 = vector.multi_reduction <maximumf>, %639, %cst_195 [1] : vector<2x8xf32> to vector<2xf32>
    %641 = vector.shape_cast %640 : vector<2xf32> to vector<2x1xf32>
    %642 = vector.broadcast %641 : vector<2x1xf32> to vector<2x8xf32>
    %643 = arith.subf %639, %642 : vector<2x8xf32>
    %644 = math.exp %643 : vector<2x8xf32>
    %cst_196 = arith.constant dense<0.000000e+00> : vector<2xf32>
    %645 = vector.multi_reduction <add>, %644, %cst_196 [1] : vector<2x8xf32> to vector<2xf32>
    %646 = vector.shape_cast %645 : vector<2xf32> to vector<2x1xf32>
    %647 = vector.broadcast %646 : vector<2x1xf32> to vector<2x8xf32>
    %648 = arith.divf %644, %647 : vector<2x8xf32>
    %649 = vector.shape_cast %648 : vector<2x8xf32> to vector<2x8x1xf32>
    %650 = vector.broadcast %649 : vector<2x8x1xf32> to vector<2x8x32xf32>
    %651 = arith.mulf %238, %650 : vector<2x8x32xf32>
    %cst_197 = arith.constant dense<0.000000e+00> : vector<2x32xf32>
    %652 = vector.multi_reduction <add>, %651, %cst_197 [1] : vector<2x8x32xf32> to vector<2x32xf32>
    %cst_198 = arith.constant dense<0.000000e+00> : vector<2x32xf32>
    %653 = tpu.matmul %652, %16, %cst_198 {dimension_numbers = #tpu.dot_dimension_numbers<[1], [0], [0], [1], [0, 0, 1, 1], [], []>} : vector<2x32xf32>, vector<32x32xf32>, vector<2x32xf32> -> vector<2x32xf32>
    %654 = arith.addf %653, %22 : vector<2x32xf32>
    %655 = vector.shape_cast %654 : vector<2x32xf32> to vector<2x1x32xf32>
    %656 = vector.broadcast %655 : vector<2x1x32xf32> to vector<2x8x32xf32>
    %657 = arith.addf %656, %240 : vector<2x8x32xf32>
    %658 = math.tanh %657 : vector<2x8x32xf32>
    %659 = arith.mulf %658, %30 : vector<2x8x32xf32>
    %cst_199 = arith.constant dense<0.000000e+00> : vector<2x8xf32>
    %660 = vector.multi_reduction <add>, %659, %cst_199 [2] : vector<2x8x32xf32> to vector<2x8xf32>
    %661 = math.tanh %660 : vector<2x8xf32>
    %cst_200 = arith.constant 1.000000e+01 : f32
    %662 = vector.broadcast %cst_200 : f32 to vector<2x8xf32>
    %663 = arith.mulf %662, %661 : vector<2x8xf32>
    %cst_201 = arith.constant 5.000000e-01 : f32
    %664 = vector.broadcast %cst_201 : f32 to vector<2x8xf32>
    %665 = arith.cmpf ogt, %600, %664 : vector<2x8xf32>
    %cst_202 = arith.constant 0xFF800000 : f32
    %666 = vector.broadcast %cst_202 : f32 to vector<2x8xf32>
    %667 = arith.select %665, %666, %663 : vector<2x8xi1>, vector<2x8xf32>
    %cst_203 = arith.constant dense<0xFF800000> : vector<2xf32>
    %668 = vector.multi_reduction <maximumf>, %667, %cst_203 [1] : vector<2x8xf32> to vector<2xf32>
    %669 = vector.shape_cast %668 : vector<2xf32> to vector<2x1xf32>
    %670 = vector.broadcast %669 : vector<2x1xf32> to vector<2x8xf32>
    %671 = arith.subf %667, %670 : vector<2x8xf32>
    %672 = math.exp %671 : vector<2x8xf32>
    %cst_204 = arith.constant dense<0.000000e+00> : vector<2xf32>
    %673 = vector.multi_reduction <add>, %672, %cst_204 [1] : vector<2x8xf32> to vector<2xf32>
    %674 = vector.shape_cast %673 : vector<2xf32> to vector<2x1xf32>
    %675 = vector.broadcast %674 : vector<2x1xf32> to vector<2x8xf32>
    %676 = arith.divf %672, %675 : vector<2x8xf32>
    %c4_205 = arith.constant 4 : index
    %c0_206 = arith.constant 0 : index
    %c0_207 = arith.constant 0 : index
    %677 = vector.load %arg2[%c4_205, %c0_206, %c0_207] : memref<8x2x8xf32, #tpu.memory_space<vmem>>, vector<1x2x8xf32>
    %678 = vector.shape_cast %677 : vector<1x2x8xf32> to vector<2x8xf32>
    %679 = arith.addf %667, %678 : vector<2x8xf32>
    %cst_208 = arith.constant dense<0xFF800000> : vector<2xf32>
    %680 = vector.multi_reduction <maximumf>, %679, %cst_208 [1] : vector<2x8xf32> to vector<2xf32>
    %681 = vector.shape_cast %680 : vector<2xf32> to vector<2x1xf32>
    %682 = vector.broadcast %681 : vector<2x1xf32> to vector<2x8xf32>
    %683 = arith.cmpf oge, %679, %682 : vector<2x8xf32>
    %c8_i32_209 = arith.constant 8 : i32
    %684 = vector.broadcast %c8_i32_209 : i32 to vector<2x8xi32>
    %685 = arith.select %683, %241, %684 : vector<2x8xi1>, vector<2x8xi32>
    %cst_210 = arith.constant dense<2147483647> : vector<2xi32>
    %686 = vector.multi_reduction <minsi>, %685, %cst_210 [1] : vector<2x8xi32> to vector<2xi32>
    %687 = vector.shape_cast %686 : vector<2xi32> to vector<2x1xi32>
    %688 = vector.broadcast %687 : vector<2x1xi32> to vector<2x8xi32>
    %689 = arith.cmpi eq, %241, %688 : vector<2x8xi32>
    %690 = arith.extui %689 : vector<2x8xi1> to vector<2x8xi32>
    %691 = arith.sitofp %690 : vector<2x8xi32> to vector<2x8xf32>
    %692 = arith.maximumf %600, %691 : vector<2x8xf32>
    %693 = vector.shape_cast %691 : vector<2x8xf32> to vector<2x8x1xf32>
    %694 = vector.broadcast %693 : vector<2x8x1xf32> to vector<2x8x128xf32>
    %695 = arith.mulf %694, %41 : vector<2x8x128xf32>
    %cst_211 = arith.constant dense<0.000000e+00> : vector<2x128xf32>
    %696 = vector.multi_reduction <add>, %695, %cst_211 [1] : vector<2x8x128xf32> to vector<2x128xf32>
    %c4_212 = arith.constant 4 : index
    %c0_213 = arith.constant 0 : index
    %c0_214 = arith.constant 0 : index
    %697 = vector.load %arg17[%c4_212, %c0_213, %c0_214] : memref<8x2x8xf32, #tpu.memory_space<vmem>>, vector<1x2x8xf32>
    %698 = vector.shape_cast %697 : vector<1x2x8xf32> to vector<2x8xf32>
    %699 = vector.shape_cast %676 : vector<2x8xf32> to vector<1x2x8xf32>
    tpu.vector_store %arg17[%c4_212, %c0_213, %c0_214], %699 {strides = array<i32>} : memref<8x2x8xf32, #tpu.memory_space<vmem>>, vector<1x2x8xf32>,
    %c4_215 = arith.constant 4 : index
    %c0_216 = arith.constant 0 : index
    %c0_217 = arith.constant 0 : index
    %700 = vector.load %arg18[%c4_215, %c0_216, %c0_217] : memref<8x2x1xi32, #tpu.memory_space<vmem>>, vector<1x2x1xi32>
    %701 = vector.shape_cast %700 : vector<1x2x1xi32> to vector<2x1xi32>
    %702 = vector.shape_cast %687 : vector<2x1xi32> to vector<1x2x1xi32>
    tpu.vector_store %arg18[%c4_215, %c0_216, %c0_217], %702 {strides = array<i32>} : memref<8x2x1xi32, #tpu.memory_space<vmem>>, vector<1x2x1xi32>,
    %cst_218 = arith.constant dense<0.000000e+00> : vector<2x128xf32>
    %703 = tpu.matmul %627, %14, %cst_218 {dimension_numbers = #tpu.dot_dimension_numbers<[1], [0], [0], [1], [0, 0, 1, 1], [], []>} : vector<2x32xf32>, vector<32x128xf32>, vector<2x128xf32> -> vector<2x128xf32>
    %704 = arith.addf %696, %703 : vector<2x128xf32>
    %705 = arith.negf %704 : vector<2x128xf32>
    %706 = math.exp %705 : vector<2x128xf32>
    %cst_219 = arith.constant 1.000000e+00 : f32
    %707 = vector.broadcast %cst_219 : f32 to vector<2x128xf32>
    %708 = arith.addf %707, %706 : vector<2x128xf32>
    %709 = arith.divf %707, %708 : vector<2x128xf32>
    %710 = vector.extract_strided_slice %709 {offsets = [0, 0], sizes = [2, 32], strides = [1, 1]} : vector<2x128xf32> to vector<2x32xf32>
    %711 = vector.extract_strided_slice %709 {offsets = [0, 32], sizes = [2, 32], strides = [1, 1]} : vector<2x128xf32> to vector<2x32xf32>
    %712 = vector.extract_strided_slice %709 {offsets = [0, 96], sizes = [2, 32], strides = [1, 1]} : vector<2x128xf32> to vector<2x32xf32>
    %713 = vector.extract_strided_slice %704 {offsets = [0, 64], sizes = [2, 32], strides = [1, 1]} : vector<2x128xf32> to vector<2x32xf32>
    %714 = math.tanh %713 : vector<2x32xf32>
    %715 = arith.mulf %711, %625 : vector<2x32xf32>
    %716 = arith.mulf %710, %714 : vector<2x32xf32>
    %717 = arith.addf %715, %716 : vector<2x32xf32>
    %718 = math.tanh %717 : vector<2x32xf32>
    %719 = arith.mulf %712, %718 : vector<2x32xf32>
    %cst_220 = arith.constant dense<0.000000e+00> : vector<2x32xf32>
    %720 = tpu.matmul %719, %15, %cst_220 {dimension_numbers = #tpu.dot_dimension_numbers<[1], [0], [0], [1], [0, 0, 1, 1], [], []>} : vector<2x32xf32>, vector<32x32xf32>, vector<2x32xf32> -> vector<2x32xf32>
    %721 = arith.addf %720, %19 : vector<2x32xf32>
    %722 = vector.shape_cast %721 : vector<2x32xf32> to vector<2x1x32xf32>
    %723 = vector.broadcast %722 : vector<2x1x32xf32> to vector<2x8x32xf32>
    %724 = arith.addf %723, %238 : vector<2x8x32xf32>
    %725 = math.tanh %724 : vector<2x8x32xf32>
    %726 = arith.mulf %725, %26 : vector<2x8x32xf32>
    %cst_221 = arith.constant dense<0.000000e+00> : vector<2x8xf32>
    %727 = vector.multi_reduction <add>, %726, %cst_221 [2] : vector<2x8x32xf32> to vector<2x8xf32>
    %cst_222 = arith.constant 5.000000e-01 : f32
    %728 = vector.broadcast %cst_222 : f32 to vector<2x8xf32>
    %729 = arith.cmpf ogt, %692, %728 : vector<2x8xf32>
    %cst_223 = arith.constant 0xFF800000 : f32
    %730 = vector.broadcast %cst_223 : f32 to vector<2x8xf32>
    %731 = arith.select %729, %730, %727 : vector<2x8xi1>, vector<2x8xf32>
    %cst_224 = arith.constant dense<0xFF800000> : vector<2xf32>
    %732 = vector.multi_reduction <maximumf>, %731, %cst_224 [1] : vector<2x8xf32> to vector<2xf32>
    %733 = vector.shape_cast %732 : vector<2xf32> to vector<2x1xf32>
    %734 = vector.broadcast %733 : vector<2x1xf32> to vector<2x8xf32>
    %735 = arith.subf %731, %734 : vector<2x8xf32>
    %736 = math.exp %735 : vector<2x8xf32>
    %cst_225 = arith.constant dense<0.000000e+00> : vector<2xf32>
    %737 = vector.multi_reduction <add>, %736, %cst_225 [1] : vector<2x8xf32> to vector<2xf32>
    %738 = vector.shape_cast %737 : vector<2xf32> to vector<2x1xf32>
    %739 = vector.broadcast %738 : vector<2x1xf32> to vector<2x8xf32>
    %740 = arith.divf %736, %739 : vector<2x8xf32>
    %741 = vector.shape_cast %740 : vector<2x8xf32> to vector<2x8x1xf32>
    %742 = vector.broadcast %741 : vector<2x8x1xf32> to vector<2x8x32xf32>
    %743 = arith.mulf %238, %742 : vector<2x8x32xf32>
    %cst_226 = arith.constant dense<0.000000e+00> : vector<2x32xf32>
    %744 = vector.multi_reduction <add>, %743, %cst_226 [1] : vector<2x8x32xf32> to vector<2x32xf32>
    %cst_227 = arith.constant dense<0.000000e+00> : vector<2x32xf32>
    %745 = tpu.matmul %744, %16, %cst_227 {dimension_numbers = #tpu.dot_dimension_numbers<[1], [0], [0], [1], [0, 0, 1, 1], [], []>} : vector<2x32xf32>, vector<32x32xf32>, vector<2x32xf32> -> vector<2x32xf32>
    %746 = arith.addf %745, %22 : vector<2x32xf32>
    %747 = vector.shape_cast %746 : vector<2x32xf32> to vector<2x1x32xf32>
    %748 = vector.broadcast %747 : vector<2x1x32xf32> to vector<2x8x32xf32>
    %749 = arith.addf %748, %240 : vector<2x8x32xf32>
    %750 = math.tanh %749 : vector<2x8x32xf32>
    %751 = arith.mulf %750, %30 : vector<2x8x32xf32>
    %cst_228 = arith.constant dense<0.000000e+00> : vector<2x8xf32>
    %752 = vector.multi_reduction <add>, %751, %cst_228 [2] : vector<2x8x32xf32> to vector<2x8xf32>
    %753 = math.tanh %752 : vector<2x8xf32>
    %cst_229 = arith.constant 1.000000e+01 : f32
    %754 = vector.broadcast %cst_229 : f32 to vector<2x8xf32>
    %755 = arith.mulf %754, %753 : vector<2x8xf32>
    %cst_230 = arith.constant 5.000000e-01 : f32
    %756 = vector.broadcast %cst_230 : f32 to vector<2x8xf32>
    %757 = arith.cmpf ogt, %692, %756 : vector<2x8xf32>
    %cst_231 = arith.constant 0xFF800000 : f32
    %758 = vector.broadcast %cst_231 : f32 to vector<2x8xf32>
    %759 = arith.select %757, %758, %755 : vector<2x8xi1>, vector<2x8xf32>
    %cst_232 = arith.constant dense<0xFF800000> : vector<2xf32>
    %760 = vector.multi_reduction <maximumf>, %759, %cst_232 [1] : vector<2x8xf32> to vector<2xf32>
    %761 = vector.shape_cast %760 : vector<2xf32> to vector<2x1xf32>
    %762 = vector.broadcast %761 : vector<2x1xf32> to vector<2x8xf32>
    %763 = arith.subf %759, %762 : vector<2x8xf32>
    %764 = math.exp %763 : vector<2x8xf32>
    %cst_233 = arith.constant dense<0.000000e+00> : vector<2xf32>
    %765 = vector.multi_reduction <add>, %764, %cst_233 [1] : vector<2x8xf32> to vector<2xf32>
    %766 = vector.shape_cast %765 : vector<2xf32> to vector<2x1xf32>
    %767 = vector.broadcast %766 : vector<2x1xf32> to vector<2x8xf32>
    %768 = arith.divf %764, %767 : vector<2x8xf32>
    %c5_234 = arith.constant 5 : index
    %c0_235 = arith.constant 0 : index
    %c0_236 = arith.constant 0 : index
    %769 = vector.load %arg2[%c5_234, %c0_235, %c0_236] : memref<8x2x8xf32, #tpu.memory_space<vmem>>, vector<1x2x8xf32>
    %770 = vector.shape_cast %769 : vector<1x2x8xf32> to vector<2x8xf32>
    %771 = arith.addf %759, %770 : vector<2x8xf32>
    %cst_237 = arith.constant dense<0xFF800000> : vector<2xf32>
    %772 = vector.multi_reduction <maximumf>, %771, %cst_237 [1] : vector<2x8xf32> to vector<2xf32>
    %773 = vector.shape_cast %772 : vector<2xf32> to vector<2x1xf32>
    %774 = vector.broadcast %773 : vector<2x1xf32> to vector<2x8xf32>
    %775 = arith.cmpf oge, %771, %774 : vector<2x8xf32>
    %c8_i32_238 = arith.constant 8 : i32
    %776 = vector.broadcast %c8_i32_238 : i32 to vector<2x8xi32>
    %777 = arith.select %775, %241, %776 : vector<2x8xi1>, vector<2x8xi32>
    %cst_239 = arith.constant dense<2147483647> : vector<2xi32>
    %778 = vector.multi_reduction <minsi>, %777, %cst_239 [1] : vector<2x8xi32> to vector<2xi32>
    %779 = vector.shape_cast %778 : vector<2xi32> to vector<2x1xi32>
    %780 = vector.broadcast %779 : vector<2x1xi32> to vector<2x8xi32>
    %781 = arith.cmpi eq, %241, %780 : vector<2x8xi32>
    %782 = arith.extui %781 : vector<2x8xi1> to vector<2x8xi32>
    %783 = arith.sitofp %782 : vector<2x8xi32> to vector<2x8xf32>
    %784 = arith.maximumf %692, %783 : vector<2x8xf32>
    %785 = vector.shape_cast %783 : vector<2x8xf32> to vector<2x8x1xf32>
    %786 = vector.broadcast %785 : vector<2x8x1xf32> to vector<2x8x128xf32>
    %787 = arith.mulf %786, %41 : vector<2x8x128xf32>
    %cst_240 = arith.constant dense<0.000000e+00> : vector<2x128xf32>
    %788 = vector.multi_reduction <add>, %787, %cst_240 [1] : vector<2x8x128xf32> to vector<2x128xf32>
    %c5_241 = arith.constant 5 : index
    %c0_242 = arith.constant 0 : index
    %c0_243 = arith.constant 0 : index
    %789 = vector.load %arg17[%c5_241, %c0_242, %c0_243] : memref<8x2x8xf32, #tpu.memory_space<vmem>>, vector<1x2x8xf32>
    %790 = vector.shape_cast %789 : vector<1x2x8xf32> to vector<2x8xf32>
    %791 = vector.shape_cast %768 : vector<2x8xf32> to vector<1x2x8xf32>
    tpu.vector_store %arg17[%c5_241, %c0_242, %c0_243], %791 {strides = array<i32>} : memref<8x2x8xf32, #tpu.memory_space<vmem>>, vector<1x2x8xf32>,
    %c5_244 = arith.constant 5 : index
    %c0_245 = arith.constant 0 : index
    %c0_246 = arith.constant 0 : index
    %792 = vector.load %arg18[%c5_244, %c0_245, %c0_246] : memref<8x2x1xi32, #tpu.memory_space<vmem>>, vector<1x2x1xi32>
    %793 = vector.shape_cast %792 : vector<1x2x1xi32> to vector<2x1xi32>
    %794 = vector.shape_cast %779 : vector<2x1xi32> to vector<1x2x1xi32>
    tpu.vector_store %arg18[%c5_244, %c0_245, %c0_246], %794 {strides = array<i32>} : memref<8x2x1xi32, #tpu.memory_space<vmem>>, vector<1x2x1xi32>,
    %cst_247 = arith.constant dense<0.000000e+00> : vector<2x128xf32>
    %795 = tpu.matmul %719, %14, %cst_247 {dimension_numbers = #tpu.dot_dimension_numbers<[1], [0], [0], [1], [0, 0, 1, 1], [], []>} : vector<2x32xf32>, vector<32x128xf32>, vector<2x128xf32> -> vector<2x128xf32>
    %796 = arith.addf %788, %795 : vector<2x128xf32>
    %797 = arith.negf %796 : vector<2x128xf32>
    %798 = math.exp %797 : vector<2x128xf32>
    %cst_248 = arith.constant 1.000000e+00 : f32
    %799 = vector.broadcast %cst_248 : f32 to vector<2x128xf32>
    %800 = arith.addf %799, %798 : vector<2x128xf32>
    %801 = arith.divf %799, %800 : vector<2x128xf32>
    %802 = vector.extract_strided_slice %801 {offsets = [0, 0], sizes = [2, 32], strides = [1, 1]} : vector<2x128xf32> to vector<2x32xf32>
    %803 = vector.extract_strided_slice %801 {offsets = [0, 32], sizes = [2, 32], strides = [1, 1]} : vector<2x128xf32> to vector<2x32xf32>
    %804 = vector.extract_strided_slice %801 {offsets = [0, 96], sizes = [2, 32], strides = [1, 1]} : vector<2x128xf32> to vector<2x32xf32>
    %805 = vector.extract_strided_slice %796 {offsets = [0, 64], sizes = [2, 32], strides = [1, 1]} : vector<2x128xf32> to vector<2x32xf32>
    %806 = math.tanh %805 : vector<2x32xf32>
    %807 = arith.mulf %803, %717 : vector<2x32xf32>
    %808 = arith.mulf %802, %806 : vector<2x32xf32>
    %809 = arith.addf %807, %808 : vector<2x32xf32>
    %810 = math.tanh %809 : vector<2x32xf32>
    %811 = arith.mulf %804, %810 : vector<2x32xf32>
    %cst_249 = arith.constant dense<0.000000e+00> : vector<2x32xf32>
    %812 = tpu.matmul %811, %15, %cst_249 {dimension_numbers = #tpu.dot_dimension_numbers<[1], [0], [0], [1], [0, 0, 1, 1], [], []>} : vector<2x32xf32>, vector<32x32xf32>, vector<2x32xf32> -> vector<2x32xf32>
    %813 = arith.addf %812, %19 : vector<2x32xf32>
    %814 = vector.shape_cast %813 : vector<2x32xf32> to vector<2x1x32xf32>
    %815 = vector.broadcast %814 : vector<2x1x32xf32> to vector<2x8x32xf32>
    %816 = arith.addf %815, %238 : vector<2x8x32xf32>
    %817 = math.tanh %816 : vector<2x8x32xf32>
    %818 = arith.mulf %817, %26 : vector<2x8x32xf32>
    %cst_250 = arith.constant dense<0.000000e+00> : vector<2x8xf32>
    %819 = vector.multi_reduction <add>, %818, %cst_250 [2] : vector<2x8x32xf32> to vector<2x8xf32>
    %cst_251 = arith.constant 5.000000e-01 : f32
    %820 = vector.broadcast %cst_251 : f32 to vector<2x8xf32>
    %821 = arith.cmpf ogt, %784, %820 : vector<2x8xf32>
    %cst_252 = arith.constant 0xFF800000 : f32
    %822 = vector.broadcast %cst_252 : f32 to vector<2x8xf32>
    %823 = arith.select %821, %822, %819 : vector<2x8xi1>, vector<2x8xf32>
    %cst_253 = arith.constant dense<0xFF800000> : vector<2xf32>
    %824 = vector.multi_reduction <maximumf>, %823, %cst_253 [1] : vector<2x8xf32> to vector<2xf32>
    %825 = vector.shape_cast %824 : vector<2xf32> to vector<2x1xf32>
    %826 = vector.broadcast %825 : vector<2x1xf32> to vector<2x8xf32>
    %827 = arith.subf %823, %826 : vector<2x8xf32>
    %828 = math.exp %827 : vector<2x8xf32>
    %cst_254 = arith.constant dense<0.000000e+00> : vector<2xf32>
    %829 = vector.multi_reduction <add>, %828, %cst_254 [1] : vector<2x8xf32> to vector<2xf32>
    %830 = vector.shape_cast %829 : vector<2xf32> to vector<2x1xf32>
    %831 = vector.broadcast %830 : vector<2x1xf32> to vector<2x8xf32>
    %832 = arith.divf %828, %831 : vector<2x8xf32>
    %833 = vector.shape_cast %832 : vector<2x8xf32> to vector<2x8x1xf32>
    %834 = vector.broadcast %833 : vector<2x8x1xf32> to vector<2x8x32xf32>
    %835 = arith.mulf %238, %834 : vector<2x8x32xf32>
    %cst_255 = arith.constant dense<0.000000e+00> : vector<2x32xf32>
    %836 = vector.multi_reduction <add>, %835, %cst_255 [1] : vector<2x8x32xf32> to vector<2x32xf32>
    %cst_256 = arith.constant dense<0.000000e+00> : vector<2x32xf32>
    %837 = tpu.matmul %836, %16, %cst_256 {dimension_numbers = #tpu.dot_dimension_numbers<[1], [0], [0], [1], [0, 0, 1, 1], [], []>} : vector<2x32xf32>, vector<32x32xf32>, vector<2x32xf32> -> vector<2x32xf32>
    %838 = arith.addf %837, %22 : vector<2x32xf32>
    %839 = vector.shape_cast %838 : vector<2x32xf32> to vector<2x1x32xf32>
    %840 = vector.broadcast %839 : vector<2x1x32xf32> to vector<2x8x32xf32>
    %841 = arith.addf %840, %240 : vector<2x8x32xf32>
    %842 = math.tanh %841 : vector<2x8x32xf32>
    %843 = arith.mulf %842, %30 : vector<2x8x32xf32>
    %cst_257 = arith.constant dense<0.000000e+00> : vector<2x8xf32>
    %844 = vector.multi_reduction <add>, %843, %cst_257 [2] : vector<2x8x32xf32> to vector<2x8xf32>
    %845 = math.tanh %844 : vector<2x8xf32>
    %cst_258 = arith.constant 1.000000e+01 : f32
    %846 = vector.broadcast %cst_258 : f32 to vector<2x8xf32>
    %847 = arith.mulf %846, %845 : vector<2x8xf32>
    %cst_259 = arith.constant 5.000000e-01 : f32
    %848 = vector.broadcast %cst_259 : f32 to vector<2x8xf32>
    %849 = arith.cmpf ogt, %784, %848 : vector<2x8xf32>
    %cst_260 = arith.constant 0xFF800000 : f32
    %850 = vector.broadcast %cst_260 : f32 to vector<2x8xf32>
    %851 = arith.select %849, %850, %847 : vector<2x8xi1>, vector<2x8xf32>
    %cst_261 = arith.constant dense<0xFF800000> : vector<2xf32>
    %852 = vector.multi_reduction <maximumf>, %851, %cst_261 [1] : vector<2x8xf32> to vector<2xf32>
    %853 = vector.shape_cast %852 : vector<2xf32> to vector<2x1xf32>
    %854 = vector.broadcast %853 : vector<2x1xf32> to vector<2x8xf32>
    %855 = arith.subf %851, %854 : vector<2x8xf32>
    %856 = math.exp %855 : vector<2x8xf32>
    %cst_262 = arith.constant dense<0.000000e+00> : vector<2xf32>
    %857 = vector.multi_reduction <add>, %856, %cst_262 [1] : vector<2x8xf32> to vector<2xf32>
    %858 = vector.shape_cast %857 : vector<2xf32> to vector<2x1xf32>
    %859 = vector.broadcast %858 : vector<2x1xf32> to vector<2x8xf32>
    %860 = arith.divf %856, %859 : vector<2x8xf32>
    %c6_263 = arith.constant 6 : index
    %c0_264 = arith.constant 0 : index
    %c0_265 = arith.constant 0 : index
    %861 = vector.load %arg2[%c6_263, %c0_264, %c0_265] : memref<8x2x8xf32, #tpu.memory_space<vmem>>, vector<1x2x8xf32>
    %862 = vector.shape_cast %861 : vector<1x2x8xf32> to vector<2x8xf32>
    %863 = arith.addf %851, %862 : vector<2x8xf32>
    %cst_266 = arith.constant dense<0xFF800000> : vector<2xf32>
    %864 = vector.multi_reduction <maximumf>, %863, %cst_266 [1] : vector<2x8xf32> to vector<2xf32>
    %865 = vector.shape_cast %864 : vector<2xf32> to vector<2x1xf32>
    %866 = vector.broadcast %865 : vector<2x1xf32> to vector<2x8xf32>
    %867 = arith.cmpf oge, %863, %866 : vector<2x8xf32>
    %c8_i32_267 = arith.constant 8 : i32
    %868 = vector.broadcast %c8_i32_267 : i32 to vector<2x8xi32>
    %869 = arith.select %867, %241, %868 : vector<2x8xi1>, vector<2x8xi32>
    %cst_268 = arith.constant dense<2147483647> : vector<2xi32>
    %870 = vector.multi_reduction <minsi>, %869, %cst_268 [1] : vector<2x8xi32> to vector<2xi32>
    %871 = vector.shape_cast %870 : vector<2xi32> to vector<2x1xi32>
    %872 = vector.broadcast %871 : vector<2x1xi32> to vector<2x8xi32>
    %873 = arith.cmpi eq, %241, %872 : vector<2x8xi32>
    %874 = arith.extui %873 : vector<2x8xi1> to vector<2x8xi32>
    %875 = arith.sitofp %874 : vector<2x8xi32> to vector<2x8xf32>
    %876 = arith.maximumf %784, %875 : vector<2x8xf32>
    %877 = vector.shape_cast %875 : vector<2x8xf32> to vector<2x8x1xf32>
    %878 = vector.broadcast %877 : vector<2x8x1xf32> to vector<2x8x128xf32>
    %879 = arith.mulf %878, %41 : vector<2x8x128xf32>
    %cst_269 = arith.constant dense<0.000000e+00> : vector<2x128xf32>
    %880 = vector.multi_reduction <add>, %879, %cst_269 [1] : vector<2x8x128xf32> to vector<2x128xf32>
    %c6_270 = arith.constant 6 : index
    %c0_271 = arith.constant 0 : index
    %c0_272 = arith.constant 0 : index
    %881 = vector.load %arg17[%c6_270, %c0_271, %c0_272] : memref<8x2x8xf32, #tpu.memory_space<vmem>>, vector<1x2x8xf32>
    %882 = vector.shape_cast %881 : vector<1x2x8xf32> to vector<2x8xf32>
    %883 = vector.shape_cast %860 : vector<2x8xf32> to vector<1x2x8xf32>
    tpu.vector_store %arg17[%c6_270, %c0_271, %c0_272], %883 {strides = array<i32>} : memref<8x2x8xf32, #tpu.memory_space<vmem>>, vector<1x2x8xf32>,
    %c6_273 = arith.constant 6 : index
    %c0_274 = arith.constant 0 : index
    %c0_275 = arith.constant 0 : index
    %884 = vector.load %arg18[%c6_273, %c0_274, %c0_275] : memref<8x2x1xi32, #tpu.memory_space<vmem>>, vector<1x2x1xi32>
    %885 = vector.shape_cast %884 : vector<1x2x1xi32> to vector<2x1xi32>
    %886 = vector.shape_cast %871 : vector<2x1xi32> to vector<1x2x1xi32>
    tpu.vector_store %arg18[%c6_273, %c0_274, %c0_275], %886 {strides = array<i32>} : memref<8x2x1xi32, #tpu.memory_space<vmem>>, vector<1x2x1xi32>,
    %cst_276 = arith.constant dense<0.000000e+00> : vector<2x128xf32>
    %887 = tpu.matmul %811, %14, %cst_276 {dimension_numbers = #tpu.dot_dimension_numbers<[1], [0], [0], [1], [0, 0, 1, 1], [], []>} : vector<2x32xf32>, vector<32x128xf32>, vector<2x128xf32> -> vector<2x128xf32>
    %888 = arith.addf %880, %887 : vector<2x128xf32>
    %889 = arith.negf %888 : vector<2x128xf32>
    %890 = math.exp %889 : vector<2x128xf32>
    %cst_277 = arith.constant 1.000000e+00 : f32
    %891 = vector.broadcast %cst_277 : f32 to vector<2x128xf32>
    %892 = arith.addf %891, %890 : vector<2x128xf32>
    %893 = arith.divf %891, %892 : vector<2x128xf32>
    %894 = vector.extract_strided_slice %893 {offsets = [0, 0], sizes = [2, 32], strides = [1, 1]} : vector<2x128xf32> to vector<2x32xf32>
    %895 = vector.extract_strided_slice %893 {offsets = [0, 32], sizes = [2, 32], strides = [1, 1]} : vector<2x128xf32> to vector<2x32xf32>
    %896 = vector.extract_strided_slice %893 {offsets = [0, 96], sizes = [2, 32], strides = [1, 1]} : vector<2x128xf32> to vector<2x32xf32>
    %897 = vector.extract_strided_slice %888 {offsets = [0, 64], sizes = [2, 32], strides = [1, 1]} : vector<2x128xf32> to vector<2x32xf32>
    %898 = math.tanh %897 : vector<2x32xf32>
    %899 = arith.mulf %895, %809 : vector<2x32xf32>
    %900 = arith.mulf %894, %898 : vector<2x32xf32>
    %901 = arith.addf %899, %900 : vector<2x32xf32>
    %902 = math.tanh %901 : vector<2x32xf32>
    %903 = arith.mulf %896, %902 : vector<2x32xf32>
    %cst_278 = arith.constant dense<0.000000e+00> : vector<2x32xf32>
    %904 = tpu.matmul %903, %15, %cst_278 {dimension_numbers = #tpu.dot_dimension_numbers<[1], [0], [0], [1], [0, 0, 1, 1], [], []>} : vector<2x32xf32>, vector<32x32xf32>, vector<2x32xf32> -> vector<2x32xf32>
    %905 = arith.addf %904, %19 : vector<2x32xf32>
    %906 = vector.shape_cast %905 : vector<2x32xf32> to vector<2x1x32xf32>
    %907 = vector.broadcast %906 : vector<2x1x32xf32> to vector<2x8x32xf32>
    %908 = arith.addf %907, %238 : vector<2x8x32xf32>
    %909 = math.tanh %908 : vector<2x8x32xf32>
    %910 = arith.mulf %909, %26 : vector<2x8x32xf32>
    %cst_279 = arith.constant dense<0.000000e+00> : vector<2x8xf32>
    %911 = vector.multi_reduction <add>, %910, %cst_279 [2] : vector<2x8x32xf32> to vector<2x8xf32>
    %cst_280 = arith.constant 5.000000e-01 : f32
    %912 = vector.broadcast %cst_280 : f32 to vector<2x8xf32>
    %913 = arith.cmpf ogt, %876, %912 : vector<2x8xf32>
    %cst_281 = arith.constant 0xFF800000 : f32
    %914 = vector.broadcast %cst_281 : f32 to vector<2x8xf32>
    %915 = arith.select %913, %914, %911 : vector<2x8xi1>, vector<2x8xf32>
    %cst_282 = arith.constant dense<0xFF800000> : vector<2xf32>
    %916 = vector.multi_reduction <maximumf>, %915, %cst_282 [1] : vector<2x8xf32> to vector<2xf32>
    %917 = vector.shape_cast %916 : vector<2xf32> to vector<2x1xf32>
    %918 = vector.broadcast %917 : vector<2x1xf32> to vector<2x8xf32>
    %919 = arith.subf %915, %918 : vector<2x8xf32>
    %920 = math.exp %919 : vector<2x8xf32>
    %cst_283 = arith.constant dense<0.000000e+00> : vector<2xf32>
    %921 = vector.multi_reduction <add>, %920, %cst_283 [1] : vector<2x8xf32> to vector<2xf32>
    %922 = vector.shape_cast %921 : vector<2xf32> to vector<2x1xf32>
    %923 = vector.broadcast %922 : vector<2x1xf32> to vector<2x8xf32>
    %924 = arith.divf %920, %923 : vector<2x8xf32>
    %925 = vector.shape_cast %924 : vector<2x8xf32> to vector<2x8x1xf32>
    %926 = vector.broadcast %925 : vector<2x8x1xf32> to vector<2x8x32xf32>
    %927 = arith.mulf %238, %926 : vector<2x8x32xf32>
    %cst_284 = arith.constant dense<0.000000e+00> : vector<2x32xf32>
    %928 = vector.multi_reduction <add>, %927, %cst_284 [1] : vector<2x8x32xf32> to vector<2x32xf32>
    %cst_285 = arith.constant dense<0.000000e+00> : vector<2x32xf32>
    %929 = tpu.matmul %928, %16, %cst_285 {dimension_numbers = #tpu.dot_dimension_numbers<[1], [0], [0], [1], [0, 0, 1, 1], [], []>} : vector<2x32xf32>, vector<32x32xf32>, vector<2x32xf32> -> vector<2x32xf32>
    %930 = arith.addf %929, %22 : vector<2x32xf32>
    %931 = vector.shape_cast %930 : vector<2x32xf32> to vector<2x1x32xf32>
    %932 = vector.broadcast %931 : vector<2x1x32xf32> to vector<2x8x32xf32>
    %933 = arith.addf %932, %240 : vector<2x8x32xf32>
    %934 = math.tanh %933 : vector<2x8x32xf32>
    %935 = arith.mulf %934, %30 : vector<2x8x32xf32>
    %cst_286 = arith.constant dense<0.000000e+00> : vector<2x8xf32>
    %936 = vector.multi_reduction <add>, %935, %cst_286 [2] : vector<2x8x32xf32> to vector<2x8xf32>
    %937 = math.tanh %936 : vector<2x8xf32>
    %cst_287 = arith.constant 1.000000e+01 : f32
    %938 = vector.broadcast %cst_287 : f32 to vector<2x8xf32>
    %939 = arith.mulf %938, %937 : vector<2x8xf32>
    %cst_288 = arith.constant 5.000000e-01 : f32
    %940 = vector.broadcast %cst_288 : f32 to vector<2x8xf32>
    %941 = arith.cmpf ogt, %876, %940 : vector<2x8xf32>
    %cst_289 = arith.constant 0xFF800000 : f32
    %942 = vector.broadcast %cst_289 : f32 to vector<2x8xf32>
    %943 = arith.select %941, %942, %939 : vector<2x8xi1>, vector<2x8xf32>
    %cst_290 = arith.constant dense<0xFF800000> : vector<2xf32>
    %944 = vector.multi_reduction <maximumf>, %943, %cst_290 [1] : vector<2x8xf32> to vector<2xf32>
    %945 = vector.shape_cast %944 : vector<2xf32> to vector<2x1xf32>
    %946 = vector.broadcast %945 : vector<2x1xf32> to vector<2x8xf32>
    %947 = arith.subf %943, %946 : vector<2x8xf32>
    %948 = math.exp %947 : vector<2x8xf32>
    %cst_291 = arith.constant dense<0.000000e+00> : vector<2xf32>
    %949 = vector.multi_reduction <add>, %948, %cst_291 [1] : vector<2x8xf32> to vector<2xf32>
    %950 = vector.shape_cast %949 : vector<2xf32> to vector<2x1xf32>
    %951 = vector.broadcast %950 : vector<2x1xf32> to vector<2x8xf32>
    %952 = arith.divf %948, %951 : vector<2x8xf32>
    %c7_292 = arith.constant 7 : index
    %c0_293 = arith.constant 0 : index
    %c0_294 = arith.constant 0 : index
    %953 = vector.load %arg2[%c7_292, %c0_293, %c0_294] : memref<8x2x8xf32, #tpu.memory_space<vmem>>, vector<1x2x8xf32>
    %954 = vector.shape_cast %953 : vector<1x2x8xf32> to vector<2x8xf32>
    %955 = arith.addf %943, %954 : vector<2x8xf32>
    %cst_295 = arith.constant dense<0xFF800000> : vector<2xf32>
    %956 = vector.multi_reduction <maximumf>, %955, %cst_295 [1] : vector<2x8xf32> to vector<2xf32>
    %957 = vector.shape_cast %956 : vector<2xf32> to vector<2x1xf32>
    %958 = vector.broadcast %957 : vector<2x1xf32> to vector<2x8xf32>
    %959 = arith.cmpf oge, %955, %958 : vector<2x8xf32>
    %c8_i32_296 = arith.constant 8 : i32
    %960 = vector.broadcast %c8_i32_296 : i32 to vector<2x8xi32>
    %961 = arith.select %959, %241, %960 : vector<2x8xi1>, vector<2x8xi32>
    %cst_297 = arith.constant dense<2147483647> : vector<2xi32>
    %962 = vector.multi_reduction <minsi>, %961, %cst_297 [1] : vector<2x8xi32> to vector<2xi32>
    %963 = vector.shape_cast %962 : vector<2xi32> to vector<2x1xi32>
    %c7_298 = arith.constant 7 : index
    %c0_299 = arith.constant 0 : index
    %c0_300 = arith.constant 0 : index
    %964 = vector.load %arg17[%c7_298, %c0_299, %c0_300] : memref<8x2x8xf32, #tpu.memory_space<vmem>>, vector<1x2x8xf32>
    %965 = vector.shape_cast %964 : vector<1x2x8xf32> to vector<2x8xf32>
    %966 = vector.shape_cast %952 : vector<2x8xf32> to vector<1x2x8xf32>
    tpu.vector_store %arg17[%c7_298, %c0_299, %c0_300], %966 {strides = array<i32>} : memref<8x2x8xf32, #tpu.memory_space<vmem>>, vector<1x2x8xf32>,
    %c7_301 = arith.constant 7 : index
    %c0_302 = arith.constant 0 : index
    %c0_303 = arith.constant 0 : index
    %967 = vector.load %arg18[%c7_301, %c0_302, %c0_303] : memref<8x2x1xi32, #tpu.memory_space<vmem>>, vector<1x2x1xi32>
    %968 = vector.shape_cast %967 : vector<1x2x1xi32> to vector<2x1xi32>
    %969 = vector.shape_cast %963 : vector<2x1xi32> to vector<1x2x1xi32>
    tpu.vector_store %arg18[%c7_301, %c0_302, %c0_303], %969 {strides = array<i32>} : memref<8x2x1xi32, #tpu.memory_space<vmem>>, vector<1x2x1xi32>,
    return
  }
  func.func @transform_0(%arg0: i32) -> (i32, i32) {
    %c0_i32 = arith.constant 0 : i32
    %c0_i32_0 = arith.constant 0 : i32
    return %arg0, %c0_i32 : i32, i32
  }
  func.func @transform_1(%arg0: i32) -> (i32, i32, i32) {
    %c0_i32 = arith.constant 0 : i32
    %c0_i32_0 = arith.constant 0 : i32
    %c0_i32_1 = arith.constant 0 : i32
    return %c0_i32, %arg0, %c0_i32_0 : i32, i32, i32
  }
  func.func @transform_2(%arg0: i32) -> (i32, i32) {
    %c0_i32 = arith.constant 0 : i32
    %c0_i32_0 = arith.constant 0 : i32
    %c0_i32_1 = arith.constant 0 : i32
    return %c0_i32, %c0_i32_0 : i32, i32
  }
  func.func @transform_3(%arg0: i32) -> (i32, i32) {
    %c0_i32 = arith.constant 0 : i32
    %c0_i32_0 = arith.constant 0 : i32
    %c0_i32_1 = arith.constant 0 : i32
    return %c0_i32, %c0_i32_0 : i32, i32
  }
  func.func @transform_4(%arg0: i32) -> (i32, i32) {
    %c0_i32 = arith.constant 0 : i32
    %c0_i32_0 = arith.constant 0 : i32
    %c0_i32_1 = arith.constant 0 : i32
    return %c0_i32, %c0_i32_0 : i32, i32
  }
  func.func @transform_5(%arg0: i32) -> (i32, i32) {
    %c0_i32 = arith.constant 0 : i32
    %c0_i32_0 = arith.constant 0 : i32
    %c0_i32_1 = arith.constant 0 : i32
    return %c0_i32, %c0_i32_0 : i32, i32
  }
  func.func @transform_6(%arg0: i32) -> (i32, i32) {
    %c0_i32 = arith.constant 0 : i32
    %c0_i32_0 = arith.constant 0 : i32
    %c0_i32_1 = arith.constant 0 : i32
    return %c0_i32, %c0_i32_0 : i32, i32
  }
  func.func @transform_7(%arg0: i32) -> (i32, i32) {
    %c0_i32 = arith.constant 0 : i32
    %c0_i32_0 = arith.constant 0 : i32
    %c0_i32_1 = arith.constant 0 : i32
    return %c0_i32, %c0_i32_0 : i32, i32
  }
  func.func @transform_8(%arg0: i32) -> (i32, i32) {
    %c0_i32 = arith.constant 0 : i32
    %c0_i32_0 = arith.constant 0 : i32
    %c0_i32_1 = arith.constant 0 : i32
    return %c0_i32, %c0_i32_0 : i32, i32
  }
  func.func @transform_9(%arg0: i32) -> (i32, i32) {
    %c0_i32 = arith.constant 0 : i32
    %c0_i32_0 = arith.constant 0 : i32
    %c0_i32_1 = arith.constant 0 : i32
    return %c0_i32, %c0_i32_0 : i32, i32
  }
  func.func @transform_10(%arg0: i32) -> (i32, i32) {
    %c0_i32 = arith.constant 0 : i32
    %c0_i32_0 = arith.constant 0 : i32
    %c0_i32_1 = arith.constant 0 : i32
    return %c0_i32, %c0_i32_0 : i32, i32
  }
  func.func @transform_11(%arg0: i32) -> (i32, i32) {
    %c0_i32 = arith.constant 0 : i32
    %c0_i32_0 = arith.constant 0 : i32
    %c0_i32_1 = arith.constant 0 : i32
    return %c0_i32, %c0_i32_0 : i32, i32
  }
  func.func @transform_12(%arg0: i32) -> (i32, i32) {
    %c0_i32 = arith.constant 0 : i32
    %c0_i32_0 = arith.constant 0 : i32
    %c0_i32_1 = arith.constant 0 : i32
    return %c0_i32, %c0_i32_0 : i32, i32
  }
  func.func @transform_13(%arg0: i32) -> (i32, i32) {
    %c0_i32 = arith.constant 0 : i32
    %c0_i32_0 = arith.constant 0 : i32
    %c0_i32_1 = arith.constant 0 : i32
    return %c0_i32, %c0_i32_0 : i32, i32
  }
  func.func @transform_14(%arg0: i32) -> (i32, i32) {
    %c0_i32 = arith.constant 0 : i32
    %c0_i32_0 = arith.constant 0 : i32
    %c0_i32_1 = arith.constant 0 : i32
    return %c0_i32, %c0_i32_0 : i32, i32
  }
  func.func @transform_15(%arg0: i32) -> (i32, i32) {
    %c0_i32 = arith.constant 0 : i32
    %c0_i32_0 = arith.constant 0 : i32
    %c0_i32_1 = arith.constant 0 : i32
    return %c0_i32, %c0_i32_0 : i32, i32
  }
  func.func @transform_16(%arg0: i32) -> (i32, i32, i32) {
    %c0_i32 = arith.constant 0 : i32
    %c0_i32_0 = arith.constant 0 : i32
    %c0_i32_1 = arith.constant 0 : i32
    return %c0_i32, %arg0, %c0_i32_0 : i32, i32, i32
  }
  func.func @transform_17(%arg0: i32) -> (i32, i32, i32) {
    %c0_i32 = arith.constant 0 : i32
    %c0_i32_0 = arith.constant 0 : i32
    %c0_i32_1 = arith.constant 0 : i32
    return %c0_i32, %arg0, %c0_i32_0 : i32, i32, i32
  }
}

</mosaic_0001>

<llo_original>
// kernel: tpu_custom_call.1
$region0: #{tpu_custom_call.1}
  #allocation0 [shape = 'u32[]', space=smem, size = 0x4, offset = 0x4, fixed_abs, tag = 'smem constant byte address 0x4 - core index']
  #allocation1 [shape = 'u32[144,128]{1,0:T(1,128)}', space=vmem, size = 0x12000, scoped, tag = 'internal scratch']
  #allocation2 [shape = 'f32[2,8,32]{2,1,0:T(8,128)}', space=vmem, size = 0x2000, scoped, tag = 'scratch operand']
  %s0 = inlined_call_operand.vmem [shape: f32[16,2], index: 0, kind: input, shape index: {}]
  %s1 = inlined_call_operand.hbm [shape: f32[8,2,8], index: 1, kind: input, shape index: {}]
  %s2 = inlined_call_operand.vmem [shape: f32[2,16], index: 2, kind: input, shape index: {}]
  %s3 = inlined_call_operand.hbm [shape: f32[16,256], index: 3, kind: input, shape index: {}]
  %s4 = inlined_call_operand.hbm [shape: f32[1,256], index: 4, kind: input, shape index: {}]
  %s5 = inlined_call_operand.hbm [shape: f32[32,128], index: 5, kind: input, shape index: {}]
  %s6 = inlined_call_operand.hbm [shape: f32[32,128], index: 6, kind: input, shape index: {}]
  %s7 = inlined_call_operand.hbm [shape: f32[32,64], index: 7, kind: input, shape index: {}]
  %s8 = inlined_call_operand.hbm [shape: f32[1,64], index: 8, kind: input, shape index: {}]
  %s9 = inlined_call_operand.vmem [shape: f32[32,32], index: 9, kind: input, shape index: {}]
  %s10 = inlined_call_operand.vmem [shape: f32[1,32], index: 10, kind: input, shape index: {}]
  %s11 = inlined_call_operand.vmem [shape: f32[1,32], index: 11, kind: input, shape index: {}]
  %s12 = inlined_call_operand.hbm [shape: f32[32,32], index: 12, kind: input, shape index: {}]
  %s13 = inlined_call_operand.vmem [shape: f32[1,32], index: 13, kind: input, shape index: {}]
  %s14 = inlined_call_operand.vmem [shape: f32[1,32], index: 14, kind: input, shape index: {}]
  %s15 = inlined_call_operand.vmem [shape: f32[1,16], index: 15, kind: input, shape index: {}]
  %s16 = inlined_call_operand.hbm [shape: f32[8,2,8], index: 16, kind: output, shape index: {0}]
  %s17 = inlined_call_operand.vmem [shape: s32[8,2,1], index: 17, kind: output, shape index: {1}]
  %18 = xla_tuple %s16, %s17
  %s19 = sld [smem:[#allocation0]]
  $region114: #{tpu_custom_call.1} parent=0
    _
  %s21 = ssub.s32 1, %s19
  %s22 = scalar_select 0, %s21, %s19
  $region1: #{tpu_custom_call.1} parent=0
    #allocation3 [shape = 'u8[8192]{0}', space=vmem, size = 0x2000, scoped, tag = 'input window, operand 1, single buffered']
    #allocation4 [shape = 's32[1]{0}', space=sflag, size = 0x4, scoped, tag = 'scoped memory for tpu_custom_call.1']
    #allocation5 [shape = 's32[1]{0}', space=sflag, size = 0x4, scoped, tag = 'scoped memory for tpu_custom_call.1']
    #allocation6 [shape = 'u8[16384]{0}', space=vmem, size = 0x4000, scoped, tag = 'input window, operand 3, single buffered']
    #allocation7 [shape = 's32[1]{0}', space=sflag, size = 0x4, scoped, tag = 'scoped memory for tpu_custom_call.1']
    #allocation8 [shape = 'u8[1024]{0}', space=vmem, size = 0x400, scoped, tag = 'input window, operand 4, single buffered']
    #allocation9 [shape = 'u8[16384]{0}', space=vmem, size = 0x4000, scoped, tag = 'input window, operand 5, single buffered']
    #allocation10 [shape = 's32[1]{0}', space=sflag, size = 0x4, scoped, tag = 'scoped memory for tpu_custom_call.1']
    #allocation11 [shape = 'u8[16384]{0}', space=vmem, size = 0x4000, scoped, tag = 'input window, operand 6, single buffered']
    #allocation12 [shape = 'u8[16384]{0}', space=vmem, size = 0x4000, scoped, tag = 'input window, operand 7, single buffered']
    #allocation13 [shape = 's32[1]{0}', space=sflag, size = 0x4, scoped, tag = 'scoped memory for tpu_custom_call.1']
    #allocation14 [shape = 'u8[512]{0}', space=vmem, size = 0x400, scoped, tag = 'input window, operand 8, single buffered']
    #allocation15 [shape = 'u8[16384]{0}', space=vmem, size = 0x4000, scoped, tag = 'input window, operand 12, single buffered']
    #allocation16 [shape = 's32[1]{0}', space=sflag, size = 0x4, scoped, tag = 'scoped memory for tpu_custom_call.1']
    #allocation17 [shape = 'u8[8192]{0}', space=vmem, size = 0x2000, scoped, tag = 'output window, operand 0, single buffered']
    %23 = vsyncpa [#allocation4], 0
    %24 = vsyncpa [#allocation7], 0
    %25 = vsyncpa [#allocation10], 0
    %26 = vsyncpa [#allocation13], 0
    %27 = vsyncpa [#allocation16], 0
    %28 = vsyncpa [#allocation5], 0
    // Predicated region
    $region2: #{tpu_custom_call.1} parent=1 // pred_check
      _
    $region3: #{tpu_custom_call.1} parent=1 // pred_check_branch
      %30 = sbr.rel (0) target = $region5
    $region4: #{tpu_custom_call.1} parent=1 // pred_region
      _
    $region5: #{tpu_custom_call.1} parent=1 // pred_fallthru
      _
    // Predicated region
    $region6: #{tpu_custom_call.1} parent=1 // pred_check
      _
    $region7: #{tpu_custom_call.1} parent=1 // pred_check_branch
      %32 = sbr.rel (0) target = $region9
    $region8: #{tpu_custom_call.1} parent=1 // pred_region
      %s34 = ssub.s32 256, 256
      %35 = vsyncadd [#allocation4], %s34
      %s36 = sshll.u32 [#allocation3], 4
      %s37 = int_to_ptr.vmem [resolvable:$true] %s36
      %42 = dma.hbm_to_vmem [thread:$0]  %s1, 256, %s37, [#allocation4], 32, 32, 2
    $region9: #{tpu_custom_call.1} parent=1 // pred_fallthru
      _
    // Predicated region
    $region10: #{tpu_custom_call.1} parent=1 // pred_check
      _
    $region11: #{tpu_custom_call.1} parent=1 // pred_check_branch
      %44 = sbr.rel (0) target = $region13
    $region12: #{tpu_custom_call.1} parent=1 // pred_region
      _
    $region13: #{tpu_custom_call.1} parent=1 // pred_fallthru
      _
    // Predicated region
    $region14: #{tpu_custom_call.1} parent=1 // pred_check
      _
    $region15: #{tpu_custom_call.1} parent=1 // pred_check_branch
      %46 = sbr.rel (0) target = $region17
    $region16: #{tpu_custom_call.1} parent=1 // pred_region
      %s48 = ssub.s32 512, 512
      %49 = vsyncadd [#allocation7], %s48
      %s50 = sshll.u32 [#allocation6], 4
      %s51 = int_to_ptr.vmem [resolvable:$true] %s50
      %56 = dma.hbm_to_vmem [thread:$0]  %s3, 512, %s51, [#allocation7], 256, 256, 16
    $region17: #{tpu_custom_call.1} parent=1 // pred_fallthru
      _
    // Predicated region
    $region18: #{tpu_custom_call.1} parent=1 // pred_check
      _
    $region19: #{tpu_custom_call.1} parent=1 // pred_check_branch
      %58 = sbr.rel (0) target = $region21
    $region20: #{tpu_custom_call.1} parent=1 // pred_region
      %s60 = ssub.s32 32, 32
      %61 = vsyncadd [#allocation7], %s60
      %s63 = sshll.u32 [#allocation8], 4
      %s64 = int_to_ptr.vmem [resolvable:$true] %s63
      %66 = dma.hbm_to_vmem [thread:$0]  %s4, 32, %s64, [#allocation7]
    $region21: #{tpu_custom_call.1} parent=1 // pred_fallthru
      _
    // Predicated region
    $region22: #{tpu_custom_call.1} parent=1 // pred_check
      _
    $region23: #{tpu_custom_call.1} parent=1 // pred_check_branch
      %68 = sbr.rel (0) target = $region25
    $region24: #{tpu_custom_call.1} parent=1 // pred_region
      %s70 = ssub.s32 512, 512
      %71 = vsyncadd [#allocation10], %s70
      %s72 = sshll.u32 [#allocation9], 4
      %s73 = int_to_ptr.vmem [resolvable:$true] %s72
      %78 = dma.hbm_to_vmem [thread:$0]  %s5, 512, %s73, [#allocation10], 128, 128, 8
    $region25: #{tpu_custom_call.1} parent=1 // pred_fallthru
      _
    // Predicated region
    $region26: #{tpu_custom_call.1} parent=1 // pred_check
      _
    $region27: #{tpu_custom_call.1} parent=1 // pred_check_branch
      %80 = sbr.rel (0) target = $region29
    $region28: #{tpu_custom_call.1} parent=1 // pred_region
      %s82 = ssub.s32 512, 512
      %83 = vsyncadd [#allocation10], %s82
      %s84 = sshll.u32 [#allocation11], 4
      %s85 = int_to_ptr.vmem [resolvable:$true] %s84
      %90 = dma.hbm_to_vmem [thread:$0]  %s6, 512, %s85, [#allocation10], 128, 128, 8
    $region29: #{tpu_custom_call.1} parent=1 // pred_fallthru
      _
    // Predicated region
    $region30: #{tpu_custom_call.1} parent=1 // pred_check
      _
    $region31: #{tpu_custom_call.1} parent=1 // pred_check_branch
      %92 = sbr.rel (0) target = $region33
    $region32: #{tpu_custom_call.1} parent=1 // pred_region
      %s94 = ssub.s32 512, 512
      %95 = vsyncadd [#allocation13], %s94
      %s96 = sshll.u32 [#allocation12], 4
      %s97 = int_to_ptr.vmem [resolvable:$true] %s96
      %102 = dma.hbm_to_vmem [thread:$0]  %s7, 512, %s97, [#allocation13], 128, 128, 8
    $region33: #{tpu_custom_call.1} parent=1 // pred_fallthru
      _
    // Predicated region
    $region34: #{tpu_custom_call.1} parent=1 // pred_check
      _
    $region35: #{tpu_custom_call.1} parent=1 // pred_check_branch
      %104 = sbr.rel (0) target = $region37
    $region36: #{tpu_custom_call.1} parent=1 // pred_region
      %s106 = ssub.s32 16, 16
      %107 = vsyncadd [#allocation13], %s106
      %s109 = sshll.u32 [#allocation14], 4
      %s110 = int_to_ptr.vmem [resolvable:$true] %s109
      %112 = dma.hbm_to_vmem [thread:$0]  %s8, 16, %s110, [#allocation13]
    $region37: #{tpu_custom_call.1} parent=1 // pred_fallthru
      _
    // Predicated region
    $region38: #{tpu_custom_call.1} parent=1 // pred_check
      _
    $region39: #{tpu_custom_call.1} parent=1 // pred_check_branch
      %114 = sbr.rel (0) target = $region41
    $region40: #{tpu_custom_call.1} parent=1 // pred_region
      _
    $region41: #{tpu_custom_call.1} parent=1 // pred_fallthru
      _
    // Predicated region
    $region42: #{tpu_custom_call.1} parent=1 // pred_check
      _
    $region43: #{tpu_custom_call.1} parent=1 // pred_check_branch
      %116 = sbr.rel (0) target = $region45
    $region44: #{tpu_custom_call.1} parent=1 // pred_region
      _
    $region45: #{tpu_custom_call.1} parent=1 // pred_fallthru
      _
    // Predicated region
    $region46: #{tpu_custom_call.1} parent=1 // pred_check
      _
    $region47: #{tpu_custom_call.1} parent=1 // pred_check_branch
      %118 = sbr.rel (0) target = $region49
    $region48: #{tpu_custom_call.1} parent=1 // pred_region
      _
    $region49: #{tpu_custom_call.1} parent=1 // pred_fallthru
      _
    // Predicated region
    $region50: #{tpu_custom_call.1} parent=1 // pred_check
      _
    $region51: #{tpu_custom_call.1} parent=1 // pred_check_branch
      %120 = sbr.rel (0) target = $region53
    $region52: #{tpu_custom_call.1} parent=1 // pred_region
      %s122 = ssub.s32 512, 512
      %123 = vsyncadd [#allocation16], %s122
      %s124 = sshll.u32 [#allocation15], 4
      %s125 = int_to_ptr.vmem [resolvable:$true] %s124
      %130 = dma.hbm_to_vmem [thread:$0]  %s12, 512, %s125, [#allocation16], 128, 128, 8
    $region53: #{tpu_custom_call.1} parent=1 // pred_fallthru
      _
    // Predicated region
    $region54: #{tpu_custom_call.1} parent=1 // pred_check
      _
    $region55: #{tpu_custom_call.1} parent=1 // pred_check_branch
      %132 = sbr.rel (0) target = $region57
    $region56: #{tpu_custom_call.1} parent=1 // pred_region
      _
    $region57: #{tpu_custom_call.1} parent=1 // pred_fallthru
      _
    // Predicated region
    $region58: #{tpu_custom_call.1} parent=1 // pred_check
      _
    $region59: #{tpu_custom_call.1} parent=1 // pred_check_branch
      %134 = sbr.rel (0) target = $region61
    $region60: #{tpu_custom_call.1} parent=1 // pred_region
      _
    $region61: #{tpu_custom_call.1} parent=1 // pred_fallthru
      _
    // Predicated region
    $region62: #{tpu_custom_call.1} parent=1 // pred_check
      _
    $region63: #{tpu_custom_call.1} parent=1 // pred_check_branch
      %136 = sbr.rel (0) target = $region65
    $region64: #{tpu_custom_call.1} parent=1 // pred_region
      _
    $region65: #{tpu_custom_call.1} parent=1 // pred_fallthru
      _
    // Predicated region
    $region66: #{tpu_custom_call.1} parent=1 // pred_check
      _
    $region67: #{tpu_custom_call.1} parent=1 // pred_check_branch
      %138 = sbr.rel (0) target = $region69
    $region68: #{tpu_custom_call.1} parent=1 // pred_region
      %139 = dma.done [#allocation4], 256
    $region69: #{tpu_custom_call.1} parent=1 // pred_fallthru
      _
    // Predicated region
    $region70: #{tpu_custom_call.1} parent=1 // pred_check
      _
    $region71: #{tpu_custom_call.1} parent=1 // pred_check_branch
      %141 = sbr.rel (0) target = $region73
    $region72: #{tpu_custom_call.1} parent=1 // pred_region
      %142 = dma.done [#allocation7], 512
    $region73: #{tpu_custom_call.1} parent=1 // pred_fallthru
      _
    // Predicated region
    $region74: #{tpu_custom_call.1} parent=1 // pred_check
      _
    $region75: #{tpu_custom_call.1} parent=1 // pred_check_branch
      %144 = sbr.rel (0) target = $region77
    $region76: #{tpu_custom_call.1} parent=1 // pred_region
      %145 = dma.done [#allocation7], 32
    $region77: #{tpu_custom_call.1} parent=1 // pred_fallthru
      _
    // Predicated region
    $region78: #{tpu_custom_call.1} parent=1 // pred_check
      _
    $region79: #{tpu_custom_call.1} parent=1 // pred_check_branch
      %147 = sbr.rel (0) target = $region81
    $region80: #{tpu_custom_call.1} parent=1 // pred_region
      %148 = dma.done [#allocation10], 512
    $region81: #{tpu_custom_call.1} parent=1 // pred_fallthru
      _
    // Predicated region
    $region82: #{tpu_custom_call.1} parent=1 // pred_check
      _
    $region83: #{tpu_custom_call.1} parent=1 // pred_check_branch
      %150 = sbr.rel (0) target = $region85
    $region84: #{tpu_custom_call.1} parent=1 // pred_region
      %151 = dma.done [#allocation10], 512
    $region85: #{tpu_custom_call.1} parent=1 // pred_fallthru
      _
    // Predicated region
    $region86: #{tpu_custom_call.1} parent=1 // pred_check
      _
    $region87: #{tpu_custom_call.1} parent=1 // pred_check_branch
      %153 = sbr.rel (0) target = $region89
    $region88: #{tpu_custom_call.1} parent=1 // pred_region
      %154 = dma.done [#allocation13], 512
    $region89: #{tpu_custom_call.1} parent=1 // pred_fallthru
      _
    // Predicated region
    $region90: #{tpu_custom_call.1} parent=1 // pred_check
      _
    $region91: #{tpu_custom_call.1} parent=1 // pred_check_branch
      %156 = sbr.rel (0) target = $region93
    $region92: #{tpu_custom_call.1} parent=1 // pred_region
      %157 = dma.done [#allocation13], 16
    $region93: #{tpu_custom_call.1} parent=1 // pred_fallthru
      _
    // Predicated region
    $region94: #{tpu_custom_call.1} parent=1 // pred_check
      _
    $region95: #{tpu_custom_call.1} parent=1 // pred_check_branch
      %159 = sbr.rel (0) target = $region97
    $region96: #{tpu_custom_call.1} parent=1 // pred_region
      %160 = dma.done [#allocation16], 512
    $region97: #{tpu_custom_call.1} parent=1 // pred_fallthru
      _
    %v162 = vld [vmem:[%s0] sm:$0xff]
    %v163 = vld [vmem:[%s0 + $0x8] sm:$0xff]
    %v164 = vld [vmem:[%s2] sm:$0x3]
    %166 = vset.pattern.permute.xlu0 0
    %167 = vperm.xlu0 %166, %v162
    %v168 = vpop.permute.xlu0 %167
    %171 = vset.pattern.permute.xlu0 0
    %172 = vperm.xlu0 %171, %v163
    %v173 = vpop.permute.xlu0 %172
    %v175 = vlaneseq
    %v176 = vshrl.u32 %v175, 7
    %v177 = vsub.s32 0, %v176
    %v178 = vrot.slane %v164, %v177
    %v179 = vmul.f32 %v168, %v178
    %v180 = vmul.f32 %v173, %v178
    %181 = vset.pattern.permute.xlu0 1
    %182 = vperm.xlu0 %181, %v162
    %v183 = vpop.permute.xlu0 %182
    %185 = vset.pattern.permute.xlu0 1
    %186 = vperm.xlu0 %185, %v163
    %v187 = vpop.permute.xlu0 %186
    %v189 = vlaneseq
    %v190 = vshrl.u32 %v189, 7
    %v191 = vsub.s32 1, %v190
    %v192 = vrot.slane %v164, %v191
    %v193 = vmul.f32 %v183, %v192
    %v194 = vmul.f32 %v187, %v192
    %v195 = vadd.f32 %v179, %v193
    %v196 = vadd.f32 %v180, %v194
    %v197 = vld [vmem:[#allocation9] sm:$0xff]
    %v198 = vld [vmem:[#allocation9 + $0x8] sm:$0xff]
    %v199 = vld [vmem:[#allocation9 + $0x10] sm:$0xff]
    %v200 = vld [vmem:[#allocation9 + $0x18] sm:$0xff]
    %v201 = vld [vmem:[#allocation11] sm:$0xff]
    %v202 = vld [vmem:[#allocation11 + $0x8] sm:$0xff]
    %v203 = vld [vmem:[#allocation11 + $0x10] sm:$0xff]
    %v204 = vld [vmem:[#allocation11 + $0x18] sm:$0xff]
    %v205 = vld [vmem:[%s9] sm:$0xff]
    %v206 = vld [vmem:[%s9 + $0x8] sm:$0xff]
    %v207 = vld [vmem:[%s9 + $0x10] sm:$0xff]
    %v208 = vld [vmem:[%s9 + $0x18] sm:$0xff]
    %v209 = vld [vmem:[#allocation15] sm:$0xff]
    %v210 = vld [vmem:[#allocation15 + $0x8] sm:$0xff]
    %v211 = vld [vmem:[#allocation15 + $0x10] sm:$0xff]
    %v212 = vld [vmem:[#allocation15 + $0x18] sm:$0xff]
    %v213 = vld [vmem:[%s10] sm:$0x1]
    %v215 = vlaneseq
    %v216 = vshrl.u32 %v215, 7
    %v217 = vsub.s32 0, %v216
    %v218 = vrot.slane %v213, %v217
    %v220 = vld [vmem:[%s13] sm:$0x1]
    %v222 = vlaneseq
    %v223 = vshrl.u32 %v222, 7
    %v224 = vsub.s32 0, %v223
    %v225 = vrot.slane %v220, %v224
    %v227 = vld [vmem:[%s11] sm:$0x1]
    %v229 = vlaneseq
    %v230 = vshrl.u32 %v229, 7
    %v231 = vsub.s32 0, %v230
    %v232 = vrot.slane %v227, %v231
    %v234 = vld [vmem:[%s14] sm:$0x1]
    %v236 = vlaneseq
    %v237 = vshrl.u32 %v236, 7
    %v238 = vsub.s32 0, %v237
    %v239 = vrot.slane %v234, %v238
    %v241 = vld [vmem:[#allocation6] sm:$0xff]
    %v242 = vld [vmem:[#allocation6 + $0x8] sm:$0xff]
    %v243 = vld [vmem:[#allocation6 + $0x10] sm:$0xff]
    %v244 = vld [vmem:[#allocation6 + $0x18] sm:$0xff]
    %v245 = vpack.c.bf16 %v196, %v195
    %v246 = vpack.c.bf16 %v243, %v241
    %v247 = vpack.c.bf16 %v244, %v242
    %v248 = vld [vmem:[#allocation8] sm:$0x3]
    %v250 = vlaneseq
    %v251 = vshrl.u32 %v250, 7
    %v252 = vsub.s32 0, %v251
    %v253 = vrot.slane %v248, %v252
    %v254 = vlaneseq
    %v255 = vshrl.u32 %v254, 7
    %v256 = vsub.s32 1, %v255
    %v257 = vrot.slane %v248, %v256
    %vm260 = vcmask 130048
    %v262 = vsel %vm260, %v245, 0
    %264 = vmatprep.subr.bf16.mxu0 0
    %265 = vmatpush1.bf16.msra.mxu0 0
    %266 = vmatprep.subr.bf16.mxu0 0
    %267 = vmatpush1.bf16.msra.mxu0 0
    %268 = vmatprep.subr.bf16.mxu0 0
    %269 = vmatpush1.bf16.msra.mxu0 0
    %270 = vmatprep.subr.bf16.mxu0 0
    %271 = vmatpush1.bf16.msra.mxu0 0
    %272 = vmatprep.subr.bf16.mxu0 0
    %273 = vmatpush1.bf16.msra.mxu0 0
    %274 = vmatprep.subr.bf16.mxu0 0
    %275 = vmatpush1.bf16.msra.mxu0 0
    %276 = vmatprep.subr.bf16.mxu0 0
    %277 = vmatpush1.bf16.msra.mxu0 0
    %278 = vmatprep.subr.bf16.mxu0 %v247
    %279 = vmatpush1.bf16.msra.mxu0 %v246
    %280 = vmatprep.subr.bf16.mxu0 0
    %281 = vmatpush2.bf16.msra.mxu0 0
    %282 = vmatprep.subr.bf16.mxu0 0
    %283 = vmatpush2.bf16.msra.mxu0 0
    %284 = vmatprep.subr.bf16.mxu0 0
    %285 = vmatpush2.bf16.msra.mxu0 0
    %286 = vmatprep.subr.bf16.mxu0 0
    %287 = vmatpush2.bf16.msra.mxu0 0
    %288 = vmatprep.subr.bf16.mxu0 0
    %289 = vmatpush2.bf16.msra.mxu0 0
    %290 = vmatprep.subr.bf16.mxu0 0
    %291 = vmatpush2.bf16.msra.mxu0 0
    %292 = vmatprep.subr.bf16.mxu0 0
    %293 = vmatpush2.bf16.msra.mxu0 0
    %294 = vmatprep.subr.bf16.mxu0 0
    %295 = vmatpush2.bf16.msra.mxu0 0
    %296 = vmatprep.mubr.bf16.mxu0 0
    %297 = vmatmul.mubr.bf16.gmra.mxu0 %v262
    %v298 = vpop.f32.mrf.mxu0
    %v299 = vadd.f32 %v253, %v298
    %v300 = vpop.f32.mrf.mxu0
    %v301 = vadd.f32 %v257, %v300
    %v302 = vpop.f32.mrf.mxu0
    %v303 = vadd.f32 %v253, %v302
    %v304 = vpop.f32.mrf.mxu0
    %v305 = vadd.f32 %v257, %v304
    %306 = vdwg.mxu0
    %v307 = vld [vmem:[%s15] sm:$0x1]
    %v309 = vsel %vm260, %v307, 0
    %311 = vmatprep.subr.mxu0 0.0
    %312 = vmatpush1.msra.mxu0 0.0
    %313 = vmatprep.subr.mxu0 0.0
    %314 = vmatpush1.msra.mxu0 0.0
    %315 = vmatprep.subr.mxu0 0.0
    %316 = vmatpush1.msra.mxu0 0.0
    %317 = vmatprep.subr.mxu0 0.0
    %318 = vmatpush1.msra.mxu0 0.0
    %319 = vmatprep.subr.mxu0 0.0
    %320 = vmatpush1.msra.mxu0 0.0
    %321 = vmatprep.subr.mxu0 0.0
    %322 = vmatpush1.msra.mxu0 0.0
    %323 = vmatprep.subr.mxu0 0.0
    %324 = vmatpush1.msra.mxu0 0.0
    %325 = vmatprep.subr.mxu0 0.0
    %326 = vmatpush1.msra.mxu0 0.0
    %327 = vmatprep.subr.mxu0 0.0
    %328 = vmatpush1.msra.mxu0 0.0
    %329 = vmatprep.subr.mxu0 0.0
    %330 = vmatpush1.msra.mxu0 0.0
    %331 = vmatprep.subr.mxu0 0.0
    %332 = vmatpush1.msra.mxu0 0.0
    %333 = vmatprep.subr.mxu0 0.0
    %334 = vmatpush1.msra.mxu0 0.0
    %335 = vmatprep.subr.mxu0 0.0
    %336 = vmatpush1.msra.mxu0 0.0
    %337 = vmatprep.subr.mxu0 0.0
    %338 = vmatpush1.msra.mxu0 0.0
    %339 = vmatprep.subr.mxu0 %v244
    %340 = vmatpush1.msra.mxu0 %v243
    %341 = vmatprep.subr.mxu0 %v242
    %342 = vmatpush1.msra.mxu0 %v241
    %343 = vmatprep.subr.mxu0 0.0
    %344 = vmatpush2.msra.mxu0 0.0
    %345 = vmatprep.subr.mxu0 0.0
    %346 = vmatpush2.msra.mxu0 0.0
    %347 = vmatprep.subr.mxu0 0.0
    %348 = vmatpush2.msra.mxu0 0.0
    %349 = vmatprep.subr.mxu0 0.0
    %350 = vmatpush2.msra.mxu0 0.0
    %351 = vmatprep.subr.mxu0 0.0
    %352 = vmatpush2.msra.mxu0 0.0
    %353 = vmatprep.subr.mxu0 0.0
    %354 = vmatpush2.msra.mxu0 0.0
    %355 = vmatprep.subr.mxu0 0.0
    %356 = vmatpush2.msra.mxu0 0.0
    %357 = vmatprep.subr.mxu0 0.0
    %358 = vmatpush2.msra.mxu0 0.0
    %359 = vmatprep.subr.mxu0 0.0
    %360 = vmatpush2.msra.mxu0 0.0
    %361 = vmatprep.subr.mxu0 0.0
    %362 = vmatpush2.msra.mxu0 0.0
    %363 = vmatprep.subr.mxu0 0.0
    %364 = vmatpush2.msra.mxu0 0.0
    %365 = vmatprep.subr.mxu0 0.0
    %366 = vmatpush2.msra.mxu0 0.0
    %367 = vmatprep.subr.mxu0 0.0
    %368 = vmatpush2.msra.mxu0 0.0
    %369 = vmatprep.subr.mxu0 0.0
    %370 = vmatpush2.msra.mxu0 0.0
    %371 = vmatprep.subr.mxu0 0.0
    %372 = vmatpush2.msra.mxu0 0.0
    %373 = vmatprep.subr.mxu0 0.0
    %374 = vmatpush2.msra.mxu0 0.0
    %375 = vmatprep.mubr.f32.mxu0 0.0
    %376 = vmatmul.mubr.f32.gmra.mxu0 %v309
    %v377 = vpop.f32.mrf.mxu0
    %v378 = vpop.f32.mrf.mxu0
    %v379 = vadd.f32 %v257, %v378
    %380 = vdwg.mxu0
    %v381 = vlaneseq
    %v382 = vshrl.u32 %v381, 7
    %v383 = vsub.s32 0, %v382
    %v384 = vrot.slane %v379, %v383
    %vm385 = vcmask 261120
    %v387 = vsel %vm385, 0.0, 0
    %389 = vmatprep.subr.mxu0 0.0
    %390 = vmatpush1.msra.mxu0 0.0
    %391 = vmatprep.subr.mxu0 0.0
    %392 = vmatpush1.msra.mxu0 0.0
    %393 = vmatprep.subr.mxu0 0.0
    %394 = vmatpush1.msra.mxu0 0.0
    %395 = vmatprep.subr.mxu0 0.0
    %396 = vmatpush1.msra.mxu0 0.0
    %397 = vmatprep.subr.mxu0 0.0
    %398 = vmatpush1.msra.mxu0 0.0
    %399 = vmatprep.subr.mxu0 0.0
    %400 = vmatpush1.msra.mxu0 0.0
    %401 = vmatprep.subr.mxu0 0.0
    %402 = vmatpush1.msra.mxu0 0.0
    %403 = vmatprep.subr.mxu0 0.0
    %404 = vmatpush1.msra.mxu0 0.0
    %405 = vmatprep.subr.mxu0 0.0
    %406 = vmatpush1.msra.mxu0 0.0
    %407 = vmatprep.subr.mxu0 0.0
    %408 = vmatpush1.msra.mxu0 0.0
    %409 = vmatprep.subr.mxu0 0.0
    %410 = vmatpush1.msra.mxu0 0.0
    %411 = vmatprep.subr.mxu0 0.0
    %412 = vmatpush1.msra.mxu0 0.0
    %413 = vmatprep.subr.mxu0 0.0
    %414 = vmatpush1.msra.mxu0 %v200
    %415 = vmatprep.subr.mxu0 0.0
    %416 = vmatpush1.msra.mxu0 %v199
    %417 = vmatprep.subr.mxu0 0.0
    %418 = vmatpush1.msra.mxu0 %v198
    %419 = vmatprep.subr.mxu0 0.0
    %420 = vmatpush1.msra.mxu0 %v197
    %421 = vmatprep.subr.mxu0 0.0
    %422 = vmatpush2.msra.mxu0 0.0
    %423 = vmatprep.subr.mxu0 0.0
    %424 = vmatpush2.msra.mxu0 0.0
    %425 = vmatprep.subr.mxu0 0.0
    %426 = vmatpush2.msra.mxu0 0.0
    %427 = vmatprep.subr.mxu0 0.0
    %428 = vmatpush2.msra.mxu0 0.0
    %429 = vmatprep.subr.mxu0 0.0
    %430 = vmatpush2.msra.mxu0 0.0
    %431 = vmatprep.subr.mxu0 0.0
    %432 = vmatpush2.msra.mxu0 0.0
    %433 = vmatprep.subr.mxu0 0.0
    %434 = vmatpush2.msra.mxu0 0.0
    %435 = vmatprep.subr.mxu0 0.0
    %436 = vmatpush2.msra.mxu0 0.0
    %437 = vmatprep.subr.mxu0 0.0
    %438 = vmatpush2.msra.mxu0 0.0
    %439 = vmatprep.subr.mxu0 0.0
    %440 = vmatpush2.msra.mxu0 0.0
    %441 = vmatprep.subr.mxu0 0.0
    %442 = vmatpush2.msra.mxu0 0.0
    %443 = vmatprep.subr.mxu0 0.0
    %444 = vmatpush2.msra.mxu0 0.0
    %445 = vmatprep.subr.mxu0 0.0
    %446 = vmatpush2.msra.mxu0 0.0
    %447 = vmatprep.subr.mxu0 0.0
    %448 = vmatpush2.msra.mxu0 0.0
    %449 = vmatprep.subr.mxu0 0.0
    %450 = vmatpush2.msra.mxu0 0.0
    %451 = vmatprep.subr.mxu0 0.0
    %452 = vmatpush2.msra.mxu0 0.0
    %453 = vmatprep.mubr.f32.mxu0 0.0
    %454 = vmatmul.mubr.f32.gmra.mxu0 %v387
    %v455 = vpop.f32.mrf.mxu0
    %v456 = vadd.f32 0.0, %v455
    %v457 = vpop.f32.mrf.mxu0
    %458 = vdwg.mxu0
    %v460 = vrot.slane %v456, 1
    %v463 = vadd.f32 %v299, %v456
    %v464 = vadd.f32 %v303, %v460
    %v465 = vxor.u32 %v463, 2147483648
    %v466 = vxor.u32 %v464, 2147483648
    %v467 = vmul.f32 %v465, 1.442695
    %v468 = vpow.pop %v467
    %v469 = vmul.f32 %v466, 1.442695
    %v470 = vpow.pop %v469
    %v471 = vadd.f32 %v468, 1.0
    %v472 = vadd.f32 %v470, 1.0
    %v473 = vrcp.pop %v471
    %v474 = vmul.f32 1.0, %v473
    %v475 = vrcp.pop %v472
    %v476 = vmul.f32 1.0, %v475
    %v477 = vtanh.pop %v463
    %v478 = vtanh.pop %v464
    %v479 = vmul.f32 %v474, 0.0
    %v480 = vmul.f32 %v476, 0.0
    %483 = vrot.lane.b32.xlu0 %v477, 64
    %v484 = vpop.permute.xlu0 %483
    %485 = vrot.lane.b32.xlu0 %v478, 64
    %v486 = vpop.permute.xlu0 %485
    %v489 = vmul.f32 %v474, %v484
    %v490 = vmul.f32 %v476, %v486
    %493 = vrot.lane.b32.xlu0 %v489, 32
    %v494 = vpop.permute.xlu0 %493
    %495 = vrot.lane.b32.xlu0 %v490, 32
    %v496 = vpop.permute.xlu0 %495
    %v499 = vadd.f32 %v479, %v494
    %v500 = vadd.f32 %v480, %v496
    %v501 = vtanh.pop %v499
    %v502 = vtanh.pop %v500
    %505 = vrot.lane.b32.xlu0 %v501, 64
    %v506 = vpop.permute.xlu0 %505
    %507 = vrot.lane.b32.xlu0 %v502, 64
    %v508 = vpop.permute.xlu0 %507
    %v511 = vmul.f32 %v474, %v506
    %v512 = vmul.f32 %v476, %v508
    %515 = vrot.lane.b32.xlu0 %v511, 32
    %v516 = vpop.permute.xlu0 %515
    %517 = vrot.lane.b32.xlu0 %v512, 32
    %v518 = vpop.permute.xlu0 %517
    %vm521 = vcmask 253952
    %522 = vst.msk [vmem:[#allocation2] sm:$0x1] %vm521, %v516
    %523 = vst.msk [vmem:[#allocation2 + $0x8] sm:$0x1] %vm521, %v518
    %v524 = vrot.slane %v512, 7
    %vm525 = vcmask 1041409
    %v526 = vsel %vm525, %v524, %v511
    %527 = vrot.lane.b32.xlu0 %v526, 32
    %v528 = vpop.permute.xlu0 %527
    %v529 = vsel %vm385, %v528, 0
    %531 = vmatprep.subr.mxu0 0.0
    %532 = vmatpush1.msra.mxu0 0.0
    %533 = vmatprep.subr.mxu0 0.0
    %534 = vmatpush1.msra.mxu0 0.0
    %535 = vmatprep.subr.mxu0 0.0
    %536 = vmatpush1.msra.mxu0 0.0
    %537 = vmatprep.subr.mxu0 0.0
    %538 = vmatpush1.msra.mxu0 0.0
    %539 = vmatprep.subr.mxu0 0.0
    %540 = vmatpush1.msra.mxu0 0.0
    %541 = vmatprep.subr.mxu0 0.0
    %542 = vmatpush1.msra.mxu0 0.0
    %543 = vmatprep.subr.mxu0 0.0
    %544 = vmatpush1.msra.mxu0 0.0
    %545 = vmatprep.subr.mxu0 0.0
    %546 = vmatpush1.msra.mxu0 0.0
    %547 = vmatprep.subr.mxu0 0.0
    %548 = vmatpush1.msra.mxu0 0.0
    %549 = vmatprep.subr.mxu0 0.0
    %550 = vmatpush1.msra.mxu0 0.0
    %551 = vmatprep.subr.mxu0 0.0
    %552 = vmatpush1.msra.mxu0 0.0
    %553 = vmatprep.subr.mxu0 0.0
    %554 = vmatpush1.msra.mxu0 0.0
    %555 = vmatprep.subr.mxu0 0.0
    %556 = vmatpush1.msra.mxu0 %v200
    %557 = vmatprep.subr.mxu0 0.0
    %558 = vmatpush1.msra.mxu0 %v199
    %559 = vmatprep.subr.mxu0 0.0
    %560 = vmatpush1.msra.mxu0 %v198
    %561 = vmatprep.subr.mxu0 0.0
    %562 = vmatpush1.msra.mxu0 %v197
    %563 = vmatprep.subr.mxu0 0.0
    %564 = vmatpush2.msra.mxu0 0.0
    %565 = vmatprep.subr.mxu0 0.0
    %566 = vmatpush2.msra.mxu0 0.0
    %567 = vmatprep.subr.mxu0 0.0
    %568 = vmatpush2.msra.mxu0 0.0
    %569 = vmatprep.subr.mxu0 0.0
    %570 = vmatpush2.msra.mxu0 0.0
    %571 = vmatprep.subr.mxu0 0.0
    %572 = vmatpush2.msra.mxu0 0.0
    %573 = vmatprep.subr.mxu0 0.0
    %574 = vmatpush2.msra.mxu0 0.0
    %575 = vmatprep.subr.mxu0 0.0
    %576 = vmatpush2.msra.mxu0 0.0
    %577 = vmatprep.subr.mxu0 0.0
    %578 = vmatpush2.msra.mxu0 0.0
    %579 = vmatprep.subr.mxu0 0.0
    %580 = vmatpush2.msra.mxu0 0.0
    %581 = vmatprep.subr.mxu0 0.0
    %582 = vmatpush2.msra.mxu0 0.0
    %583 = vmatprep.subr.mxu0 0.0
    %584 = vmatpush2.msra.mxu0 0.0
    %585 = vmatprep.subr.mxu0 0.0
    %586 = vmatpush2.msra.mxu0 0.0
    %587 = vmatprep.subr.mxu0 0.0
    %588 = vmatpush2.msra.mxu0 0.0
    %589 = vmatprep.subr.mxu0 0.0
    %590 = vmatpush2.msra.mxu0 0.0
    %591 = vmatprep.subr.mxu0 0.0
    %592 = vmatpush2.msra.mxu0 0.0
    %593 = vmatprep.subr.mxu0 0.0
    %594 = vmatpush2.msra.mxu0 0.0
    %595 = vmatprep.mubr.f32.mxu0 0.0
    %596 = vmatmul.mubr.f32.gmra.mxu0 %v529
    %v597 = vpop.f32.mrf.mxu0
    %v598 = vadd.f32 0.0, %v597
    %v599 = vpop.f32.mrf.mxu0
    %600 = vdwg.mxu0
    %v602 = vrot.slane %v598, 7
    %v605 = vadd.f32 %v299, %v602
    %v606 = vadd.f32 %v303, %v598
    %v607 = vxor.u32 %v605, 2147483648
    %v608 = vxor.u32 %v606, 2147483648
    %v609 = vmul.f32 %v607, 1.442695
    %v610 = vpow.pop %v609
    %v611 = vmul.f32 %v608, 1.442695
    %v612 = vpow.pop %v611
    %v613 = vadd.f32 %v610, 1.0
    %v614 = vadd.f32 %v612, 1.0
    %v615 = vrcp.pop %v613
    %v616 = vmul.f32 1.0, %v615
    %v617 = vrcp.pop %v614
    %v618 = vmul.f32 1.0, %v617
    %v619 = vtanh.pop %v605
    %v620 = vtanh.pop %v606
    %v623 = vrot.slane %v499, 7
    %v624 = vrot.slane %v500, 7
    %v627 = vmul.f32 %v616, %v623
    %v628 = vmul.f32 %v618, %v624
    %631 = vrot.lane.b32.xlu0 %v619, 64
    %v632 = vpop.permute.xlu0 %631
    %633 = vrot.lane.b32.xlu0 %v620, 64
    %v634 = vpop.permute.xlu0 %633
    %v637 = vmul.f32 %v616, %v632
    %v638 = vmul.f32 %v618, %v634
    %641 = vrot.lane.b32.xlu0 %v637, 32
    %v642 = vpop.permute.xlu0 %641
    %643 = vrot.lane.b32.xlu0 %v638, 32
    %v644 = vpop.permute.xlu0 %643
    %v647 = vadd.f32 %v627, %v642
    %v648 = vadd.f32 %v628, %v644
    %v649 = vtanh.pop %v647
    %v650 = vtanh.pop %v648
    %653 = vrot.lane.b32.xlu0 %v649, 64
    %v654 = vpop.permute.xlu0 %653
    %655 = vrot.lane.b32.xlu0 %v650, 64
    %v656 = vpop.permute.xlu0 %655
    %v659 = vmul.f32 %v616, %v654
    %v660 = vmul.f32 %v618, %v656
    %663 = vrot.lane.b32.xlu0 %v659, 32
    %v664 = vpop.permute.xlu0 %663
    %665 = vrot.lane.b32.xlu0 %v660, 32
    %v666 = vpop.permute.xlu0 %665
    %vm669 = vcmask 254977
    %670 = vst.msk [vmem:[#allocation2] sm:$0x2] %vm669, %v664
    %671 = vst.msk [vmem:[#allocation2 + $0x8] sm:$0x2] %vm669, %v666
    %v672 = vrot.slane %v659, 1
    %v673 = vsel %vm525, %v660, %v672
    %674 = vrot.lane.b32.xlu0 %v673, 32
    %v675 = vpop.permute.xlu0 %674
    %v676 = vsel %vm385, %v675, 0
    %678 = vmatprep.subr.mxu0 0.0
    %679 = vmatpush1.msra.mxu0 0.0
    %680 = vmatprep.subr.mxu0 0.0
    %681 = vmatpush1.msra.mxu0 0.0
    %682 = vmatprep.subr.mxu0 0.0
    %683 = vmatpush1.msra.mxu0 0.0
    %684 = vmatprep.subr.mxu0 0.0
    %685 = vmatpush1.msra.mxu0 0.0
    %686 = vmatprep.subr.mxu0 0.0
    %687 = vmatpush1.msra.mxu0 0.0
    %688 = vmatprep.subr.mxu0 0.0
    %689 = vmatpush1.msra.mxu0 0.0
    %690 = vmatprep.subr.mxu0 0.0
    %691 = vmatpush1.msra.mxu0 0.0
    %692 = vmatprep.subr.mxu0 0.0
    %693 = vmatpush1.msra.mxu0 0.0
    %694 = vmatprep.subr.mxu0 0.0
    %695 = vmatpush1.msra.mxu0 0.0
    %696 = vmatprep.subr.mxu0 0.0
    %697 = vmatpush1.msra.mxu0 0.0
    %698 = vmatprep.subr.mxu0 0.0
    %699 = vmatpush1.msra.mxu0 0.0
    %700 = vmatprep.subr.mxu0 0.0
    %701 = vmatpush1.msra.mxu0 0.0
    %702 = vmatprep.subr.mxu0 0.0
    %703 = vmatpush1.msra.mxu0 %v200
    %704 = vmatprep.subr.mxu0 0.0
    %705 = vmatpush1.msra.mxu0 %v199
    %706 = vmatprep.subr.mxu0 0.0
    %707 = vmatpush1.msra.mxu0 %v198
    %708 = vmatprep.subr.mxu0 0.0
    %709 = vmatpush1.msra.mxu0 %v197
    %710 = vmatprep.subr.mxu0 0.0
    %711 = vmatpush2.msra.mxu0 0.0
    %712 = vmatprep.subr.mxu0 0.0
    %713 = vmatpush2.msra.mxu0 0.0
    %714 = vmatprep.subr.mxu0 0.0
    %715 = vmatpush2.msra.mxu0 0.0
    %716 = vmatprep.subr.mxu0 0.0
    %717 = vmatpush2.msra.mxu0 0.0
    %718 = vmatprep.subr.mxu0 0.0
    %719 = vmatpush2.msra.mxu0 0.0
    %720 = vmatprep.subr.mxu0 0.0
    %721 = vmatpush2.msra.mxu0 0.0
    %722 = vmatprep.subr.mxu0 0.0
    %723 = vmatpush2.msra.mxu0 0.0
    %724 = vmatprep.subr.mxu0 0.0
    %725 = vmatpush2.msra.mxu0 0.0
    %726 = vmatprep.subr.mxu0 0.0
    %727 = vmatpush2.msra.mxu0 0.0
    %728 = vmatprep.subr.mxu0 0.0
    %729 = vmatpush2.msra.mxu0 0.0
    %730 = vmatprep.subr.mxu0 0.0
    %731 = vmatpush2.msra.mxu0 0.0
    %732 = vmatprep.subr.mxu0 0.0
    %733 = vmatpush2.msra.mxu0 0.0
    %734 = vmatprep.subr.mxu0 0.0
    %735 = vmatpush2.msra.mxu0 0.0
    %736 = vmatprep.subr.mxu0 0.0
    %737 = vmatpush2.msra.mxu0 0.0
    %738 = vmatprep.subr.mxu0 0.0
    %739 = vmatpush2.msra.mxu0 0.0
    %740 = vmatprep.subr.mxu0 0.0
    %741 = vmatpush2.msra.mxu0 0.0
    %742 = vmatprep.mubr.f32.mxu0 0.0
    %743 = vmatmul.mubr.f32.gmra.mxu0 %v676
    %v744 = vpop.f32.mrf.mxu0
    %v745 = vadd.f32 0.0, %v744
    %v746 = vpop.f32.mrf.mxu0
    %747 = vdwg.mxu0
    %v749 = vrot.slane %v745, 6
    %v750 = vrot.slane %v745, 7
    %v753 = vadd.f32 %v299, %v749
    %v754 = vadd.f32 %v303, %v750
    %v755 = vxor.u32 %v753, 2147483648
    %v756 = vxor.u32 %v754, 2147483648
    %v757 = vmul.f32 %v755, 1.442695
    %v758 = vpow.pop %v757
    %v759 = vmul.f32 %v756, 1.442695
    %v760 = vpow.pop %v759
    %v761 = vadd.f32 %v758, 1.0
    %v762 = vadd.f32 %v760, 1.0
    %v763 = vrcp.pop %v761
    %v764 = vmul.f32 1.0, %v763
    %v765 = vrcp.pop %v762
    %v766 = vmul.f32 1.0, %v765
    %v767 = vtanh.pop %v753
    %v768 = vtanh.pop %v754
    %v771 = vrot.slane %v647, 7
    %v772 = vrot.slane %v648, 7
    %v775 = vmul.f32 %v764, %v771
    %v776 = vmul.f32 %v766, %v772
    %779 = vrot.lane.b32.xlu0 %v767, 64
    %v780 = vpop.permute.xlu0 %779
    %781 = vrot.lane.b32.xlu0 %v768, 64
    %v782 = vpop.permute.xlu0 %781
    %v785 = vmul.f32 %v764, %v780
    %v786 = vmul.f32 %v766, %v782
    %789 = vrot.lane.b32.xlu0 %v785, 32
    %v790 = vpop.permute.xlu0 %789
    %791 = vrot.lane.b32.xlu0 %v786, 32
    %v792 = vpop.permute.xlu0 %791
    %v795 = vadd.f32 %v775, %v790
    %v796 = vadd.f32 %v776, %v792
    %v797 = vtanh.pop %v795
    %v798 = vtanh.pop %v796
    %801 = vrot.lane.b32.xlu0 %v797, 64
    %v802 = vpop.permute.xlu0 %801
    %803 = vrot.lane.b32.xlu0 %v798, 64
    %v804 = vpop.permute.xlu0 %803
    %v807 = vmul.f32 %v764, %v802
    %v808 = vmul.f32 %v766, %v804
    %811 = vrot.lane.b32.xlu0 %v807, 32
    %v812 = vpop.permute.xlu0 %811
    %813 = vrot.lane.b32.xlu0 %v808, 32
    %v814 = vpop.permute.xlu0 %813
    %vm817 = vcmask 256002
    %818 = vst.msk [vmem:[#allocation2] sm:$0x4] %vm817, %v812
    %819 = vst.msk [vmem:[#allocation2 + $0x8] sm:$0x4] %vm817, %v814
    %v820 = vrot.slane %v807, 2
    %v821 = vrot.slane %v808, 1
    %v822 = vsel %vm525, %v821, %v820
    %823 = vrot.lane.b32.xlu0 %v822, 32
    %v824 = vpop.permute.xlu0 %823
    %v825 = vsel %vm385, %v824, 0
    %827 = vmatprep.subr.mxu0 0.0
    %828 = vmatpush1.msra.mxu0 0.0
    %829 = vmatprep.subr.mxu0 0.0
    %830 = vmatpush1.msra.mxu0 0.0
    %831 = vmatprep.subr.mxu0 0.0
    %832 = vmatpush1.msra.mxu0 0.0
    %833 = vmatprep.subr.mxu0 0.0
    %834 = vmatpush1.msra.mxu0 0.0
    %835 = vmatprep.subr.mxu0 0.0
    %836 = vmatpush1.msra.mxu0 0.0
    %837 = vmatprep.subr.mxu0 0.0
    %838 = vmatpush1.msra.mxu0 0.0
    %839 = vmatprep.subr.mxu0 0.0
    %840 = vmatpush1.msra.mxu0 0.0
    %841 = vmatprep.subr.mxu0 0.0
    %842 = vmatpush1.msra.mxu0 0.0
    %843 = vmatprep.subr.mxu0 0.0
    %844 = vmatpush1.msra.mxu0 0.0
    %845 = vmatprep.subr.mxu0 0.0
    %846 = vmatpush1.msra.mxu0 0.0
    %847 = vmatprep.subr.mxu0 0.0
    %848 = vmatpush1.msra.mxu0 0.0
    %849 = vmatprep.subr.mxu0 0.0
    %850 = vmatpush1.msra.mxu0 0.0
    %851 = vmatprep.subr.mxu0 0.0
    %852 = vmatpush1.msra.mxu0 %v200
    %853 = vmatprep.subr.mxu0 0.0
    %854 = vmatpush1.msra.mxu0 %v199
    %855 = vmatprep.subr.mxu0 0.0
    %856 = vmatpush1.msra.mxu0 %v198
    %857 = vmatprep.subr.mxu0 0.0
    %858 = vmatpush1.msra.mxu0 %v197
    %859 = vmatprep.subr.mxu0 0.0
    %860 = vmatpush2.msra.mxu0 0.0
    %861 = vmatprep.subr.mxu0 0.0
    %862 = vmatpush2.msra.mxu0 0.0
    %863 = vmatprep.subr.mxu0 0.0
    %864 = vmatpush2.msra.mxu0 0.0
    %865 = vmatprep.subr.mxu0 0.0
    %866 = vmatpush2.msra.mxu0 0.0
    %867 = vmatprep.subr.mxu0 0.0
    %868 = vmatpush2.msra.mxu0 0.0
    %869 = vmatprep.subr.mxu0 0.0
    %870 = vmatpush2.msra.mxu0 0.0
    %871 = vmatprep.subr.mxu0 0.0
    %872 = vmatpush2.msra.mxu0 0.0
    %873 = vmatprep.subr.mxu0 0.0
    %874 = vmatpush2.msra.mxu0 0.0
    %875 = vmatprep.subr.mxu0 0.0
    %876 = vmatpush2.msra.mxu0 0.0
    %877 = vmatprep.subr.mxu0 0.0
    %878 = vmatpush2.msra.mxu0 0.0
    %879 = vmatprep.subr.mxu0 0.0
    %880 = vmatpush2.msra.mxu0 0.0
    %881 = vmatprep.subr.mxu0 0.0
    %882 = vmatpush2.msra.mxu0 0.0
    %883 = vmatprep.subr.mxu0 0.0
    %884 = vmatpush2.msra.mxu0 0.0
    %885 = vmatprep.subr.mxu0 0.0
    %886 = vmatpush2.msra.mxu0 0.0
    %887 = vmatprep.subr.mxu0 0.0
    %888 = vmatpush2.msra.mxu0 0.0
    %889 = vmatprep.subr.mxu0 0.0
    %890 = vmatpush2.msra.mxu0 0.0
    %891 = vmatprep.mubr.f32.mxu0 0.0
    %892 = vmatmul.mubr.f32.gmra.mxu0 %v825
    %v893 = vpop.f32.mrf.mxu0
    %v894 = vadd.f32 0.0, %v893
    %v895 = vpop.f32.mrf.mxu0
    %896 = vdwg.mxu0
    %v898 = vrot.slane %v894, 5
    %v899 = vrot.slane %v894, 6
    %v902 = vadd.f32 %v299, %v898
    %v903 = vadd.f32 %v303, %v899
    %v904 = vxor.u32 %v902, 2147483648
    %v905 = vxor.u32 %v903, 2147483648
    %v906 = vmul.f32 %v904, 1.442695
    %v907 = vpow.pop %v906
    %v908 = vmul.f32 %v905, 1.442695
    %v909 = vpow.pop %v908
    %v910 = vadd.f32 %v907, 1.0
    %v911 = vadd.f32 %v909, 1.0
    %v912 = vrcp.pop %v910
    %v913 = vmul.f32 1.0, %v912
    %v914 = vrcp.pop %v911
    %v915 = vmul.f32 1.0, %v914
    %v916 = vtanh.pop %v902
    %v917 = vtanh.pop %v903
    %v920 = vrot.slane %v795, 7
    %v921 = vrot.slane %v796, 7
    %v924 = vmul.f32 %v913, %v920
    %v925 = vmul.f32 %v915, %v921
    %928 = vrot.lane.b32.xlu0 %v916, 64
    %v929 = vpop.permute.xlu0 %928
    %930 = vrot.lane.b32.xlu0 %v917, 64
    %v931 = vpop.permute.xlu0 %930
    %v934 = vmul.f32 %v913, %v929
    %v935 = vmul.f32 %v915, %v931
    %938 = vrot.lane.b32.xlu0 %v934, 32
    %v939 = vpop.permute.xlu0 %938
    %940 = vrot.lane.b32.xlu0 %v935, 32
    %v941 = vpop.permute.xlu0 %940
    %v944 = vadd.f32 %v924, %v939
    %v945 = vadd.f32 %v925, %v941
    %v946 = vtanh.pop %v944
    %v947 = vtanh.pop %v945
    %950 = vrot.lane.b32.xlu0 %v946, 64
    %v951 = vpop.permute.xlu0 %950
    %952 = vrot.lane.b32.xlu0 %v947, 64
    %v953 = vpop.permute.xlu0 %952
    %v956 = vmul.f32 %v913, %v951
    %v957 = vmul.f32 %v915, %v953
    %960 = vrot.lane.b32.xlu0 %v956, 32
    %v961 = vpop.permute.xlu0 %960
    %962 = vrot.lane.b32.xlu0 %v957, 32
    %v963 = vpop.permute.xlu0 %962
    %vm966 = vcmask 257027
    %967 = vst.msk [vmem:[#allocation2] sm:$0x8] %vm966, %v961
    %968 = vst.msk [vmem:[#allocation2 + $0x8] sm:$0x8] %vm966, %v963
    %v969 = vrot.slane %v956, 3
    %v970 = vrot.slane %v957, 2
    %v971 = vsel %vm525, %v970, %v969
    %972 = vrot.lane.b32.xlu0 %v971, 32
    %v973 = vpop.permute.xlu0 %972
    %v974 = vsel %vm385, %v973, 0
    %976 = vmatprep.subr.mxu0 0.0
    %977 = vmatpush1.msra.mxu0 0.0
    %978 = vmatprep.subr.mxu0 0.0
    %979 = vmatpush1.msra.mxu0 0.0
    %980 = vmatprep.subr.mxu0 0.0
    %981 = vmatpush1.msra.mxu0 0.0
    %982 = vmatprep.subr.mxu0 0.0
    %983 = vmatpush1.msra.mxu0 0.0
    %984 = vmatprep.subr.mxu0 0.0
    %985 = vmatpush1.msra.mxu0 0.0
    %986 = vmatprep.subr.mxu0 0.0
    %987 = vmatpush1.msra.mxu0 0.0
    %988 = vmatprep.subr.mxu0 0.0
    %989 = vmatpush1.msra.mxu0 0.0
    %990 = vmatprep.subr.mxu0 0.0
    %991 = vmatpush1.msra.mxu0 0.0
    %992 = vmatprep.subr.mxu0 0.0
    %993 = vmatpush1.msra.mxu0 0.0
    %994 = vmatprep.subr.mxu0 0.0
    %995 = vmatpush1.msra.mxu0 0.0
    %996 = vmatprep.subr.mxu0 0.0
    %997 = vmatpush1.msra.mxu0 0.0
    %998 = vmatprep.subr.mxu0 0.0
    %999 = vmatpush1.msra.mxu0 0.0
    %1000 = vmatprep.subr.mxu0 0.0
    %1001 = vmatpush1.msra.mxu0 %v200
    %1002 = vmatprep.subr.mxu0 0.0
    %1003 = vmatpush1.msra.mxu0 %v199
    %1004 = vmatprep.subr.mxu0 0.0
    %1005 = vmatpush1.msra.mxu0 %v198
    %1006 = vmatprep.subr.mxu0 0.0
    %1007 = vmatpush1.msra.mxu0 %v197
    %1008 = vmatprep.subr.mxu0 0.0
    %1009 = vmatpush2.msra.mxu0 0.0
    %1010 = vmatprep.subr.mxu0 0.0
    %1011 = vmatpush2.msra.mxu0 0.0
    %1012 = vmatprep.subr.mxu0 0.0
    %1013 = vmatpush2.msra.mxu0 0.0
    %1014 = vmatprep.subr.mxu0 0.0
    %1015 = vmatpush2.msra.mxu0 0.0
    %1016 = vmatprep.subr.mxu0 0.0
    %1017 = vmatpush2.msra.mxu0 0.0
    %1018 = vmatprep.subr.mxu0 0.0
    %1019 = vmatpush2.msra.mxu0 0.0
    %1020 = vmatprep.subr.mxu0 0.0
    %1021 = vmatpush2.msra.mxu0 0.0
    %1022 = vmatprep.subr.mxu0 0.0
    %1023 = vmatpush2.msra.mxu0 0.0
    %1024 = vmatprep.subr.mxu0 0.0
    %1025 = vmatpush2.msra.mxu0 0.0
    %1026 = vmatprep.subr.mxu0 0.0
    %1027 = vmatpush2.msra.mxu0 0.0
    %1028 = vmatprep.subr.mxu0 0.0
    %1029 = vmatpush2.msra.mxu0 0.0
    %1030 = vmatprep.subr.mxu0 0.0
    %1031 = vmatpush2.msra.mxu0 0.0
    %1032 = vmatprep.subr.mxu0 0.0
    %1033 = vmatpush2.msra.mxu0 0.0
    %1034 = vmatprep.subr.mxu0 0.0
    %1035 = vmatpush2.msra.mxu0 0.0
    %1036 = vmatprep.subr.mxu0 0.0
    %1037 = vmatpush2.msra.mxu0 0.0
    %1038 = vmatprep.subr.mxu0 0.0
    %1039 = vmatpush2.msra.mxu0 0.0
    %1040 = vmatprep.mubr.f32.mxu0 0.0
    %1041 = vmatmul.mubr.f32.gmra.mxu0 %v974
    %v1042 = vpop.f32.mrf.mxu0
    %v1043 = vadd.f32 0.0, %v1042
    %v1044 = vpop.f32.mrf.mxu0
    %1045 = vdwg.mxu0
    %v1047 = vrot.slane %v1043, 4
    %v1048 = vrot.slane %v1043, 5
    %v1051 = vadd.f32 %v299, %v1047
    %v1052 = vadd.f32 %v303, %v1048
    %v1053 = vxor.u32 %v1051, 2147483648
    %v1054 = vxor.u32 %v1052, 2147483648
    %v1055 = vmul.f32 %v1053, 1.442695
    %v1056 = vpow.pop %v1055
    %v1057 = vmul.f32 %v1054, 1.442695
    %v1058 = vpow.pop %v1057
    %v1059 = vadd.f32 %v1056, 1.0
    %v1060 = vadd.f32 %v1058, 1.0
    %v1061 = vrcp.pop %v1059
    %v1062 = vmul.f32 1.0, %v1061
    %v1063 = vrcp.pop %v1060
    %v1064 = vmul.f32 1.0, %v1063
    %v1065 = vtanh.pop %v1051
    %v1066 = vtanh.pop %v1052
    %v1069 = vrot.slane %v944, 7
    %v1070 = vrot.slane %v945, 7
    %v1073 = vmul.f32 %v1062, %v1069
    %v1074 = vmul.f32 %v1064, %v1070
    %1077 = vrot.lane.b32.xlu0 %v1065, 64
    %v1078 = vpop.permute.xlu0 %1077
    %1079 = vrot.lane.b32.xlu0 %v1066, 64
    %v1080 = vpop.permute.xlu0 %1079
    %v1083 = vmul.f32 %v1062, %v1078
    %v1084 = vmul.f32 %v1064, %v1080
    %1087 = vrot.lane.b32.xlu0 %v1083, 32
    %v1088 = vpop.permute.xlu0 %1087
    %1089 = vrot.lane.b32.xlu0 %v1084, 32
    %v1090 = vpop.permute.xlu0 %1089
    %v1093 = vadd.f32 %v1073, %v1088
    %v1094 = vadd.f32 %v1074, %v1090
    %v1095 = vtanh.pop %v1093
    %v1096 = vtanh.pop %v1094
    %1099 = vrot.lane.b32.xlu0 %v1095, 64
    %v1100 = vpop.permute.xlu0 %1099
    %1101 = vrot.lane.b32.xlu0 %v1096, 64
    %v1102 = vpop.permute.xlu0 %1101
    %v1105 = vmul.f32 %v1062, %v1100
    %v1106 = vmul.f32 %v1064, %v1102
    %1109 = vrot.lane.b32.xlu0 %v1105, 32
    %v1110 = vpop.permute.xlu0 %1109
    %1111 = vrot.lane.b32.xlu0 %v1106, 32
    %v1112 = vpop.permute.xlu0 %1111
    %vm1115 = vcmask 258052
    %1116 = vst.msk [vmem:[#allocation2] sm:$0x10] %vm1115, %v1110
    %1117 = vst.msk [vmem:[#allocation2 + $0x8] sm:$0x10] %vm1115, %v1112
    %v1118 = vrot.slane %v1105, 4
    %v1119 = vrot.slane %v1106, 3
    %v1120 = vsel %vm525, %v1119, %v1118
    %1121 = vrot.lane.b32.xlu0 %v1120, 32
    %v1122 = vpop.permute.xlu0 %1121
    %v1123 = vsel %vm385, %v1122, 0
    %1125 = vmatprep.subr.mxu0 0.0
    %1126 = vmatpush1.msra.mxu0 0.0
    %1127 = vmatprep.subr.mxu0 0.0
    %1128 = vmatpush1.msra.mxu0 0.0
    %1129 = vmatprep.subr.mxu0 0.0
    %1130 = vmatpush1.msra.mxu0 0.0
    %1131 = vmatprep.subr.mxu0 0.0
    %1132 = vmatpush1.msra.mxu0 0.0
    %1133 = vmatprep.subr.mxu0 0.0
    %1134 = vmatpush1.msra.mxu0 0.0
    %1135 = vmatprep.subr.mxu0 0.0
    %1136 = vmatpush1.msra.mxu0 0.0
    %1137 = vmatprep.subr.mxu0 0.0
    %1138 = vmatpush1.msra.mxu0 0.0
    %1139 = vmatprep.subr.mxu0 0.0
    %1140 = vmatpush1.msra.mxu0 0.0
    %1141 = vmatprep.subr.mxu0 0.0
    %1142 = vmatpush1.msra.mxu0 0.0
    %1143 = vmatprep.subr.mxu0 0.0
    %1144 = vmatpush1.msra.mxu0 0.0
    %1145 = vmatprep.subr.mxu0 0.0
    %1146 = vmatpush1.msra.mxu0 0.0
    %1147 = vmatprep.subr.mxu0 0.0
    %1148 = vmatpush1.msra.mxu0 0.0
    %1149 = vmatprep.subr.mxu0 0.0
    %1150 = vmatpush1.msra.mxu0 %v200
    %1151 = vmatprep.subr.mxu0 0.0
    %1152 = vmatpush1.msra.mxu0 %v199
    %1153 = vmatprep.subr.mxu0 0.0
    %1154 = vmatpush1.msra.mxu0 %v198
    %1155 = vmatprep.subr.mxu0 0.0
    %1156 = vmatpush1.msra.mxu0 %v197
    %1157 = vmatprep.subr.mxu0 0.0
    %1158 = vmatpush2.msra.mxu0 0.0
    %1159 = vmatprep.subr.mxu0 0.0
    %1160 = vmatpush2.msra.mxu0 0.0
    %1161 = vmatprep.subr.mxu0 0.0
    %1162 = vmatpush2.msra.mxu0 0.0
    %1163 = vmatprep.subr.mxu0 0.0
    %1164 = vmatpush2.msra.mxu0 0.0
    %1165 = vmatprep.subr.mxu0 0.0
    %1166 = vmatpush2.msra.mxu0 0.0
    %1167 = vmatprep.subr.mxu0 0.0
    %1168 = vmatpush2.msra.mxu0 0.0
    %1169 = vmatprep.subr.mxu0 0.0
    %1170 = vmatpush2.msra.mxu0 0.0
    %1171 = vmatprep.subr.mxu0 0.0
    %1172 = vmatpush2.msra.mxu0 0.0
    %1173 = vmatprep.subr.mxu0 0.0
    %1174 = vmatpush2.msra.mxu0 0.0
    %1175 = vmatprep.subr.mxu0 0.0
    %1176 = vmatpush2.msra.mxu0 0.0
    %1177 = vmatprep.subr.mxu0 0.0
    %1178 = vmatpush2.msra.mxu0 0.0
    %1179 = vmatprep.subr.mxu0 0.0
    %1180 = vmatpush2.msra.mxu0 0.0
    %1181 = vmatprep.subr.mxu0 0.0
    %1182 = vmatpush2.msra.mxu0 0.0
    %1183 = vmatprep.subr.mxu0 0.0
    %1184 = vmatpush2.msra.mxu0 0.0
    %1185 = vmatprep.subr.mxu0 0.0
    %1186 = vmatpush2.msra.mxu0 0.0
    %1187 = vmatprep.subr.mxu0 0.0
    %1188 = vmatpush2.msra.mxu0 0.0
    %1189 = vmatprep.mubr.f32.mxu0 0.0
    %1190 = vmatmul.mubr.f32.gmra.mxu0 %v1123
    %v1191 = vpop.f32.mrf.mxu0
    %v1192 = vadd.f32 0.0, %v1191
    %v1193 = vpop.f32.mrf.mxu0
    %1194 = vdwg.mxu0
    %v1196 = vrot.slane %v1192, 3
    %v1197 = vrot.slane %v1192, 4
    %v1200 = vadd.f32 %v299, %v1196
    %v1201 = vadd.f32 %v303, %v1197
    %v1202 = vxor.u32 %v1200, 2147483648
    %v1203 = vxor.u32 %v1201, 2147483648
    %v1204 = vmul.f32 %v1202, 1.442695
    %v1205 = vpow.pop %v1204
    %v1206 = vmul.f32 %v1203, 1.442695
    %v1207 = vpow.pop %v1206
    %v1208 = vadd.f32 %v1205, 1.0
    %v1209 = vadd.f32 %v1207, 1.0
    %v1210 = vrcp.pop %v1208
    %v1211 = vmul.f32 1.0, %v1210
    %v1212 = vrcp.pop %v1209
    %v1213 = vmul.f32 1.0, %v1212
    %v1214 = vtanh.pop %v1200
    %v1215 = vtanh.pop %v1201
    %v1218 = vrot.slane %v1093, 7
    %v1219 = vrot.slane %v1094, 7
    %v1222 = vmul.f32 %v1211, %v1218
    %v1223 = vmul.f32 %v1213, %v1219
    %1226 = vrot.lane.b32.xlu0 %v1214, 64
    %v1227 = vpop.permute.xlu0 %1226
    %1228 = vrot.lane.b32.xlu0 %v1215, 64
    %v1229 = vpop.permute.xlu0 %1228
    %v1232 = vmul.f32 %v1211, %v1227
    %v1233 = vmul.f32 %v1213, %v1229
    %1236 = vrot.lane.b32.xlu0 %v1232, 32
    %v1237 = vpop.permute.xlu0 %1236
    %1238 = vrot.lane.b32.xlu0 %v1233, 32
    %v1239 = vpop.permute.xlu0 %1238
    %v1242 = vadd.f32 %v1222, %v1237
    %v1243 = vadd.f32 %v1223, %v1239
    %v1244 = vtanh.pop %v1242
    %v1245 = vtanh.pop %v1243
    %1248 = vrot.lane.b32.xlu0 %v1244, 64
    %v1249 = vpop.permute.xlu0 %1248
    %1250 = vrot.lane.b32.xlu0 %v1245, 64
    %v1251 = vpop.permute.xlu0 %1250
    %v1254 = vmul.f32 %v1211, %v1249
    %v1255 = vmul.f32 %v1213, %v1251
    %1258 = vrot.lane.b32.xlu0 %v1254, 32
    %v1259 = vpop.permute.xlu0 %1258
    %1260 = vrot.lane.b32.xlu0 %v1255, 32
    %v1261 = vpop.permute.xlu0 %1260
    %vm1264 = vcmask 259077
    %1265 = vst.msk [vmem:[#allocation2] sm:$0x20] %vm1264, %v1259
    %1266 = vst.msk [vmem:[#allocation2 + $0x8] sm:$0x20] %vm1264, %v1261
    %v1267 = vrot.slane %v1254, 5
    %v1268 = vrot.slane %v1255, 4
    %v1269 = vsel %vm525, %v1268, %v1267
    %1270 = vrot.lane.b32.xlu0 %v1269, 32
    %v1271 = vpop.permute.xlu0 %1270
    %v1272 = vsel %vm385, %v1271, 0
    %1274 = vmatprep.subr.mxu0 0.0
    %1275 = vmatpush1.msra.mxu0 0.0
    %1276 = vmatprep.subr.mxu0 0.0
    %1277 = vmatpush1.msra.mxu0 0.0
    %1278 = vmatprep.subr.mxu0 0.0
    %1279 = vmatpush1.msra.mxu0 0.0
    %1280 = vmatprep.subr.mxu0 0.0
    %1281 = vmatpush1.msra.mxu0 0.0
    %1282 = vmatprep.subr.mxu0 0.0
    %1283 = vmatpush1.msra.mxu0 0.0
    %1284 = vmatprep.subr.mxu0 0.0
    %1285 = vmatpush1.msra.mxu0 0.0
    %1286 = vmatprep.subr.mxu0 0.0
    %1287 = vmatpush1.msra.mxu0 0.0
    %1288 = vmatprep.subr.mxu0 0.0
    %1289 = vmatpush1.msra.mxu0 0.0
    %1290 = vmatprep.subr.mxu0 0.0
    %1291 = vmatpush1.msra.mxu0 0.0
    %1292 = vmatprep.subr.mxu0 0.0
    %1293 = vmatpush1.msra.mxu0 0.0
    %1294 = vmatprep.subr.mxu0 0.0
    %1295 = vmatpush1.msra.mxu0 0.0
    %1296 = vmatprep.subr.mxu0 0.0
    %1297 = vmatpush1.msra.mxu0 0.0
    %1298 = vmatprep.subr.mxu0 0.0
    %1299 = vmatpush1.msra.mxu0 %v200
    %1300 = vmatprep.subr.mxu0 0.0
    %1301 = vmatpush1.msra.mxu0 %v199
    %1302 = vmatprep.subr.mxu0 0.0
    %1303 = vmatpush1.msra.mxu0 %v198
    %1304 = vmatprep.subr.mxu0 0.0
    %1305 = vmatpush1.msra.mxu0 %v197
    %1306 = vmatprep.subr.mxu0 0.0
    %1307 = vmatpush2.msra.mxu0 0.0
    %1308 = vmatprep.subr.mxu0 0.0
    %1309 = vmatpush2.msra.mxu0 0.0
    %1310 = vmatprep.subr.mxu0 0.0
    %1311 = vmatpush2.msra.mxu0 0.0
    %1312 = vmatprep.subr.mxu0 0.0
    %1313 = vmatpush2.msra.mxu0 0.0
    %1314 = vmatprep.subr.mxu0 0.0
    %1315 = vmatpush2.msra.mxu0 0.0
    %1316 = vmatprep.subr.mxu0 0.0
    %1317 = vmatpush2.msra.mxu0 0.0
    %1318 = vmatprep.subr.mxu0 0.0
    %1319 = vmatpush2.msra.mxu0 0.0
    %1320 = vmatprep.subr.mxu0 0.0
    %1321 = vmatpush2.msra.mxu0 0.0
    %1322 = vmatprep.subr.mxu0 0.0
    %1323 = vmatpush2.msra.mxu0 0.0
    %1324 = vmatprep.subr.mxu0 0.0
    %1325 = vmatpush2.msra.mxu0 0.0
    %1326 = vmatprep.subr.mxu0 0.0
    %1327 = vmatpush2.msra.mxu0 0.0
    %1328 = vmatprep.subr.mxu0 0.0
    %1329 = vmatpush2.msra.mxu0 0.0
    %1330 = vmatprep.subr.mxu0 0.0
    %1331 = vmatpush2.msra.mxu0 0.0
    %1332 = vmatprep.subr.mxu0 0.0
    %1333 = vmatpush2.msra.mxu0 0.0
    %1334 = vmatprep.subr.mxu0 0.0
    %1335 = vmatpush2.msra.mxu0 0.0
    %1336 = vmatprep.subr.mxu0 0.0
    %1337 = vmatpush2.msra.mxu0 0.0
    %1338 = vmatprep.mubr.f32.mxu0 0.0
    %1339 = vmatmul.mubr.f32.gmra.mxu0 %v1272
    %v1340 = vpop.f32.mrf.mxu0
    %v1341 = vadd.f32 0.0, %v1340
    %v1342 = vpop.f32.mrf.mxu0
    %1343 = vdwg.mxu0
    %v1345 = vrot.slane %v1341, 2
    %v1346 = vrot.slane %v1341, 3
    %v1349 = vadd.f32 %v299, %v1345
    %v1350 = vadd.f32 %v303, %v1346
    %v1351 = vxor.u32 %v1349, 2147483648
    %v1352 = vxor.u32 %v1350, 2147483648
    %v1353 = vmul.f32 %v1351, 1.442695
    %v1354 = vpow.pop %v1353
    %v1355 = vmul.f32 %v1352, 1.442695
    %v1356 = vpow.pop %v1355
    %v1357 = vadd.f32 %v1354, 1.0
    %v1358 = vadd.f32 %v1356, 1.0
    %v1359 = vrcp.pop %v1357
    %v1360 = vmul.f32 1.0, %v1359
    %v1361 = vrcp.pop %v1358
    %v1362 = vmul.f32 1.0, %v1361
    %v1363 = vtanh.pop %v1349
    %v1364 = vtanh.pop %v1350
    %v1367 = vrot.slane %v1242, 7
    %v1368 = vrot.slane %v1243, 7
    %v1371 = vmul.f32 %v1360, %v1367
    %v1372 = vmul.f32 %v1362, %v1368
    %1375 = vrot.lane.b32.xlu0 %v1363, 64
    %v1376 = vpop.permute.xlu0 %1375
    %1377 = vrot.lane.b32.xlu0 %v1364, 64
    %v1378 = vpop.permute.xlu0 %1377
    %v1381 = vmul.f32 %v1360, %v1376
    %v1382 = vmul.f32 %v1362, %v1378
    %1385 = vrot.lane.b32.xlu0 %v1381, 32
    %v1386 = vpop.permute.xlu0 %1385
    %1387 = vrot.lane.b32.xlu0 %v1382, 32
    %v1388 = vpop.permute.xlu0 %1387
    %v1391 = vadd.f32 %v1371, %v1386
    %v1392 = vadd.f32 %v1372, %v1388
    %v1393 = vtanh.pop %v1391
    %v1394 = vtanh.pop %v1392
    %1397 = vrot.lane.b32.xlu0 %v1393, 64
    %v1398 = vpop.permute.xlu0 %1397
    %1399 = vrot.lane.b32.xlu0 %v1394, 64
    %v1400 = vpop.permute.xlu0 %1399
    %v1403 = vmul.f32 %v1360, %v1398
    %v1404 = vmul.f32 %v1362, %v1400
    %1407 = vrot.lane.b32.xlu0 %v1403, 32
    %v1408 = vpop.permute.xlu0 %1407
    %1409 = vrot.lane.b32.xlu0 %v1404, 32
    %v1410 = vpop.permute.xlu0 %1409
    %vm1413 = vcmask 260102
    %1414 = vst.msk [vmem:[#allocation2] sm:$0x40] %vm1413, %v1408
    %1415 = vst.msk [vmem:[#allocation2 + $0x8] sm:$0x40] %vm1413, %v1410
    %v1416 = vrot.slane %v1403, 6
    %v1417 = vrot.slane %v1404, 5
    %v1418 = vsel %vm525, %v1417, %v1416
    %1419 = vrot.lane.b32.xlu0 %v1418, 32
    %v1420 = vpop.permute.xlu0 %1419
    %v1421 = vsel %vm385, %v1420, 0
    %1423 = vmatprep.subr.mxu0 0.0
    %1424 = vmatpush1.msra.mxu0 0.0
    %1425 = vmatprep.subr.mxu0 0.0
    %1426 = vmatpush1.msra.mxu0 0.0
    %1427 = vmatprep.subr.mxu0 0.0
    %1428 = vmatpush1.msra.mxu0 0.0
    %1429 = vmatprep.subr.mxu0 0.0
    %1430 = vmatpush1.msra.mxu0 0.0
    %1431 = vmatprep.subr.mxu0 0.0
    %1432 = vmatpush1.msra.mxu0 0.0
    %1433 = vmatprep.subr.mxu0 0.0
    %1434 = vmatpush1.msra.mxu0 0.0
    %1435 = vmatprep.subr.mxu0 0.0
    %1436 = vmatpush1.msra.mxu0 0.0
    %1437 = vmatprep.subr.mxu0 0.0
    %1438 = vmatpush1.msra.mxu0 0.0
    %1439 = vmatprep.subr.mxu0 0.0
    %1440 = vmatpush1.msra.mxu0 0.0
    %1441 = vmatprep.subr.mxu0 0.0
    %1442 = vmatpush1.msra.mxu0 0.0
    %1443 = vmatprep.subr.mxu0 0.0
    %1444 = vmatpush1.msra.mxu0 0.0
    %1445 = vmatprep.subr.mxu0 0.0
    %1446 = vmatpush1.msra.mxu0 0.0
    %1447 = vmatprep.subr.mxu0 0.0
    %1448 = vmatpush1.msra.mxu0 %v200
    %1449 = vmatprep.subr.mxu0 0.0
    %1450 = vmatpush1.msra.mxu0 %v199
    %1451 = vmatprep.subr.mxu0 0.0
    %1452 = vmatpush1.msra.mxu0 %v198
    %1453 = vmatprep.subr.mxu0 0.0
    %1454 = vmatpush1.msra.mxu0 %v197
    %1455 = vmatprep.subr.mxu0 0.0
    %1456 = vmatpush2.msra.mxu0 0.0
    %1457 = vmatprep.subr.mxu0 0.0
    %1458 = vmatpush2.msra.mxu0 0.0
    %1459 = vmatprep.subr.mxu0 0.0
    %1460 = vmatpush2.msra.mxu0 0.0
    %1461 = vmatprep.subr.mxu0 0.0
    %1462 = vmatpush2.msra.mxu0 0.0
    %1463 = vmatprep.subr.mxu0 0.0
    %1464 = vmatpush2.msra.mxu0 0.0
    %1465 = vmatprep.subr.mxu0 0.0
    %1466 = vmatpush2.msra.mxu0 0.0
    %1467 = vmatprep.subr.mxu0 0.0
    %1468 = vmatpush2.msra.mxu0 0.0
    %1469 = vmatprep.subr.mxu0 0.0
    %1470 = vmatpush2.msra.mxu0 0.0
    %1471 = vmatprep.subr.mxu0 0.0
    %1472 = vmatpush2.msra.mxu0 0.0
    %1473 = vmatprep.subr.mxu0 0.0
    %1474 = vmatpush2.msra.mxu0 0.0
    %1475 = vmatprep.subr.mxu0 0.0
    %1476 = vmatpush2.msra.mxu0 0.0
    %1477 = vmatprep.subr.mxu0 0.0
    %1478 = vmatpush2.msra.mxu0 0.0
    %1479 = vmatprep.subr.mxu0 0.0
    %1480 = vmatpush2.msra.mxu0 0.0
    %1481 = vmatprep.subr.mxu0 0.0
    %1482 = vmatpush2.msra.mxu0 0.0
    %1483 = vmatprep.subr.mxu0 0.0
    %1484 = vmatpush2.msra.mxu0 0.0
    %1485 = vmatprep.subr.mxu0 0.0
    %1486 = vmatpush2.msra.mxu0 0.0
    %1487 = vmatprep.mubr.f32.mxu0 0.0
    %1488 = vmatmul.mubr.f32.gmra.mxu0 %v1421
    %v1489 = vpop.f32.mrf.mxu0
    %v1490 = vadd.f32 0.0, %v1489
    %v1491 = vpop.f32.mrf.mxu0
    %1492 = vdwg.mxu0
    %v1494 = vrot.slane %v1490, 1
    %v1495 = vrot.slane %v1490, 2
    %v1498 = vadd.f32 %v299, %v1494
    %v1499 = vadd.f32 %v303, %v1495
    %v1500 = vxor.u32 %v1498, 2147483648
    %v1501 = vxor.u32 %v1499, 2147483648
    %v1502 = vmul.f32 %v1500, 1.442695
    %v1503 = vpow.pop %v1502
    %v1504 = vmul.f32 %v1501, 1.442695
    %v1505 = vpow.pop %v1504
    %v1506 = vadd.f32 %v1503, 1.0
    %v1507 = vadd.f32 %v1505, 1.0
    %v1508 = vrcp.pop %v1506
    %v1509 = vmul.f32 1.0, %v1508
    %v1510 = vrcp.pop %v1507
    %v1511 = vmul.f32 1.0, %v1510
    %v1512 = vtanh.pop %v1498
    %v1513 = vtanh.pop %v1499
    %v1516 = vrot.slane %v1391, 7
    %v1517 = vrot.slane %v1392, 7
    %v1520 = vmul.f32 %v1509, %v1516
    %v1521 = vmul.f32 %v1511, %v1517
    %1524 = vrot.lane.b32.xlu0 %v1512, 64
    %v1525 = vpop.permute.xlu0 %1524
    %1526 = vrot.lane.b32.xlu0 %v1513, 64
    %v1527 = vpop.permute.xlu0 %1526
    %v1530 = vmul.f32 %v1509, %v1525
    %v1531 = vmul.f32 %v1511, %v1527
    %1534 = vrot.lane.b32.xlu0 %v1530, 32
    %v1535 = vpop.permute.xlu0 %1534
    %1536 = vrot.lane.b32.xlu0 %v1531, 32
    %v1537 = vpop.permute.xlu0 %1536
    %v1540 = vadd.f32 %v1520, %v1535
    %v1541 = vadd.f32 %v1521, %v1537
    %v1542 = vtanh.pop %v1540
    %v1543 = vtanh.pop %v1541
    %1546 = vrot.lane.b32.xlu0 %v1542, 64
    %v1547 = vpop.permute.xlu0 %1546
    %1548 = vrot.lane.b32.xlu0 %v1543, 64
    %v1549 = vpop.permute.xlu0 %1548
    %v1552 = vmul.f32 %v1509, %v1547
    %v1553 = vmul.f32 %v1511, %v1549
    %1556 = vrot.lane.b32.xlu0 %v1552, 32
    %v1557 = vpop.permute.xlu0 %1556
    %1558 = vrot.lane.b32.xlu0 %v1553, 32
    %v1559 = vpop.permute.xlu0 %1558
    %vm1562 = vcmask 261127
    %1563 = vst.msk [vmem:[#allocation2] sm:$0x80] %vm1562, %v1557
    %1564 = vst.msk [vmem:[#allocation2 + $0x8] sm:$0x80] %vm1562, %v1559
    %v1565 = vld [vmem:[#allocation2] sm:$0xff]
    %v1566 = vld [vmem:[#allocation2 + $0x8] sm:$0xff]
    %v1567 = vld [vmem:[#allocation12] sm:$0xff]
    %v1568 = vld [vmem:[#allocation12 + $0x8] sm:$0xff]
    %v1569 = vld [vmem:[#allocation12 + $0x10] sm:$0xff]
    %v1570 = vld [vmem:[#allocation12 + $0x18] sm:$0xff]
    %v1571 = vpack.c.bf16 %v1566, %v1565
    %v1572 = vpack.c.bf16 %v1568, %v1567
    %v1573 = vpack.c.bf16 %v1570, %v1569
    %v1574 = vld [vmem:[#allocation14] sm:$0x1]
    %v1576 = vlaneseq
    %v1577 = vshrl.u32 %v1576, 7
    %v1578 = vsub.s32 0, %v1577
    %v1579 = vrot.slane %v1574, %v1578
    %v1582 = vsel %vm385, %v1571, 0
    %1584 = vmatprep.subr.bf16.mxu0 0
    %1585 = vmatpush1.bf16.msra.mxu0 0
    %1586 = vmatprep.subr.bf16.mxu0 0
    %1587 = vmatpush1.bf16.msra.mxu0 0
    %1588 = vmatprep.subr.bf16.mxu0 0
    %1589 = vmatpush1.bf16.msra.mxu0 0
    %1590 = vmatprep.subr.bf16.mxu0 0
    %1591 = vmatpush1.bf16.msra.mxu0 0
    %1592 = vmatprep.subr.bf16.mxu0 0
    %1593 = vmatpush1.bf16.msra.mxu0 0
    %1594 = vmatprep.subr.bf16.mxu0 0
    %1595 = vmatpush1.bf16.msra.mxu0 0
    %1596 = vmatprep.subr.bf16.mxu0 0
    %1597 = vmatpush1.bf16.msra.mxu0 %v1573
    %1598 = vmatprep.subr.bf16.mxu0 0
    %1599 = vmatpush1.bf16.msra.mxu0 %v1572
    %1600 = vmatprep.subr.bf16.mxu0 0
    %1601 = vmatpush2.bf16.msra.mxu0 0
    %1602 = vmatprep.subr.bf16.mxu0 0
    %1603 = vmatpush2.bf16.msra.mxu0 0
    %1604 = vmatprep.subr.bf16.mxu0 0
    %1605 = vmatpush2.bf16.msra.mxu0 0
    %1606 = vmatprep.subr.bf16.mxu0 0
    %1607 = vmatpush2.bf16.msra.mxu0 0
    %1608 = vmatprep.subr.bf16.mxu0 0
    %1609 = vmatpush2.bf16.msra.mxu0 0
    %1610 = vmatprep.subr.bf16.mxu0 0
    %1611 = vmatpush2.bf16.msra.mxu0 0
    %1612 = vmatprep.subr.bf16.mxu0 0
    %1613 = vmatpush2.bf16.msra.mxu0 0
    %1614 = vmatprep.subr.bf16.mxu0 0
    %1615 = vmatpush2.bf16.msra.mxu0 0
    %1616 = vmatprep.mubr.bf16.mxu0 0
    %1617 = vmatmul.mubr.bf16.gmra.mxu0 %v1582
    %v1618 = vpop.f32.mrf.mxu0
    %v1619 = vadd.f32 %v1579, %v1618
    %v1620 = vpop.f32.mrf.mxu0
    %v1621 = vpop.f32.mrf.mxu0
    %v1622 = vadd.f32 %v1579, %v1621
    %v1623 = vpop.f32.mrf.mxu0
    %1624 = vdwg.mxu0
    %v1625 = vlaneseq
    %v1626 = vand.u32 %v1625, 127
    %v1627 = vrot.slane %v1552, 7
    %v1628 = vrot.slane %v1553, 6
    %v1629 = vsel %vm525, %v1628, %v1627
    %1630 = vrot.lane.b32.xlu0 %v1629, 32
    %v1631 = vpop.permute.xlu0 %1630
    %v1632 = vsel %vm385, %v1631, 0
    %1634 = vmatprep.subr.mxu0 0.0
    %1635 = vmatpush1.msra.mxu0 0.0
    %1636 = vmatprep.subr.mxu0 0.0
    %1637 = vmatpush1.msra.mxu0 0.0
    %1638 = vmatprep.subr.mxu0 0.0
    %1639 = vmatpush1.msra.mxu0 0.0
    %1640 = vmatprep.subr.mxu0 0.0
    %1641 = vmatpush1.msra.mxu0 0.0
    %1642 = vmatprep.subr.mxu0 0.0
    %1643 = vmatpush1.msra.mxu0 0.0
    %1644 = vmatprep.subr.mxu0 0.0
    %1645 = vmatpush1.msra.mxu0 0.0
    %1646 = vmatprep.subr.mxu0 0.0
    %1647 = vmatpush1.msra.mxu0 0.0
    %1648 = vmatprep.subr.mxu0 0.0
    %1649 = vmatpush1.msra.mxu0 0.0
    %1650 = vmatprep.subr.mxu0 0.0
    %1651 = vmatpush1.msra.mxu0 0.0
    %1652 = vmatprep.subr.mxu0 0.0
    %1653 = vmatpush1.msra.mxu0 0.0
    %1654 = vmatprep.subr.mxu0 0.0
    %1655 = vmatpush1.msra.mxu0 0.0
    %1656 = vmatprep.subr.mxu0 0.0
    %1657 = vmatpush1.msra.mxu0 0.0
    %1658 = vmatprep.subr.mxu0 0.0
    %1659 = vmatpush1.msra.mxu0 %v204
    %1660 = vmatprep.subr.mxu0 0.0
    %1661 = vmatpush1.msra.mxu0 %v203
    %1662 = vmatprep.subr.mxu0 0.0
    %1663 = vmatpush1.msra.mxu0 %v202
    %1664 = vmatprep.subr.mxu0 0.0
    %1665 = vmatpush1.msra.mxu0 %v201
    %1666 = vmatprep.subr.mxu0 0.0
    %1667 = vmatpush2.msra.mxu0 0.0
    %1668 = vmatprep.subr.mxu0 0.0
    %1669 = vmatpush2.msra.mxu0 0.0
    %1670 = vmatprep.subr.mxu0 0.0
    %1671 = vmatpush2.msra.mxu0 0.0
    %1672 = vmatprep.subr.mxu0 0.0
    %1673 = vmatpush2.msra.mxu0 0.0
    %1674 = vmatprep.subr.mxu0 0.0
    %1675 = vmatpush2.msra.mxu0 0.0
    %1676 = vmatprep.subr.mxu0 0.0
    %1677 = vmatpush2.msra.mxu0 0.0
    %1678 = vmatprep.subr.mxu0 0.0
    %1679 = vmatpush2.msra.mxu0 0.0
    %1680 = vmatprep.subr.mxu0 0.0
    %1681 = vmatpush2.msra.mxu0 0.0
    %1682 = vmatprep.subr.mxu0 0.0
    %1683 = vmatpush2.msra.mxu0 0.0
    %1684 = vmatprep.subr.mxu0 0.0
    %1685 = vmatpush2.msra.mxu0 0.0
    %1686 = vmatprep.subr.mxu0 0.0
    %1687 = vmatpush2.msra.mxu0 0.0
    %1688 = vmatprep.subr.mxu0 0.0
    %1689 = vmatpush2.msra.mxu0 0.0
    %1690 = vmatprep.subr.mxu0 0.0
    %1691 = vmatpush2.msra.mxu0 0.0
    %1692 = vmatprep.subr.mxu0 0.0
    %1693 = vmatpush2.msra.mxu0 0.0
    %1694 = vmatprep.subr.mxu0 0.0
    %1695 = vmatpush2.msra.mxu0 0.0
    %1696 = vmatprep.subr.mxu0 0.0
    %1697 = vmatpush2.msra.mxu0 0.0
    %1698 = vmatprep.mubr.f32.mxu0 0.0
    %1699 = vmatmul.mubr.f32.gmra.mxu0 %v1632
    %v1700 = vpop.f32.mrf.mxu0
    %v1701 = vadd.f32 0.0, %v1700
    %v1702 = vpop.f32.mrf.mxu0
    %1703 = vdwg.mxu0
    %v1704 = vadd.f32 %v384, %v1701
    %v1705 = vxor.u32 %v1704, 2147483648
    %v1706 = vmul.f32 %v1705, 1.442695
    %v1707 = vpow.pop %v1706
    %v1708 = vadd.f32 %v1707, 1.0
    %v1709 = vrcp.pop %v1708
    %v1710 = vmul.f32 1.0, %v1709
    %v1711 = vtanh.pop %v1704
    %v1714 = vrot.slane %v1540, 7
    %v1715 = vrot.slane %v1541, 6
    %v1716 = vsel %vm525, %v1715, %v1714
    %v1718 = vmul.f32 %v1710, %v1716
    %1720 = vrot.lane.b32.xlu0 %v1711, 64
    %v1721 = vpop.permute.xlu0 %1720
    %v1723 = vmul.f32 %v1710, %v1721
    %1725 = vrot.lane.b32.xlu0 %v1723, 32
    %v1726 = vpop.permute.xlu0 %1725
    %v1728 = vadd.f32 %v1718, %v1726
    %v1729 = vtanh.pop %v1728
    %1731 = vrot.lane.b32.xlu0 %v1729, 64
    %v1732 = vpop.permute.xlu0 %1731
    %v1734 = vmul.f32 %v1710, %v1732
    %1736 = vrot.lane.b32.xlu0 %v1734, 32
    %v1737 = vpop.permute.xlu0 %1736
    %v1738 = vsel %vm385, %v1737, 0
    %1740 = vmatprep.subr.mxu0 0.0
    %1741 = vmatpush1.msra.mxu0 0.0
    %1742 = vmatprep.subr.mxu0 0.0
    %1743 = vmatpush1.msra.mxu0 0.0
    %1744 = vmatprep.subr.mxu0 0.0
    %1745 = vmatpush1.msra.mxu0 0.0
    %1746 = vmatprep.subr.mxu0 0.0
    %1747 = vmatpush1.msra.mxu0 0.0
    %1748 = vmatprep.subr.mxu0 0.0
    %1749 = vmatpush1.msra.mxu0 0.0
    %1750 = vmatprep.subr.mxu0 0.0
    %1751 = vmatpush1.msra.mxu0 0.0
    %1752 = vmatprep.subr.mxu0 0.0
    %1753 = vmatpush1.msra.mxu0 0.0
    %1754 = vmatprep.subr.mxu0 0.0
    %1755 = vmatpush1.msra.mxu0 0.0
    %1756 = vmatprep.subr.mxu0 0.0
    %1757 = vmatpush1.msra.mxu0 0.0
    %1758 = vmatprep.subr.mxu0 0.0
    %1759 = vmatpush1.msra.mxu0 0.0
    %1760 = vmatprep.subr.mxu0 0.0
    %1761 = vmatpush1.msra.mxu0 0.0
    %1762 = vmatprep.subr.mxu0 0.0
    %1763 = vmatpush1.msra.mxu0 0.0
    %1764 = vmatprep.subr.mxu0 0.0
    %1765 = vmatpush1.msra.mxu0 %v208
    %1766 = vmatprep.subr.mxu0 0.0
    %1767 = vmatpush1.msra.mxu0 %v207
    %1768 = vmatprep.subr.mxu0 0.0
    %1769 = vmatpush1.msra.mxu0 %v206
    %1770 = vmatprep.subr.mxu0 0.0
    %1771 = vmatpush1.msra.mxu0 %v205
    %1772 = vmatprep.subr.mxu0 0.0
    %1773 = vmatpush2.msra.mxu0 0.0
    %1774 = vmatprep.subr.mxu0 0.0
    %1775 = vmatpush2.msra.mxu0 0.0
    %1776 = vmatprep.subr.mxu0 0.0
    %1777 = vmatpush2.msra.mxu0 0.0
    %1778 = vmatprep.subr.mxu0 0.0
    %1779 = vmatpush2.msra.mxu0 0.0
    %1780 = vmatprep.subr.mxu0 0.0
    %1781 = vmatpush2.msra.mxu0 0.0
    %1782 = vmatprep.subr.mxu0 0.0
    %1783 = vmatpush2.msra.mxu0 0.0
    %1784 = vmatprep.subr.mxu0 0.0
    %1785 = vmatpush2.msra.mxu0 0.0
    %1786 = vmatprep.subr.mxu0 0.0
    %1787 = vmatpush2.msra.mxu0 0.0
    %1788 = vmatprep.subr.mxu0 0.0
    %1789 = vmatpush2.msra.mxu0 0.0
    %1790 = vmatprep.subr.mxu0 0.0
    %1791 = vmatpush2.msra.mxu0 0.0
    %1792 = vmatprep.subr.mxu0 0.0
    %1793 = vmatpush2.msra.mxu0 0.0
    %1794 = vmatprep.subr.mxu0 0.0
    %1795 = vmatpush2.msra.mxu0 0.0
    %1796 = vmatprep.subr.mxu0 0.0
    %1797 = vmatpush2.msra.mxu0 0.0
    %1798 = vmatprep.subr.mxu0 0.0
    %1799 = vmatpush2.msra.mxu0 0.0
    %1800 = vmatprep.subr.mxu0 0.0
    %1801 = vmatpush2.msra.mxu0 0.0
    %1802 = vmatprep.subr.mxu0 0.0
    %1803 = vmatpush2.msra.mxu0 0.0
    %1804 = vmatprep.mubr.f32.mxu0 0.0
    %1805 = vmatmul.mubr.f32.gmra.mxu0 %v1738
    %v1806 = vpop.f32.mrf.mxu0
    %v1807 = vadd.f32 %v218, %v1806
    %v1808 = vpop.f32.mrf.mxu0
    %1809 = vdwg.mxu0
    %v1812 = vunpack.c.l.s4 1966171168
    %v1813 = vunpack.c.0.s8 %v1812
    %v1814 = vlaneseq
    %v1815 = vshrl.u32 %v1814, 7
    %v1816 = vsub.s32 %v1813, %v1815
    %v1817 = vrot.slane %v1807, %v1816
    %v1818 = vcombine.high %v1817, %v1817
    %v1820 = vunpack.c.l.s4 1966171168
    %v1821 = vunpack.c.0.s8 %v1820
    %v1822 = vlaneseq
    %v1823 = vshrl.u32 %v1822, 7
    %v1824 = vsub.s32 %v1821, %v1823
    %v1825 = vrot.slane %v1817, %v1824
    %v1827 = vunpack.c.l.s4 1966171168
    %v1828 = vunpack.c.0.s8 %v1827
    %v1829 = vlaneseq
    %v1830 = vshrl.u32 %v1829, 7
    %v1831 = vsub.s32 %v1828, %v1830
    %v1832 = vrot.slane %v1818, %v1831
    %v1833 = vlaneseq
    %v1834 = vshrl.u32 %v1833, 7
    %v1835 = vsub.s32 0, %v1834
    %v1836 = vrot.slane %v1825, %v1835
    %v1837 = vlaneseq
    %v1838 = vshrl.u32 %v1837, 7
    %v1839 = vsub.s32 0, %v1838
    %v1840 = vrot.slane %v1832, %v1839
    %v1843 = vadd.f32 %v1836, %v1619
    %v1844 = vadd.f32 %v1840, %v1622
    %v1845 = vtanh.pop %v1843
    %v1846 = vtanh.pop %v1844
    %v1847 = vmul.f32 %v1845, %v232
    %v1848 = vmul.f32 %v1846, %v232
    %v1849 = vsel %vm385, %v1847, 0.0
    %1850 = vadd.xlane.f32.xlu0 %v1849
    %v1851 = vpop.xlane.xlu0 %1850
    %v1852 = vsel %vm385, %v1848, 0.0
    %1853 = vadd.xlane.f32.xlu0 %v1852
    %v1854 = vpop.xlane.xlu0 %1853
    %vm1855 = vcmp.gt.f32.partialorder 0.0, 0.5
    %v1856 = vsel %vm1855, -inf, %v1851
    %v1857 = vsel %vm1855, -inf, %v1854
    %v1860 = vlaneseq
    %v1861 = vshrl.u32 %v1860, 7
    %v1862 = vsub.s32 %v1626, %v1861
    %v1863 = vrot.slane %v1856, %v1862
    %v1864 = vlaneseq
    %v1865 = vshrl.u32 %v1864, 7
    %v1866 = vsub.s32 %v1626, %v1865
    %v1867 = vrot.slane %v1857, %v1866
    %v1868 = vsel %vm525, %v1867, %v1863
    %vm1870 = vcmask 58368
    %v1871 = vsel %vm1870, %v1868, -inf
    %1872 = vmax.xlane.f32.xlu0 %v1871
    %v1873 = vpop.xlane.xlu0 %1872
    %v1875 = vlaneseq
    %v1876 = vshrl.u32 %v1875, 7
    %v1877 = vsub.s32 0, %v1876
    %v1878 = vrot.slane %v1873, %v1877
    %v1879 = vlaneseq
    %v1880 = vshrl.u32 %v1879, 7
    %v1881 = vsub.s32 1, %v1880
    %v1882 = vrot.slane %v1873, %v1881
    %v1885 = vsub.f32 %v1856, %v1878
    %v1886 = vsub.f32 %v1857, %v1882
    %v1887 = vmul.f32 %v1885, 1.442695
    %v1888 = vpow.pop %v1887
    %v1889 = vmul.f32 %v1886, 1.442695
    %v1890 = vpow.pop %v1889
    %1893 = vset.pattern.permute.xlu0 0
    %1894 = vperm.xlu0 %1893, %v1888
    %v1895 = vpop.permute.xlu0 %1894
    %1896 = vset.pattern.permute.xlu0 0
    %1897 = vperm.xlu0 %1896, %v1890
    %v1898 = vpop.permute.xlu0 %1897
    %v1899 = vlaneseq
    %v1900 = vshrl.u32 %v1899, 7
    %v1901 = vsub.s32 %v1626, %v1900
    %v1902 = vrot.slane %v1895, %v1901
    %v1903 = vlaneseq
    %v1904 = vshrl.u32 %v1903, 7
    %v1905 = vsub.s32 %v1626, %v1904
    %v1906 = vrot.slane %v1898, %v1905
    %v1907 = vsel %vm525, %v1906, %v1902
    %v1909 = vsel %vm1870, %v1907, 0.0
    %1910 = vadd.xlane.f32.xlu0 %v1909
    %v1911 = vpop.xlane.xlu0 %1910
    %v1913 = vlaneseq
    %v1914 = vshrl.u32 %v1913, 7
    %v1915 = vsub.s32 0, %v1914
    %v1916 = vrot.slane %v1911, %v1915
    %v1917 = vlaneseq
    %v1918 = vshrl.u32 %v1917, 7
    %v1919 = vsub.s32 1, %v1918
    %v1920 = vrot.slane %v1911, %v1919
    %v1923 = vrcp.pop %v1916
    %v1924 = vmul.f32 %v1888, %v1923
    %v1925 = vrcp.pop %v1920
    %v1926 = vmul.f32 %v1890, %v1925
    %1928 = vset.pattern.permute.xlu0 0
    %1929 = vperm.xlu0 %1928, %v1924
    %v1930 = vpop.permute.xlu0 %1929
    %1933 = vset.pattern.permute.xlu0 0
    %1934 = vperm.xlu0 %1933, %v1926
    %v1935 = vpop.permute.xlu0 %1934
    %v1937 = vmul.f32 %v1619, %v1930
    %v1938 = vmul.f32 %v1622, %v1935
    %v1939 = vsel %vm385, %v1937, 0.0
    %v1940 = vrot.slane %v1939, 4
    %v1941 = vadd.f32 %v1939, %v1940
    %v1942 = vrot.slane %v1941, 2
    %v1943 = vadd.f32 %v1941, %v1942
    %v1944 = vrot.slane %v1943, 1
    %v1945 = vadd.f32 %v1943, %v1944
    %v1946 = vsel %vm385, %v1938, 0.0
    %v1947 = vrot.slane %v1946, 4
    %v1948 = vadd.f32 %v1946, %v1947
    %v1949 = vrot.slane %v1948, 2
    %v1950 = vadd.f32 %v1948, %v1949
    %v1951 = vrot.slane %v1950, 1
    %v1952 = vadd.f32 %v1950, %v1951
    %v1955 = vsel %vm525, %v1952, %v1945
    %v1956 = vsel %vm385, %v1955, 0
    %1958 = vmatprep.subr.mxu0 0.0
    %1959 = vmatpush1.msra.mxu0 0.0
    %1960 = vmatprep.subr.mxu0 0.0
    %1961 = vmatpush1.msra.mxu0 0.0
    %1962 = vmatprep.subr.mxu0 0.0
    %1963 = vmatpush1.msra.mxu0 0.0
    %1964 = vmatprep.subr.mxu0 0.0
    %1965 = vmatpush1.msra.mxu0 0.0
    %1966 = vmatprep.subr.mxu0 0.0
    %1967 = vmatpush1.msra.mxu0 0.0
    %1968 = vmatprep.subr.mxu0 0.0
    %1969 = vmatpush1.msra.mxu0 0.0
    %1970 = vmatprep.subr.mxu0 0.0
    %1971 = vmatpush1.msra.mxu0 0.0
    %1972 = vmatprep.subr.mxu0 0.0
    %1973 = vmatpush1.msra.mxu0 0.0
    %1974 = vmatprep.subr.mxu0 0.0
    %1975 = vmatpush1.msra.mxu0 0.0
    %1976 = vmatprep.subr.mxu0 0.0
    %1977 = vmatpush1.msra.mxu0 0.0
    %1978 = vmatprep.subr.mxu0 0.0
    %1979 = vmatpush1.msra.mxu0 0.0
    %1980 = vmatprep.subr.mxu0 0.0
    %1981 = vmatpush1.msra.mxu0 0.0
    %1982 = vmatprep.subr.mxu0 0.0
    %1983 = vmatpush1.msra.mxu0 %v212
    %1984 = vmatprep.subr.mxu0 0.0
    %1985 = vmatpush1.msra.mxu0 %v211
    %1986 = vmatprep.subr.mxu0 0.0
    %1987 = vmatpush1.msra.mxu0 %v210
    %1988 = vmatprep.subr.mxu0 0.0
    %1989 = vmatpush1.msra.mxu0 %v209
    %1990 = vmatprep.subr.mxu0 0.0
    %1991 = vmatpush2.msra.mxu0 0.0
    %1992 = vmatprep.subr.mxu0 0.0
    %1993 = vmatpush2.msra.mxu0 0.0
    %1994 = vmatprep.subr.mxu0 0.0
    %1995 = vmatpush2.msra.mxu0 0.0
    %1996 = vmatprep.subr.mxu0 0.0
    %1997 = vmatpush2.msra.mxu0 0.0
    %1998 = vmatprep.subr.mxu0 0.0
    %1999 = vmatpush2.msra.mxu0 0.0
    %2000 = vmatprep.subr.mxu0 0.0
    %2001 = vmatpush2.msra.mxu0 0.0
    %2002 = vmatprep.subr.mxu0 0.0
    %2003 = vmatpush2.msra.mxu0 0.0
    %2004 = vmatprep.subr.mxu0 0.0
    %2005 = vmatpush2.msra.mxu0 0.0
    %2006 = vmatprep.subr.mxu0 0.0
    %2007 = vmatpush2.msra.mxu0 0.0
    %2008 = vmatprep.subr.mxu0 0.0
    %2009 = vmatpush2.msra.mxu0 0.0
    %2010 = vmatprep.subr.mxu0 0.0
    %2011 = vmatpush2.msra.mxu0 0.0
    %2012 = vmatprep.subr.mxu0 0.0
    %2013 = vmatpush2.msra.mxu0 0.0
    %2014 = vmatprep.subr.mxu0 0.0
    %2015 = vmatpush2.msra.mxu0 0.0
    %2016 = vmatprep.subr.mxu0 0.0
    %2017 = vmatpush2.msra.mxu0 0.0
    %2018 = vmatprep.subr.mxu0 0.0
    %2019 = vmatpush2.msra.mxu0 0.0
    %2020 = vmatprep.subr.mxu0 0.0
    %2021 = vmatpush2.msra.mxu0 0.0
    %2022 = vmatprep.mubr.f32.mxu0 0.0
    %2023 = vmatmul.mubr.f32.gmra.mxu0 %v1956
    %v2024 = vpop.f32.mrf.mxu0
    %v2025 = vadd.f32 %v225, %v2024
    %v2026 = vpop.f32.mrf.mxu0
    %2027 = vdwg.mxu0
    %v2030 = vunpack.c.l.s4 1966171168
    %v2031 = vunpack.c.0.s8 %v2030
    %v2032 = vlaneseq
    %v2033 = vshrl.u32 %v2032, 7
    %v2034 = vsub.s32 %v2031, %v2033
    %v2035 = vrot.slane %v2025, %v2034
    %v2036 = vcombine.high %v2035, %v2035
    %v2038 = vunpack.c.l.s4 1966171168
    %v2039 = vunpack.c.0.s8 %v2038
    %v2040 = vlaneseq
    %v2041 = vshrl.u32 %v2040, 7
    %v2042 = vsub.s32 %v2039, %v2041
    %v2043 = vrot.slane %v2035, %v2042
    %v2045 = vunpack.c.l.s4 1966171168
    %v2046 = vunpack.c.0.s8 %v2045
    %v2047 = vlaneseq
    %v2048 = vshrl.u32 %v2047, 7
    %v2049 = vsub.s32 %v2046, %v2048
    %v2050 = vrot.slane %v2036, %v2049
    %v2051 = vlaneseq
    %v2052 = vshrl.u32 %v2051, 7
    %v2053 = vsub.s32 0, %v2052
    %v2054 = vrot.slane %v2043, %v2053
    %v2055 = vlaneseq
    %v2056 = vshrl.u32 %v2055, 7
    %v2057 = vsub.s32 0, %v2056
    %v2058 = vrot.slane %v2050, %v2057
    %2063 = vrot.lane.b32.xlu0 %v1619, 96
    %v2064 = vpop.permute.xlu0 %2063
    %2065 = vrot.lane.b32.xlu0 %v1622, 96
    %v2066 = vpop.permute.xlu0 %2065
    %v2069 = vadd.f32 %v2054, %v2064
    %v2070 = vadd.f32 %v2058, %v2066
    %v2071 = vtanh.pop %v2069
    %v2072 = vtanh.pop %v2070
    %v2073 = vmul.f32 %v2071, %v239
    %v2074 = vmul.f32 %v2072, %v239
    %v2075 = vsel %vm385, %v2073, 0.0
    %2076 = vadd.xlane.f32.xlu0 %v2075
    %v2077 = vpop.xlane.xlu0 %2076
    %v2078 = vsel %vm385, %v2074, 0.0
    %2079 = vadd.xlane.f32.xlu0 %v2078
    %v2080 = vpop.xlane.xlu0 %2079
    %v2081 = vtanh.pop %v2077
    %v2082 = vtanh.pop %v2080
    %v2083 = vmul.f32 %v2081, 10.0
    %v2084 = vmul.f32 %v2082, 10.0
    %v2085 = vsel %vm1855, -inf, %v2083
    %v2086 = vsel %vm1855, -inf, %v2084
    %v2089 = vlaneseq
    %v2090 = vshrl.u32 %v2089, 7
    %v2091 = vsub.s32 %v1626, %v2090
    %v2092 = vrot.slane %v2085, %v2091
    %v2093 = vlaneseq
    %v2094 = vshrl.u32 %v2093, 7
    %v2095 = vsub.s32 %v1626, %v2094
    %v2096 = vrot.slane %v2086, %v2095
    %v2097 = vsel %vm525, %v2096, %v2092
    %v2099 = vsel %vm1870, %v2097, -inf
    %2100 = vmax.xlane.f32.xlu0 %v2099
    %v2101 = vpop.xlane.xlu0 %2100
    %v2103 = vlaneseq
    %v2104 = vshrl.u32 %v2103, 7
    %v2105 = vsub.s32 0, %v2104
    %v2106 = vrot.slane %v2101, %v2105
    %v2107 = vlaneseq
    %v2108 = vshrl.u32 %v2107, 7
    %v2109 = vsub.s32 1, %v2108
    %v2110 = vrot.slane %v2101, %v2109
    %v2113 = vsub.f32 %v2085, %v2106
    %v2114 = vsub.f32 %v2086, %v2110
    %v2115 = vmul.f32 %v2113, 1.442695
    %v2116 = vpow.pop %v2115
    %v2117 = vmul.f32 %v2114, 1.442695
    %v2118 = vpow.pop %v2117
    %2121 = vset.pattern.permute.xlu0 0
    %2122 = vperm.xlu0 %2121, %v2116
    %v2123 = vpop.permute.xlu0 %2122
    %2124 = vset.pattern.permute.xlu0 0
    %2125 = vperm.xlu0 %2124, %v2118
    %v2126 = vpop.permute.xlu0 %2125
    %v2127 = vlaneseq
    %v2128 = vshrl.u32 %v2127, 7
    %v2129 = vsub.s32 %v1626, %v2128
    %v2130 = vrot.slane %v2123, %v2129
    %v2131 = vlaneseq
    %v2132 = vshrl.u32 %v2131, 7
    %v2133 = vsub.s32 %v1626, %v2132
    %v2134 = vrot.slane %v2126, %v2133
    %v2135 = vsel %vm525, %v2134, %v2130
    %v2137 = vsel %vm1870, %v2135, 0.0
    %2138 = vadd.xlane.f32.xlu0 %v2137
    %v2139 = vpop.xlane.xlu0 %2138
    %v2141 = vlaneseq
    %v2142 = vshrl.u32 %v2141, 7
    %v2143 = vsub.s32 0, %v2142
    %v2144 = vrot.slane %v2139, %v2143
    %v2145 = vlaneseq
    %v2146 = vshrl.u32 %v2145, 7
    %v2147 = vsub.s32 1, %v2146
    %v2148 = vrot.slane %v2139, %v2147
    %v2151 = vrcp.pop %v2144
    %v2152 = vmul.f32 %v2116, %v2151
    %v2153 = vrcp.pop %v2148
    %v2154 = vmul.f32 %v2118, %v2153
    %v2155 = vld [vmem:[#allocation3] sm:$0x3]
    %v2157 = vlaneseq
    %v2158 = vshrl.u32 %v2157, 7
    %v2159 = vsub.s32 0, %v2158
    %v2160 = vrot.slane %v2155, %v2159
    %2162 = vbcast.lane.b32.xlu0 %v2160, 256
    %v2163 = vpop.permute.xlu0 %2162
    %v2164 = vlaneseq
    %v2165 = vshrl.u32 %v2164, 7
    %v2166 = vsub.s32 1, %v2165
    %v2167 = vrot.slane %v2155, %v2166
    %2169 = vbcast.lane.b32.xlu0 %v2167, 256
    %v2170 = vpop.permute.xlu0 %2169
    %v2173 = vadd.f32 %v2085, %v2163
    %v2174 = vadd.f32 %v2086, %v2170
    %2177 = vset.pattern.permute.xlu0 0
    %2178 = vperm.xlu0 %2177, %v2173
    %v2179 = vpop.permute.xlu0 %2178
    %2180 = vset.pattern.permute.xlu0 0
    %2181 = vperm.xlu0 %2180, %v2174
    %v2182 = vpop.permute.xlu0 %2181
    %v2183 = vlaneseq
    %v2184 = vshrl.u32 %v2183, 7
    %v2185 = vsub.s32 %v1626, %v2184
    %v2186 = vrot.slane %v2179, %v2185
    %v2187 = vlaneseq
    %v2188 = vshrl.u32 %v2187, 7
    %v2189 = vsub.s32 %v1626, %v2188
    %v2190 = vrot.slane %v2182, %v2189
    %v2191 = vsel %vm525, %v2190, %v2186
    %v2193 = vsel %vm1870, %v2191, -inf
    %2194 = vmax.xlane.f32.xlu0 %v2193
    %v2195 = vpop.xlane.xlu0 %2194
    %v2197 = vlaneseq
    %v2198 = vshrl.u32 %v2197, 7
    %v2199 = vsub.s32 0, %v2198
    %v2200 = vrot.slane %v2195, %v2199
    %v2201 = vlaneseq
    %v2202 = vshrl.u32 %v2201, 7
    %v2203 = vsub.s32 1, %v2202
    %v2204 = vrot.slane %v2195, %v2203
    %vm2207 = vcmp.ge.f32.partialorder %v2173, %v2200
    %vm2208 = vcmp.ge.f32.partialorder %v2174, %v2204
    %2210 = vbcast.lane.b32.xlu0 %v1626, 256
    %v2211 = vpop.permute.xlu0 %2210
    %v2212 = vsel %vm2207, %v2211, 8
    %v2213 = vsel %vm2208, %v2211, 8
    %2214 = vset.pattern.permute.xlu0 0
    %2215 = vperm.xlu0 %2214, %v2212
    %v2216 = vpop.permute.xlu0 %2215
    %2217 = vset.pattern.permute.xlu0 0
    %2218 = vperm.xlu0 %2217, %v2213
    %v2219 = vpop.permute.xlu0 %2218
    %v2220 = vlaneseq
    %v2221 = vshrl.u32 %v2220, 7
    %v2222 = vsub.s32 %v1626, %v2221
    %v2223 = vrot.slane %v2216, %v2222
    %v2224 = vlaneseq
    %v2225 = vshrl.u32 %v2224, 7
    %v2226 = vsub.s32 %v1626, %v2225
    %v2227 = vrot.slane %v2219, %v2226
    %v2228 = vsel %vm525, %v2227, %v2223
    %v2229 = vsel %vm1870, %v2228, 2147483647
    %v2230 = vand.u32 %v2229, 65535
    %v2231 = vshra.s32 %v2229, 16
    %v2232 = vcvt.s32.f32 %v2230
    %v2233 = vcvt.s32.f32 %v2231
    %2234 = vmin.xlane.f32.xlu0 %v2233
    %v2235 = vpop.xlane.xlu0 %2234
    %vm2236 = vcmp.eq.f32.partialorder %v2233, %v2235
    %v2237 = vsel %vm2236, %v2232, inf
    %2238 = vmin.xlane.f32.xlu0 %v2237
    %v2239 = vpop.xlane.xlu0 %2238
    %v2240 = vcvt.f32.s32 %v2239
    %v2241 = vcvt.f32.s32 %v2235
    %v2242 = vshll.u32 %v2241, 16
    %v2243 = vadd.s32 %v2242, %v2240
    %vm2244 = vcmp.eq.s32.totalorder %v1626, %v2243
    %v2245 = vsel %vm2244, 1, 0
    %v2246 = vcvt.s32.f32 %v2245
    %v2247 = vmax.f32 %v2246, 0.0
    %v2248 = vlaneseq
    %v2249 = vshrl.u32 %v2248, 7
    %v2250 = vsub.s32 0, %v2249
    %v2251 = vrot.slane %v2246, %v2250
    %2253 = vbcast.lane.b32.xlu0 %v2251, 256
    %v2254 = vpop.permute.xlu0 %2253
    %v2255 = vlaneseq
    %v2256 = vshrl.u32 %v2255, 7
    %v2257 = vsub.s32 1, %v2256
    %v2258 = vrot.slane %v2246, %v2257
    %2260 = vbcast.lane.b32.xlu0 %v2258, 256
    %v2261 = vpop.permute.xlu0 %2260
    %v2262 = vmul.f32 %v2254, %v301
    %v2263 = vmul.f32 %v2261, %v305
    %v2264 = vrot.slane %v2262, 4
    %v2265 = vadd.f32 %v2262, %v2264
    %v2266 = vrot.slane %v2265, 2
    %v2267 = vadd.f32 %v2265, %v2266
    %v2268 = vrot.slane %v2267, 1
    %v2269 = vadd.f32 %v2267, %v2268
    %v2270 = vrot.slane %v2263, 4
    %v2271 = vadd.f32 %v2263, %v2270
    %v2272 = vrot.slane %v2271, 2
    %v2273 = vadd.f32 %v2271, %v2272
    %v2274 = vrot.slane %v2273, 1
    %v2275 = vadd.f32 %v2273, %v2274
    %2278 = vset.pattern.permute.xlu0 0
    %2279 = vperm.xlu0 %2278, %v2152
    %v2280 = vpop.permute.xlu0 %2279
    %2281 = vset.pattern.permute.xlu0 0
    %2282 = vperm.xlu0 %2281, %v2154
    %v2283 = vpop.permute.xlu0 %2282
    %v2284 = vlaneseq
    %v2285 = vshrl.u32 %v2284, 7
    %v2286 = vsub.s32 %v1626, %v2285
    %v2287 = vrot.slane %v2280, %v2286
    %v2288 = vlaneseq
    %v2289 = vshrl.u32 %v2288, 7
    %v2290 = vsub.s32 %v1626, %v2289
    %v2291 = vrot.slane %v2283, %v2290
    %v2292 = vsel %vm525, %v2291, %v2287
    %2294 = vst.msk [vmem:[#allocation17] sm:$0x3] %vm1870, %v2292
    %vm2295 = vcmask 1024
    %2296 = vst.msk [vmem:[%s17] sm:$0x3] %vm2295, %v2243
    %2297 = vmatprep.subr.mxu0 0.0
    %2298 = vmatpush1.msra.mxu0 0.0
    %2299 = vmatprep.subr.mxu0 0.0
    %2300 = vmatpush1.msra.mxu0 0.0
    %2301 = vmatprep.subr.mxu0 0.0
    %2302 = vmatpush1.msra.mxu0 0.0
    %2303 = vmatprep.subr.mxu0 0.0
    %2304 = vmatpush1.msra.mxu0 0.0
    %2305 = vmatprep.subr.mxu0 0.0
    %2306 = vmatpush1.msra.mxu0 0.0
    %2307 = vmatprep.subr.mxu0 0.0
    %2308 = vmatpush1.msra.mxu0 0.0
    %2309 = vmatprep.subr.mxu0 0.0
    %2310 = vmatpush1.msra.mxu0 0.0
    %2311 = vmatprep.subr.mxu0 0.0
    %2312 = vmatpush1.msra.mxu0 0.0
    %2313 = vmatprep.subr.mxu0 0.0
    %2314 = vmatpush1.msra.mxu0 0.0
    %2315 = vmatprep.subr.mxu0 0.0
    %2316 = vmatpush1.msra.mxu0 0.0
    %2317 = vmatprep.subr.mxu0 0.0
    %2318 = vmatpush1.msra.mxu0 0.0
    %2319 = vmatprep.subr.mxu0 0.0
    %2320 = vmatpush1.msra.mxu0 0.0
    %2321 = vmatprep.subr.mxu0 0.0
    %2322 = vmatpush1.msra.mxu0 %v204
    %2323 = vmatprep.subr.mxu0 0.0
    %2324 = vmatpush1.msra.mxu0 %v203
    %2325 = vmatprep.subr.mxu0 0.0
    %2326 = vmatpush1.msra.mxu0 %v202
    %2327 = vmatprep.subr.mxu0 0.0
    %2328 = vmatpush1.msra.mxu0 %v201
    %2329 = vmatprep.subr.mxu0 0.0
    %2330 = vmatpush2.msra.mxu0 0.0
    %2331 = vmatprep.subr.mxu0 0.0
    %2332 = vmatpush2.msra.mxu0 0.0
    %2333 = vmatprep.subr.mxu0 0.0
    %2334 = vmatpush2.msra.mxu0 0.0
    %2335 = vmatprep.subr.mxu0 0.0
    %2336 = vmatpush2.msra.mxu0 0.0
    %2337 = vmatprep.subr.mxu0 0.0
    %2338 = vmatpush2.msra.mxu0 0.0
    %2339 = vmatprep.subr.mxu0 0.0
    %2340 = vmatpush2.msra.mxu0 0.0
    %2341 = vmatprep.subr.mxu0 0.0
    %2342 = vmatpush2.msra.mxu0 0.0
    %2343 = vmatprep.subr.mxu0 0.0
    %2344 = vmatpush2.msra.mxu0 0.0
    %2345 = vmatprep.subr.mxu0 0.0
    %2346 = vmatpush2.msra.mxu0 0.0
    %2347 = vmatprep.subr.mxu0 0.0
    %2348 = vmatpush2.msra.mxu0 0.0
    %2349 = vmatprep.subr.mxu0 0.0
    %2350 = vmatpush2.msra.mxu0 0.0
    %2351 = vmatprep.subr.mxu0 0.0
    %2352 = vmatpush2.msra.mxu0 0.0
    %2353 = vmatprep.subr.mxu0 0.0
    %2354 = vmatpush2.msra.mxu0 0.0
    %2355 = vmatprep.subr.mxu0 0.0
    %2356 = vmatpush2.msra.mxu0 0.0
    %2357 = vmatprep.subr.mxu0 0.0
    %2358 = vmatpush2.msra.mxu0 0.0
    %2359 = vmatprep.subr.mxu0 0.0
    %2360 = vmatpush2.msra.mxu0 0.0
    %2361 = vmatprep.mubr.f32.mxu0 0.0
    %2362 = vmatmul.mubr.f32.gmra.mxu0 %v1738
    %v2363 = vpop.f32.mrf.mxu0
    %v2364 = vadd.f32 0.0, %v2363
    %v2365 = vpop.f32.mrf.mxu0
    %2366 = vdwg.mxu0
    %v2368 = vrot.slane %v2364, 1
    %v2371 = vadd.f32 %v2269, %v2364
    %v2372 = vadd.f32 %v2275, %v2368
    %v2373 = vxor.u32 %v2371, 2147483648
    %v2374 = vxor.u32 %v2372, 2147483648
    %v2375 = vmul.f32 %v2373, 1.442695
    %v2376 = vpow.pop %v2375
    %v2377 = vmul.f32 %v2374, 1.442695
    %v2378 = vpow.pop %v2377
    %v2379 = vadd.f32 %v2376, 1.0
    %v2380 = vadd.f32 %v2378, 1.0
    %v2381 = vrcp.pop %v2379
    %v2382 = vmul.f32 1.0, %v2381
    %v2383 = vrcp.pop %v2380
    %v2384 = vmul.f32 1.0, %v2383
    %v2385 = vtanh.pop %v2371
    %v2386 = vtanh.pop %v2372
    %v2388 = vrot.slane %v1728, 1
    %v2391 = vmul.f32 %v2382, %v1728
    %v2392 = vmul.f32 %v2384, %v2388
    %2395 = vrot.lane.b32.xlu0 %v2385, 64
    %v2396 = vpop.permute.xlu0 %2395
    %2397 = vrot.lane.b32.xlu0 %v2386, 64
    %v2398 = vpop.permute.xlu0 %2397
    %v2401 = vmul.f32 %v2382, %v2396
    %v2402 = vmul.f32 %v2384, %v2398
    %2405 = vrot.lane.b32.xlu0 %v2401, 32
    %v2406 = vpop.permute.xlu0 %2405
    %2407 = vrot.lane.b32.xlu0 %v2402, 32
    %v2408 = vpop.permute.xlu0 %2407
    %v2411 = vadd.f32 %v2391, %v2406
    %v2412 = vadd.f32 %v2392, %v2408
    %v2413 = vtanh.pop %v2411
    %v2414 = vtanh.pop %v2412
    %2417 = vrot.lane.b32.xlu0 %v2413, 64
    %v2418 = vpop.permute.xlu0 %2417
    %2419 = vrot.lane.b32.xlu0 %v2414, 64
    %v2420 = vpop.permute.xlu0 %2419
    %v2423 = vmul.f32 %v2382, %v2418
    %v2424 = vmul.f32 %v2384, %v2420
    %v2427 = vrot.slane %v2424, 7
    %v2428 = vsel %vm525, %v2427, %v2423
    %2429 = vrot.lane.b32.xlu0 %v2428, 32
    %v2430 = vpop.permute.xlu0 %2429
    %v2431 = vsel %vm385, %v2430, 0
    %2433 = vmatprep.subr.mxu0 0.0
    %2434 = vmatpush1.msra.mxu0 0.0
    %2435 = vmatprep.subr.mxu0 0.0
    %2436 = vmatpush1.msra.mxu0 0.0
    %2437 = vmatprep.subr.mxu0 0.0
    %2438 = vmatpush1.msra.mxu0 0.0
    %2439 = vmatprep.subr.mxu0 0.0
    %2440 = vmatpush1.msra.mxu0 0.0
    %2441 = vmatprep.subr.mxu0 0.0
    %2442 = vmatpush1.msra.mxu0 0.0
    %2443 = vmatprep.subr.mxu0 0.0
    %2444 = vmatpush1.msra.mxu0 0.0
    %2445 = vmatprep.subr.mxu0 0.0
    %2446 = vmatpush1.msra.mxu0 0.0
    %2447 = vmatprep.subr.mxu0 0.0
    %2448 = vmatpush1.msra.mxu0 0.0
    %2449 = vmatprep.subr.mxu0 0.0
    %2450 = vmatpush1.msra.mxu0 0.0
    %2451 = vmatprep.subr.mxu0 0.0
    %2452 = vmatpush1.msra.mxu0 0.0
    %2453 = vmatprep.subr.mxu0 0.0
    %2454 = vmatpush1.msra.mxu0 0.0
    %2455 = vmatprep.subr.mxu0 0.0
    %2456 = vmatpush1.msra.mxu0 0.0
    %2457 = vmatprep.subr.mxu0 0.0
    %2458 = vmatpush1.msra.mxu0 %v208
    %2459 = vmatprep.subr.mxu0 0.0
    %2460 = vmatpush1.msra.mxu0 %v207
    %2461 = vmatprep.subr.mxu0 0.0
    %2462 = vmatpush1.msra.mxu0 %v206
    %2463 = vmatprep.subr.mxu0 0.0
    %2464 = vmatpush1.msra.mxu0 %v205
    %2465 = vmatprep.subr.mxu0 0.0
    %2466 = vmatpush2.msra.mxu0 0.0
    %2467 = vmatprep.subr.mxu0 0.0
    %2468 = vmatpush2.msra.mxu0 0.0
    %2469 = vmatprep.subr.mxu0 0.0
    %2470 = vmatpush2.msra.mxu0 0.0
    %2471 = vmatprep.subr.mxu0 0.0
    %2472 = vmatpush2.msra.mxu0 0.0
    %2473 = vmatprep.subr.mxu0 0.0
    %2474 = vmatpush2.msra.mxu0 0.0
    %2475 = vmatprep.subr.mxu0 0.0
    %2476 = vmatpush2.msra.mxu0 0.0
    %2477 = vmatprep.subr.mxu0 0.0
    %2478 = vmatpush2.msra.mxu0 0.0
    %2479 = vmatprep.subr.mxu0 0.0
    %2480 = vmatpush2.msra.mxu0 0.0
    %2481 = vmatprep.subr.mxu0 0.0
    %2482 = vmatpush2.msra.mxu0 0.0
    %2483 = vmatprep.subr.mxu0 0.0
    %2484 = vmatpush2.msra.mxu0 0.0
    %2485 = vmatprep.subr.mxu0 0.0
    %2486 = vmatpush2.msra.mxu0 0.0
    %2487 = vmatprep.subr.mxu0 0.0
    %2488 = vmatpush2.msra.mxu0 0.0
    %2489 = vmatprep.subr.mxu0 0.0
    %2490 = vmatpush2.msra.mxu0 0.0
    %2491 = vmatprep.subr.mxu0 0.0
    %2492 = vmatpush2.msra.mxu0 0.0
    %2493 = vmatprep.subr.mxu0 0.0
    %2494 = vmatpush2.msra.mxu0 0.0
    %2495 = vmatprep.subr.mxu0 0.0
    %2496 = vmatpush2.msra.mxu0 0.0
    %2497 = vmatprep.mubr.f32.mxu0 0.0
    %2498 = vmatmul.mubr.f32.gmra.mxu0 %v2431
    %v2499 = vpop.f32.mrf.mxu0
    %v2500 = vadd.f32 %v218, %v2499
    %v2501 = vpop.f32.mrf.mxu0
    %2502 = vdwg.mxu0
    %v2505 = vunpack.c.l.s4 1966171168
    %v2506 = vunpack.c.0.s8 %v2505
    %v2507 = vlaneseq
    %v2508 = vshrl.u32 %v2507, 7
    %v2509 = vsub.s32 %v2506, %v2508
    %v2510 = vrot.slane %v2500, %v2509
    %v2511 = vcombine.high %v2510, %v2510
    %v2513 = vunpack.c.l.s4 1966171168
    %v2514 = vunpack.c.0.s8 %v2513
    %v2515 = vlaneseq
    %v2516 = vshrl.u32 %v2515, 7
    %v2517 = vsub.s32 %v2514, %v2516
    %v2518 = vrot.slane %v2510, %v2517
    %v2520 = vunpack.c.l.s4 1966171168
    %v2521 = vunpack.c.0.s8 %v2520
    %v2522 = vlaneseq
    %v2523 = vshrl.u32 %v2522, 7
    %v2524 = vsub.s32 %v2521, %v2523
    %v2525 = vrot.slane %v2511, %v2524
    %v2526 = vlaneseq
    %v2527 = vshrl.u32 %v2526, 7
    %v2528 = vsub.s32 0, %v2527
    %v2529 = vrot.slane %v2518, %v2528
    %v2530 = vlaneseq
    %v2531 = vshrl.u32 %v2530, 7
    %v2532 = vsub.s32 0, %v2531
    %v2533 = vrot.slane %v2525, %v2532
    %v2536 = vadd.f32 %v2529, %v1619
    %v2537 = vadd.f32 %v2533, %v1622
    %v2538 = vtanh.pop %v2536
    %v2539 = vtanh.pop %v2537
    %v2540 = vmul.f32 %v2538, %v232
    %v2541 = vmul.f32 %v2539, %v232
    %v2542 = vsel %vm385, %v2540, 0.0
    %2543 = vadd.xlane.f32.xlu0 %v2542
    %v2544 = vpop.xlane.xlu0 %2543
    %v2545 = vsel %vm385, %v2541, 0.0
    %2546 = vadd.xlane.f32.xlu0 %v2545
    %v2547 = vpop.xlane.xlu0 %2546
    %vm2548 = vcmp.gt.f32.partialorder %v2247, 0.5
    %v2551 = vlaneseq
    %v2552 = vshrl.u32 %v2551, 7
    %v2553 = vsub.s32 %v1626, %v2552
    %v2554 = vrot.slane %v2544, %v2553
    %v2555 = vlaneseq
    %v2556 = vshrl.u32 %v2555, 7
    %v2557 = vsub.s32 %v1626, %v2556
    %v2558 = vrot.slane %v2547, %v2557
    %v2559 = vsel %vm525, %v2558, %v2554
    %v2561 = vsel %vm2548, -inf, %v2559
    %v2562 = vsel %vm1870, %v2561, -inf
    %2563 = vmax.xlane.f32.xlu0 %v2562
    %v2564 = vpop.xlane.xlu0 %2563
    %v2565 = vsub.f32 %v2561, %v2564
    %v2566 = vmul.f32 %v2565, 1.442695
    %v2567 = vpow.pop %v2566
    %v2568 = vsel %vm1870, %v2567, 0.0
    %2569 = vadd.xlane.f32.xlu0 %v2568
    %v2570 = vpop.xlane.xlu0 %2569
    %v2571 = vrcp.pop %v2570
    %v2572 = vmul.f32 %v2567, %v2571
    %v2573 = vlaneseq
    %v2574 = vshrl.u32 %v2573, 7
    %v2575 = vsub.s32 0, %v2574
    %v2576 = vrot.slane %v2572, %v2575
    %2578 = vbcast.lane.b32.xlu0 %v2576, 256
    %v2579 = vpop.permute.xlu0 %2578
    %v2580 = vlaneseq
    %v2581 = vshrl.u32 %v2580, 7
    %v2582 = vsub.s32 1, %v2581
    %v2583 = vrot.slane %v2572, %v2582
    %2585 = vbcast.lane.b32.xlu0 %v2583, 256
    %v2586 = vpop.permute.xlu0 %2585
    %v2587 = vmul.f32 %v1619, %v2579
    %v2588 = vmul.f32 %v1622, %v2586
    %v2589 = vsel %vm385, %v2587, 0.0
    %v2590 = vrot.slane %v2589, 4
    %v2591 = vadd.f32 %v2589, %v2590
    %v2592 = vrot.slane %v2591, 2
    %v2593 = vadd.f32 %v2591, %v2592
    %v2594 = vrot.slane %v2593, 1
    %v2595 = vadd.f32 %v2593, %v2594
    %v2596 = vsel %vm385, %v2588, 0.0
    %v2597 = vrot.slane %v2596, 4
    %v2598 = vadd.f32 %v2596, %v2597
    %v2599 = vrot.slane %v2598, 2
    %v2600 = vadd.f32 %v2598, %v2599
    %v2601 = vrot.slane %v2600, 1
    %v2602 = vadd.f32 %v2600, %v2601
    %v2605 = vsel %vm525, %v2602, %v2595
    %v2606 = vsel %vm385, %v2605, 0
    %2608 = vmatprep.subr.mxu0 0.0
    %2609 = vmatpush1.msra.mxu0 0.0
    %2610 = vmatprep.subr.mxu0 0.0
    %2611 = vmatpush1.msra.mxu0 0.0
    %2612 = vmatprep.subr.mxu0 0.0
    %2613 = vmatpush1.msra.mxu0 0.0
    %2614 = vmatprep.subr.mxu0 0.0
    %2615 = vmatpush1.msra.mxu0 0.0
    %2616 = vmatprep.subr.mxu0 0.0
    %2617 = vmatpush1.msra.mxu0 0.0
    %2618 = vmatprep.subr.mxu0 0.0
    %2619 = vmatpush1.msra.mxu0 0.0
    %2620 = vmatprep.subr.mxu0 0.0
    %2621 = vmatpush1.msra.mxu0 0.0
    %2622 = vmatprep.subr.mxu0 0.0
    %2623 = vmatpush1.msra.mxu0 0.0
    %2624 = vmatprep.subr.mxu0 0.0
    %2625 = vmatpush1.msra.mxu0 0.0
    %2626 = vmatprep.subr.mxu0 0.0
    %2627 = vmatpush1.msra.mxu0 0.0
    %2628 = vmatprep.subr.mxu0 0.0
    %2629 = vmatpush1.msra.mxu0 0.0
    %2630 = vmatprep.subr.mxu0 0.0
    %2631 = vmatpush1.msra.mxu0 0.0
    %2632 = vmatprep.subr.mxu0 0.0
    %2633 = vmatpush1.msra.mxu0 %v212
    %2634 = vmatprep.subr.mxu0 0.0
    %2635 = vmatpush1.msra.mxu0 %v211
    %2636 = vmatprep.subr.mxu0 0.0
    %2637 = vmatpush1.msra.mxu0 %v210
    %2638 = vmatprep.subr.mxu0 0.0
    %2639 = vmatpush1.msra.mxu0 %v209
    %2640 = vmatprep.subr.mxu0 0.0
    %2641 = vmatpush2.msra.mxu0 0.0
    %2642 = vmatprep.subr.mxu0 0.0
    %2643 = vmatpush2.msra.mxu0 0.0
    %2644 = vmatprep.subr.mxu0 0.0
    %2645 = vmatpush2.msra.mxu0 0.0
    %2646 = vmatprep.subr.mxu0 0.0
    %2647 = vmatpush2.msra.mxu0 0.0
    %2648 = vmatprep.subr.mxu0 0.0
    %2649 = vmatpush2.msra.mxu0 0.0
    %2650 = vmatprep.subr.mxu0 0.0
    %2651 = vmatpush2.msra.mxu0 0.0
    %2652 = vmatprep.subr.mxu0 0.0
    %2653 = vmatpush2.msra.mxu0 0.0
    %2654 = vmatprep.subr.mxu0 0.0
    %2655 = vmatpush2.msra.mxu0 0.0
    %2656 = vmatprep.subr.mxu0 0.0
    %2657 = vmatpush2.msra.mxu0 0.0
    %2658 = vmatprep.subr.mxu0 0.0
    %2659 = vmatpush2.msra.mxu0 0.0
    %2660 = vmatprep.subr.mxu0 0.0
    %2661 = vmatpush2.msra.mxu0 0.0
    %2662 = vmatprep.subr.mxu0 0.0
    %2663 = vmatpush2.msra.mxu0 0.0
    %2664 = vmatprep.subr.mxu0 0.0
    %2665 = vmatpush2.msra.mxu0 0.0
    %2666 = vmatprep.subr.mxu0 0.0
    %2667 = vmatpush2.msra.mxu0 0.0
    %2668 = vmatprep.subr.mxu0 0.0
    %2669 = vmatpush2.msra.mxu0 0.0
    %2670 = vmatprep.subr.mxu0 0.0
    %2671 = vmatpush2.msra.mxu0 0.0
    %2672 = vmatprep.mubr.f32.mxu0 0.0
    %2673 = vmatmul.mubr.f32.gmra.mxu0 %v2606
    %v2674 = vpop.f32.mrf.mxu0
    %v2675 = vadd.f32 %v225, %v2674
    %v2676 = vpop.f32.mrf.mxu0
    %2677 = vdwg.mxu0
    %v2680 = vunpack.c.l.s4 1966171168
    %v2681 = vunpack.c.0.s8 %v2680
    %v2682 = vlaneseq
    %v2683 = vshrl.u32 %v2682, 7
    %v2684 = vsub.s32 %v2681, %v2683
    %v2685 = vrot.slane %v2675, %v2684
    %v2686 = vcombine.high %v2685, %v2685
    %v2688 = vunpack.c.l.s4 1966171168
    %v2689 = vunpack.c.0.s8 %v2688
    %v2690 = vlaneseq
    %v2691 = vshrl.u32 %v2690, 7
    %v2692 = vsub.s32 %v2689, %v2691
    %v2693 = vrot.slane %v2685, %v2692
    %v2695 = vunpack.c.l.s4 1966171168
    %v2696 = vunpack.c.0.s8 %v2695
    %v2697 = vlaneseq
    %v2698 = vshrl.u32 %v2697, 7
    %v2699 = vsub.s32 %v2696, %v2698
    %v2700 = vrot.slane %v2686, %v2699
    %v2701 = vlaneseq
    %v2702 = vshrl.u32 %v2701, 7
    %v2703 = vsub.s32 0, %v2702
    %v2704 = vrot.slane %v2693, %v2703
    %v2705 = vlaneseq
    %v2706 = vshrl.u32 %v2705, 7
    %v2707 = vsub.s32 0, %v2706
    %v2708 = vrot.slane %v2700, %v2707
    %v2711 = vadd.f32 %v2704, %v2064
    %v2712 = vadd.f32 %v2708, %v2066
    %v2713 = vtanh.pop %v2711
    %v2714 = vtanh.pop %v2712
    %v2715 = vmul.f32 %v2713, %v239
    %v2716 = vmul.f32 %v2714, %v239
    %v2717 = vsel %vm385, %v2715, 0.0
    %2718 = vadd.xlane.f32.xlu0 %v2717
    %v2719 = vpop.xlane.xlu0 %2718
    %v2720 = vsel %vm385, %v2716, 0.0
    %2721 = vadd.xlane.f32.xlu0 %v2720
    %v2722 = vpop.xlane.xlu0 %2721
    %v2723 = vtanh.pop %v2719
    %v2724 = vtanh.pop %v2722
    %v2725 = vmul.f32 %v2723, 10.0
    %v2726 = vmul.f32 %v2724, 10.0
    %v2729 = vlaneseq
    %v2730 = vshrl.u32 %v2729, 7
    %v2731 = vsub.s32 %v1626, %v2730
    %v2732 = vrot.slane %v2725, %v2731
    %v2733 = vlaneseq
    %v2734 = vshrl.u32 %v2733, 7
    %v2735 = vsub.s32 %v1626, %v2734
    %v2736 = vrot.slane %v2726, %v2735
    %v2737 = vsel %vm525, %v2736, %v2732
    %v2739 = vsel %vm2548, -inf, %v2737
    %v2740 = vsel %vm1870, %v2739, -inf
    %2741 = vmax.xlane.f32.xlu0 %v2740
    %v2742 = vpop.xlane.xlu0 %2741
    %v2743 = vsub.f32 %v2739, %v2742
    %v2744 = vmul.f32 %v2743, 1.442695
    %v2745 = vpow.pop %v2744
    %v2746 = vsel %vm1870, %v2745, 0.0
    %2747 = vadd.xlane.f32.xlu0 %v2746
    %v2748 = vpop.xlane.xlu0 %2747
    %v2749 = vrcp.pop %v2748
    %v2750 = vmul.f32 %v2745, %v2749
    %s2751 = scalar_lea.vmem [#allocation3], 2
    %v2752 = vld [vmem:[%s2751] sm:$0x3]
    %v2753 = vadd.f32 %v2739, %v2752
    %v2754 = vsel %vm1870, %v2753, -inf
    %2755 = vmax.xlane.f32.xlu0 %v2754
    %v2756 = vpop.xlane.xlu0 %2755
    %vm2757 = vcmp.ge.f32.partialorder %v2753, %v2756
    %v2758 = vsel %vm2757, %v1626, 8
    %v2759 = vsel %vm1870, %v2758, 2147483647
    %v2760 = vand.u32 %v2759, 65535
    %v2761 = vshra.s32 %v2759, 16
    %v2762 = vcvt.s32.f32 %v2760
    %v2763 = vcvt.s32.f32 %v2761
    %2764 = vmin.xlane.f32.xlu0 %v2763
    %v2765 = vpop.xlane.xlu0 %2764
    %vm2766 = vcmp.eq.f32.partialorder %v2763, %v2765
    %v2767 = vsel %vm2766, %v2762, inf
    %2768 = vmin.xlane.f32.xlu0 %v2767
    %v2769 = vpop.xlane.xlu0 %2768
    %v2770 = vcvt.f32.s32 %v2769
    %v2771 = vcvt.f32.s32 %v2765
    %v2772 = vshll.u32 %v2771, 16
    %v2773 = vadd.s32 %v2772, %v2770
    %vm2774 = vcmp.eq.s32.totalorder %v1626, %v2773
    %v2775 = vsel %vm2774, 1, 0
    %v2776 = vcvt.s32.f32 %v2775
    %v2777 = vmax.f32 %v2247, %v2776
    %v2778 = vlaneseq
    %v2779 = vshrl.u32 %v2778, 7
    %v2780 = vsub.s32 0, %v2779
    %v2781 = vrot.slane %v2776, %v2780
    %2783 = vbcast.lane.b32.xlu0 %v2781, 256
    %v2784 = vpop.permute.xlu0 %2783
    %v2785 = vlaneseq
    %v2786 = vshrl.u32 %v2785, 7
    %v2787 = vsub.s32 1, %v2786
    %v2788 = vrot.slane %v2776, %v2787
    %2790 = vbcast.lane.b32.xlu0 %v2788, 256
    %v2791 = vpop.permute.xlu0 %2790
    %v2792 = vmul.f32 %v2784, %v301
    %v2793 = vmul.f32 %v2791, %v305
    %v2794 = vrot.slane %v2792, 4
    %v2795 = vadd.f32 %v2792, %v2794
    %v2796 = vrot.slane %v2795, 2
    %v2797 = vadd.f32 %v2795, %v2796
    %v2798 = vrot.slane %v2797, 1
    %v2799 = vadd.f32 %v2797, %v2798
    %v2800 = vrot.slane %v2793, 4
    %v2801 = vadd.f32 %v2793, %v2800
    %v2802 = vrot.slane %v2801, 2
    %v2803 = vadd.f32 %v2801, %v2802
    %v2804 = vrot.slane %v2803, 1
    %v2805 = vadd.f32 %v2803, %v2804
    %s2806 = scalar_lea.vmem [#allocation17], 2
    %2807 = vst.msk [vmem:[%s2806] sm:$0x3] %vm1870, %v2750
    %s2808 = scalar_lea.vmem %s17, 2
    %2809 = vst.msk [vmem:[%s2808] sm:$0x3] %vm2295, %v2773
    %2810 = vmatprep.subr.mxu0 0.0
    %2811 = vmatpush1.msra.mxu0 0.0
    %2812 = vmatprep.subr.mxu0 0.0
    %2813 = vmatpush1.msra.mxu0 0.0
    %2814 = vmatprep.subr.mxu0 0.0
    %2815 = vmatpush1.msra.mxu0 0.0
    %2816 = vmatprep.subr.mxu0 0.0
    %2817 = vmatpush1.msra.mxu0 0.0
    %2818 = vmatprep.subr.mxu0 0.0
    %2819 = vmatpush1.msra.mxu0 0.0
    %2820 = vmatprep.subr.mxu0 0.0
    %2821 = vmatpush1.msra.mxu0 0.0
    %2822 = vmatprep.subr.mxu0 0.0
    %2823 = vmatpush1.msra.mxu0 0.0
    %2824 = vmatprep.subr.mxu0 0.0
    %2825 = vmatpush1.msra.mxu0 0.0
    %2826 = vmatprep.subr.mxu0 0.0
    %2827 = vmatpush1.msra.mxu0 0.0
    %2828 = vmatprep.subr.mxu0 0.0
    %2829 = vmatpush1.msra.mxu0 0.0
    %2830 = vmatprep.subr.mxu0 0.0
    %2831 = vmatpush1.msra.mxu0 0.0
    %2832 = vmatprep.subr.mxu0 0.0
    %2833 = vmatpush1.msra.mxu0 0.0
    %2834 = vmatprep.subr.mxu0 0.0
    %2835 = vmatpush1.msra.mxu0 %v204
    %2836 = vmatprep.subr.mxu0 0.0
    %2837 = vmatpush1.msra.mxu0 %v203
    %2838 = vmatprep.subr.mxu0 0.0
    %2839 = vmatpush1.msra.mxu0 %v202
    %2840 = vmatprep.subr.mxu0 0.0
    %2841 = vmatpush1.msra.mxu0 %v201
    %2842 = vmatprep.subr.mxu0 0.0
    %2843 = vmatpush2.msra.mxu0 0.0
    %2844 = vmatprep.subr.mxu0 0.0
    %2845 = vmatpush2.msra.mxu0 0.0
    %2846 = vmatprep.subr.mxu0 0.0
    %2847 = vmatpush2.msra.mxu0 0.0
    %2848 = vmatprep.subr.mxu0 0.0
    %2849 = vmatpush2.msra.mxu0 0.0
    %2850 = vmatprep.subr.mxu0 0.0
    %2851 = vmatpush2.msra.mxu0 0.0
    %2852 = vmatprep.subr.mxu0 0.0
    %2853 = vmatpush2.msra.mxu0 0.0
    %2854 = vmatprep.subr.mxu0 0.0
    %2855 = vmatpush2.msra.mxu0 0.0
    %2856 = vmatprep.subr.mxu0 0.0
    %2857 = vmatpush2.msra.mxu0 0.0
    %2858 = vmatprep.subr.mxu0 0.0
    %2859 = vmatpush2.msra.mxu0 0.0
    %2860 = vmatprep.subr.mxu0 0.0
    %2861 = vmatpush2.msra.mxu0 0.0
    %2862 = vmatprep.subr.mxu0 0.0
    %2863 = vmatpush2.msra.mxu0 0.0
    %2864 = vmatprep.subr.mxu0 0.0
    %2865 = vmatpush2.msra.mxu0 0.0
    %2866 = vmatprep.subr.mxu0 0.0
    %2867 = vmatpush2.msra.mxu0 0.0
    %2868 = vmatprep.subr.mxu0 0.0
    %2869 = vmatpush2.msra.mxu0 0.0
    %2870 = vmatprep.subr.mxu0 0.0
    %2871 = vmatpush2.msra.mxu0 0.0
    %2872 = vmatprep.subr.mxu0 0.0
    %2873 = vmatpush2.msra.mxu0 0.0
    %2874 = vmatprep.mubr.f32.mxu0 0.0
    %2875 = vmatmul.mubr.f32.gmra.mxu0 %v2431
    %v2876 = vpop.f32.mrf.mxu0
    %v2877 = vadd.f32 0.0, %v2876
    %v2878 = vpop.f32.mrf.mxu0
    %2879 = vdwg.mxu0
    %v2881 = vrot.slane %v2877, 1
    %v2884 = vadd.f32 %v2799, %v2877
    %v2885 = vadd.f32 %v2805, %v2881
    %v2886 = vxor.u32 %v2884, 2147483648
    %v2887 = vxor.u32 %v2885, 2147483648
    %v2888 = vmul.f32 %v2886, 1.442695
    %v2889 = vpow.pop %v2888
    %v2890 = vmul.f32 %v2887, 1.442695
    %v2891 = vpow.pop %v2890
    %v2892 = vadd.f32 %v2889, 1.0
    %v2893 = vadd.f32 %v2891, 1.0
    %v2894 = vrcp.pop %v2892
    %v2895 = vmul.f32 1.0, %v2894
    %v2896 = vrcp.pop %v2893
    %v2897 = vmul.f32 1.0, %v2896
    %v2898 = vtanh.pop %v2884
    %v2899 = vtanh.pop %v2885
    %v2900 = vmul.f32 %v2895, %v2411
    %v2901 = vmul.f32 %v2897, %v2412
    %2904 = vrot.lane.b32.xlu0 %v2898, 64
    %v2905 = vpop.permute.xlu0 %2904
    %2906 = vrot.lane.b32.xlu0 %v2899, 64
    %v2907 = vpop.permute.xlu0 %2906
    %v2910 = vmul.f32 %v2895, %v2905
    %v2911 = vmul.f32 %v2897, %v2907
    %2914 = vrot.lane.b32.xlu0 %v2910, 32
    %v2915 = vpop.permute.xlu0 %2914
    %2916 = vrot.lane.b32.xlu0 %v2911, 32
    %v2917 = vpop.permute.xlu0 %2916
    %v2920 = vadd.f32 %v2900, %v2915
    %v2921 = vadd.f32 %v2901, %v2917
    %v2922 = vtanh.pop %v2920
    %v2923 = vtanh.pop %v2921
    %2926 = vrot.lane.b32.xlu0 %v2922, 64
    %v2927 = vpop.permute.xlu0 %2926
    %2928 = vrot.lane.b32.xlu0 %v2923, 64
    %v2929 = vpop.permute.xlu0 %2928
    %v2932 = vmul.f32 %v2895, %v2927
    %v2933 = vmul.f32 %v2897, %v2929
    %v2936 = vrot.slane %v2933, 7
    %v2937 = vsel %vm525, %v2936, %v2932
    %2938 = vrot.lane.b32.xlu0 %v2937, 32
    %v2939 = vpop.permute.xlu0 %2938
    %v2940 = vsel %vm385, %v2939, 0
    %2942 = vmatprep.subr.mxu0 0.0
    %2943 = vmatpush1.msra.mxu0 0.0
    %2944 = vmatprep.subr.mxu0 0.0
    %2945 = vmatpush1.msra.mxu0 0.0
    %2946 = vmatprep.subr.mxu0 0.0
    %2947 = vmatpush1.msra.mxu0 0.0
    %2948 = vmatprep.subr.mxu0 0.0
    %2949 = vmatpush1.msra.mxu0 0.0
    %2950 = vmatprep.subr.mxu0 0.0
    %2951 = vmatpush1.msra.mxu0 0.0
    %2952 = vmatprep.subr.mxu0 0.0
    %2953 = vmatpush1.msra.mxu0 0.0
    %2954 = vmatprep.subr.mxu0 0.0
    %2955 = vmatpush1.msra.mxu0 0.0
    %2956 = vmatprep.subr.mxu0 0.0
    %2957 = vmatpush1.msra.mxu0 0.0
    %2958 = vmatprep.subr.mxu0 0.0
    %2959 = vmatpush1.msra.mxu0 0.0
    %2960 = vmatprep.subr.mxu0 0.0
    %2961 = vmatpush1.msra.mxu0 0.0
    %2962 = vmatprep.subr.mxu0 0.0
    %2963 = vmatpush1.msra.mxu0 0.0
    %2964 = vmatprep.subr.mxu0 0.0
    %2965 = vmatpush1.msra.mxu0 0.0
    %2966 = vmatprep.subr.mxu0 0.0
    %2967 = vmatpush1.msra.mxu0 %v208
    %2968 = vmatprep.subr.mxu0 0.0
    %2969 = vmatpush1.msra.mxu0 %v207
    %2970 = vmatprep.subr.mxu0 0.0
    %2971 = vmatpush1.msra.mxu0 %v206
    %2972 = vmatprep.subr.mxu0 0.0
    %2973 = vmatpush1.msra.mxu0 %v205
    %2974 = vmatprep.subr.mxu0 0.0
    %2975 = vmatpush2.msra.mxu0 0.0
    %2976 = vmatprep.subr.mxu0 0.0
    %2977 = vmatpush2.msra.mxu0 0.0
    %2978 = vmatprep.subr.mxu0 0.0
    %2979 = vmatpush2.msra.mxu0 0.0
    %2980 = vmatprep.subr.mxu0 0.0
    %2981 = vmatpush2.msra.mxu0 0.0
    %2982 = vmatprep.subr.mxu0 0.0
    %2983 = vmatpush2.msra.mxu0 0.0
    %2984 = vmatprep.subr.mxu0 0.0
    %2985 = vmatpush2.msra.mxu0 0.0
    %2986 = vmatprep.subr.mxu0 0.0
    %2987 = vmatpush2.msra.mxu0 0.0
    %2988 = vmatprep.subr.mxu0 0.0
    %2989 = vmatpush2.msra.mxu0 0.0
    %2990 = vmatprep.subr.mxu0 0.0
    %2991 = vmatpush2.msra.mxu0 0.0
    %2992 = vmatprep.subr.mxu0 0.0
    %2993 = vmatpush2.msra.mxu0 0.0
    %2994 = vmatprep.subr.mxu0 0.0
    %2995 = vmatpush2.msra.mxu0 0.0
    %2996 = vmatprep.subr.mxu0 0.0
    %2997 = vmatpush2.msra.mxu0 0.0
    %2998 = vmatprep.subr.mxu0 0.0
    %2999 = vmatpush2.msra.mxu0 0.0
    %3000 = vmatprep.subr.mxu0 0.0
    %3001 = vmatpush2.msra.mxu0 0.0
    %3002 = vmatprep.subr.mxu0 0.0
    %3003 = vmatpush2.msra.mxu0 0.0
    %3004 = vmatprep.subr.mxu0 0.0
    %3005 = vmatpush2.msra.mxu0 0.0
    %3006 = vmatprep.mubr.f32.mxu0 0.0
    %3007 = vmatmul.mubr.f32.gmra.mxu0 %v2940
    %v3008 = vpop.f32.mrf.mxu0
    %v3009 = vadd.f32 %v218, %v3008
    %v3010 = vpop.f32.mrf.mxu0
    %3011 = vdwg.mxu0
    %v3014 = vunpack.c.l.s4 1966171168
    %v3015 = vunpack.c.0.s8 %v3014
    %v3016 = vlaneseq
    %v3017 = vshrl.u32 %v3016, 7
    %v3018 = vsub.s32 %v3015, %v3017
    %v3019 = vrot.slane %v3009, %v3018
    %v3020 = vcombine.high %v3019, %v3019
    %v3022 = vunpack.c.l.s4 1966171168
    %v3023 = vunpack.c.0.s8 %v3022
    %v3024 = vlaneseq
    %v3025 = vshrl.u32 %v3024, 7
    %v3026 = vsub.s32 %v3023, %v3025
    %v3027 = vrot.slane %v3019, %v3026
    %v3029 = vunpack.c.l.s4 1966171168
    %v3030 = vunpack.c.0.s8 %v3029
    %v3031 = vlaneseq
    %v3032 = vshrl.u32 %v3031, 7
    %v3033 = vsub.s32 %v3030, %v3032
    %v3034 = vrot.slane %v3020, %v3033
    %v3035 = vlaneseq
    %v3036 = vshrl.u32 %v3035, 7
    %v3037 = vsub.s32 0, %v3036
    %v3038 = vrot.slane %v3027, %v3037
    %v3039 = vlaneseq
    %v3040 = vshrl.u32 %v3039, 7
    %v3041 = vsub.s32 0, %v3040
    %v3042 = vrot.slane %v3034, %v3041
    %v3045 = vadd.f32 %v3038, %v1619
    %v3046 = vadd.f32 %v3042, %v1622
    %v3047 = vtanh.pop %v3045
    %v3048 = vtanh.pop %v3046
    %v3049 = vmul.f32 %v3047, %v232
    %v3050 = vmul.f32 %v3048, %v232
    %v3051 = vsel %vm385, %v3049, 0.0
    %3052 = vadd.xlane.f32.xlu0 %v3051
    %v3053 = vpop.xlane.xlu0 %3052
    %v3054 = vsel %vm385, %v3050, 0.0
    %3055 = vadd.xlane.f32.xlu0 %v3054
    %v3056 = vpop.xlane.xlu0 %3055
    %vm3057 = vcmp.gt.f32.partialorder %v2777, 0.5
    %v3060 = vlaneseq
    %v3061 = vshrl.u32 %v3060, 7
    %v3062 = vsub.s32 %v1626, %v3061
    %v3063 = vrot.slane %v3053, %v3062
    %v3064 = vlaneseq
    %v3065 = vshrl.u32 %v3064, 7
    %v3066 = vsub.s32 %v1626, %v3065
    %v3067 = vrot.slane %v3056, %v3066
    %v3068 = vsel %vm525, %v3067, %v3063
    %v3070 = vsel %vm3057, -inf, %v3068
    %v3071 = vsel %vm1870, %v3070, -inf
    %3072 = vmax.xlane.f32.xlu0 %v3071
    %v3073 = vpop.xlane.xlu0 %3072
    %v3074 = vsub.f32 %v3070, %v3073
    %v3075 = vmul.f32 %v3074, 1.442695
    %v3076 = vpow.pop %v3075
    %v3077 = vsel %vm1870, %v3076, 0.0
    %3078 = vadd.xlane.f32.xlu0 %v3077
    %v3079 = vpop.xlane.xlu0 %3078
    %v3080 = vrcp.pop %v3079
    %v3081 = vmul.f32 %v3076, %v3080
    %v3082 = vlaneseq
    %v3083 = vshrl.u32 %v3082, 7
    %v3084 = vsub.s32 0, %v3083
    %v3085 = vrot.slane %v3081, %v3084
    %3087 = vbcast.lane.b32.xlu0 %v3085, 256
    %v3088 = vpop.permute.xlu0 %3087
    %v3089 = vlaneseq
    %v3090 = vshrl.u32 %v3089, 7
    %v3091 = vsub.s32 1, %v3090
    %v3092 = vrot.slane %v3081, %v3091
    %3094 = vbcast.lane.b32.xlu0 %v3092, 256
    %v3095 = vpop.permute.xlu0 %3094
    %v3096 = vmul.f32 %v1619, %v3088
    %v3097 = vmul.f32 %v1622, %v3095
    %v3098 = vsel %vm385, %v3096, 0.0
    %v3099 = vrot.slane %v3098, 4
    %v3100 = vadd.f32 %v3098, %v3099
    %v3101 = vrot.slane %v3100, 2
    %v3102 = vadd.f32 %v3100, %v3101
    %v3103 = vrot.slane %v3102, 1
    %v3104 = vadd.f32 %v3102, %v3103
    %v3105 = vsel %vm385, %v3097, 0.0
    %v3106 = vrot.slane %v3105, 4
    %v3107 = vadd.f32 %v3105, %v3106
    %v3108 = vrot.slane %v3107, 2
    %v3109 = vadd.f32 %v3107, %v3108
    %v3110 = vrot.slane %v3109, 1
    %v3111 = vadd.f32 %v3109, %v3110
    %v3114 = vsel %vm525, %v3111, %v3104
    %v3115 = vsel %vm385, %v3114, 0
    %3117 = vmatprep.subr.mxu0 0.0
    %3118 = vmatpush1.msra.mxu0 0.0
    %3119 = vmatprep.subr.mxu0 0.0
    %3120 = vmatpush1.msra.mxu0 0.0
    %3121 = vmatprep.subr.mxu0 0.0
    %3122 = vmatpush1.msra.mxu0 0.0
    %3123 = vmatprep.subr.mxu0 0.0
    %3124 = vmatpush1.msra.mxu0 0.0
    %3125 = vmatprep.subr.mxu0 0.0
    %3126 = vmatpush1.msra.mxu0 0.0
    %3127 = vmatprep.subr.mxu0 0.0
    %3128 = vmatpush1.msra.mxu0 0.0
    %3129 = vmatprep.subr.mxu0 0.0
    %3130 = vmatpush1.msra.mxu0 0.0
    %3131 = vmatprep.subr.mxu0 0.0
    %3132 = vmatpush1.msra.mxu0 0.0
    %3133 = vmatprep.subr.mxu0 0.0
    %3134 = vmatpush1.msra.mxu0 0.0
    %3135 = vmatprep.subr.mxu0 0.0
    %3136 = vmatpush1.msra.mxu0 0.0
    %3137 = vmatprep.subr.mxu0 0.0
    %3138 = vmatpush1.msra.mxu0 0.0
    %3139 = vmatprep.subr.mxu0 0.0
    %3140 = vmatpush1.msra.mxu0 0.0
    %3141 = vmatprep.subr.mxu0 0.0
    %3142 = vmatpush1.msra.mxu0 %v212
    %3143 = vmatprep.subr.mxu0 0.0
    %3144 = vmatpush1.msra.mxu0 %v211
    %3145 = vmatprep.subr.mxu0 0.0
    %3146 = vmatpush1.msra.mxu0 %v210
    %3147 = vmatprep.subr.mxu0 0.0
    %3148 = vmatpush1.msra.mxu0 %v209
    %3149 = vmatprep.subr.mxu0 0.0
    %3150 = vmatpush2.msra.mxu0 0.0
    %3151 = vmatprep.subr.mxu0 0.0
    %3152 = vmatpush2.msra.mxu0 0.0
    %3153 = vmatprep.subr.mxu0 0.0
    %3154 = vmatpush2.msra.mxu0 0.0
    %3155 = vmatprep.subr.mxu0 0.0
    %3156 = vmatpush2.msra.mxu0 0.0
    %3157 = vmatprep.subr.mxu0 0.0
    %3158 = vmatpush2.msra.mxu0 0.0
    %3159 = vmatprep.subr.mxu0 0.0
    %3160 = vmatpush2.msra.mxu0 0.0
    %3161 = vmatprep.subr.mxu0 0.0
    %3162 = vmatpush2.msra.mxu0 0.0
    %3163 = vmatprep.subr.mxu0 0.0
    %3164 = vmatpush2.msra.mxu0 0.0
    %3165 = vmatprep.subr.mxu0 0.0
    %3166 = vmatpush2.msra.mxu0 0.0
    %3167 = vmatprep.subr.mxu0 0.0
    %3168 = vmatpush2.msra.mxu0 0.0
    %3169 = vmatprep.subr.mxu0 0.0
    %3170 = vmatpush2.msra.mxu0 0.0
    %3171 = vmatprep.subr.mxu0 0.0
    %3172 = vmatpush2.msra.mxu0 0.0
    %3173 = vmatprep.subr.mxu0 0.0
    %3174 = vmatpush2.msra.mxu0 0.0
    %3175 = vmatprep.subr.mxu0 0.0
    %3176 = vmatpush2.msra.mxu0 0.0
    %3177 = vmatprep.subr.mxu0 0.0
    %3178 = vmatpush2.msra.mxu0 0.0
    %3179 = vmatprep.subr.mxu0 0.0
    %3180 = vmatpush2.msra.mxu0 0.0
    %3181 = vmatprep.mubr.f32.mxu0 0.0
    %3182 = vmatmul.mubr.f32.gmra.mxu0 %v3115
    %v3183 = vpop.f32.mrf.mxu0
    %v3184 = vadd.f32 %v225, %v3183
    %v3185 = vpop.f32.mrf.mxu0
    %3186 = vdwg.mxu0
    %v3189 = vunpack.c.l.s4 1966171168
    %v3190 = vunpack.c.0.s8 %v3189
    %v3191 = vlaneseq
    %v3192 = vshrl.u32 %v3191, 7
    %v3193 = vsub.s32 %v3190, %v3192
    %v3194 = vrot.slane %v3184, %v3193
    %v3195 = vcombine.high %v3194, %v3194
    %v3197 = vunpack.c.l.s4 1966171168
    %v3198 = vunpack.c.0.s8 %v3197
    %v3199 = vlaneseq
    %v3200 = vshrl.u32 %v3199, 7
    %v3201 = vsub.s32 %v3198, %v3200
    %v3202 = vrot.slane %v3194, %v3201
    %v3204 = vunpack.c.l.s4 1966171168
    %v3205 = vunpack.c.0.s8 %v3204
    %v3206 = vlaneseq
    %v3207 = vshrl.u32 %v3206, 7
    %v3208 = vsub.s32 %v3205, %v3207
    %v3209 = vrot.slane %v3195, %v3208
    %v3210 = vlaneseq
    %v3211 = vshrl.u32 %v3210, 7
    %v3212 = vsub.s32 0, %v3211
    %v3213 = vrot.slane %v3202, %v3212
    %v3214 = vlaneseq
    %v3215 = vshrl.u32 %v3214, 7
    %v3216 = vsub.s32 0, %v3215
    %v3217 = vrot.slane %v3209, %v3216
    %v3220 = vadd.f32 %v3213, %v2064
    %v3221 = vadd.f32 %v3217, %v2066
    %v3222 = vtanh.pop %v3220
    %v3223 = vtanh.pop %v3221
    %v3224 = vmul.f32 %v3222, %v239
    %v3225 = vmul.f32 %v3223, %v239
    %v3226 = vsel %vm385, %v3224, 0.0
    %3227 = vadd.xlane.f32.xlu0 %v3226
    %v3228 = vpop.xlane.xlu0 %3227
    %v3229 = vsel %vm385, %v3225, 0.0
    %3230 = vadd.xlane.f32.xlu0 %v3229
    %v3231 = vpop.xlane.xlu0 %3230
    %v3232 = vtanh.pop %v3228
    %v3233 = vtanh.pop %v3231
    %v3234 = vmul.f32 %v3232, 10.0
    %v3235 = vmul.f32 %v3233, 10.0
    %v3238 = vlaneseq
    %v3239 = vshrl.u32 %v3238, 7
    %v3240 = vsub.s32 %v1626, %v3239
    %v3241 = vrot.slane %v3234, %v3240
    %v3242 = vlaneseq
    %v3243 = vshrl.u32 %v3242, 7
    %v3244 = vsub.s32 %v1626, %v3243
    %v3245 = vrot.slane %v3235, %v3244
    %v3246 = vsel %vm525, %v3245, %v3241
    %v3248 = vsel %vm3057, -inf, %v3246
    %v3249 = vsel %vm1870, %v3248, -inf
    %3250 = vmax.xlane.f32.xlu0 %v3249
    %v3251 = vpop.xlane.xlu0 %3250
    %v3252 = vsub.f32 %v3248, %v3251
    %v3253 = vmul.f32 %v3252, 1.442695
    %v3254 = vpow.pop %v3253
    %v3255 = vsel %vm1870, %v3254, 0.0
    %3256 = vadd.xlane.f32.xlu0 %v3255
    %v3257 = vpop.xlane.xlu0 %3256
    %v3258 = vrcp.pop %v3257
    %v3259 = vmul.f32 %v3254, %v3258
    %s3260 = scalar_lea.vmem [#allocation3], 4
    %v3261 = vld [vmem:[%s3260] sm:$0x3]
    %v3262 = vadd.f32 %v3248, %v3261
    %v3263 = vsel %vm1870, %v3262, -inf
    %3264 = vmax.xlane.f32.xlu0 %v3263
    %v3265 = vpop.xlane.xlu0 %3264
    %vm3266 = vcmp.ge.f32.partialorder %v3262, %v3265
    %v3267 = vsel %vm3266, %v1626, 8
    %v3268 = vsel %vm1870, %v3267, 2147483647
    %v3269 = vand.u32 %v3268, 65535
    %v3270 = vshra.s32 %v3268, 16
    %v3271 = vcvt.s32.f32 %v3269
    %v3272 = vcvt.s32.f32 %v3270
    %3273 = vmin.xlane.f32.xlu0 %v3272
    %v3274 = vpop.xlane.xlu0 %3273
    %vm3275 = vcmp.eq.f32.partialorder %v3272, %v3274
    %v3276 = vsel %vm3275, %v3271, inf
    %3277 = vmin.xlane.f32.xlu0 %v3276
    %v3278 = vpop.xlane.xlu0 %3277
    %v3279 = vcvt.f32.s32 %v3278
    %v3280 = vcvt.f32.s32 %v3274
    %v3281 = vshll.u32 %v3280, 16
    %v3282 = vadd.s32 %v3281, %v3279
    %vm3283 = vcmp.eq.s32.totalorder %v1626, %v3282
    %v3284 = vsel %vm3283, 1, 0
    %v3285 = vcvt.s32.f32 %v3284
    %v3286 = vmax.f32 %v2777, %v3285
    %v3287 = vlaneseq
    %v3288 = vshrl.u32 %v3287, 7
    %v3289 = vsub.s32 0, %v3288
    %v3290 = vrot.slane %v3285, %v3289
    %3292 = vbcast.lane.b32.xlu0 %v3290, 256
    %v3293 = vpop.permute.xlu0 %3292
    %v3294 = vlaneseq
    %v3295 = vshrl.u32 %v3294, 7
    %v3296 = vsub.s32 1, %v3295
    %v3297 = vrot.slane %v3285, %v3296
    %3299 = vbcast.lane.b32.xlu0 %v3297, 256
    %v3300 = vpop.permute.xlu0 %3299
    %v3301 = vmul.f32 %v3293, %v301
    %v3302 = vmul.f32 %v3300, %v305
    %v3303 = vrot.slane %v3301, 4
    %v3304 = vadd.f32 %v3301, %v3303
    %v3305 = vrot.slane %v3304, 2
    %v3306 = vadd.f32 %v3304, %v3305
    %v3307 = vrot.slane %v3306, 1
    %v3308 = vadd.f32 %v3306, %v3307
    %v3309 = vrot.slane %v3302, 4
    %v3310 = vadd.f32 %v3302, %v3309
    %v3311 = vrot.slane %v3310, 2
    %v3312 = vadd.f32 %v3310, %v3311
    %v3313 = vrot.slane %v3312, 1
    %v3314 = vadd.f32 %v3312, %v3313
    %s3315 = scalar_lea.vmem [#allocation17], 4
    %3316 = vst.msk [vmem:[%s3315] sm:$0x3] %vm1870, %v3259
    %s3317 = scalar_lea.vmem %s17, 4
    %3318 = vst.msk [vmem:[%s3317] sm:$0x3] %vm2295, %v3282
    %3319 = vmatprep.subr.mxu0 0.0
    %3320 = vmatpush1.msra.mxu0 0.0
    %3321 = vmatprep.subr.mxu0 0.0
    %3322 = vmatpush1.msra.mxu0 0.0
    %3323 = vmatprep.subr.mxu0 0.0
    %3324 = vmatpush1.msra.mxu0 0.0
    %3325 = vmatprep.subr.mxu0 0.0
    %3326 = vmatpush1.msra.mxu0 0.0
    %3327 = vmatprep.subr.mxu0 0.0
    %3328 = vmatpush1.msra.mxu0 0.0
    %3329 = vmatprep.subr.mxu0 0.0
    %3330 = vmatpush1.msra.mxu0 0.0
    %3331 = vmatprep.subr.mxu0 0.0
    %3332 = vmatpush1.msra.mxu0 0.0
    %3333 = vmatprep.subr.mxu0 0.0
    %3334 = vmatpush1.msra.mxu0 0.0
    %3335 = vmatprep.subr.mxu0 0.0
    %3336 = vmatpush1.msra.mxu0 0.0
    %3337 = vmatprep.subr.mxu0 0.0
    %3338 = vmatpush1.msra.mxu0 0.0
    %3339 = vmatprep.subr.mxu0 0.0
    %3340 = vmatpush1.msra.mxu0 0.0
    %3341 = vmatprep.subr.mxu0 0.0
    %3342 = vmatpush1.msra.mxu0 0.0
    %3343 = vmatprep.subr.mxu0 0.0
    %3344 = vmatpush1.msra.mxu0 %v204
    %3345 = vmatprep.subr.mxu0 0.0
    %3346 = vmatpush1.msra.mxu0 %v203
    %3347 = vmatprep.subr.mxu0 0.0
    %3348 = vmatpush1.msra.mxu0 %v202
    %3349 = vmatprep.subr.mxu0 0.0
    %3350 = vmatpush1.msra.mxu0 %v201
    %3351 = vmatprep.subr.mxu0 0.0
    %3352 = vmatpush2.msra.mxu0 0.0
    %3353 = vmatprep.subr.mxu0 0.0
    %3354 = vmatpush2.msra.mxu0 0.0
    %3355 = vmatprep.subr.mxu0 0.0
    %3356 = vmatpush2.msra.mxu0 0.0
    %3357 = vmatprep.subr.mxu0 0.0
    %3358 = vmatpush2.msra.mxu0 0.0
    %3359 = vmatprep.subr.mxu0 0.0
    %3360 = vmatpush2.msra.mxu0 0.0
    %3361 = vmatprep.subr.mxu0 0.0
    %3362 = vmatpush2.msra.mxu0 0.0
    %3363 = vmatprep.subr.mxu0 0.0
    %3364 = vmatpush2.msra.mxu0 0.0
    %3365 = vmatprep.subr.mxu0 0.0
    %3366 = vmatpush2.msra.mxu0 0.0
    %3367 = vmatprep.subr.mxu0 0.0
    %3368 = vmatpush2.msra.mxu0 0.0
    %3369 = vmatprep.subr.mxu0 0.0
    %3370 = vmatpush2.msra.mxu0 0.0
    %3371 = vmatprep.subr.mxu0 0.0
    %3372 = vmatpush2.msra.mxu0 0.0
    %3373 = vmatprep.subr.mxu0 0.0
    %3374 = vmatpush2.msra.mxu0 0.0
    %3375 = vmatprep.subr.mxu0 0.0
    %3376 = vmatpush2.msra.mxu0 0.0
    %3377 = vmatprep.subr.mxu0 0.0
    %3378 = vmatpush2.msra.mxu0 0.0
    %3379 = vmatprep.subr.mxu0 0.0
    %3380 = vmatpush2.msra.mxu0 0.0
    %3381 = vmatprep.subr.mxu0 0.0
    %3382 = vmatpush2.msra.mxu0 0.0
    %3383 = vmatprep.mubr.f32.mxu0 0.0
    %3384 = vmatmul.mubr.f32.gmra.mxu0 %v2940
    %v3385 = vpop.f32.mrf.mxu0
    %v3386 = vadd.f32 0.0, %v3385
    %v3387 = vpop.f32.mrf.mxu0
    %3388 = vdwg.mxu0
    %v3390 = vrot.slane %v3386, 1
    %v3393 = vadd.f32 %v3308, %v3386
    %v3394 = vadd.f32 %v3314, %v3390
    %v3395 = vxor.u32 %v3393, 2147483648
    %v3396 = vxor.u32 %v3394, 2147483648
    %v3397 = vmul.f32 %v3395, 1.442695
    %v3398 = vpow.pop %v3397
    %v3399 = vmul.f32 %v3396, 1.442695
    %v3400 = vpow.pop %v3399
    %v3401 = vadd.f32 %v3398, 1.0
    %v3402 = vadd.f32 %v3400, 1.0
    %v3403 = vrcp.pop %v3401
    %v3404 = vmul.f32 1.0, %v3403
    %v3405 = vrcp.pop %v3402
    %v3406 = vmul.f32 1.0, %v3405
    %v3407 = vtanh.pop %v3393
    %v3408 = vtanh.pop %v3394
    %v3409 = vmul.f32 %v3404, %v2920
    %v3410 = vmul.f32 %v3406, %v2921
    %3413 = vrot.lane.b32.xlu0 %v3407, 64
    %v3414 = vpop.permute.xlu0 %3413
    %3415 = vrot.lane.b32.xlu0 %v3408, 64
    %v3416 = vpop.permute.xlu0 %3415
    %v3419 = vmul.f32 %v3404, %v3414
    %v3420 = vmul.f32 %v3406, %v3416
    %3423 = vrot.lane.b32.xlu0 %v3419, 32
    %v3424 = vpop.permute.xlu0 %3423
    %3425 = vrot.lane.b32.xlu0 %v3420, 32
    %v3426 = vpop.permute.xlu0 %3425
    %v3429 = vadd.f32 %v3409, %v3424
    %v3430 = vadd.f32 %v3410, %v3426
    %v3431 = vtanh.pop %v3429
    %v3432 = vtanh.pop %v3430
    %3435 = vrot.lane.b32.xlu0 %v3431, 64
    %v3436 = vpop.permute.xlu0 %3435
    %3437 = vrot.lane.b32.xlu0 %v3432, 64
    %v3438 = vpop.permute.xlu0 %3437
    %v3441 = vmul.f32 %v3404, %v3436
    %v3442 = vmul.f32 %v3406, %v3438
    %v3445 = vrot.slane %v3442, 7
    %v3446 = vsel %vm525, %v3445, %v3441
    %3447 = vrot.lane.b32.xlu0 %v3446, 32
    %v3448 = vpop.permute.xlu0 %3447
    %v3449 = vsel %vm385, %v3448, 0
    %3451 = vmatprep.subr.mxu0 0.0
    %3452 = vmatpush1.msra.mxu0 0.0
    %3453 = vmatprep.subr.mxu0 0.0
    %3454 = vmatpush1.msra.mxu0 0.0
    %3455 = vmatprep.subr.mxu0 0.0
    %3456 = vmatpush1.msra.mxu0 0.0
    %3457 = vmatprep.subr.mxu0 0.0
    %3458 = vmatpush1.msra.mxu0 0.0
    %3459 = vmatprep.subr.mxu0 0.0
    %3460 = vmatpush1.msra.mxu0 0.0
    %3461 = vmatprep.subr.mxu0 0.0
    %3462 = vmatpush1.msra.mxu0 0.0
    %3463 = vmatprep.subr.mxu0 0.0
    %3464 = vmatpush1.msra.mxu0 0.0
    %3465 = vmatprep.subr.mxu0 0.0
    %3466 = vmatpush1.msra.mxu0 0.0
    %3467 = vmatprep.subr.mxu0 0.0
    %3468 = vmatpush1.msra.mxu0 0.0
    %3469 = vmatprep.subr.mxu0 0.0
    %3470 = vmatpush1.msra.mxu0 0.0
    %3471 = vmatprep.subr.mxu0 0.0
    %3472 = vmatpush1.msra.mxu0 0.0
    %3473 = vmatprep.subr.mxu0 0.0
    %3474 = vmatpush1.msra.mxu0 0.0
    %3475 = vmatprep.subr.mxu0 0.0
    %3476 = vmatpush1.msra.mxu0 %v208
    %3477 = vmatprep.subr.mxu0 0.0
    %3478 = vmatpush1.msra.mxu0 %v207
    %3479 = vmatprep.subr.mxu0 0.0
    %3480 = vmatpush1.msra.mxu0 %v206
    %3481 = vmatprep.subr.mxu0 0.0
    %3482 = vmatpush1.msra.mxu0 %v205
    %3483 = vmatprep.subr.mxu0 0.0
    %3484 = vmatpush2.msra.mxu0 0.0
    %3485 = vmatprep.subr.mxu0 0.0
    %3486 = vmatpush2.msra.mxu0 0.0
    %3487 = vmatprep.subr.mxu0 0.0
    %3488 = vmatpush2.msra.mxu0 0.0
    %3489 = vmatprep.subr.mxu0 0.0
    %3490 = vmatpush2.msra.mxu0 0.0
    %3491 = vmatprep.subr.mxu0 0.0
    %3492 = vmatpush2.msra.mxu0 0.0
    %3493 = vmatprep.subr.mxu0 0.0
    %3494 = vmatpush2.msra.mxu0 0.0
    %3495 = vmatprep.subr.mxu0 0.0
    %3496 = vmatpush2.msra.mxu0 0.0
    %3497 = vmatprep.subr.mxu0 0.0
    %3498 = vmatpush2.msra.mxu0 0.0
    %3499 = vmatprep.subr.mxu0 0.0
    %3500 = vmatpush2.msra.mxu0 0.0
    %3501 = vmatprep.subr.mxu0 0.0
    %3502 = vmatpush2.msra.mxu0 0.0
    %3503 = vmatprep.subr.mxu0 0.0
    %3504 = vmatpush2.msra.mxu0 0.0
    %3505 = vmatprep.subr.mxu0 0.0
    %3506 = vmatpush2.msra.mxu0 0.0
    %3507 = vmatprep.subr.mxu0 0.0
    %3508 = vmatpush2.msra.mxu0 0.0
    %3509 = vmatprep.subr.mxu0 0.0
    %3510 = vmatpush2.msra.mxu0 0.0
    %3511 = vmatprep.subr.mxu0 0.0
    %3512 = vmatpush2.msra.mxu0 0.0
    %3513 = vmatprep.subr.mxu0 0.0
    %3514 = vmatpush2.msra.mxu0 0.0
    %3515 = vmatprep.mubr.f32.mxu0 0.0
    %3516 = vmatmul.mubr.f32.gmra.mxu0 %v3449
    %v3517 = vpop.f32.mrf.mxu0
    %v3518 = vadd.f32 %v218, %v3517
    %v3519 = vpop.f32.mrf.mxu0
    %3520 = vdwg.mxu0
    %v3523 = vunpack.c.l.s4 1966171168
    %v3524 = vunpack.c.0.s8 %v3523
    %v3525 = vlaneseq
    %v3526 = vshrl.u32 %v3525, 7
    %v3527 = vsub.s32 %v3524, %v3526
    %v3528 = vrot.slane %v3518, %v3527
    %v3529 = vcombine.high %v3528, %v3528
    %v3531 = vunpack.c.l.s4 1966171168
    %v3532 = vunpack.c.0.s8 %v3531
    %v3533 = vlaneseq
    %v3534 = vshrl.u32 %v3533, 7
    %v3535 = vsub.s32 %v3532, %v3534
    %v3536 = vrot.slane %v3528, %v3535
    %v3538 = vunpack.c.l.s4 1966171168
    %v3539 = vunpack.c.0.s8 %v3538
    %v3540 = vlaneseq
    %v3541 = vshrl.u32 %v3540, 7
    %v3542 = vsub.s32 %v3539, %v3541
    %v3543 = vrot.slane %v3529, %v3542
    %v3544 = vlaneseq
    %v3545 = vshrl.u32 %v3544, 7
    %v3546 = vsub.s32 0, %v3545
    %v3547 = vrot.slane %v3536, %v3546
    %v3548 = vlaneseq
    %v3549 = vshrl.u32 %v3548, 7
    %v3550 = vsub.s32 0, %v3549
    %v3551 = vrot.slane %v3543, %v3550
    %v3554 = vadd.f32 %v3547, %v1619
    %v3555 = vadd.f32 %v3551, %v1622
    %v3556 = vtanh.pop %v3554
    %v3557 = vtanh.pop %v3555
    %v3558 = vmul.f32 %v3556, %v232
    %v3559 = vmul.f32 %v3557, %v232
    %v3560 = vsel %vm385, %v3558, 0.0
    %3561 = vadd.xlane.f32.xlu0 %v3560
    %v3562 = vpop.xlane.xlu0 %3561
    %v3563 = vsel %vm385, %v3559, 0.0
    %3564 = vadd.xlane.f32.xlu0 %v3563
    %v3565 = vpop.xlane.xlu0 %3564
    %vm3566 = vcmp.gt.f32.partialorder %v3286, 0.5
    %v3569 = vlaneseq
    %v3570 = vshrl.u32 %v3569, 7
    %v3571 = vsub.s32 %v1626, %v3570
    %v3572 = vrot.slane %v3562, %v3571
    %v3573 = vlaneseq
    %v3574 = vshrl.u32 %v3573, 7
    %v3575 = vsub.s32 %v1626, %v3574
    %v3576 = vrot.slane %v3565, %v3575
    %v3577 = vsel %vm525, %v3576, %v3572
    %v3579 = vsel %vm3566, -inf, %v3577
    %v3580 = vsel %vm1870, %v3579, -inf
    %3581 = vmax.xlane.f32.xlu0 %v3580
    %v3582 = vpop.xlane.xlu0 %3581
    %v3583 = vsub.f32 %v3579, %v3582
    %v3584 = vmul.f32 %v3583, 1.442695
    %v3585 = vpow.pop %v3584
    %v3586 = vsel %vm1870, %v3585, 0.0
    %3587 = vadd.xlane.f32.xlu0 %v3586
    %v3588 = vpop.xlane.xlu0 %3587
    %v3589 = vrcp.pop %v3588
    %v3590 = vmul.f32 %v3585, %v3589
    %v3591 = vlaneseq
    %v3592 = vshrl.u32 %v3591, 7
    %v3593 = vsub.s32 0, %v3592
    %v3594 = vrot.slane %v3590, %v3593
    %3596 = vbcast.lane.b32.xlu0 %v3594, 256
    %v3597 = vpop.permute.xlu0 %3596
    %v3598 = vlaneseq
    %v3599 = vshrl.u32 %v3598, 7
    %v3600 = vsub.s32 1, %v3599
    %v3601 = vrot.slane %v3590, %v3600
    %3603 = vbcast.lane.b32.xlu0 %v3601, 256
    %v3604 = vpop.permute.xlu0 %3603
    %v3605 = vmul.f32 %v1619, %v3597
    %v3606 = vmul.f32 %v1622, %v3604
    %v3607 = vsel %vm385, %v3605, 0.0
    %v3608 = vrot.slane %v3607, 4
    %v3609 = vadd.f32 %v3607, %v3608
    %v3610 = vrot.slane %v3609, 2
    %v3611 = vadd.f32 %v3609, %v3610
    %v3612 = vrot.slane %v3611, 1
    %v3613 = vadd.f32 %v3611, %v3612
    %v3614 = vsel %vm385, %v3606, 0.0
    %v3615 = vrot.slane %v3614, 4
    %v3616 = vadd.f32 %v3614, %v3615
    %v3617 = vrot.slane %v3616, 2
    %v3618 = vadd.f32 %v3616, %v3617
    %v3619 = vrot.slane %v3618, 1
    %v3620 = vadd.f32 %v3618, %v3619
    %v3623 = vsel %vm525, %v3620, %v3613
    %v3624 = vsel %vm385, %v3623, 0
    %3626 = vmatprep.subr.mxu0 0.0
    %3627 = vmatpush1.msra.mxu0 0.0
    %3628 = vmatprep.subr.mxu0 0.0
    %3629 = vmatpush1.msra.mxu0 0.0
    %3630 = vmatprep.subr.mxu0 0.0
    %3631 = vmatpush1.msra.mxu0 0.0
    %3632 = vmatprep.subr.mxu0 0.0
    %3633 = vmatpush1.msra.mxu0 0.0
    %3634 = vmatprep.subr.mxu0 0.0
    %3635 = vmatpush1.msra.mxu0 0.0
    %3636 = vmatprep.subr.mxu0 0.0
    %3637 = vmatpush1.msra.mxu0 0.0
    %3638 = vmatprep.subr.mxu0 0.0
    %3639 = vmatpush1.msra.mxu0 0.0
    %3640 = vmatprep.subr.mxu0 0.0
    %3641 = vmatpush1.msra.mxu0 0.0
    %3642 = vmatprep.subr.mxu0 0.0
    %3643 = vmatpush1.msra.mxu0 0.0
    %3644 = vmatprep.subr.mxu0 0.0
    %3645 = vmatpush1.msra.mxu0 0.0
    %3646 = vmatprep.subr.mxu0 0.0
    %3647 = vmatpush1.msra.mxu0 0.0
    %3648 = vmatprep.subr.mxu0 0.0
    %3649 = vmatpush1.msra.mxu0 0.0
    %3650 = vmatprep.subr.mxu0 0.0
    %3651 = vmatpush1.msra.mxu0 %v212
    %3652 = vmatprep.subr.mxu0 0.0
    %3653 = vmatpush1.msra.mxu0 %v211
    %3654 = vmatprep.subr.mxu0 0.0
    %3655 = vmatpush1.msra.mxu0 %v210
    %3656 = vmatprep.subr.mxu0 0.0
    %3657 = vmatpush1.msra.mxu0 %v209
    %3658 = vmatprep.subr.mxu0 0.0
    %3659 = vmatpush2.msra.mxu0 0.0
    %3660 = vmatprep.subr.mxu0 0.0
    %3661 = vmatpush2.msra.mxu0 0.0
    %3662 = vmatprep.subr.mxu0 0.0
    %3663 = vmatpush2.msra.mxu0 0.0
    %3664 = vmatprep.subr.mxu0 0.0
    %3665 = vmatpush2.msra.mxu0 0.0
    %3666 = vmatprep.subr.mxu0 0.0
    %3667 = vmatpush2.msra.mxu0 0.0
    %3668 = vmatprep.subr.mxu0 0.0
    %3669 = vmatpush2.msra.mxu0 0.0
    %3670 = vmatprep.subr.mxu0 0.0
    %3671 = vmatpush2.msra.mxu0 0.0
    %3672 = vmatprep.subr.mxu0 0.0
    %3673 = vmatpush2.msra.mxu0 0.0
    %3674 = vmatprep.subr.mxu0 0.0
    %3675 = vmatpush2.msra.mxu0 0.0
    %3676 = vmatprep.subr.mxu0 0.0
    %3677 = vmatpush2.msra.mxu0 0.0
    %3678 = vmatprep.subr.mxu0 0.0
    %3679 = vmatpush2.msra.mxu0 0.0
    %3680 = vmatprep.subr.mxu0 0.0
    %3681 = vmatpush2.msra.mxu0 0.0
    %3682 = vmatprep.subr.mxu0 0.0
    %3683 = vmatpush2.msra.mxu0 0.0
    %3684 = vmatprep.subr.mxu0 0.0
    %3685 = vmatpush2.msra.mxu0 0.0
    %3686 = vmatprep.subr.mxu0 0.0
    %3687 = vmatpush2.msra.mxu0 0.0
    %3688 = vmatprep.subr.mxu0 0.0
    %3689 = vmatpush2.msra.mxu0 0.0
    %3690 = vmatprep.mubr.f32.mxu0 0.0
    %3691 = vmatmul.mubr.f32.gmra.mxu0 %v3624
    %v3692 = vpop.f32.mrf.mxu0
    %v3693 = vadd.f32 %v225, %v3692
    %v3694 = vpop.f32.mrf.mxu0
    %3695 = vdwg.mxu0
    %v3698 = vunpack.c.l.s4 1966171168
    %v3699 = vunpack.c.0.s8 %v3698
    %v3700 = vlaneseq
    %v3701 = vshrl.u32 %v3700, 7
    %v3702 = vsub.s32 %v3699, %v3701
    %v3703 = vrot.slane %v3693, %v3702
    %v3704 = vcombine.high %v3703, %v3703
    %v3706 = vunpack.c.l.s4 1966171168
    %v3707 = vunpack.c.0.s8 %v3706
    %v3708 = vlaneseq
    %v3709 = vshrl.u32 %v3708, 7
    %v3710 = vsub.s32 %v3707, %v3709
    %v3711 = vrot.slane %v3703, %v3710
    %v3713 = vunpack.c.l.s4 1966171168
    %v3714 = vunpack.c.0.s8 %v3713
    %v3715 = vlaneseq
    %v3716 = vshrl.u32 %v3715, 7
    %v3717 = vsub.s32 %v3714, %v3716
    %v3718 = vrot.slane %v3704, %v3717
    %v3719 = vlaneseq
    %v3720 = vshrl.u32 %v3719, 7
    %v3721 = vsub.s32 0, %v3720
    %v3722 = vrot.slane %v3711, %v3721
    %v3723 = vlaneseq
    %v3724 = vshrl.u32 %v3723, 7
    %v3725 = vsub.s32 0, %v3724
    %v3726 = vrot.slane %v3718, %v3725
    %v3729 = vadd.f32 %v3722, %v2064
    %v3730 = vadd.f32 %v3726, %v2066
    %v3731 = vtanh.pop %v3729
    %v3732 = vtanh.pop %v3730
    %v3733 = vmul.f32 %v3731, %v239
    %v3734 = vmul.f32 %v3732, %v239
    %v3735 = vsel %vm385, %v3733, 0.0
    %3736 = vadd.xlane.f32.xlu0 %v3735
    %v3737 = vpop.xlane.xlu0 %3736
    %v3738 = vsel %vm385, %v3734, 0.0
    %3739 = vadd.xlane.f32.xlu0 %v3738
    %v3740 = vpop.xlane.xlu0 %3739
    %v3741 = vtanh.pop %v3737
    %v3742 = vtanh.pop %v3740
    %v3743 = vmul.f32 %v3741, 10.0
    %v3744 = vmul.f32 %v3742, 10.0
    %v3747 = vlaneseq
    %v3748 = vshrl.u32 %v3747, 7
    %v3749 = vsub.s32 %v1626, %v3748
    %v3750 = vrot.slane %v3743, %v3749
    %v3751 = vlaneseq
    %v3752 = vshrl.u32 %v3751, 7
    %v3753 = vsub.s32 %v1626, %v3752
    %v3754 = vrot.slane %v3744, %v3753
    %v3755 = vsel %vm525, %v3754, %v3750
    %v3757 = vsel %vm3566, -inf, %v3755
    %v3758 = vsel %vm1870, %v3757, -inf
    %3759 = vmax.xlane.f32.xlu0 %v3758
    %v3760 = vpop.xlane.xlu0 %3759
    %v3761 = vsub.f32 %v3757, %v3760
    %v3762 = vmul.f32 %v3761, 1.442695
    %v3763 = vpow.pop %v3762
    %v3764 = vsel %vm1870, %v3763, 0.0
    %3765 = vadd.xlane.f32.xlu0 %v3764
    %v3766 = vpop.xlane.xlu0 %3765
    %v3767 = vrcp.pop %v3766
    %v3768 = vmul.f32 %v3763, %v3767
    %s3769 = scalar_lea.vmem [#allocation3], 6
    %v3770 = vld [vmem:[%s3769] sm:$0x3]
    %v3771 = vadd.f32 %v3757, %v3770
    %v3772 = vsel %vm1870, %v3771, -inf
    %3773 = vmax.xlane.f32.xlu0 %v3772
    %v3774 = vpop.xlane.xlu0 %3773
    %vm3775 = vcmp.ge.f32.partialorder %v3771, %v3774
    %v3776 = vsel %vm3775, %v1626, 8
    %v3777 = vsel %vm1870, %v3776, 2147483647
    %v3778 = vand.u32 %v3777, 65535
    %v3779 = vshra.s32 %v3777, 16
    %v3780 = vcvt.s32.f32 %v3778
    %v3781 = vcvt.s32.f32 %v3779
    %3782 = vmin.xlane.f32.xlu0 %v3781
    %v3783 = vpop.xlane.xlu0 %3782
    %vm3784 = vcmp.eq.f32.partialorder %v3781, %v3783
    %v3785 = vsel %vm3784, %v3780, inf
    %3786 = vmin.xlane.f32.xlu0 %v3785
    %v3787 = vpop.xlane.xlu0 %3786
    %v3788 = vcvt.f32.s32 %v3787
    %v3789 = vcvt.f32.s32 %v3783
    %v3790 = vshll.u32 %v3789, 16
    %v3791 = vadd.s32 %v3790, %v3788
    %vm3792 = vcmp.eq.s32.totalorder %v1626, %v3791
    %v3793 = vsel %vm3792, 1, 0
    %v3794 = vcvt.s32.f32 %v3793
    %v3795 = vmax.f32 %v3286, %v3794
    %v3796 = vlaneseq
    %v3797 = vshrl.u32 %v3796, 7
    %v3798 = vsub.s32 0, %v3797
    %v3799 = vrot.slane %v3794, %v3798
    %3801 = vbcast.lane.b32.xlu0 %v3799, 256
    %v3802 = vpop.permute.xlu0 %3801
    %v3803 = vlaneseq
    %v3804 = vshrl.u32 %v3803, 7
    %v3805 = vsub.s32 1, %v3804
    %v3806 = vrot.slane %v3794, %v3805
    %3808 = vbcast.lane.b32.xlu0 %v3806, 256
    %v3809 = vpop.permute.xlu0 %3808
    %v3810 = vmul.f32 %v3802, %v301
    %v3811 = vmul.f32 %v3809, %v305
    %v3812 = vrot.slane %v3810, 4
    %v3813 = vadd.f32 %v3810, %v3812
    %v3814 = vrot.slane %v3813, 2
    %v3815 = vadd.f32 %v3813, %v3814
    %v3816 = vrot.slane %v3815, 1
    %v3817 = vadd.f32 %v3815, %v3816
    %v3818 = vrot.slane %v3811, 4
    %v3819 = vadd.f32 %v3811, %v3818
    %v3820 = vrot.slane %v3819, 2
    %v3821 = vadd.f32 %v3819, %v3820
    %v3822 = vrot.slane %v3821, 1
    %v3823 = vadd.f32 %v3821, %v3822
    %s3824 = scalar_lea.vmem [#allocation17], 6
    %3825 = vst.msk [vmem:[%s3824] sm:$0x3] %vm1870, %v3768
    %s3826 = scalar_lea.vmem %s17, 6
    %3827 = vst.msk [vmem:[%s3826] sm:$0x3] %vm2295, %v3791
    %3828 = vmatprep.subr.mxu0 0.0
    %3829 = vmatpush1.msra.mxu0 0.0
    %3830 = vmatprep.subr.mxu0 0.0
    %3831 = vmatpush1.msra.mxu0 0.0
    %3832 = vmatprep.subr.mxu0 0.0
    %3833 = vmatpush1.msra.mxu0 0.0
    %3834 = vmatprep.subr.mxu0 0.0
    %3835 = vmatpush1.msra.mxu0 0.0
    %3836 = vmatprep.subr.mxu0 0.0
    %3837 = vmatpush1.msra.mxu0 0.0
    %3838 = vmatprep.subr.mxu0 0.0
    %3839 = vmatpush1.msra.mxu0 0.0
    %3840 = vmatprep.subr.mxu0 0.0
    %3841 = vmatpush1.msra.mxu0 0.0
    %3842 = vmatprep.subr.mxu0 0.0
    %3843 = vmatpush1.msra.mxu0 0.0
    %3844 = vmatprep.subr.mxu0 0.0
    %3845 = vmatpush1.msra.mxu0 0.0
    %3846 = vmatprep.subr.mxu0 0.0
    %3847 = vmatpush1.msra.mxu0 0.0
    %3848 = vmatprep.subr.mxu0 0.0
    %3849 = vmatpush1.msra.mxu0 0.0
    %3850 = vmatprep.subr.mxu0 0.0
    %3851 = vmatpush1.msra.mxu0 0.0
    %3852 = vmatprep.subr.mxu0 0.0
    %3853 = vmatpush1.msra.mxu0 %v204
    %3854 = vmatprep.subr.mxu0 0.0
    %3855 = vmatpush1.msra.mxu0 %v203
    %3856 = vmatprep.subr.mxu0 0.0
    %3857 = vmatpush1.msra.mxu0 %v202
    %3858 = vmatprep.subr.mxu0 0.0
    %3859 = vmatpush1.msra.mxu0 %v201
    %3860 = vmatprep.subr.mxu0 0.0
    %3861 = vmatpush2.msra.mxu0 0.0
    %3862 = vmatprep.subr.mxu0 0.0
    %3863 = vmatpush2.msra.mxu0 0.0
    %3864 = vmatprep.subr.mxu0 0.0
    %3865 = vmatpush2.msra.mxu0 0.0
    %3866 = vmatprep.subr.mxu0 0.0
    %3867 = vmatpush2.msra.mxu0 0.0
    %3868 = vmatprep.subr.mxu0 0.0
    %3869 = vmatpush2.msra.mxu0 0.0
    %3870 = vmatprep.subr.mxu0 0.0
    %3871 = vmatpush2.msra.mxu0 0.0
    %3872 = vmatprep.subr.mxu0 0.0
    %3873 = vmatpush2.msra.mxu0 0.0
    %3874 = vmatprep.subr.mxu0 0.0
    %3875 = vmatpush2.msra.mxu0 0.0
    %3876 = vmatprep.subr.mxu0 0.0
    %3877 = vmatpush2.msra.mxu0 0.0
    %3878 = vmatprep.subr.mxu0 0.0
    %3879 = vmatpush2.msra.mxu0 0.0
    %3880 = vmatprep.subr.mxu0 0.0
    %3881 = vmatpush2.msra.mxu0 0.0
    %3882 = vmatprep.subr.mxu0 0.0
    %3883 = vmatpush2.msra.mxu0 0.0
    %3884 = vmatprep.subr.mxu0 0.0
    %3885 = vmatpush2.msra.mxu0 0.0
    %3886 = vmatprep.subr.mxu0 0.0
    %3887 = vmatpush2.msra.mxu0 0.0
    %3888 = vmatprep.subr.mxu0 0.0
    %3889 = vmatpush2.msra.mxu0 0.0
    %3890 = vmatprep.subr.mxu0 0.0
    %3891 = vmatpush2.msra.mxu0 0.0
    %3892 = vmatprep.mubr.f32.mxu0 0.0
    %3893 = vmatmul.mubr.f32.gmra.mxu0 %v3449
    %v3894 = vpop.f32.mrf.mxu0
    %v3895 = vadd.f32 0.0, %v3894
    %v3896 = vpop.f32.mrf.mxu0
    %3897 = vdwg.mxu0
    %v3899 = vrot.slane %v3895, 1
    %v3902 = vadd.f32 %v3817, %v3895
    %v3903 = vadd.f32 %v3823, %v3899
    %v3904 = vxor.u32 %v3902, 2147483648
    %v3905 = vxor.u32 %v3903, 2147483648
    %v3906 = vmul.f32 %v3904, 1.442695
    %v3907 = vpow.pop %v3906
    %v3908 = vmul.f32 %v3905, 1.442695
    %v3909 = vpow.pop %v3908
    %v3910 = vadd.f32 %v3907, 1.0
    %v3911 = vadd.f32 %v3909, 1.0
    %v3912 = vrcp.pop %v3910
    %v3913 = vmul.f32 1.0, %v3912
    %v3914 = vrcp.pop %v3911
    %v3915 = vmul.f32 1.0, %v3914
    %v3916 = vtanh.pop %v3902
    %v3917 = vtanh.pop %v3903
    %v3918 = vmul.f32 %v3913, %v3429
    %v3919 = vmul.f32 %v3915, %v3430
    %3922 = vrot.lane.b32.xlu0 %v3916, 64
    %v3923 = vpop.permute.xlu0 %3922
    %3924 = vrot.lane.b32.xlu0 %v3917, 64
    %v3925 = vpop.permute.xlu0 %3924
    %v3928 = vmul.f32 %v3913, %v3923
    %v3929 = vmul.f32 %v3915, %v3925
    %3932 = vrot.lane.b32.xlu0 %v3928, 32
    %v3933 = vpop.permute.xlu0 %3932
    %3934 = vrot.lane.b32.xlu0 %v3929, 32
    %v3935 = vpop.permute.xlu0 %3934
    %v3938 = vadd.f32 %v3918, %v3933
    %v3939 = vadd.f32 %v3919, %v3935
    %v3940 = vtanh.pop %v3938
    %v3941 = vtanh.pop %v3939
    %3944 = vrot.lane.b32.xlu0 %v3940, 64
    %v3945 = vpop.permute.xlu0 %3944
    %3946 = vrot.lane.b32.xlu0 %v3941, 64
    %v3947 = vpop.permute.xlu0 %3946
    %v3950 = vmul.f32 %v3913, %v3945
    %v3951 = vmul.f32 %v3915, %v3947
    %v3954 = vrot.slane %v3951, 7
    %v3955 = vsel %vm525, %v3954, %v3950
    %3956 = vrot.lane.b32.xlu0 %v3955, 32
    %v3957 = vpop.permute.xlu0 %3956
    %v3958 = vsel %vm385, %v3957, 0
    %3960 = vmatprep.subr.mxu0 0.0
    %3961 = vmatpush1.msra.mxu0 0.0
    %3962 = vmatprep.subr.mxu0 0.0
    %3963 = vmatpush1.msra.mxu0 0.0
    %3964 = vmatprep.subr.mxu0 0.0
    %3965 = vmatpush1.msra.mxu0 0.0
    %3966 = vmatprep.subr.mxu0 0.0
    %3967 = vmatpush1.msra.mxu0 0.0
    %3968 = vmatprep.subr.mxu0 0.0
    %3969 = vmatpush1.msra.mxu0 0.0
    %3970 = vmatprep.subr.mxu0 0.0
    %3971 = vmatpush1.msra.mxu0 0.0
    %3972 = vmatprep.subr.mxu0 0.0
    %3973 = vmatpush1.msra.mxu0 0.0
    %3974 = vmatprep.subr.mxu0 0.0
    %3975 = vmatpush1.msra.mxu0 0.0
    %3976 = vmatprep.subr.mxu0 0.0
    %3977 = vmatpush1.msra.mxu0 0.0
    %3978 = vmatprep.subr.mxu0 0.0
    %3979 = vmatpush1.msra.mxu0 0.0
    %3980 = vmatprep.subr.mxu0 0.0
    %3981 = vmatpush1.msra.mxu0 0.0
    %3982 = vmatprep.subr.mxu0 0.0
    %3983 = vmatpush1.msra.mxu0 0.0
    %3984 = vmatprep.subr.mxu0 0.0
    %3985 = vmatpush1.msra.mxu0 %v208
    %3986 = vmatprep.subr.mxu0 0.0
    %3987 = vmatpush1.msra.mxu0 %v207
    %3988 = vmatprep.subr.mxu0 0.0
    %3989 = vmatpush1.msra.mxu0 %v206
    %3990 = vmatprep.subr.mxu0 0.0
    %3991 = vmatpush1.msra.mxu0 %v205
    %3992 = vmatprep.subr.mxu0 0.0
    %3993 = vmatpush2.msra.mxu0 0.0
    %3994 = vmatprep.subr.mxu0 0.0
    %3995 = vmatpush2.msra.mxu0 0.0
    %3996 = vmatprep.subr.mxu0 0.0
    %3997 = vmatpush2.msra.mxu0 0.0
    %3998 = vmatprep.subr.mxu0 0.0
    %3999 = vmatpush2.msra.mxu0 0.0
    %4000 = vmatprep.subr.mxu0 0.0
    %4001 = vmatpush2.msra.mxu0 0.0
    %4002 = vmatprep.subr.mxu0 0.0
    %4003 = vmatpush2.msra.mxu0 0.0
    %4004 = vmatprep.subr.mxu0 0.0
    %4005 = vmatpush2.msra.mxu0 0.0
    %4006 = vmatprep.subr.mxu0 0.0
    %4007 = vmatpush2.msra.mxu0 0.0
    %4008 = vmatprep.subr.mxu0 0.0
    %4009 = vmatpush2.msra.mxu0 0.0
    %4010 = vmatprep.subr.mxu0 0.0
    %4011 = vmatpush2.msra.mxu0 0.0
    %4012 = vmatprep.subr.mxu0 0.0
    %4013 = vmatpush2.msra.mxu0 0.0
    %4014 = vmatprep.subr.mxu0 0.0
    %4015 = vmatpush2.msra.mxu0 0.0
    %4016 = vmatprep.subr.mxu0 0.0
    %4017 = vmatpush2.msra.mxu0 0.0
    %4018 = vmatprep.subr.mxu0 0.0
    %4019 = vmatpush2.msra.mxu0 0.0
    %4020 = vmatprep.subr.mxu0 0.0
    %4021 = vmatpush2.msra.mxu0 0.0
    %4022 = vmatprep.subr.mxu0 0.0
    %4023 = vmatpush2.msra.mxu0 0.0
    %4024 = vmatprep.mubr.f32.mxu0 0.0
    %4025 = vmatmul.mubr.f32.gmra.mxu0 %v3958
    %v4026 = vpop.f32.mrf.mxu0
    %v4027 = vadd.f32 %v218, %v4026
    %v4028 = vpop.f32.mrf.mxu0
    %4029 = vdwg.mxu0
    %v4032 = vunpack.c.l.s4 1966171168
    %v4033 = vunpack.c.0.s8 %v4032
    %v4034 = vlaneseq
    %v4035 = vshrl.u32 %v4034, 7
    %v4036 = vsub.s32 %v4033, %v4035
    %v4037 = vrot.slane %v4027, %v4036
    %v4038 = vcombine.high %v4037, %v4037
    %v4040 = vunpack.c.l.s4 1966171168
    %v4041 = vunpack.c.0.s8 %v4040
    %v4042 = vlaneseq
    %v4043 = vshrl.u32 %v4042, 7
    %v4044 = vsub.s32 %v4041, %v4043
    %v4045 = vrot.slane %v4037, %v4044
    %v4047 = vunpack.c.l.s4 1966171168
    %v4048 = vunpack.c.0.s8 %v4047
    %v4049 = vlaneseq
    %v4050 = vshrl.u32 %v4049, 7
    %v4051 = vsub.s32 %v4048, %v4050
    %v4052 = vrot.slane %v4038, %v4051
    %v4053 = vlaneseq
    %v4054 = vshrl.u32 %v4053, 7
    %v4055 = vsub.s32 0, %v4054
    %v4056 = vrot.slane %v4045, %v4055
    %v4057 = vlaneseq
    %v4058 = vshrl.u32 %v4057, 7
    %v4059 = vsub.s32 0, %v4058
    %v4060 = vrot.slane %v4052, %v4059
    %v4063 = vadd.f32 %v4056, %v1619
    %v4064 = vadd.f32 %v4060, %v1622
    %v4065 = vtanh.pop %v4063
    %v4066 = vtanh.pop %v4064
    %v4067 = vmul.f32 %v4065, %v232
    %v4068 = vmul.f32 %v4066, %v232
    %v4069 = vsel %vm385, %v4067, 0.0
    %4070 = vadd.xlane.f32.xlu0 %v4069
    %v4071 = vpop.xlane.xlu0 %4070
    %v4072 = vsel %vm385, %v4068, 0.0
    %4073 = vadd.xlane.f32.xlu0 %v4072
    %v4074 = vpop.xlane.xlu0 %4073
    %vm4075 = vcmp.gt.f32.partialorder %v3795, 0.5
    %v4078 = vlaneseq
    %v4079 = vshrl.u32 %v4078, 7
    %v4080 = vsub.s32 %v1626, %v4079
    %v4081 = vrot.slane %v4071, %v4080
    %v4082 = vlaneseq
    %v4083 = vshrl.u32 %v4082, 7
    %v4084 = vsub.s32 %v1626, %v4083
    %v4085 = vrot.slane %v4074, %v4084
    %v4086 = vsel %vm525, %v4085, %v4081
    %v4088 = vsel %vm4075, -inf, %v4086
    %v4089 = vsel %vm1870, %v4088, -inf
    %4090 = vmax.xlane.f32.xlu0 %v4089
    %v4091 = vpop.xlane.xlu0 %4090
    %v4092 = vsub.f32 %v4088, %v4091
    %v4093 = vmul.f32 %v4092, 1.442695
    %v4094 = vpow.pop %v4093
    %v4095 = vsel %vm1870, %v4094, 0.0
    %4096 = vadd.xlane.f32.xlu0 %v4095
    %v4097 = vpop.xlane.xlu0 %4096
    %v4098 = vrcp.pop %v4097
    %v4099 = vmul.f32 %v4094, %v4098
    %v4100 = vlaneseq
    %v4101 = vshrl.u32 %v4100, 7
    %v4102 = vsub.s32 0, %v4101
    %v4103 = vrot.slane %v4099, %v4102
    %4105 = vbcast.lane.b32.xlu0 %v4103, 256
    %v4106 = vpop.permute.xlu0 %4105
    %v4107 = vlaneseq
    %v4108 = vshrl.u32 %v4107, 7
    %v4109 = vsub.s32 1, %v4108
    %v4110 = vrot.slane %v4099, %v4109
    %4112 = vbcast.lane.b32.xlu0 %v4110, 256
    %v4113 = vpop.permute.xlu0 %4112
    %v4114 = vmul.f32 %v1619, %v4106
    %v4115 = vmul.f32 %v1622, %v4113
    %v4116 = vsel %vm385, %v4114, 0.0
    %v4117 = vrot.slane %v4116, 4
    %v4118 = vadd.f32 %v4116, %v4117
    %v4119 = vrot.slane %v4118, 2
    %v4120 = vadd.f32 %v4118, %v4119
    %v4121 = vrot.slane %v4120, 1
    %v4122 = vadd.f32 %v4120, %v4121
    %v4123 = vsel %vm385, %v4115, 0.0
    %v4124 = vrot.slane %v4123, 4
    %v4125 = vadd.f32 %v4123, %v4124
    %v4126 = vrot.slane %v4125, 2
    %v4127 = vadd.f32 %v4125, %v4126
    %v4128 = vrot.slane %v4127, 1
    %v4129 = vadd.f32 %v4127, %v4128
    %v4132 = vsel %vm525, %v4129, %v4122
    %v4133 = vsel %vm385, %v4132, 0
    %4135 = vmatprep.subr.mxu0 0.0
    %4136 = vmatpush1.msra.mxu0 0.0
    %4137 = vmatprep.subr.mxu0 0.0
    %4138 = vmatpush1.msra.mxu0 0.0
    %4139 = vmatprep.subr.mxu0 0.0
    %4140 = vmatpush1.msra.mxu0 0.0
    %4141 = vmatprep.subr.mxu0 0.0
    %4142 = vmatpush1.msra.mxu0 0.0
    %4143 = vmatprep.subr.mxu0 0.0
    %4144 = vmatpush1.msra.mxu0 0.0
    %4145 = vmatprep.subr.mxu0 0.0
    %4146 = vmatpush1.msra.mxu0 0.0
    %4147 = vmatprep.subr.mxu0 0.0
    %4148 = vmatpush1.msra.mxu0 0.0
    %4149 = vmatprep.subr.mxu0 0.0
    %4150 = vmatpush1.msra.mxu0 0.0
    %4151 = vmatprep.subr.mxu0 0.0
    %4152 = vmatpush1.msra.mxu0 0.0
    %4153 = vmatprep.subr.mxu0 0.0
    %4154 = vmatpush1.msra.mxu0 0.0
    %4155 = vmatprep.subr.mxu0 0.0
    %4156 = vmatpush1.msra.mxu0 0.0
    %4157 = vmatprep.subr.mxu0 0.0
    %4158 = vmatpush1.msra.mxu0 0.0
    %4159 = vmatprep.subr.mxu0 0.0
    %4160 = vmatpush1.msra.mxu0 %v212
    %4161 = vmatprep.subr.mxu0 0.0
    %4162 = vmatpush1.msra.mxu0 %v211
    %4163 = vmatprep.subr.mxu0 0.0
    %4164 = vmatpush1.msra.mxu0 %v210
    %4165 = vmatprep.subr.mxu0 0.0
    %4166 = vmatpush1.msra.mxu0 %v209
    %4167 = vmatprep.subr.mxu0 0.0
    %4168 = vmatpush2.msra.mxu0 0.0
    %4169 = vmatprep.subr.mxu0 0.0
    %4170 = vmatpush2.msra.mxu0 0.0
    %4171 = vmatprep.subr.mxu0 0.0
    %4172 = vmatpush2.msra.mxu0 0.0
    %4173 = vmatprep.subr.mxu0 0.0
    %4174 = vmatpush2.msra.mxu0 0.0
    %4175 = vmatprep.subr.mxu0 0.0
    %4176 = vmatpush2.msra.mxu0 0.0
    %4177 = vmatprep.subr.mxu0 0.0
    %4178 = vmatpush2.msra.mxu0 0.0
    %4179 = vmatprep.subr.mxu0 0.0
    %4180 = vmatpush2.msra.mxu0 0.0
    %4181 = vmatprep.subr.mxu0 0.0
    %4182 = vmatpush2.msra.mxu0 0.0
    %4183 = vmatprep.subr.mxu0 0.0
    %4184 = vmatpush2.msra.mxu0 0.0
    %4185 = vmatprep.subr.mxu0 0.0
    %4186 = vmatpush2.msra.mxu0 0.0
    %4187 = vmatprep.subr.mxu0 0.0
    %4188 = vmatpush2.msra.mxu0 0.0
    %4189 = vmatprep.subr.mxu0 0.0
    %4190 = vmatpush2.msra.mxu0 0.0
    %4191 = vmatprep.subr.mxu0 0.0
    %4192 = vmatpush2.msra.mxu0 0.0
    %4193 = vmatprep.subr.mxu0 0.0
    %4194 = vmatpush2.msra.mxu0 0.0
    %4195 = vmatprep.subr.mxu0 0.0
    %4196 = vmatpush2.msra.mxu0 0.0
    %4197 = vmatprep.subr.mxu0 0.0
    %4198 = vmatpush2.msra.mxu0 0.0
    %4199 = vmatprep.mubr.f32.mxu0 0.0
    %4200 = vmatmul.mubr.f32.gmra.mxu0 %v4133
    %v4201 = vpop.f32.mrf.mxu0
    %v4202 = vadd.f32 %v225, %v4201
    %v4203 = vpop.f32.mrf.mxu0
    %4204 = vdwg.mxu0
    %v4207 = vunpack.c.l.s4 1966171168
    %v4208 = vunpack.c.0.s8 %v4207
    %v4209 = vlaneseq
    %v4210 = vshrl.u32 %v4209, 7
    %v4211 = vsub.s32 %v4208, %v4210
    %v4212 = vrot.slane %v4202, %v4211
    %v4213 = vcombine.high %v4212, %v4212
    %v4215 = vunpack.c.l.s4 1966171168
    %v4216 = vunpack.c.0.s8 %v4215
    %v4217 = vlaneseq
    %v4218 = vshrl.u32 %v4217, 7
    %v4219 = vsub.s32 %v4216, %v4218
    %v4220 = vrot.slane %v4212, %v4219
    %v4222 = vunpack.c.l.s4 1966171168
    %v4223 = vunpack.c.0.s8 %v4222
    %v4224 = vlaneseq
    %v4225 = vshrl.u32 %v4224, 7
    %v4226 = vsub.s32 %v4223, %v4225
    %v4227 = vrot.slane %v4213, %v4226
    %v4228 = vlaneseq
    %v4229 = vshrl.u32 %v4228, 7
    %v4230 = vsub.s32 0, %v4229
    %v4231 = vrot.slane %v4220, %v4230
    %v4232 = vlaneseq
    %v4233 = vshrl.u32 %v4232, 7
    %v4234 = vsub.s32 0, %v4233
    %v4235 = vrot.slane %v4227, %v4234
    %v4238 = vadd.f32 %v4231, %v2064
    %v4239 = vadd.f32 %v4235, %v2066
    %v4240 = vtanh.pop %v4238
    %v4241 = vtanh.pop %v4239
    %v4242 = vmul.f32 %v4240, %v239
    %v4243 = vmul.f32 %v4241, %v239
    %v4244 = vsel %vm385, %v4242, 0.0
    %4245 = vadd.xlane.f32.xlu0 %v4244
    %v4246 = vpop.xlane.xlu0 %4245
    %v4247 = vsel %vm385, %v4243, 0.0
    %4248 = vadd.xlane.f32.xlu0 %v4247
    %v4249 = vpop.xlane.xlu0 %4248
    %v4250 = vtanh.pop %v4246
    %v4251 = vtanh.pop %v4249
    %v4252 = vmul.f32 %v4250, 10.0
    %v4253 = vmul.f32 %v4251, 10.0
    %v4256 = vlaneseq
    %v4257 = vshrl.u32 %v4256, 7
    %v4258 = vsub.s32 %v1626, %v4257
    %v4259 = vrot.slane %v4252, %v4258
    %v4260 = vlaneseq
    %v4261 = vshrl.u32 %v4260, 7
    %v4262 = vsub.s32 %v1626, %v4261
    %v4263 = vrot.slane %v4253, %v4262
    %v4264 = vsel %vm525, %v4263, %v4259
    %v4266 = vsel %vm4075, -inf, %v4264
    %v4267 = vsel %vm1870, %v4266, -inf
    %4268 = vmax.xlane.f32.xlu0 %v4267
    %v4269 = vpop.xlane.xlu0 %4268
    %v4270 = vsub.f32 %v4266, %v4269
    %v4271 = vmul.f32 %v4270, 1.442695
    %v4272 = vpow.pop %v4271
    %v4273 = vsel %vm1870, %v4272, 0.0
    %4274 = vadd.xlane.f32.xlu0 %v4273
    %v4275 = vpop.xlane.xlu0 %4274
    %v4276 = vrcp.pop %v4275
    %v4277 = vmul.f32 %v4272, %v4276
    %s4278 = scalar_lea.vmem [#allocation3], 8
    %v4279 = vld [vmem:[%s4278] sm:$0x3]
    %v4280 = vadd.f32 %v4266, %v4279
    %v4281 = vsel %vm1870, %v4280, -inf
    %4282 = vmax.xlane.f32.xlu0 %v4281
    %v4283 = vpop.xlane.xlu0 %4282
    %vm4284 = vcmp.ge.f32.partialorder %v4280, %v4283
    %v4285 = vsel %vm4284, %v1626, 8
    %v4286 = vsel %vm1870, %v4285, 2147483647
    %v4287 = vand.u32 %v4286, 65535
    %v4288 = vshra.s32 %v4286, 16
    %v4289 = vcvt.s32.f32 %v4287
    %v4290 = vcvt.s32.f32 %v4288
    %4291 = vmin.xlane.f32.xlu0 %v4290
    %v4292 = vpop.xlane.xlu0 %4291
    %vm4293 = vcmp.eq.f32.partialorder %v4290, %v4292
    %v4294 = vsel %vm4293, %v4289, inf
    %4295 = vmin.xlane.f32.xlu0 %v4294
    %v4296 = vpop.xlane.xlu0 %4295
    %v4297 = vcvt.f32.s32 %v4296
    %v4298 = vcvt.f32.s32 %v4292
    %v4299 = vshll.u32 %v4298, 16
    %v4300 = vadd.s32 %v4299, %v4297
    %vm4301 = vcmp.eq.s32.totalorder %v1626, %v4300
    %v4302 = vsel %vm4301, 1, 0
    %v4303 = vcvt.s32.f32 %v4302
    %v4304 = vmax.f32 %v3795, %v4303
    %v4305 = vlaneseq
    %v4306 = vshrl.u32 %v4305, 7
    %v4307 = vsub.s32 0, %v4306
    %v4308 = vrot.slane %v4303, %v4307
    %4310 = vbcast.lane.b32.xlu0 %v4308, 256
    %v4311 = vpop.permute.xlu0 %4310
    %v4312 = vlaneseq
    %v4313 = vshrl.u32 %v4312, 7
    %v4314 = vsub.s32 1, %v4313
    %v4315 = vrot.slane %v4303, %v4314
    %4317 = vbcast.lane.b32.xlu0 %v4315, 256
    %v4318 = vpop.permute.xlu0 %4317
    %v4319 = vmul.f32 %v4311, %v301
    %v4320 = vmul.f32 %v4318, %v305
    %v4321 = vrot.slane %v4319, 4
    %v4322 = vadd.f32 %v4319, %v4321
    %v4323 = vrot.slane %v4322, 2
    %v4324 = vadd.f32 %v4322, %v4323
    %v4325 = vrot.slane %v4324, 1
    %v4326 = vadd.f32 %v4324, %v4325
    %v4327 = vrot.slane %v4320, 4
    %v4328 = vadd.f32 %v4320, %v4327
    %v4329 = vrot.slane %v4328, 2
    %v4330 = vadd.f32 %v4328, %v4329
    %v4331 = vrot.slane %v4330, 1
    %v4332 = vadd.f32 %v4330, %v4331
    %s4333 = scalar_lea.vmem [#allocation17], 8
    %4334 = vst.msk [vmem:[%s4333] sm:$0x3] %vm1870, %v4277
    %s4335 = scalar_lea.vmem %s17, 8
    %4336 = vst.msk [vmem:[%s4335] sm:$0x3] %vm2295, %v4300
    %4337 = vmatprep.subr.mxu0 0.0
    %4338 = vmatpush1.msra.mxu0 0.0
    %4339 = vmatprep.subr.mxu0 0.0
    %4340 = vmatpush1.msra.mxu0 0.0
    %4341 = vmatprep.subr.mxu0 0.0
    %4342 = vmatpush1.msra.mxu0 0.0
    %4343 = vmatprep.subr.mxu0 0.0
    %4344 = vmatpush1.msra.mxu0 0.0
    %4345 = vmatprep.subr.mxu0 0.0
    %4346 = vmatpush1.msra.mxu0 0.0
    %4347 = vmatprep.subr.mxu0 0.0
    %4348 = vmatpush1.msra.mxu0 0.0
    %4349 = vmatprep.subr.mxu0 0.0
    %4350 = vmatpush1.msra.mxu0 0.0
    %4351 = vmatprep.subr.mxu0 0.0
    %4352 = vmatpush1.msra.mxu0 0.0
    %4353 = vmatprep.subr.mxu0 0.0
    %4354 = vmatpush1.msra.mxu0 0.0
    %4355 = vmatprep.subr.mxu0 0.0
    %4356 = vmatpush1.msra.mxu0 0.0
    %4357 = vmatprep.subr.mxu0 0.0
    %4358 = vmatpush1.msra.mxu0 0.0
    %4359 = vmatprep.subr.mxu0 0.0
    %4360 = vmatpush1.msra.mxu0 0.0
    %4361 = vmatprep.subr.mxu0 0.0
    %4362 = vmatpush1.msra.mxu0 %v204
    %4363 = vmatprep.subr.mxu0 0.0
    %4364 = vmatpush1.msra.mxu0 %v203
    %4365 = vmatprep.subr.mxu0 0.0
    %4366 = vmatpush1.msra.mxu0 %v202
    %4367 = vmatprep.subr.mxu0 0.0
    %4368 = vmatpush1.msra.mxu0 %v201
    %4369 = vmatprep.subr.mxu0 0.0
    %4370 = vmatpush2.msra.mxu0 0.0
    %4371 = vmatprep.subr.mxu0 0.0
    %4372 = vmatpush2.msra.mxu0 0.0
    %4373 = vmatprep.subr.mxu0 0.0
    %4374 = vmatpush2.msra.mxu0 0.0
    %4375 = vmatprep.subr.mxu0 0.0
    %4376 = vmatpush2.msra.mxu0 0.0
    %4377 = vmatprep.subr.mxu0 0.0
    %4378 = vmatpush2.msra.mxu0 0.0
    %4379 = vmatprep.subr.mxu0 0.0
    %4380 = vmatpush2.msra.mxu0 0.0
    %4381 = vmatprep.subr.mxu0 0.0
    %4382 = vmatpush2.msra.mxu0 0.0
    %4383 = vmatprep.subr.mxu0 0.0
    %4384 = vmatpush2.msra.mxu0 0.0
    %4385 = vmatprep.subr.mxu0 0.0
    %4386 = vmatpush2.msra.mxu0 0.0
    %4387 = vmatprep.subr.mxu0 0.0
    %4388 = vmatpush2.msra.mxu0 0.0
    %4389 = vmatprep.subr.mxu0 0.0
    %4390 = vmatpush2.msra.mxu0 0.0
    %4391 = vmatprep.subr.mxu0 0.0
    %4392 = vmatpush2.msra.mxu0 0.0
    %4393 = vmatprep.subr.mxu0 0.0
    %4394 = vmatpush2.msra.mxu0 0.0
    %4395 = vmatprep.subr.mxu0 0.0
    %4396 = vmatpush2.msra.mxu0 0.0
    %4397 = vmatprep.subr.mxu0 0.0
    %4398 = vmatpush2.msra.mxu0 0.0
    %4399 = vmatprep.subr.mxu0 0.0
    %4400 = vmatpush2.msra.mxu0 0.0
    %4401 = vmatprep.mubr.f32.mxu0 0.0
    %4402 = vmatmul.mubr.f32.gmra.mxu0 %v3958
    %v4403 = vpop.f32.mrf.mxu0
    %v4404 = vadd.f32 0.0, %v4403
    %v4405 = vpop.f32.mrf.mxu0
    %4406 = vdwg.mxu0
    %v4408 = vrot.slane %v4404, 1
    %v4411 = vadd.f32 %v4326, %v4404
    %v4412 = vadd.f32 %v4332, %v4408
    %v4413 = vxor.u32 %v4411, 2147483648
    %v4414 = vxor.u32 %v4412, 2147483648
    %v4415 = vmul.f32 %v4413, 1.442695
    %v4416 = vpow.pop %v4415
    %v4417 = vmul.f32 %v4414, 1.442695
    %v4418 = vpow.pop %v4417
    %v4419 = vadd.f32 %v4416, 1.0
    %v4420 = vadd.f32 %v4418, 1.0
    %v4421 = vrcp.pop %v4419
    %v4422 = vmul.f32 1.0, %v4421
    %v4423 = vrcp.pop %v4420
    %v4424 = vmul.f32 1.0, %v4423
    %v4425 = vtanh.pop %v4411
    %v4426 = vtanh.pop %v4412
    %v4427 = vmul.f32 %v4422, %v3938
    %v4428 = vmul.f32 %v4424, %v3939
    %4431 = vrot.lane.b32.xlu0 %v4425, 64
    %v4432 = vpop.permute.xlu0 %4431
    %4433 = vrot.lane.b32.xlu0 %v4426, 64
    %v4434 = vpop.permute.xlu0 %4433
    %v4437 = vmul.f32 %v4422, %v4432
    %v4438 = vmul.f32 %v4424, %v4434
    %4441 = vrot.lane.b32.xlu0 %v4437, 32
    %v4442 = vpop.permute.xlu0 %4441
    %4443 = vrot.lane.b32.xlu0 %v4438, 32
    %v4444 = vpop.permute.xlu0 %4443
    %v4447 = vadd.f32 %v4427, %v4442
    %v4448 = vadd.f32 %v4428, %v4444
    %v4449 = vtanh.pop %v4447
    %v4450 = vtanh.pop %v4448
    %4453 = vrot.lane.b32.xlu0 %v4449, 64
    %v4454 = vpop.permute.xlu0 %4453
    %4455 = vrot.lane.b32.xlu0 %v4450, 64
    %v4456 = vpop.permute.xlu0 %4455
    %v4459 = vmul.f32 %v4422, %v4454
    %v4460 = vmul.f32 %v4424, %v4456
    %v4463 = vrot.slane %v4460, 7
    %v4464 = vsel %vm525, %v4463, %v4459
    %4465 = vrot.lane.b32.xlu0 %v4464, 32
    %v4466 = vpop.permute.xlu0 %4465
    %v4467 = vsel %vm385, %v4466, 0
    %4469 = vmatprep.subr.mxu0 0.0
    %4470 = vmatpush1.msra.mxu0 0.0
    %4471 = vmatprep.subr.mxu0 0.0
    %4472 = vmatpush1.msra.mxu0 0.0
    %4473 = vmatprep.subr.mxu0 0.0
    %4474 = vmatpush1.msra.mxu0 0.0
    %4475 = vmatprep.subr.mxu0 0.0
    %4476 = vmatpush1.msra.mxu0 0.0
    %4477 = vmatprep.subr.mxu0 0.0
    %4478 = vmatpush1.msra.mxu0 0.0
    %4479 = vmatprep.subr.mxu0 0.0
    %4480 = vmatpush1.msra.mxu0 0.0
    %4481 = vmatprep.subr.mxu0 0.0
    %4482 = vmatpush1.msra.mxu0 0.0
    %4483 = vmatprep.subr.mxu0 0.0
    %4484 = vmatpush1.msra.mxu0 0.0
    %4485 = vmatprep.subr.mxu0 0.0
    %4486 = vmatpush1.msra.mxu0 0.0
    %4487 = vmatprep.subr.mxu0 0.0
    %4488 = vmatpush1.msra.mxu0 0.0
    %4489 = vmatprep.subr.mxu0 0.0
    %4490 = vmatpush1.msra.mxu0 0.0
    %4491 = vmatprep.subr.mxu0 0.0
    %4492 = vmatpush1.msra.mxu0 0.0
    %4493 = vmatprep.subr.mxu0 0.0
    %4494 = vmatpush1.msra.mxu0 %v208
    %4495 = vmatprep.subr.mxu0 0.0
    %4496 = vmatpush1.msra.mxu0 %v207
    %4497 = vmatprep.subr.mxu0 0.0
    %4498 = vmatpush1.msra.mxu0 %v206
    %4499 = vmatprep.subr.mxu0 0.0
    %4500 = vmatpush1.msra.mxu0 %v205
    %4501 = vmatprep.subr.mxu0 0.0
    %4502 = vmatpush2.msra.mxu0 0.0
    %4503 = vmatprep.subr.mxu0 0.0
    %4504 = vmatpush2.msra.mxu0 0.0
    %4505 = vmatprep.subr.mxu0 0.0
    %4506 = vmatpush2.msra.mxu0 0.0
    %4507 = vmatprep.subr.mxu0 0.0
    %4508 = vmatpush2.msra.mxu0 0.0
    %4509 = vmatprep.subr.mxu0 0.0
    %4510 = vmatpush2.msra.mxu0 0.0
    %4511 = vmatprep.subr.mxu0 0.0
    %4512 = vmatpush2.msra.mxu0 0.0
    %4513 = vmatprep.subr.mxu0 0.0
    %4514 = vmatpush2.msra.mxu0 0.0
    %4515 = vmatprep.subr.mxu0 0.0
    %4516 = vmatpush2.msra.mxu0 0.0
    %4517 = vmatprep.subr.mxu0 0.0
    %4518 = vmatpush2.msra.mxu0 0.0
    %4519 = vmatprep.subr.mxu0 0.0
    %4520 = vmatpush2.msra.mxu0 0.0
    %4521 = vmatprep.subr.mxu0 0.0
    %4522 = vmatpush2.msra.mxu0 0.0
    %4523 = vmatprep.subr.mxu0 0.0
    %4524 = vmatpush2.msra.mxu0 0.0
    %4525 = vmatprep.subr.mxu0 0.0
    %4526 = vmatpush2.msra.mxu0 0.0
    %4527 = vmatprep.subr.mxu0 0.0
    %4528 = vmatpush2.msra.mxu0 0.0
    %4529 = vmatprep.subr.mxu0 0.0
    %4530 = vmatpush2.msra.mxu0 0.0
    %4531 = vmatprep.subr.mxu0 0.0
    %4532 = vmatpush2.msra.mxu0 0.0
    %4533 = vmatprep.mubr.f32.mxu0 0.0
    %4534 = vmatmul.mubr.f32.gmra.mxu0 %v4467
    %v4535 = vpop.f32.mrf.mxu0
    %v4536 = vadd.f32 %v218, %v4535
    %v4537 = vpop.f32.mrf.mxu0
    %4538 = vdwg.mxu0
    %v4541 = vunpack.c.l.s4 1966171168
    %v4542 = vunpack.c.0.s8 %v4541
    %v4543 = vlaneseq
    %v4544 = vshrl.u32 %v4543, 7
    %v4545 = vsub.s32 %v4542, %v4544
    %v4546 = vrot.slane %v4536, %v4545
    %v4547 = vcombine.high %v4546, %v4546
    %v4549 = vunpack.c.l.s4 1966171168
    %v4550 = vunpack.c.0.s8 %v4549
    %v4551 = vlaneseq
    %v4552 = vshrl.u32 %v4551, 7
    %v4553 = vsub.s32 %v4550, %v4552
    %v4554 = vrot.slane %v4546, %v4553
    %v4556 = vunpack.c.l.s4 1966171168
    %v4557 = vunpack.c.0.s8 %v4556
    %v4558 = vlaneseq
    %v4559 = vshrl.u32 %v4558, 7
    %v4560 = vsub.s32 %v4557, %v4559
    %v4561 = vrot.slane %v4547, %v4560
    %v4562 = vlaneseq
    %v4563 = vshrl.u32 %v4562, 7
    %v4564 = vsub.s32 0, %v4563
    %v4565 = vrot.slane %v4554, %v4564
    %v4566 = vlaneseq
    %v4567 = vshrl.u32 %v4566, 7
    %v4568 = vsub.s32 0, %v4567
    %v4569 = vrot.slane %v4561, %v4568
    %v4572 = vadd.f32 %v4565, %v1619
    %v4573 = vadd.f32 %v4569, %v1622
    %v4574 = vtanh.pop %v4572
    %v4575 = vtanh.pop %v4573
    %v4576 = vmul.f32 %v4574, %v232
    %v4577 = vmul.f32 %v4575, %v232
    %v4578 = vsel %vm385, %v4576, 0.0
    %4579 = vadd.xlane.f32.xlu0 %v4578
    %v4580 = vpop.xlane.xlu0 %4579
    %v4581 = vsel %vm385, %v4577, 0.0
    %4582 = vadd.xlane.f32.xlu0 %v4581
    %v4583 = vpop.xlane.xlu0 %4582
    %vm4584 = vcmp.gt.f32.partialorder %v4304, 0.5
    %v4587 = vlaneseq
    %v4588 = vshrl.u32 %v4587, 7
    %v4589 = vsub.s32 %v1626, %v4588
    %v4590 = vrot.slane %v4580, %v4589
    %v4591 = vlaneseq
    %v4592 = vshrl.u32 %v4591, 7
    %v4593 = vsub.s32 %v1626, %v4592
    %v4594 = vrot.slane %v4583, %v4593
    %v4595 = vsel %vm525, %v4594, %v4590
    %v4597 = vsel %vm4584, -inf, %v4595
    %v4598 = vsel %vm1870, %v4597, -inf
    %4599 = vmax.xlane.f32.xlu0 %v4598
    %v4600 = vpop.xlane.xlu0 %4599
    %v4601 = vsub.f32 %v4597, %v4600
    %v4602 = vmul.f32 %v4601, 1.442695
    %v4603 = vpow.pop %v4602
    %v4604 = vsel %vm1870, %v4603, 0.0
    %4605 = vadd.xlane.f32.xlu0 %v4604
    %v4606 = vpop.xlane.xlu0 %4605
    %v4607 = vrcp.pop %v4606
    %v4608 = vmul.f32 %v4603, %v4607
    %v4609 = vlaneseq
    %v4610 = vshrl.u32 %v4609, 7
    %v4611 = vsub.s32 0, %v4610
    %v4612 = vrot.slane %v4608, %v4611
    %4614 = vbcast.lane.b32.xlu0 %v4612, 256
    %v4615 = vpop.permute.xlu0 %4614
    %v4616 = vlaneseq
    %v4617 = vshrl.u32 %v4616, 7
    %v4618 = vsub.s32 1, %v4617
    %v4619 = vrot.slane %v4608, %v4618
    %4621 = vbcast.lane.b32.xlu0 %v4619, 256
    %v4622 = vpop.permute.xlu0 %4621
    %v4623 = vmul.f32 %v1619, %v4615
    %v4624 = vmul.f32 %v1622, %v4622
    %v4625 = vsel %vm385, %v4623, 0.0
    %v4626 = vrot.slane %v4625, 4
    %v4627 = vadd.f32 %v4625, %v4626
    %v4628 = vrot.slane %v4627, 2
    %v4629 = vadd.f32 %v4627, %v4628
    %v4630 = vrot.slane %v4629, 1
    %v4631 = vadd.f32 %v4629, %v4630
    %v4632 = vsel %vm385, %v4624, 0.0
    %v4633 = vrot.slane %v4632, 4
    %v4634 = vadd.f32 %v4632, %v4633
    %v4635 = vrot.slane %v4634, 2
    %v4636 = vadd.f32 %v4634, %v4635
    %v4637 = vrot.slane %v4636, 1
    %v4638 = vadd.f32 %v4636, %v4637
    %v4641 = vsel %vm525, %v4638, %v4631
    %v4642 = vsel %vm385, %v4641, 0
    %4644 = vmatprep.subr.mxu0 0.0
    %4645 = vmatpush1.msra.mxu0 0.0
    %4646 = vmatprep.subr.mxu0 0.0
    %4647 = vmatpush1.msra.mxu0 0.0
    %4648 = vmatprep.subr.mxu0 0.0
    %4649 = vmatpush1.msra.mxu0 0.0
    %4650 = vmatprep.subr.mxu0 0.0
    %4651 = vmatpush1.msra.mxu0 0.0
    %4652 = vmatprep.subr.mxu0 0.0
    %4653 = vmatpush1.msra.mxu0 0.0
    %4654 = vmatprep.subr.mxu0 0.0
    %4655 = vmatpush1.msra.mxu0 0.0
    %4656 = vmatprep.subr.mxu0 0.0
    %4657 = vmatpush1.msra.mxu0 0.0
    %4658 = vmatprep.subr.mxu0 0.0
    %4659 = vmatpush1.msra.mxu0 0.0
    %4660 = vmatprep.subr.mxu0 0.0
    %4661 = vmatpush1.msra.mxu0 0.0
    %4662 = vmatprep.subr.mxu0 0.0
    %4663 = vmatpush1.msra.mxu0 0.0
    %4664 = vmatprep.subr.mxu0 0.0
    %4665 = vmatpush1.msra.mxu0 0.0
    %4666 = vmatprep.subr.mxu0 0.0
    %4667 = vmatpush1.msra.mxu0 0.0
    %4668 = vmatprep.subr.mxu0 0.0
    %4669 = vmatpush1.msra.mxu0 %v212
    %4670 = vmatprep.subr.mxu0 0.0
    %4671 = vmatpush1.msra.mxu0 %v211
    %4672 = vmatprep.subr.mxu0 0.0
    %4673 = vmatpush1.msra.mxu0 %v210
    %4674 = vmatprep.subr.mxu0 0.0
    %4675 = vmatpush1.msra.mxu0 %v209
    %4676 = vmatprep.subr.mxu0 0.0
    %4677 = vmatpush2.msra.mxu0 0.0
    %4678 = vmatprep.subr.mxu0 0.0
    %4679 = vmatpush2.msra.mxu0 0.0
    %4680 = vmatprep.subr.mxu0 0.0
    %4681 = vmatpush2.msra.mxu0 0.0
    %4682 = vmatprep.subr.mxu0 0.0
    %4683 = vmatpush2.msra.mxu0 0.0
    %4684 = vmatprep.subr.mxu0 0.0
    %4685 = vmatpush2.msra.mxu0 0.0
    %4686 = vmatprep.subr.mxu0 0.0
    %4687 = vmatpush2.msra.mxu0 0.0
    %4688 = vmatprep.subr.mxu0 0.0
    %4689 = vmatpush2.msra.mxu0 0.0
    %4690 = vmatprep.subr.mxu0 0.0
    %4691 = vmatpush2.msra.mxu0 0.0
    %4692 = vmatprep.subr.mxu0 0.0
    %4693 = vmatpush2.msra.mxu0 0.0
    %4694 = vmatprep.subr.mxu0 0.0
    %4695 = vmatpush2.msra.mxu0 0.0
    %4696 = vmatprep.subr.mxu0 0.0
    %4697 = vmatpush2.msra.mxu0 0.0
    %4698 = vmatprep.subr.mxu0 0.0
    %4699 = vmatpush2.msra.mxu0 0.0
    %4700 = vmatprep.subr.mxu0 0.0
    %4701 = vmatpush2.msra.mxu0 0.0
    %4702 = vmatprep.subr.mxu0 0.0
    %4703 = vmatpush2.msra.mxu0 0.0
    %4704 = vmatprep.subr.mxu0 0.0
    %4705 = vmatpush2.msra.mxu0 0.0
    %4706 = vmatprep.subr.mxu0 0.0
    %4707 = vmatpush2.msra.mxu0 0.0
    %4708 = vmatprep.mubr.f32.mxu0 0.0
    %4709 = vmatmul.mubr.f32.gmra.mxu0 %v4642
    %v4710 = vpop.f32.mrf.mxu0
    %v4711 = vadd.f32 %v225, %v4710
    %v4712 = vpop.f32.mrf.mxu0
    %4713 = vdwg.mxu0
    %v4716 = vunpack.c.l.s4 1966171168
    %v4717 = vunpack.c.0.s8 %v4716
    %v4718 = vlaneseq
    %v4719 = vshrl.u32 %v4718, 7
    %v4720 = vsub.s32 %v4717, %v4719
    %v4721 = vrot.slane %v4711, %v4720
    %v4722 = vcombine.high %v4721, %v4721
    %v4724 = vunpack.c.l.s4 1966171168
    %v4725 = vunpack.c.0.s8 %v4724
    %v4726 = vlaneseq
    %v4727 = vshrl.u32 %v4726, 7
    %v4728 = vsub.s32 %v4725, %v4727
    %v4729 = vrot.slane %v4721, %v4728
    %v4731 = vunpack.c.l.s4 1966171168
    %v4732 = vunpack.c.0.s8 %v4731
    %v4733 = vlaneseq
    %v4734 = vshrl.u32 %v4733, 7
    %v4735 = vsub.s32 %v4732, %v4734
    %v4736 = vrot.slane %v4722, %v4735
    %v4737 = vlaneseq
    %v4738 = vshrl.u32 %v4737, 7
    %v4739 = vsub.s32 0, %v4738
    %v4740 = vrot.slane %v4729, %v4739
    %v4741 = vlaneseq
    %v4742 = vshrl.u32 %v4741, 7
    %v4743 = vsub.s32 0, %v4742
    %v4744 = vrot.slane %v4736, %v4743
    %v4747 = vadd.f32 %v4740, %v2064
    %v4748 = vadd.f32 %v4744, %v2066
    %v4749 = vtanh.pop %v4747
    %v4750 = vtanh.pop %v4748
    %v4751 = vmul.f32 %v4749, %v239
    %v4752 = vmul.f32 %v4750, %v239
    %v4753 = vsel %vm385, %v4751, 0.0
    %4754 = vadd.xlane.f32.xlu0 %v4753
    %v4755 = vpop.xlane.xlu0 %4754
    %v4756 = vsel %vm385, %v4752, 0.0
    %4757 = vadd.xlane.f32.xlu0 %v4756
    %v4758 = vpop.xlane.xlu0 %4757
    %v4759 = vtanh.pop %v4755
    %v4760 = vtanh.pop %v4758
    %v4761 = vmul.f32 %v4759, 10.0
    %v4762 = vmul.f32 %v4760, 10.0
    %v4765 = vlaneseq
    %v4766 = vshrl.u32 %v4765, 7
    %v4767 = vsub.s32 %v1626, %v4766
    %v4768 = vrot.slane %v4761, %v4767
    %v4769 = vlaneseq
    %v4770 = vshrl.u32 %v4769, 7
    %v4771 = vsub.s32 %v1626, %v4770
    %v4772 = vrot.slane %v4762, %v4771
    %v4773 = vsel %vm525, %v4772, %v4768
    %v4775 = vsel %vm4584, -inf, %v4773
    %v4776 = vsel %vm1870, %v4775, -inf
    %4777 = vmax.xlane.f32.xlu0 %v4776
    %v4778 = vpop.xlane.xlu0 %4777
    %v4779 = vsub.f32 %v4775, %v4778
    %v4780 = vmul.f32 %v4779, 1.442695
    %v4781 = vpow.pop %v4780
    %v4782 = vsel %vm1870, %v4781, 0.0
    %4783 = vadd.xlane.f32.xlu0 %v4782
    %v4784 = vpop.xlane.xlu0 %4783
    %v4785 = vrcp.pop %v4784
    %v4786 = vmul.f32 %v4781, %v4785
    %s4787 = scalar_lea.vmem [#allocation3], 10
    %v4788 = vld [vmem:[%s4787] sm:$0x3]
    %v4789 = vadd.f32 %v4775, %v4788
    %v4790 = vsel %vm1870, %v4789, -inf
    %4791 = vmax.xlane.f32.xlu0 %v4790
    %v4792 = vpop.xlane.xlu0 %4791
    %vm4793 = vcmp.ge.f32.partialorder %v4789, %v4792
    %v4794 = vsel %vm4793, %v1626, 8
    %v4795 = vsel %vm1870, %v4794, 2147483647
    %v4796 = vand.u32 %v4795, 65535
    %v4797 = vshra.s32 %v4795, 16
    %v4798 = vcvt.s32.f32 %v4796
    %v4799 = vcvt.s32.f32 %v4797
    %4800 = vmin.xlane.f32.xlu0 %v4799
    %v4801 = vpop.xlane.xlu0 %4800
    %vm4802 = vcmp.eq.f32.partialorder %v4799, %v4801
    %v4803 = vsel %vm4802, %v4798, inf
    %4804 = vmin.xlane.f32.xlu0 %v4803
    %v4805 = vpop.xlane.xlu0 %4804
    %v4806 = vcvt.f32.s32 %v4805
    %v4807 = vcvt.f32.s32 %v4801
    %v4808 = vshll.u32 %v4807, 16
    %v4809 = vadd.s32 %v4808, %v4806
    %vm4810 = vcmp.eq.s32.totalorder %v1626, %v4809
    %v4811 = vsel %vm4810, 1, 0
    %v4812 = vcvt.s32.f32 %v4811
    %v4813 = vmax.f32 %v4304, %v4812
    %v4814 = vlaneseq
    %v4815 = vshrl.u32 %v4814, 7
    %v4816 = vsub.s32 0, %v4815
    %v4817 = vrot.slane %v4812, %v4816
    %4819 = vbcast.lane.b32.xlu0 %v4817, 256
    %v4820 = vpop.permute.xlu0 %4819
    %v4821 = vlaneseq
    %v4822 = vshrl.u32 %v4821, 7
    %v4823 = vsub.s32 1, %v4822
    %v4824 = vrot.slane %v4812, %v4823
    %4826 = vbcast.lane.b32.xlu0 %v4824, 256
    %v4827 = vpop.permute.xlu0 %4826
    %v4828 = vmul.f32 %v4820, %v301
    %v4829 = vmul.f32 %v4827, %v305
    %v4830 = vrot.slane %v4828, 4
    %v4831 = vadd.f32 %v4828, %v4830
    %v4832 = vrot.slane %v4831, 2
    %v4833 = vadd.f32 %v4831, %v4832
    %v4834 = vrot.slane %v4833, 1
    %v4835 = vadd.f32 %v4833, %v4834
    %v4836 = vrot.slane %v4829, 4
    %v4837 = vadd.f32 %v4829, %v4836
    %v4838 = vrot.slane %v4837, 2
    %v4839 = vadd.f32 %v4837, %v4838
    %v4840 = vrot.slane %v4839, 1
    %v4841 = vadd.f32 %v4839, %v4840
    %s4842 = scalar_lea.vmem [#allocation17], 10
    %4843 = vst.msk [vmem:[%s4842] sm:$0x3] %vm1870, %v4786
    %s4844 = scalar_lea.vmem %s17, 10
    %4845 = vst.msk [vmem:[%s4844] sm:$0x3] %vm2295, %v4809
    %4846 = vmatprep.subr.mxu0 0.0
    %4847 = vmatpush1.msra.mxu0 0.0
    %4848 = vmatprep.subr.mxu0 0.0
    %4849 = vmatpush1.msra.mxu0 0.0
    %4850 = vmatprep.subr.mxu0 0.0
    %4851 = vmatpush1.msra.mxu0 0.0
    %4852 = vmatprep.subr.mxu0 0.0
    %4853 = vmatpush1.msra.mxu0 0.0
    %4854 = vmatprep.subr.mxu0 0.0
    %4855 = vmatpush1.msra.mxu0 0.0
    %4856 = vmatprep.subr.mxu0 0.0
    %4857 = vmatpush1.msra.mxu0 0.0
    %4858 = vmatprep.subr.mxu0 0.0
    %4859 = vmatpush1.msra.mxu0 0.0
    %4860 = vmatprep.subr.mxu0 0.0
    %4861 = vmatpush1.msra.mxu0 0.0
    %4862 = vmatprep.subr.mxu0 0.0
    %4863 = vmatpush1.msra.mxu0 0.0
    %4864 = vmatprep.subr.mxu0 0.0
    %4865 = vmatpush1.msra.mxu0 0.0
    %4866 = vmatprep.subr.mxu0 0.0
    %4867 = vmatpush1.msra.mxu0 0.0
    %4868 = vmatprep.subr.mxu0 0.0
    %4869 = vmatpush1.msra.mxu0 0.0
    %4870 = vmatprep.subr.mxu0 0.0
    %4871 = vmatpush1.msra.mxu0 %v204
    %4872 = vmatprep.subr.mxu0 0.0
    %4873 = vmatpush1.msra.mxu0 %v203
    %4874 = vmatprep.subr.mxu0 0.0
    %4875 = vmatpush1.msra.mxu0 %v202
    %4876 = vmatprep.subr.mxu0 0.0
    %4877 = vmatpush1.msra.mxu0 %v201
    %4878 = vmatprep.subr.mxu0 0.0
    %4879 = vmatpush2.msra.mxu0 0.0
    %4880 = vmatprep.subr.mxu0 0.0
    %4881 = vmatpush2.msra.mxu0 0.0
    %4882 = vmatprep.subr.mxu0 0.0
    %4883 = vmatpush2.msra.mxu0 0.0
    %4884 = vmatprep.subr.mxu0 0.0
    %4885 = vmatpush2.msra.mxu0 0.0
    %4886 = vmatprep.subr.mxu0 0.0
    %4887 = vmatpush2.msra.mxu0 0.0
    %4888 = vmatprep.subr.mxu0 0.0
    %4889 = vmatpush2.msra.mxu0 0.0
    %4890 = vmatprep.subr.mxu0 0.0
    %4891 = vmatpush2.msra.mxu0 0.0
    %4892 = vmatprep.subr.mxu0 0.0
    %4893 = vmatpush2.msra.mxu0 0.0
    %4894 = vmatprep.subr.mxu0 0.0
    %4895 = vmatpush2.msra.mxu0 0.0
    %4896 = vmatprep.subr.mxu0 0.0
    %4897 = vmatpush2.msra.mxu0 0.0
    %4898 = vmatprep.subr.mxu0 0.0
    %4899 = vmatpush2.msra.mxu0 0.0
    %4900 = vmatprep.subr.mxu0 0.0
    %4901 = vmatpush2.msra.mxu0 0.0
    %4902 = vmatprep.subr.mxu0 0.0
    %4903 = vmatpush2.msra.mxu0 0.0
    %4904 = vmatprep.subr.mxu0 0.0
    %4905 = vmatpush2.msra.mxu0 0.0
    %4906 = vmatprep.subr.mxu0 0.0
    %4907 = vmatpush2.msra.mxu0 0.0
    %4908 = vmatprep.subr.mxu0 0.0
    %4909 = vmatpush2.msra.mxu0 0.0
    %4910 = vmatprep.mubr.f32.mxu0 0.0
    %4911 = vmatmul.mubr.f32.gmra.mxu0 %v4467
    %v4912 = vpop.f32.mrf.mxu0
    %v4913 = vadd.f32 0.0, %v4912
    %v4914 = vpop.f32.mrf.mxu0
    %4915 = vdwg.mxu0
    %v4917 = vrot.slane %v4913, 1
    %v4920 = vadd.f32 %v4835, %v4913
    %v4921 = vadd.f32 %v4841, %v4917
    %v4922 = vxor.u32 %v4920, 2147483648
    %v4923 = vxor.u32 %v4921, 2147483648
    %v4924 = vmul.f32 %v4922, 1.442695
    %v4925 = vpow.pop %v4924
    %v4926 = vmul.f32 %v4923, 1.442695
    %v4927 = vpow.pop %v4926
    %v4928 = vadd.f32 %v4925, 1.0
    %v4929 = vadd.f32 %v4927, 1.0
    %v4930 = vrcp.pop %v4928
    %v4931 = vmul.f32 1.0, %v4930
    %v4932 = vrcp.pop %v4929
    %v4933 = vmul.f32 1.0, %v4932
    %v4934 = vtanh.pop %v4920
    %v4935 = vtanh.pop %v4921
    %v4936 = vmul.f32 %v4931, %v4447
    %v4937 = vmul.f32 %v4933, %v4448
    %4940 = vrot.lane.b32.xlu0 %v4934, 64
    %v4941 = vpop.permute.xlu0 %4940
    %4942 = vrot.lane.b32.xlu0 %v4935, 64
    %v4943 = vpop.permute.xlu0 %4942
    %v4946 = vmul.f32 %v4931, %v4941
    %v4947 = vmul.f32 %v4933, %v4943
    %4950 = vrot.lane.b32.xlu0 %v4946, 32
    %v4951 = vpop.permute.xlu0 %4950
    %4952 = vrot.lane.b32.xlu0 %v4947, 32
    %v4953 = vpop.permute.xlu0 %4952
    %v4956 = vadd.f32 %v4936, %v4951
    %v4957 = vadd.f32 %v4937, %v4953
    %v4958 = vtanh.pop %v4956
    %v4959 = vtanh.pop %v4957
    %4962 = vrot.lane.b32.xlu0 %v4958, 64
    %v4963 = vpop.permute.xlu0 %4962
    %4964 = vrot.lane.b32.xlu0 %v4959, 64
    %v4965 = vpop.permute.xlu0 %4964
    %v4968 = vmul.f32 %v4931, %v4963
    %v4969 = vmul.f32 %v4933, %v4965
    %v4972 = vrot.slane %v4969, 7
    %v4973 = vsel %vm525, %v4972, %v4968
    %4974 = vrot.lane.b32.xlu0 %v4973, 32
    %v4975 = vpop.permute.xlu0 %4974
    %v4976 = vsel %vm385, %v4975, 0
    %4978 = vmatprep.subr.mxu0 0.0
    %4979 = vmatpush1.msra.mxu0 0.0
    %4980 = vmatprep.subr.mxu0 0.0
    %4981 = vmatpush1.msra.mxu0 0.0
    %4982 = vmatprep.subr.mxu0 0.0
    %4983 = vmatpush1.msra.mxu0 0.0
    %4984 = vmatprep.subr.mxu0 0.0
    %4985 = vmatpush1.msra.mxu0 0.0
    %4986 = vmatprep.subr.mxu0 0.0
    %4987 = vmatpush1.msra.mxu0 0.0
    %4988 = vmatprep.subr.mxu0 0.0
    %4989 = vmatpush1.msra.mxu0 0.0
    %4990 = vmatprep.subr.mxu0 0.0
    %4991 = vmatpush1.msra.mxu0 0.0
    %4992 = vmatprep.subr.mxu0 0.0
    %4993 = vmatpush1.msra.mxu0 0.0
    %4994 = vmatprep.subr.mxu0 0.0
    %4995 = vmatpush1.msra.mxu0 0.0
    %4996 = vmatprep.subr.mxu0 0.0
    %4997 = vmatpush1.msra.mxu0 0.0
    %4998 = vmatprep.subr.mxu0 0.0
    %4999 = vmatpush1.msra.mxu0 0.0
    %5000 = vmatprep.subr.mxu0 0.0
    %5001 = vmatpush1.msra.mxu0 0.0
    %5002 = vmatprep.subr.mxu0 0.0
    %5003 = vmatpush1.msra.mxu0 %v208
    %5004 = vmatprep.subr.mxu0 0.0
    %5005 = vmatpush1.msra.mxu0 %v207
    %5006 = vmatprep.subr.mxu0 0.0
    %5007 = vmatpush1.msra.mxu0 %v206
    %5008 = vmatprep.subr.mxu0 0.0
    %5009 = vmatpush1.msra.mxu0 %v205
    %5010 = vmatprep.subr.mxu0 0.0
    %5011 = vmatpush2.msra.mxu0 0.0
    %5012 = vmatprep.subr.mxu0 0.0
    %5013 = vmatpush2.msra.mxu0 0.0
    %5014 = vmatprep.subr.mxu0 0.0
    %5015 = vmatpush2.msra.mxu0 0.0
    %5016 = vmatprep.subr.mxu0 0.0
    %5017 = vmatpush2.msra.mxu0 0.0
    %5018 = vmatprep.subr.mxu0 0.0
    %5019 = vmatpush2.msra.mxu0 0.0
    %5020 = vmatprep.subr.mxu0 0.0
    %5021 = vmatpush2.msra.mxu0 0.0
    %5022 = vmatprep.subr.mxu0 0.0
    %5023 = vmatpush2.msra.mxu0 0.0
    %5024 = vmatprep.subr.mxu0 0.0
    %5025 = vmatpush2.msra.mxu0 0.0
    %5026 = vmatprep.subr.mxu0 0.0
    %5027 = vmatpush2.msra.mxu0 0.0
    %5028 = vmatprep.subr.mxu0 0.0
    %5029 = vmatpush2.msra.mxu0 0.0
    %5030 = vmatprep.subr.mxu0 0.0
    %5031 = vmatpush2.msra.mxu0 0.0
    %5032 = vmatprep.subr.mxu0 0.0
    %5033 = vmatpush2.msra.mxu0 0.0
    %5034 = vmatprep.subr.mxu0 0.0
    %5035 = vmatpush2.msra.mxu0 0.0
    %5036 = vmatprep.subr.mxu0 0.0
    %5037 = vmatpush2.msra.mxu0 0.0
    %5038 = vmatprep.subr.mxu0 0.0
    %5039 = vmatpush2.msra.mxu0 0.0
    %5040 = vmatprep.subr.mxu0 0.0
    %5041 = vmatpush2.msra.mxu0 0.0
    %5042 = vmatprep.mubr.f32.mxu0 0.0
    %5043 = vmatmul.mubr.f32.gmra.mxu0 %v4976
    %v5044 = vpop.f32.mrf.mxu0
    %v5045 = vadd.f32 %v218, %v5044
    %v5046 = vpop.f32.mrf.mxu0
    %5047 = vdwg.mxu0
    %v5050 = vunpack.c.l.s4 1966171168
    %v5051 = vunpack.c.0.s8 %v5050
    %v5052 = vlaneseq
    %v5053 = vshrl.u32 %v5052, 7
    %v5054 = vsub.s32 %v5051, %v5053
    %v5055 = vrot.slane %v5045, %v5054
    %v5056 = vcombine.high %v5055, %v5055
    %v5058 = vunpack.c.l.s4 1966171168
    %v5059 = vunpack.c.0.s8 %v5058
    %v5060 = vlaneseq
    %v5061 = vshrl.u32 %v5060, 7
    %v5062 = vsub.s32 %v5059, %v5061
    %v5063 = vrot.slane %v5055, %v5062
    %v5065 = vunpack.c.l.s4 1966171168
    %v5066 = vunpack.c.0.s8 %v5065
    %v5067 = vlaneseq
    %v5068 = vshrl.u32 %v5067, 7
    %v5069 = vsub.s32 %v5066, %v5068
    %v5070 = vrot.slane %v5056, %v5069
    %v5071 = vlaneseq
    %v5072 = vshrl.u32 %v5071, 7
    %v5073 = vsub.s32 0, %v5072
    %v5074 = vrot.slane %v5063, %v5073
    %v5075 = vlaneseq
    %v5076 = vshrl.u32 %v5075, 7
    %v5077 = vsub.s32 0, %v5076
    %v5078 = vrot.slane %v5070, %v5077
    %v5081 = vadd.f32 %v5074, %v1619
    %v5082 = vadd.f32 %v5078, %v1622
    %v5083 = vtanh.pop %v5081
    %v5084 = vtanh.pop %v5082
    %v5085 = vmul.f32 %v5083, %v232
    %v5086 = vmul.f32 %v5084, %v232
    %v5087 = vsel %vm385, %v5085, 0.0
    %5088 = vadd.xlane.f32.xlu0 %v5087
    %v5089 = vpop.xlane.xlu0 %5088
    %v5090 = vsel %vm385, %v5086, 0.0
    %5091 = vadd.xlane.f32.xlu0 %v5090
    %v5092 = vpop.xlane.xlu0 %5091
    %vm5093 = vcmp.gt.f32.partialorder %v4813, 0.5
    %v5096 = vlaneseq
    %v5097 = vshrl.u32 %v5096, 7
    %v5098 = vsub.s32 %v1626, %v5097
    %v5099 = vrot.slane %v5089, %v5098
    %v5100 = vlaneseq
    %v5101 = vshrl.u32 %v5100, 7
    %v5102 = vsub.s32 %v1626, %v5101
    %v5103 = vrot.slane %v5092, %v5102
    %v5104 = vsel %vm525, %v5103, %v5099
    %v5106 = vsel %vm5093, -inf, %v5104
    %v5107 = vsel %vm1870, %v5106, -inf
    %5108 = vmax.xlane.f32.xlu0 %v5107
    %v5109 = vpop.xlane.xlu0 %5108
    %v5110 = vsub.f32 %v5106, %v5109
    %v5111 = vmul.f32 %v5110, 1.442695
    %v5112 = vpow.pop %v5111
    %v5113 = vsel %vm1870, %v5112, 0.0
    %5114 = vadd.xlane.f32.xlu0 %v5113
    %v5115 = vpop.xlane.xlu0 %5114
    %v5116 = vrcp.pop %v5115
    %v5117 = vmul.f32 %v5112, %v5116
    %v5118 = vlaneseq
    %v5119 = vshrl.u32 %v5118, 7
    %v5120 = vsub.s32 0, %v5119
    %v5121 = vrot.slane %v5117, %v5120
    %5123 = vbcast.lane.b32.xlu0 %v5121, 256
    %v5124 = vpop.permute.xlu0 %5123
    %v5125 = vlaneseq
    %v5126 = vshrl.u32 %v5125, 7
    %v5127 = vsub.s32 1, %v5126
    %v5128 = vrot.slane %v5117, %v5127
    %5130 = vbcast.lane.b32.xlu0 %v5128, 256
    %v5131 = vpop.permute.xlu0 %5130
    %v5132 = vmul.f32 %v1619, %v5124
    %v5133 = vmul.f32 %v1622, %v5131
    %v5134 = vsel %vm385, %v5132, 0.0
    %v5135 = vrot.slane %v5134, 4
    %v5136 = vadd.f32 %v5134, %v5135
    %v5137 = vrot.slane %v5136, 2
    %v5138 = vadd.f32 %v5136, %v5137
    %v5139 = vrot.slane %v5138, 1
    %v5140 = vadd.f32 %v5138, %v5139
    %v5141 = vsel %vm385, %v5133, 0.0
    %v5142 = vrot.slane %v5141, 4
    %v5143 = vadd.f32 %v5141, %v5142
    %v5144 = vrot.slane %v5143, 2
    %v5145 = vadd.f32 %v5143, %v5144
    %v5146 = vrot.slane %v5145, 1
    %v5147 = vadd.f32 %v5145, %v5146
    %v5150 = vsel %vm525, %v5147, %v5140
    %v5151 = vsel %vm385, %v5150, 0
    %5153 = vmatprep.subr.mxu0 0.0
    %5154 = vmatpush1.msra.mxu0 0.0
    %5155 = vmatprep.subr.mxu0 0.0
    %5156 = vmatpush1.msra.mxu0 0.0
    %5157 = vmatprep.subr.mxu0 0.0
    %5158 = vmatpush1.msra.mxu0 0.0
    %5159 = vmatprep.subr.mxu0 0.0
    %5160 = vmatpush1.msra.mxu0 0.0
    %5161 = vmatprep.subr.mxu0 0.0
    %5162 = vmatpush1.msra.mxu0 0.0
    %5163 = vmatprep.subr.mxu0 0.0
    %5164 = vmatpush1.msra.mxu0 0.0
    %5165 = vmatprep.subr.mxu0 0.0
    %5166 = vmatpush1.msra.mxu0 0.0
    %5167 = vmatprep.subr.mxu0 0.0
    %5168 = vmatpush1.msra.mxu0 0.0
    %5169 = vmatprep.subr.mxu0 0.0
    %5170 = vmatpush1.msra.mxu0 0.0
    %5171 = vmatprep.subr.mxu0 0.0
    %5172 = vmatpush1.msra.mxu0 0.0
    %5173 = vmatprep.subr.mxu0 0.0
    %5174 = vmatpush1.msra.mxu0 0.0
    %5175 = vmatprep.subr.mxu0 0.0
    %5176 = vmatpush1.msra.mxu0 0.0
    %5177 = vmatprep.subr.mxu0 0.0
    %5178 = vmatpush1.msra.mxu0 %v212
    %5179 = vmatprep.subr.mxu0 0.0
    %5180 = vmatpush1.msra.mxu0 %v211
    %5181 = vmatprep.subr.mxu0 0.0
    %5182 = vmatpush1.msra.mxu0 %v210
    %5183 = vmatprep.subr.mxu0 0.0
    %5184 = vmatpush1.msra.mxu0 %v209
    %5185 = vmatprep.subr.mxu0 0.0
    %5186 = vmatpush2.msra.mxu0 0.0
    %5187 = vmatprep.subr.mxu0 0.0
    %5188 = vmatpush2.msra.mxu0 0.0
    %5189 = vmatprep.subr.mxu0 0.0
    %5190 = vmatpush2.msra.mxu0 0.0
    %5191 = vmatprep.subr.mxu0 0.0
    %5192 = vmatpush2.msra.mxu0 0.0
    %5193 = vmatprep.subr.mxu0 0.0
    %5194 = vmatpush2.msra.mxu0 0.0
    %5195 = vmatprep.subr.mxu0 0.0
    %5196 = vmatpush2.msra.mxu0 0.0
    %5197 = vmatprep.subr.mxu0 0.0
    %5198 = vmatpush2.msra.mxu0 0.0
    %5199 = vmatprep.subr.mxu0 0.0
    %5200 = vmatpush2.msra.mxu0 0.0
    %5201 = vmatprep.subr.mxu0 0.0
    %5202 = vmatpush2.msra.mxu0 0.0
    %5203 = vmatprep.subr.mxu0 0.0
    %5204 = vmatpush2.msra.mxu0 0.0
    %5205 = vmatprep.subr.mxu0 0.0
    %5206 = vmatpush2.msra.mxu0 0.0
    %5207 = vmatprep.subr.mxu0 0.0
    %5208 = vmatpush2.msra.mxu0 0.0
    %5209 = vmatprep.subr.mxu0 0.0
    %5210 = vmatpush2.msra.mxu0 0.0
    %5211 = vmatprep.subr.mxu0 0.0
    %5212 = vmatpush2.msra.mxu0 0.0
    %5213 = vmatprep.subr.mxu0 0.0
    %5214 = vmatpush2.msra.mxu0 0.0
    %5215 = vmatprep.subr.mxu0 0.0
    %5216 = vmatpush2.msra.mxu0 0.0
    %5217 = vmatprep.mubr.f32.mxu0 0.0
    %5218 = vmatmul.mubr.f32.gmra.mxu0 %v5151
    %v5219 = vpop.f32.mrf.mxu0
    %v5220 = vadd.f32 %v225, %v5219
    %v5221 = vpop.f32.mrf.mxu0
    %5222 = vdwg.mxu0
    %v5225 = vunpack.c.l.s4 1966171168
    %v5226 = vunpack.c.0.s8 %v5225
    %v5227 = vlaneseq
    %v5228 = vshrl.u32 %v5227, 7
    %v5229 = vsub.s32 %v5226, %v5228
    %v5230 = vrot.slane %v5220, %v5229
    %v5231 = vcombine.high %v5230, %v5230
    %v5233 = vunpack.c.l.s4 1966171168
    %v5234 = vunpack.c.0.s8 %v5233
    %v5235 = vlaneseq
    %v5236 = vshrl.u32 %v5235, 7
    %v5237 = vsub.s32 %v5234, %v5236
    %v5238 = vrot.slane %v5230, %v5237
    %v5240 = vunpack.c.l.s4 1966171168
    %v5241 = vunpack.c.0.s8 %v5240
    %v5242 = vlaneseq
    %v5243 = vshrl.u32 %v5242, 7
    %v5244 = vsub.s32 %v5241, %v5243
    %v5245 = vrot.slane %v5231, %v5244
    %v5246 = vlaneseq
    %v5247 = vshrl.u32 %v5246, 7
    %v5248 = vsub.s32 0, %v5247
    %v5249 = vrot.slane %v5238, %v5248
    %v5250 = vlaneseq
    %v5251 = vshrl.u32 %v5250, 7
    %v5252 = vsub.s32 0, %v5251
    %v5253 = vrot.slane %v5245, %v5252
    %v5256 = vadd.f32 %v5249, %v2064
    %v5257 = vadd.f32 %v5253, %v2066
    %v5258 = vtanh.pop %v5256
    %v5259 = vtanh.pop %v5257
    %v5260 = vmul.f32 %v5258, %v239
    %v5261 = vmul.f32 %v5259, %v239
    %v5262 = vsel %vm385, %v5260, 0.0
    %5263 = vadd.xlane.f32.xlu0 %v5262
    %v5264 = vpop.xlane.xlu0 %5263
    %v5265 = vsel %vm385, %v5261, 0.0
    %5266 = vadd.xlane.f32.xlu0 %v5265
    %v5267 = vpop.xlane.xlu0 %5266
    %v5268 = vtanh.pop %v5264
    %v5269 = vtanh.pop %v5267
    %v5270 = vmul.f32 %v5268, 10.0
    %v5271 = vmul.f32 %v5269, 10.0
    %v5274 = vlaneseq
    %v5275 = vshrl.u32 %v5274, 7
    %v5276 = vsub.s32 %v1626, %v5275
    %v5277 = vrot.slane %v5270, %v5276
    %v5278 = vlaneseq
    %v5279 = vshrl.u32 %v5278, 7
    %v5280 = vsub.s32 %v1626, %v5279
    %v5281 = vrot.slane %v5271, %v5280
    %v5282 = vsel %vm525, %v5281, %v5277
    %v5284 = vsel %vm5093, -inf, %v5282
    %v5285 = vsel %vm1870, %v5284, -inf
    %5286 = vmax.xlane.f32.xlu0 %v5285
    %v5287 = vpop.xlane.xlu0 %5286
    %v5288 = vsub.f32 %v5284, %v5287
    %v5289 = vmul.f32 %v5288, 1.442695
    %v5290 = vpow.pop %v5289
    %v5291 = vsel %vm1870, %v5290, 0.0
    %5292 = vadd.xlane.f32.xlu0 %v5291
    %v5293 = vpop.xlane.xlu0 %5292
    %v5294 = vrcp.pop %v5293
    %v5295 = vmul.f32 %v5290, %v5294
    %s5296 = scalar_lea.vmem [#allocation3], 12
    %v5297 = vld [vmem:[%s5296] sm:$0x3]
    %v5298 = vadd.f32 %v5284, %v5297
    %v5299 = vsel %vm1870, %v5298, -inf
    %5300 = vmax.xlane.f32.xlu0 %v5299
    %v5301 = vpop.xlane.xlu0 %5300
    %vm5302 = vcmp.ge.f32.partialorder %v5298, %v5301
    %v5303 = vsel %vm5302, %v1626, 8
    %v5304 = vsel %vm1870, %v5303, 2147483647
    %v5305 = vand.u32 %v5304, 65535
    %v5306 = vshra.s32 %v5304, 16
    %v5307 = vcvt.s32.f32 %v5305
    %v5308 = vcvt.s32.f32 %v5306
    %5309 = vmin.xlane.f32.xlu0 %v5308
    %v5310 = vpop.xlane.xlu0 %5309
    %vm5311 = vcmp.eq.f32.partialorder %v5308, %v5310
    %v5312 = vsel %vm5311, %v5307, inf
    %5313 = vmin.xlane.f32.xlu0 %v5312
    %v5314 = vpop.xlane.xlu0 %5313
    %v5315 = vcvt.f32.s32 %v5314
    %v5316 = vcvt.f32.s32 %v5310
    %v5317 = vshll.u32 %v5316, 16
    %v5318 = vadd.s32 %v5317, %v5315
    %vm5319 = vcmp.eq.s32.totalorder %v1626, %v5318
    %v5320 = vsel %vm5319, 1, 0
    %v5321 = vcvt.s32.f32 %v5320
    %v5322 = vmax.f32 %v4813, %v5321
    %v5323 = vlaneseq
    %v5324 = vshrl.u32 %v5323, 7
    %v5325 = vsub.s32 0, %v5324
    %v5326 = vrot.slane %v5321, %v5325
    %5328 = vbcast.lane.b32.xlu0 %v5326, 256
    %v5329 = vpop.permute.xlu0 %5328
    %v5330 = vlaneseq
    %v5331 = vshrl.u32 %v5330, 7
    %v5332 = vsub.s32 1, %v5331
    %v5333 = vrot.slane %v5321, %v5332
    %5335 = vbcast.lane.b32.xlu0 %v5333, 256
    %v5336 = vpop.permute.xlu0 %5335
    %v5337 = vmul.f32 %v5329, %v301
    %v5338 = vmul.f32 %v5336, %v305
    %v5339 = vrot.slane %v5337, 4
    %v5340 = vadd.f32 %v5337, %v5339
    %v5341 = vrot.slane %v5340, 2
    %v5342 = vadd.f32 %v5340, %v5341
    %v5343 = vrot.slane %v5342, 1
    %v5344 = vadd.f32 %v5342, %v5343
    %v5345 = vrot.slane %v5338, 4
    %v5346 = vadd.f32 %v5338, %v5345
    %v5347 = vrot.slane %v5346, 2
    %v5348 = vadd.f32 %v5346, %v5347
    %v5349 = vrot.slane %v5348, 1
    %v5350 = vadd.f32 %v5348, %v5349
    %s5351 = scalar_lea.vmem [#allocation17], 12
    %5352 = vst.msk [vmem:[%s5351] sm:$0x3] %vm1870, %v5295
    %s5353 = scalar_lea.vmem %s17, 12
    %5354 = vst.msk [vmem:[%s5353] sm:$0x3] %vm2295, %v5318
    %5355 = vmatprep.subr.mxu0 0.0
    %5356 = vmatpush1.msra.mxu0 0.0
    %5357 = vmatprep.subr.mxu0 0.0
    %5358 = vmatpush1.msra.mxu0 0.0
    %5359 = vmatprep.subr.mxu0 0.0
    %5360 = vmatpush1.msra.mxu0 0.0
    %5361 = vmatprep.subr.mxu0 0.0
    %5362 = vmatpush1.msra.mxu0 0.0
    %5363 = vmatprep.subr.mxu0 0.0
    %5364 = vmatpush1.msra.mxu0 0.0
    %5365 = vmatprep.subr.mxu0 0.0
    %5366 = vmatpush1.msra.mxu0 0.0
    %5367 = vmatprep.subr.mxu0 0.0
    %5368 = vmatpush1.msra.mxu0 0.0
    %5369 = vmatprep.subr.mxu0 0.0
    %5370 = vmatpush1.msra.mxu0 0.0
    %5371 = vmatprep.subr.mxu0 0.0
    %5372 = vmatpush1.msra.mxu0 0.0
    %5373 = vmatprep.subr.mxu0 0.0
    %5374 = vmatpush1.msra.mxu0 0.0
    %5375 = vmatprep.subr.mxu0 0.0
    %5376 = vmatpush1.msra.mxu0 0.0
    %5377 = vmatprep.subr.mxu0 0.0
    %5378 = vmatpush1.msra.mxu0 0.0
    %5379 = vmatprep.subr.mxu0 0.0
    %5380 = vmatpush1.msra.mxu0 %v204
    %5381 = vmatprep.subr.mxu0 0.0
    %5382 = vmatpush1.msra.mxu0 %v203
    %5383 = vmatprep.subr.mxu0 0.0
    %5384 = vmatpush1.msra.mxu0 %v202
    %5385 = vmatprep.subr.mxu0 0.0
    %5386 = vmatpush1.msra.mxu0 %v201
    %5387 = vmatprep.subr.mxu0 0.0
    %5388 = vmatpush2.msra.mxu0 0.0
    %5389 = vmatprep.subr.mxu0 0.0
    %5390 = vmatpush2.msra.mxu0 0.0
    %5391 = vmatprep.subr.mxu0 0.0
    %5392 = vmatpush2.msra.mxu0 0.0
    %5393 = vmatprep.subr.mxu0 0.0
    %5394 = vmatpush2.msra.mxu0 0.0
    %5395 = vmatprep.subr.mxu0 0.0
    %5396 = vmatpush2.msra.mxu0 0.0
    %5397 = vmatprep.subr.mxu0 0.0
    %5398 = vmatpush2.msra.mxu0 0.0
    %5399 = vmatprep.subr.mxu0 0.0
    %5400 = vmatpush2.msra.mxu0 0.0
    %5401 = vmatprep.subr.mxu0 0.0
    %5402 = vmatpush2.msra.mxu0 0.0
    %5403 = vmatprep.subr.mxu0 0.0
    %5404 = vmatpush2.msra.mxu0 0.0
    %5405 = vmatprep.subr.mxu0 0.0
    %5406 = vmatpush2.msra.mxu0 0.0
    %5407 = vmatprep.subr.mxu0 0.0
    %5408 = vmatpush2.msra.mxu0 0.0
    %5409 = vmatprep.subr.mxu0 0.0
    %5410 = vmatpush2.msra.mxu0 0.0
    %5411 = vmatprep.subr.mxu0 0.0
    %5412 = vmatpush2.msra.mxu0 0.0
    %5413 = vmatprep.subr.mxu0 0.0
    %5414 = vmatpush2.msra.mxu0 0.0
    %5415 = vmatprep.subr.mxu0 0.0
    %5416 = vmatpush2.msra.mxu0 0.0
    %5417 = vmatprep.subr.mxu0 0.0
    %5418 = vmatpush2.msra.mxu0 0.0
    %5419 = vmatprep.mubr.f32.mxu0 0.0
    %5420 = vmatmul.mubr.f32.gmra.mxu0 %v4976
    %v5421 = vpop.f32.mrf.mxu0
    %v5422 = vadd.f32 0.0, %v5421
    %v5423 = vpop.f32.mrf.mxu0
    %5424 = vdwg.mxu0
    %v5426 = vrot.slane %v5422, 1
    %v5429 = vadd.f32 %v5344, %v5422
    %v5430 = vadd.f32 %v5350, %v5426
    %v5431 = vxor.u32 %v5429, 2147483648
    %v5432 = vxor.u32 %v5430, 2147483648
    %v5433 = vmul.f32 %v5431, 1.442695
    %v5434 = vpow.pop %v5433
    %v5435 = vmul.f32 %v5432, 1.442695
    %v5436 = vpow.pop %v5435
    %v5437 = vadd.f32 %v5434, 1.0
    %v5438 = vadd.f32 %v5436, 1.0
    %v5439 = vrcp.pop %v5437
    %v5440 = vmul.f32 1.0, %v5439
    %v5441 = vrcp.pop %v5438
    %v5442 = vmul.f32 1.0, %v5441
    %v5443 = vtanh.pop %v5429
    %v5444 = vtanh.pop %v5430
    %v5445 = vmul.f32 %v5440, %v4956
    %v5446 = vmul.f32 %v5442, %v4957
    %5449 = vrot.lane.b32.xlu0 %v5443, 64
    %v5450 = vpop.permute.xlu0 %5449
    %5451 = vrot.lane.b32.xlu0 %v5444, 64
    %v5452 = vpop.permute.xlu0 %5451
    %v5455 = vmul.f32 %v5440, %v5450
    %v5456 = vmul.f32 %v5442, %v5452
    %5459 = vrot.lane.b32.xlu0 %v5455, 32
    %v5460 = vpop.permute.xlu0 %5459
    %5461 = vrot.lane.b32.xlu0 %v5456, 32
    %v5462 = vpop.permute.xlu0 %5461
    %v5465 = vadd.f32 %v5445, %v5460
    %v5466 = vadd.f32 %v5446, %v5462
    %v5467 = vtanh.pop %v5465
    %v5468 = vtanh.pop %v5466
    %5471 = vrot.lane.b32.xlu0 %v5467, 64
    %v5472 = vpop.permute.xlu0 %5471
    %5473 = vrot.lane.b32.xlu0 %v5468, 64
    %v5474 = vpop.permute.xlu0 %5473
    %v5477 = vmul.f32 %v5440, %v5472
    %v5478 = vmul.f32 %v5442, %v5474
    %v5481 = vrot.slane %v5478, 7
    %v5482 = vsel %vm525, %v5481, %v5477
    %5483 = vrot.lane.b32.xlu0 %v5482, 32
    %v5484 = vpop.permute.xlu0 %5483
    %v5485 = vsel %vm385, %v5484, 0
    %5487 = vmatprep.subr.mxu0 0.0
    %5488 = vmatpush1.msra.mxu0 0.0
    %5489 = vmatprep.subr.mxu0 0.0
    %5490 = vmatpush1.msra.mxu0 0.0
    %5491 = vmatprep.subr.mxu0 0.0
    %5492 = vmatpush1.msra.mxu0 0.0
    %5493 = vmatprep.subr.mxu0 0.0
    %5494 = vmatpush1.msra.mxu0 0.0
    %5495 = vmatprep.subr.mxu0 0.0
    %5496 = vmatpush1.msra.mxu0 0.0
    %5497 = vmatprep.subr.mxu0 0.0
    %5498 = vmatpush1.msra.mxu0 0.0
    %5499 = vmatprep.subr.mxu0 0.0
    %5500 = vmatpush1.msra.mxu0 0.0
    %5501 = vmatprep.subr.mxu0 0.0
    %5502 = vmatpush1.msra.mxu0 0.0
    %5503 = vmatprep.subr.mxu0 0.0
    %5504 = vmatpush1.msra.mxu0 0.0
    %5505 = vmatprep.subr.mxu0 0.0
    %5506 = vmatpush1.msra.mxu0 0.0
    %5507 = vmatprep.subr.mxu0 0.0
    %5508 = vmatpush1.msra.mxu0 0.0
    %5509 = vmatprep.subr.mxu0 0.0
    %5510 = vmatpush1.msra.mxu0 0.0
    %5511 = vmatprep.subr.mxu0 0.0
    %5512 = vmatpush1.msra.mxu0 %v208
    %5513 = vmatprep.subr.mxu0 0.0
    %5514 = vmatpush1.msra.mxu0 %v207
    %5515 = vmatprep.subr.mxu0 0.0
    %5516 = vmatpush1.msra.mxu0 %v206
    %5517 = vmatprep.subr.mxu0 0.0
    %5518 = vmatpush1.msra.mxu0 %v205
    %5519 = vmatprep.subr.mxu0 0.0
    %5520 = vmatpush2.msra.mxu0 0.0
    %5521 = vmatprep.subr.mxu0 0.0
    %5522 = vmatpush2.msra.mxu0 0.0
    %5523 = vmatprep.subr.mxu0 0.0
    %5524 = vmatpush2.msra.mxu0 0.0
    %5525 = vmatprep.subr.mxu0 0.0
    %5526 = vmatpush2.msra.mxu0 0.0
    %5527 = vmatprep.subr.mxu0 0.0
    %5528 = vmatpush2.msra.mxu0 0.0
    %5529 = vmatprep.subr.mxu0 0.0
    %5530 = vmatpush2.msra.mxu0 0.0
    %5531 = vmatprep.subr.mxu0 0.0
    %5532 = vmatpush2.msra.mxu0 0.0
    %5533 = vmatprep.subr.mxu0 0.0
    %5534 = vmatpush2.msra.mxu0 0.0
    %5535 = vmatprep.subr.mxu0 0.0
    %5536 = vmatpush2.msra.mxu0 0.0
    %5537 = vmatprep.subr.mxu0 0.0
    %5538 = vmatpush2.msra.mxu0 0.0
    %5539 = vmatprep.subr.mxu0 0.0
    %5540 = vmatpush2.msra.mxu0 0.0
    %5541 = vmatprep.subr.mxu0 0.0
    %5542 = vmatpush2.msra.mxu0 0.0
    %5543 = vmatprep.subr.mxu0 0.0
    %5544 = vmatpush2.msra.mxu0 0.0
    %5545 = vmatprep.subr.mxu0 0.0
    %5546 = vmatpush2.msra.mxu0 0.0
    %5547 = vmatprep.subr.mxu0 0.0
    %5548 = vmatpush2.msra.mxu0 0.0
    %5549 = vmatprep.subr.mxu0 0.0
    %5550 = vmatpush2.msra.mxu0 0.0
    %5551 = vmatprep.mubr.f32.mxu0 0.0
    %5552 = vmatmul.mubr.f32.gmra.mxu0 %v5485
    %v5553 = vpop.f32.mrf.mxu0
    %v5554 = vadd.f32 %v218, %v5553
    %v5555 = vpop.f32.mrf.mxu0
    %5556 = vdwg.mxu0
    %v5559 = vunpack.c.l.s4 1966171168
    %v5560 = vunpack.c.0.s8 %v5559
    %v5561 = vlaneseq
    %v5562 = vshrl.u32 %v5561, 7
    %v5563 = vsub.s32 %v5560, %v5562
    %v5564 = vrot.slane %v5554, %v5563
    %v5565 = vcombine.high %v5564, %v5564
    %v5567 = vunpack.c.l.s4 1966171168
    %v5568 = vunpack.c.0.s8 %v5567
    %v5569 = vlaneseq
    %v5570 = vshrl.u32 %v5569, 7
    %v5571 = vsub.s32 %v5568, %v5570
    %v5572 = vrot.slane %v5564, %v5571
    %v5574 = vunpack.c.l.s4 1966171168
    %v5575 = vunpack.c.0.s8 %v5574
    %v5576 = vlaneseq
    %v5577 = vshrl.u32 %v5576, 7
    %v5578 = vsub.s32 %v5575, %v5577
    %v5579 = vrot.slane %v5565, %v5578
    %v5580 = vlaneseq
    %v5581 = vshrl.u32 %v5580, 7
    %v5582 = vsub.s32 0, %v5581
    %v5583 = vrot.slane %v5572, %v5582
    %v5584 = vlaneseq
    %v5585 = vshrl.u32 %v5584, 7
    %v5586 = vsub.s32 0, %v5585
    %v5587 = vrot.slane %v5579, %v5586
    %v5590 = vadd.f32 %v5583, %v1619
    %v5591 = vadd.f32 %v5587, %v1622
    %v5592 = vtanh.pop %v5590
    %v5593 = vtanh.pop %v5591
    %v5594 = vmul.f32 %v5592, %v232
    %v5595 = vmul.f32 %v5593, %v232
    %v5596 = vsel %vm385, %v5594, 0.0
    %5597 = vadd.xlane.f32.xlu0 %v5596
    %v5598 = vpop.xlane.xlu0 %5597
    %v5599 = vsel %vm385, %v5595, 0.0
    %5600 = vadd.xlane.f32.xlu0 %v5599
    %v5601 = vpop.xlane.xlu0 %5600
    %vm5602 = vcmp.gt.f32.partialorder %v5322, 0.5
    %v5605 = vlaneseq
    %v5606 = vshrl.u32 %v5605, 7
    %v5607 = vsub.s32 %v1626, %v5606
    %v5608 = vrot.slane %v5598, %v5607
    %v5609 = vlaneseq
    %v5610 = vshrl.u32 %v5609, 7
    %v5611 = vsub.s32 %v1626, %v5610
    %v5612 = vrot.slane %v5601, %v5611
    %v5613 = vsel %vm525, %v5612, %v5608
    %v5615 = vsel %vm5602, -inf, %v5613
    %v5616 = vsel %vm1870, %v5615, -inf
    %5617 = vmax.xlane.f32.xlu0 %v5616
    %v5618 = vpop.xlane.xlu0 %5617
    %v5619 = vsub.f32 %v5615, %v5618
    %v5620 = vmul.f32 %v5619, 1.442695
    %v5621 = vpow.pop %v5620
    %v5622 = vsel %vm1870, %v5621, 0.0
    %5623 = vadd.xlane.f32.xlu0 %v5622
    %v5624 = vpop.xlane.xlu0 %5623
    %v5625 = vrcp.pop %v5624
    %v5626 = vmul.f32 %v5621, %v5625
    %v5627 = vlaneseq
    %v5628 = vshrl.u32 %v5627, 7
    %v5629 = vsub.s32 0, %v5628
    %v5630 = vrot.slane %v5626, %v5629
    %5632 = vbcast.lane.b32.xlu0 %v5630, 256
    %v5633 = vpop.permute.xlu0 %5632
    %v5634 = vlaneseq
    %v5635 = vshrl.u32 %v5634, 7
    %v5636 = vsub.s32 1, %v5635
    %v5637 = vrot.slane %v5626, %v5636
    %5639 = vbcast.lane.b32.xlu0 %v5637, 256
    %v5640 = vpop.permute.xlu0 %5639
    %v5641 = vmul.f32 %v1619, %v5633
    %v5642 = vmul.f32 %v1622, %v5640
    %v5643 = vsel %vm385, %v5641, 0.0
    %v5644 = vrot.slane %v5643, 4
    %v5645 = vadd.f32 %v5643, %v5644
    %v5646 = vrot.slane %v5645, 2
    %v5647 = vadd.f32 %v5645, %v5646
    %v5648 = vrot.slane %v5647, 1
    %v5649 = vadd.f32 %v5647, %v5648
    %v5650 = vsel %vm385, %v5642, 0.0
    %v5651 = vrot.slane %v5650, 4
    %v5652 = vadd.f32 %v5650, %v5651
    %v5653 = vrot.slane %v5652, 2
    %v5654 = vadd.f32 %v5652, %v5653
    %v5655 = vrot.slane %v5654, 1
    %v5656 = vadd.f32 %v5654, %v5655
    %v5659 = vsel %vm525, %v5656, %v5649
    %v5660 = vsel %vm385, %v5659, 0
    %5662 = vmatprep.subr.mxu0 0.0
    %5663 = vmatpush1.msra.mxu0 0.0
    %5664 = vmatprep.subr.mxu0 0.0
    %5665 = vmatpush1.msra.mxu0 0.0
    %5666 = vmatprep.subr.mxu0 0.0
    %5667 = vmatpush1.msra.mxu0 0.0
    %5668 = vmatprep.subr.mxu0 0.0
    %5669 = vmatpush1.msra.mxu0 0.0
    %5670 = vmatprep.subr.mxu0 0.0
    %5671 = vmatpush1.msra.mxu0 0.0
    %5672 = vmatprep.subr.mxu0 0.0
    %5673 = vmatpush1.msra.mxu0 0.0
    %5674 = vmatprep.subr.mxu0 0.0
    %5675 = vmatpush1.msra.mxu0 0.0
    %5676 = vmatprep.subr.mxu0 0.0
    %5677 = vmatpush1.msra.mxu0 0.0
    %5678 = vmatprep.subr.mxu0 0.0
    %5679 = vmatpush1.msra.mxu0 0.0
    %5680 = vmatprep.subr.mxu0 0.0
    %5681 = vmatpush1.msra.mxu0 0.0
    %5682 = vmatprep.subr.mxu0 0.0
    %5683 = vmatpush1.msra.mxu0 0.0
    %5684 = vmatprep.subr.mxu0 0.0
    %5685 = vmatpush1.msra.mxu0 0.0
    %5686 = vmatprep.subr.mxu0 0.0
    %5687 = vmatpush1.msra.mxu0 %v212
    %5688 = vmatprep.subr.mxu0 0.0
    %5689 = vmatpush1.msra.mxu0 %v211
    %5690 = vmatprep.subr.mxu0 0.0
    %5691 = vmatpush1.msra.mxu0 %v210
    %5692 = vmatprep.subr.mxu0 0.0
    %5693 = vmatpush1.msra.mxu0 %v209
    %5694 = vmatprep.subr.mxu0 0.0
    %5695 = vmatpush2.msra.mxu0 0.0
    %5696 = vmatprep.subr.mxu0 0.0
    %5697 = vmatpush2.msra.mxu0 0.0
    %5698 = vmatprep.subr.mxu0 0.0
    %5699 = vmatpush2.msra.mxu0 0.0
    %5700 = vmatprep.subr.mxu0 0.0
    %5701 = vmatpush2.msra.mxu0 0.0
    %5702 = vmatprep.subr.mxu0 0.0
    %5703 = vmatpush2.msra.mxu0 0.0
    %5704 = vmatprep.subr.mxu0 0.0
    %5705 = vmatpush2.msra.mxu0 0.0
    %5706 = vmatprep.subr.mxu0 0.0
    %5707 = vmatpush2.msra.mxu0 0.0
    %5708 = vmatprep.subr.mxu0 0.0
    %5709 = vmatpush2.msra.mxu0 0.0
    %5710 = vmatprep.subr.mxu0 0.0
    %5711 = vmatpush2.msra.mxu0 0.0
    %5712 = vmatprep.subr.mxu0 0.0
    %5713 = vmatpush2.msra.mxu0 0.0
    %5714 = vmatprep.subr.mxu0 0.0
    %5715 = vmatpush2.msra.mxu0 0.0
    %5716 = vmatprep.subr.mxu0 0.0
    %5717 = vmatpush2.msra.mxu0 0.0
    %5718 = vmatprep.subr.mxu0 0.0
    %5719 = vmatpush2.msra.mxu0 0.0
    %5720 = vmatprep.subr.mxu0 0.0
    %5721 = vmatpush2.msra.mxu0 0.0
    %5722 = vmatprep.subr.mxu0 0.0
    %5723 = vmatpush2.msra.mxu0 0.0
    %5724 = vmatprep.subr.mxu0 0.0
    %5725 = vmatpush2.msra.mxu0 0.0
    %5726 = vmatprep.mubr.f32.mxu0 0.0
    %5727 = vmatmul.mubr.f32.gmra.mxu0 %v5660
    %v5728 = vpop.f32.mrf.mxu0
    %v5729 = vadd.f32 %v225, %v5728
    %v5730 = vpop.f32.mrf.mxu0
    %5731 = vdwg.mxu0
    %v5734 = vunpack.c.l.s4 1966171168
    %v5735 = vunpack.c.0.s8 %v5734
    %v5736 = vlaneseq
    %v5737 = vshrl.u32 %v5736, 7
    %v5738 = vsub.s32 %v5735, %v5737
    %v5739 = vrot.slane %v5729, %v5738
    %v5740 = vcombine.high %v5739, %v5739
    %v5742 = vunpack.c.l.s4 1966171168
    %v5743 = vunpack.c.0.s8 %v5742
    %v5744 = vlaneseq
    %v5745 = vshrl.u32 %v5744, 7
    %v5746 = vsub.s32 %v5743, %v5745
    %v5747 = vrot.slane %v5739, %v5746
    %v5749 = vunpack.c.l.s4 1966171168
    %v5750 = vunpack.c.0.s8 %v5749
    %v5751 = vlaneseq
    %v5752 = vshrl.u32 %v5751, 7
    %v5753 = vsub.s32 %v5750, %v5752
    %v5754 = vrot.slane %v5740, %v5753
    %v5755 = vlaneseq
    %v5756 = vshrl.u32 %v5755, 7
    %v5757 = vsub.s32 0, %v5756
    %v5758 = vrot.slane %v5747, %v5757
    %v5759 = vlaneseq
    %v5760 = vshrl.u32 %v5759, 7
    %v5761 = vsub.s32 0, %v5760
    %v5762 = vrot.slane %v5754, %v5761
    %v5765 = vadd.f32 %v5758, %v2064
    %v5766 = vadd.f32 %v5762, %v2066
    %v5767 = vtanh.pop %v5765
    %v5768 = vtanh.pop %v5766
    %v5769 = vmul.f32 %v5767, %v239
    %v5770 = vmul.f32 %v5768, %v239
    %v5771 = vsel %vm385, %v5769, 0.0
    %5772 = vadd.xlane.f32.xlu0 %v5771
    %v5773 = vpop.xlane.xlu0 %5772
    %v5774 = vsel %vm385, %v5770, 0.0
    %5775 = vadd.xlane.f32.xlu0 %v5774
    %v5776 = vpop.xlane.xlu0 %5775
    %v5777 = vtanh.pop %v5773
    %v5778 = vtanh.pop %v5776
    %v5779 = vmul.f32 %v5777, 10.0
    %v5780 = vmul.f32 %v5778, 10.0
    %v5783 = vlaneseq
    %v5784 = vshrl.u32 %v5783, 7
    %v5785 = vsub.s32 %v1626, %v5784
    %v5786 = vrot.slane %v5779, %v5785
    %v5787 = vlaneseq
    %v5788 = vshrl.u32 %v5787, 7
    %v5789 = vsub.s32 %v1626, %v5788
    %v5790 = vrot.slane %v5780, %v5789
    %v5791 = vsel %vm525, %v5790, %v5786
    %v5793 = vsel %vm5602, -inf, %v5791
    %v5794 = vsel %vm1870, %v5793, -inf
    %5795 = vmax.xlane.f32.xlu0 %v5794
    %v5796 = vpop.xlane.xlu0 %5795
    %v5797 = vsub.f32 %v5793, %v5796
    %v5798 = vmul.f32 %v5797, 1.442695
    %v5799 = vpow.pop %v5798
    %v5800 = vsel %vm1870, %v5799, 0.0
    %5801 = vadd.xlane.f32.xlu0 %v5800
    %v5802 = vpop.xlane.xlu0 %5801
    %v5803 = vrcp.pop %v5802
    %v5804 = vmul.f32 %v5799, %v5803
    %s5805 = scalar_lea.vmem [#allocation3], 14
    %v5806 = vld [vmem:[%s5805] sm:$0x3]
    %v5807 = vadd.f32 %v5793, %v5806
    %v5808 = vsel %vm1870, %v5807, -inf
    %5809 = vmax.xlane.f32.xlu0 %v5808
    %v5810 = vpop.xlane.xlu0 %5809
    %vm5811 = vcmp.ge.f32.partialorder %v5807, %v5810
    %v5812 = vsel %vm5811, %v1626, 8
    %v5813 = vsel %vm1870, %v5812, 2147483647
    %v5814 = vand.u32 %v5813, 65535
    %v5815 = vshra.s32 %v5813, 16
    %v5816 = vcvt.s32.f32 %v5814
    %v5817 = vcvt.s32.f32 %v5815
    %5818 = vmin.xlane.f32.xlu0 %v5817
    %v5819 = vpop.xlane.xlu0 %5818
    %vm5820 = vcmp.eq.f32.partialorder %v5817, %v5819
    %v5821 = vsel %vm5820, %v5816, inf
    %5822 = vmin.xlane.f32.xlu0 %v5821
    %v5823 = vpop.xlane.xlu0 %5822
    %v5824 = vcvt.f32.s32 %v5823
    %v5825 = vcvt.f32.s32 %v5819
    %v5826 = vshll.u32 %v5825, 16
    %v5827 = vadd.s32 %v5826, %v5824
    %s5828 = scalar_lea.vmem [#allocation17], 14
    %5829 = vst.msk [vmem:[%s5828] sm:$0x3] %vm1870, %v5804
    %s5830 = scalar_lea.vmem %s17, 14
    %5831 = vst.msk [vmem:[%s5830] sm:$0x3] %vm2295, %v5827
    // Predicated region
    $region98: #{tpu_custom_call.1} parent=1 // pred_check
      _
    $region99: #{tpu_custom_call.1} parent=1 // pred_check_branch
      %5833 = sbr.rel (0) target = $region101
    $region100: #{tpu_custom_call.1} parent=1 // pred_region
      %s5835 = ssub.s32 256, 256
      %5836 = vsyncadd [#allocation5], %s5835
      %s5837 = sshll.u32 [#allocation17], 4
      %s5838 = int_to_ptr.vmem [resolvable:$true] %s5837
      %5843 = dma.vmem_to_hbm [thread:$0]  %s5838, 256, %s16, [#allocation5], 32, 32, 2
    $region101: #{tpu_custom_call.1} parent=1 // pred_fallthru
      _
    // Predicated region
    $region102: #{tpu_custom_call.1} parent=1 // pred_check
      _
    $region103: #{tpu_custom_call.1} parent=1 // pred_check_branch
      %5845 = sbr.rel (0) target = $region105
    $region104: #{tpu_custom_call.1} parent=1 // pred_region
      _
    $region105: #{tpu_custom_call.1} parent=1 // pred_fallthru
      _
    // Predicated region
    $region106: #{tpu_custom_call.1} parent=1 // pred_check
      _
    $region107: #{tpu_custom_call.1} parent=1 // pred_check_branch
      %5847 = sbr.rel (0) target = $region109
    $region108: #{tpu_custom_call.1} parent=1 // pred_region
      %5848 = dma.done [#allocation5], 256
    $region109: #{tpu_custom_call.1} parent=1 // pred_fallthru
      _
    // Predicated region
    $region110: #{tpu_custom_call.1} parent=1 // pred_check
      _
    $region111: #{tpu_custom_call.1} parent=1 // pred_check_branch
      %5850 = sbr.rel (0) target = $region113
    $region112: #{tpu_custom_call.1} parent=1 // pred_region
      _
    $region113: #{tpu_custom_call.1} parent=1 // pred_fallthru
      _
    %5851 = vsyncpa [#allocation4], 1
    %5852 = vsyncpa [#allocation7], 1
    %5853 = vsyncpa [#allocation10], 1
    %5854 = vsyncpa [#allocation13], 1
    %5855 = vsyncpa [#allocation16], 1
    %5856 = vsyncpa [#allocation5], 1

</llo_original>
